<compile_context>
chip_gen: v6e
topology: v6e:2x2x1
jax: 0.10.0
libtpu: 0.0.40
codegen_flags: <defaults>
</compile_context>

<pallas_src>
import functools

import jax
import jax.numpy as jnp
from jax import lax
from jax.experimental import pallas as pl
from jax.experimental.pallas import tpu as pltpu

# ---------------- small synthetic model dims ----------------
V = 50          # vocab size
VPAD = 128      # vocab padded to a full lane tile for the head matmul
C = 32          # n_embd
H = 2           # n_head
N = C // H      # head_size = 16
NLAYER = 2
T = 8           # sequence length
D_W, D_A, D_V, D_G = 16, 16, 8, 16   # LoRA dims (decay, a, v, gate)
LORA_SLOT = 16                       # fused-projection slot width per LoRA
FFN = 4 * C

_VMEM = pl.BlockSpec(memory_space=pltpu.MemorySpace.VMEM)

# row indices of the per-block 1-D parameters stacked into one (19, C) array
(_LN1W, _LN1B, _LN2W, _LN2B, _W0, _A0, _V0, _KK, _KA, _RK,
 _LNXW, _LNXB, _XKF, _XR, _XW, _XK, _XV, _XA, _XG) = range(19)


# ---------------- fused per-layer Pallas kernel ----------------
def _block_kernel(x_ref, vf_ref, sh0_ref, sh2_ref, s0_ref, vecs_ref,
                  w1_ref, w2_ref, wo_ref, wkf_ref, wvf_ref,
                  ones_ref, eye_ref,
                  xo_ref, vfo_ref, sh0o_ref, sh2o_ref, sTo_ref,
                  *, first_layer: bool):
    f32 = jnp.float32
    x = x_ref[...]                       # (T, C) residual stream
    Tt, Cc = x.shape
    Nn = s0_ref.shape[0]                 # head_size (sublane axis of packed S)
    vecs = vecs_ref[...]

    def vrow(i):                         # (1, C) parameter row
        return vecs[i:i + 1, :]

    ones_blk = ones_ref[...]             # (C, C) block-diag ones (per head)
    eye_t = eye_ref[...]                 # (N, C) identity tiled over heads

    def lnorm(z, wgt, bias, eps=1e-5):
        mu = jnp.mean(z, axis=-1, keepdims=True)
        var = jnp.mean((z - mu) ** 2, axis=-1, keepdims=True)
        return (z - mu) / jnp.sqrt(var + eps) * wgt + bias

    # token-shift as a tiny matmul (no unaligned sublane concatenation)
    ri = lax.broadcasted_iota(jnp.int32, (Tt, Tt), 0)
    ci = lax.broadcasted_iota(jnp.int32, (Tt, Tt), 1)
    shift_mat = (ri == ci + 1).astype(f32)                        # (T, T)
    row0 = (lax.broadcasted_iota(jnp.int32, (Tt, Cc), 0) == 0).astype(f32)

    # -------- time mixing --------
    xn1 = lnorm(x, vrow(_LN1W), vrow(_LN1B))
    xprev1 = (jnp.dot(shift_mat, xn1, preferred_element_type=f32)
              + row0 * sh0_ref[...])
    xx1 = xprev1 - xn1

    # fused projection #1: [ r | k | v | w-lora | a-lora | g-lora | v-lora ]
    x1s = jnp.concatenate(
        [xn1 + xx1 * vrow(_XR), xn1 + xx1 * vrow(_XW), xn1 + xx1 * vrow(_XK),
         xn1 + xx1 * vrow(_XV), xn1 + xx1 * vrow(_XA), xn1 + xx1 * vrow(_XG)],
        axis=0)                                                   # (6T, C)
    p1 = jnp.dot(x1s, w1_ref[...], preferred_element_type=f32)    # (6T, 3C+64)
    base = 3 * Cc
    r = p1[0 * Tt:1 * Tt, 0:Cc]
    hw = p1[1 * Tt:2 * Tt, base:base + LORA_SLOT]
    k = p1[2 * Tt:3 * Tt, Cc:2 * Cc]
    v = p1[3 * Tt:4 * Tt, 2 * Cc:3 * Cc]
    hv = p1[3 * Tt:4 * Tt, base + 3 * LORA_SLOT:base + 4 * LORA_SLOT]
    ha = p1[4 * Tt:5 * Tt, base + LORA_SLOT:base + 2 * LORA_SLOT]
    hg = p1[5 * Tt:6 * Tt, base + 2 * LORA_SLOT:base + 3 * LORA_SLOT]

    # fused projection #2: the four LoRA up-projections (128-lane output)
    x2s = jnp.concatenate(
        [jnp.tanh(hw), ha, jax.nn.sigmoid(hg), hv], axis=0)       # (4T, 16)
    p2 = jnp.dot(x2s, w2_ref[...], preferred_element_type=f32)    # (4T, 4C)
    w_pre = p2[0 * Tt:1 * Tt, 0:Cc]
    a_pre = p2[1 * Tt:2 * Tt, Cc:2 * Cc]
    g = p2[2 * Tt:3 * Tt, 2 * Cc:3 * Cc]
    v_pre = p2[3 * Tt:4 * Tt, 3 * Cc:4 * Cc]

    w = jnp.exp(-0.606531 * jax.nn.sigmoid(vrow(_W0) + w_pre))    # (T, C)
    a = jax.nn.sigmoid(vrow(_A0) + a_pre)                         # (T, C)

    # per-head L2-normalised kk (block-diag ones matmul == segmented reduce)
    kk = k * vrow(_KK)
    ss_b = jnp.dot(kk * kk, ones_blk, preferred_element_type=f32)
    kk = kk / jnp.maximum(jnp.sqrt(ss_b), 1e-12)
    k = k * (1.0 + (a - 1.0) * vrow(_KA))

    if first_layer:
        v_first = v
    else:
        v_first = vf_ref[...]
        v = v + (v_first - v) * jax.nn.sigmoid(vrow(_V0) + v_pre)
    vfo_ref[...] = v_first

    # -------- WKV7 recurrence, heads folded into the lane axis --------
    # S: (N_v, H*N_k).  Per-head reductions / broadcasts via block-diag ones.
    neg_kk = -kk                                                  # (T, C)
    kk_a = kk * a                                                 # (T, C)
    vsel = eye_t[None, :, :] * v[:, None, :]                      # (T, N, C)
    v_b = jnp.dot(vsel.reshape(Tt * Nn, Cc), ones_blk,
                  preferred_element_type=f32).reshape(Tt, Nn, Cc)
    vk = v_b * k[:, None, :]                                      # (T, N, C)

    S = s0_ref[...]                                               # (N, C)
    ybs = []
    for t in range(Tt):                                           # unrolled
        sa_b = jnp.dot(S * neg_kk[t:t + 1, :], ones_blk,
                       preferred_element_type=f32)                # (N, C)
        S = S * w[t:t + 1, :] + sa_b * kk_a[t:t + 1, :] + vk[t]
        ybs.append(jnp.dot(S * r[t:t + 1, :], ones_blk,
                           preferred_element_type=f32))           # (N, C)
    sTo_ref[...] = S
    yb = jnp.stack(ybs, axis=0)                                   # (T, N, C)
    y = jnp.sum(eye_t[None, :, :] * yb, axis=1)                   # (T, C)

    # -------- per-head group norm + r*k bonus + output projection --------
    inv_n = 1.0 / Nn
    mu_b = jnp.dot(y, ones_blk, preferred_element_type=f32) * inv_n
    d = y - mu_b
    var_b = jnp.dot(d * d, ones_blk, preferred_element_type=f32) * inv_n
    out = d / jnp.sqrt(var_b + 64e-5) * vrow(_LNXW) + vrow(_LNXB)
    rk_b = jnp.dot(r * k * vrow(_RK), ones_blk, preferred_element_type=f32)
    out = out + rk_b * v
    x = x + jnp.dot(out * g, wo_ref[...], preferred_element_type=f32)

    # -------- channel mixing --------
    xn2 = lnorm(x, vrow(_LN2W), vrow(_LN2B))
    xprev2 = (jnp.dot(shift_mat, xn2, preferred_element_type=f32)
              + row0 * sh2_ref[...])
    kx = xn2 + (xprev2 - xn2) * vrow(_XKF)
    hmid = jnp.square(jnp.maximum(
        jnp.dot(kx, wkf_ref[...], preferred_element_type=f32), 0.0))
    x = x + jnp.dot(hmid, wvf_ref[...], preferred_element_type=f32)

    xo_ref[...] = x
    sh0o_ref[...] = xn1[Tt - 1:Tt, :]
    sh2o_ref[...] = xn2[Tt - 1:Tt, :]


def rwkv_block(x, v_first, shift0, shift2, s_packed, bp, ones_blk, eye_t,
               *, first_layer):
    Tt, Cc = x.shape
    Nn = s_packed.shape[0]
    kern = functools.partial(_block_kernel, first_layer=first_layer)
    out_shape = (
        jax.ShapeDtypeStruct((Tt, Cc), jnp.float32),   # new residual stream
        jax.ShapeDtypeStruct((Tt, Cc), jnp.float32),   # v_first (set / passthru)
        jax.ShapeDtypeStruct((1, Cc), jnp.float32),    # time-mix shift state
        jax.ShapeDtypeStruct((1, Cc), jnp.float32),    # channel-mix shift state
        jax.ShapeDtypeStruct((Nn, Cc), jnp.float32),   # packed WKV state
    )
    return pl.pallas_call(
        kern,
        out_shape=out_shape,
        in_specs=[_VMEM] * 13,
        out_specs=(_VMEM,) * 5,
    )(x, v_first, shift0, shift2, s_packed, bp['vecs'], bp['w1cat'],
      bp['w2cat'], bp['wo'], bp['wk_ffn'], bp['wv_ffn'], ones_blk, eye_t)


# ---------------- head kernel (last token only, 128-lane padded vocab) -------
def _head_kernel(x_ref, lnw_ref, lnb_ref, head_ref, o_ref):
    x = x_ref[...]                                     # (1, C)
    mu = jnp.mean(x, axis=-1, keepdims=True)
    var = jnp.mean((x - mu) ** 2, axis=-1, keepdims=True)
    xn = (x - mu) / jnp.sqrt(var + 1e-5) * lnw_ref[...] + lnb_ref[...]
    o_ref[...] = jnp.dot(xn, head_ref[...], preferred_element_type=jnp.float32)


def head_logits(x_last, lnw, lnb, head_pad):
    return pl.pallas_call(
        _head_kernel,
        out_shape=jax.ShapeDtypeStruct((1, head_pad.shape[1]), jnp.float32),
        in_specs=[_VMEM] * 4,
        out_specs=_VMEM,
    )(x_last, lnw, lnb, head_pad)


# ---------------- plain-JAX glue ----------------
def layer_norm(x, w, b, eps=1e-5):
    mu = x.mean(-1, keepdims=True)
    var = ((x - mu) ** 2).mean(-1, keepdims=True)
    return (x - mu) / jnp.sqrt(var + eps) * w + b


def forward_seq(prep, idx, state0, state1, state2):
    # TODO(synk): embedding row-gather + the initial LayerNorm stay in plain
    # JAX (data-dependent gather; XLA fuses it into a single op).
    x = prep['emb'][idx]                                          # (T, C)
    x = layer_norm(x, prep['ln0_w'], prep['ln0_b'])
    v_first = jnp.zeros_like(x)
    new0, new1, new2 = [], [], []
    for i in range(NLAYER):
        # pack the WKV state: (H, N_v, N_k) -> (N_v, H*N_k)  (heads on lanes)
        s_packed = state1[i].transpose(1, 0, 2).reshape(N, H * N)
        x, v_first, sh0, sh2, s_t = rwkv_block(
            x, v_first, state0[i][None, :], state2[i][None, :], s_packed,
            prep['blocks'][i], prep['ones_blk'], prep['eye_t'],
            first_layer=(i == 0))
        new0.append(sh0[0])
        new1.append(s_t.reshape(N, H, N).transpose(1, 0, 2))
        new2.append(sh2[0])
    logits = head_logits(x[-1:], prep['lnout_w'], prep['lnout_b'],
                         prep['head_pad'])[0, :V]
    return logits, new0, new1, new2


# ---------------- deterministic parameter init ----------------
def init_params(key):
    ks = iter(jax.random.split(key, 512))

    def nrm(shape, s=0.1):
        return (s * jax.random.normal(next(ks), shape)).astype(jnp.float32)

    def unif(shape, lo=0.0, hi=1.0):
        return jax.random.uniform(next(ks), shape, jnp.float32, lo, hi)

    ones = lambda s: jnp.ones(s, jnp.float32)
    zeros = lambda s: jnp.zeros(s, jnp.float32)

    params = dict(
        emb=nrm((V, C), 0.5),
        ln0_w=ones((C,)), ln0_b=zeros((C,)),
        lnout_w=ones((C,)), lnout_b=zeros((C,)),
        head=nrm((C, V), 0.2),
        blocks=[],
    )
    for i in range(NLAYER):
        blk = dict(
            ln1_w=ones((C,)), ln1_b=zeros((C,)),
            ln2_w=ones((C,)), ln2_b=zeros((C,)),
            x_r=unif((C,)), x_w=unif((C,)), x_k=unif((C,)),
            x_v=unif((C,)), x_a=unif((C,)), x_g=unif((C,)),
            Wr=nrm((C, C)), Wk=nrm((C, C)), Wv=nrm((C, C)), Wo=nrm((C, C)),
            w0=nrm((C,), 0.3), w1=nrm((C, D_W)), w2=nrm((D_W, C)),
            a0=nrm((C,), 0.3), a1=nrm((C, D_A)), a2=nrm((D_A, C)),
            g1=nrm((C, D_G)), g2=nrm((D_G, C)),
            k_k=unif((C,), 0.5, 1.0), k_a=unif((C,), 0.5, 1.0),
            r_k=nrm((H, N), 0.3),
            ln_x_w=ones((C,)), ln_x_b=zeros((C,)),
            xk_ffn=unif((C,)),
            Wk_ffn=nrm((C, FFN)), Wv_ffn=nrm((FFN, C)),
        )
        if i > 0:
            blk.update(v0=nrm((C,), 0.3), v1=nrm((C, D_V)), v2=nrm((D_V, C)))
        params['blocks'].append(blk)
    return params


def prepare_params(params):
    """One-time repack: fused projection weights, lane-packing helpers."""
    f32 = jnp.float32
    ones_blk = jnp.kron(jnp.eye(H, dtype=f32), jnp.ones((N, N), f32))  # (C, C)
    eye_t = jnp.tile(jnp.eye(N, dtype=f32), (1, H))                    # (N, C)
    head_pad = jnp.zeros((C, VPAD), f32).at[:, :V].set(params['head'])

    def pad_cols(wm, width):
        return jnp.zeros((wm.shape[0], width), f32).at[:, :wm.shape[1]].set(wm)

    def pad_rows(wm, height):
        return jnp.zeros((height, wm.shape[1]), f32).at[:wm.shape[0], :].set(wm)

    blocks = []
    for i, blk in enumerate(params['blocks']):
        v0 = blk['v0'] if i > 0 else jnp.zeros((C,), f32)
        v1 = blk['v1'] if i > 0 else jnp.zeros((C, D_V), f32)
        v2 = blk['v2'] if i > 0 else jnp.zeros((D_V, C), f32)
        w1cat = jnp.concatenate(
            [blk['Wr'], blk['Wk'], blk['Wv'],
             pad_cols(blk['w1'], LORA_SLOT), pad_cols(blk['a1'], LORA_SLOT),
             pad_cols(blk['g1'], LORA_SLOT), pad_cols(v1, LORA_SLOT)],
            axis=1)                                           # (C, 3C + 64)
        w2cat = jnp.concatenate(
            [pad_rows(blk['w2'], LORA_SLOT), pad_rows(blk['a2'], LORA_SLOT),
             pad_rows(blk['g2'], LORA_SLOT), pad_rows(v2, LORA_SLOT)],
            axis=1)                                           # (16, 4C)
        vecs = jnp.stack(
            [blk['ln1_w'], blk['ln1_b'], blk['ln2_w'], blk['ln2_b'],
             blk['w0'], blk['a0'], v0,
             blk['k_k'], blk['k_a'], blk['r_k'].reshape(-1),
             blk['ln_x_w'], blk['ln_x_b'], blk['xk_ffn'],
             blk['x_r'], blk['x_w'], blk['x_k'],
             blk['x_v'], blk['x_a'], blk['x_g']], axis=0)     # (19, C)
        blocks.append(dict(vecs=vecs, w1cat=w1cat, w2cat=w2cat, wo=blk['Wo'],
                           wk_ffn=blk['Wk_ffn'], wv_ffn=blk['Wv_ffn']))
    return dict(blocks=blocks, ones_blk=ones_blk, eye_t=eye_t,
                head_pad=head_pad, emb=params['emb'],
                ln0_w=params['ln0_w'], ln0_b=params['ln0_b'],
                lnout_w=params['lnout_w'][None, :],
                lnout_b=params['lnout_b'][None, :])


if __name__ == "__main__":
    key = jax.random.PRNGKey(0)
    pkey, ikey = jax.random.split(key)
    params = init_params(pkey)
    prep = prepare_params(params)

    idx = jax.random.randint(ikey, (T,), 0, V, dtype=jnp.int32)
    state0 = [jnp.zeros((C,), jnp.float32) for _ in range(NLAYER)]
    state1 = [jnp.zeros((H, N, N), jnp.float32) for _ in range(NLAYER)]
    state2 = [jnp.zeros((C,), jnp.float32) for _ in range(NLAYER)]

    fwd = jax.jit(forward_seq)
    logits, s0n, s1n, s2n = fwd(prep, idx, state0, state1, state2)
    jax.block_until_ready((logits, s0n, s1n, s2n))

    assert logits.shape == (V,)
    assert all(s.shape == (C,) for s in s0n)
    assert all(s.shape == (H, N, N) for s in s1n)
    assert all(s.shape == (C,) for s in s2n)
    assert bool(jnp.all(jnp.isfinite(logits)))
    print("KERNEL_OK")
</pallas_src>

<mosaic_0001>
module attributes {stable_mosaic.version = 11 : i64} {
  func.func @_head_kernel(%arg0: memref<1x32xf32, #tpu.memory_space<vmem>>, %arg1: memref<1x32xf32, #tpu.memory_space<vmem>>, %arg2: memref<1x32xf32, #tpu.memory_space<vmem>>, %arg3: memref<32x128xf32, #tpu.memory_space<vmem>>, %arg4: memref<1x128xf32, #tpu.memory_space<vmem>>) attributes {dimension_semantics = [], scalar_prefetch = 0 : i64, scratch_operands = 0 : i64, tpu.core_type = #tpu.core_type<tc>} {
    %c0 = arith.constant 0 : index
    %c0_0 = arith.constant 0 : index
    %0 = vector.load %arg0[%c0, %c0_0] : memref<1x32xf32, #tpu.memory_space<vmem>>, vector<1x32xf32>
    %cst = arith.constant dense<0.000000e+00> : vector<1xf32>
    %1 = vector.multi_reduction <add>, %0, %cst [1] : vector<1x32xf32> to vector<1xf32>
    %2 = vector.shape_cast %1 : vector<1xf32> to vector<1x1xf32>
    %cst_1 = arith.constant 3.200000e+01 : f32
    %3 = vector.broadcast %cst_1 : f32 to vector<1x1xf32>
    %4 = arith.divf %2, %3 : vector<1x1xf32>
    %5 = vector.broadcast %4 : vector<1x1xf32> to vector<1x32xf32>
    %6 = arith.subf %0, %5 : vector<1x32xf32>
    %7 = arith.mulf %6, %6 : vector<1x32xf32>
    %cst_2 = arith.constant dense<0.000000e+00> : vector<1xf32>
    %8 = vector.multi_reduction <add>, %7, %cst_2 [1] : vector<1x32xf32> to vector<1xf32>
    %9 = vector.shape_cast %8 : vector<1xf32> to vector<1x1xf32>
    %cst_3 = arith.constant 3.200000e+01 : f32
    %10 = vector.broadcast %cst_3 : f32 to vector<1x1xf32>
    %11 = arith.divf %9, %10 : vector<1x1xf32>
    %12 = vector.broadcast %4 : vector<1x1xf32> to vector<1x32xf32>
    %13 = arith.subf %0, %12 : vector<1x32xf32>
    %cst_4 = arith.constant 9.99999974E-6 : f32
    %14 = vector.broadcast %cst_4 : f32 to vector<1x1xf32>
    %15 = arith.addf %11, %14 : vector<1x1xf32>
    %16 = math.sqrt %15 : vector<1x1xf32>
    %17 = vector.broadcast %16 : vector<1x1xf32> to vector<1x32xf32>
    %18 = arith.divf %13, %17 : vector<1x32xf32>
    %c0_5 = arith.constant 0 : index
    %c0_6 = arith.constant 0 : index
    %19 = vector.load %arg1[%c0_5, %c0_6] : memref<1x32xf32, #tpu.memory_space<vmem>>, vector<1x32xf32>
    %20 = arith.mulf %18, %19 : vector<1x32xf32>
    %c0_7 = arith.constant 0 : index
    %c0_8 = arith.constant 0 : index
    %21 = vector.load %arg2[%c0_7, %c0_8] : memref<1x32xf32, #tpu.memory_space<vmem>>, vector<1x32xf32>
    %22 = arith.addf %20, %21 : vector<1x32xf32>
    %c0_9 = arith.constant 0 : index
    %c0_10 = arith.constant 0 : index
    %23 = vector.load %arg3[%c0_9, %c0_10] : memref<32x128xf32, #tpu.memory_space<vmem>>, vector<32x128xf32>
    %cst_11 = arith.constant dense<0.000000e+00> : vector<1x128xf32>
    %24 = tpu.matmul %22, %23, %cst_11 {dimension_numbers = #tpu.dot_dimension_numbers<[1], [0], [0], [1], [0, 0, 1, 1], [], []>} : vector<1x32xf32>, vector<32x128xf32>, vector<1x128xf32> -> vector<1x128xf32>
    %c0_12 = arith.constant 0 : index
    %c0_13 = arith.constant 0 : index
    %25 = vector.load %arg4[%c0_12, %c0_13] : memref<1x128xf32, #tpu.memory_space<vmem>>, vector<1x128xf32>
    tpu.vector_store %arg4[%c0_12, %c0_13], %24 {strides = array<i32>} : memref<1x128xf32, #tpu.memory_space<vmem>>, vector<1x128xf32>,
    return
  }
}

module attributes {stable_mosaic.version = 11 : i64} {
  func.func @_block_kernel(%arg0: memref<8x32xf32, #tpu.memory_space<vmem>>, %arg1: memref<8x32xf32, #tpu.memory_space<vmem>>, %arg2: memref<1x32xf32, #tpu.memory_space<vmem>>, %arg3: memref<1x32xf32, #tpu.memory_space<vmem>>, %arg4: memref<16x32xf32, #tpu.memory_space<vmem>>, %arg5: memref<19x32xf32, #tpu.memory_space<vmem>>, %arg6: memref<32x160xf32, #tpu.memory_space<vmem>>, %arg7: memref<16x128xf32, #tpu.memory_space<vmem>>, %arg8: memref<32x32xf32, #tpu.memory_space<vmem>>, %arg9: memref<32x128xf32, #tpu.memory_space<vmem>>, %arg10: memref<128x32xf32, #tpu.memory_space<vmem>>, %arg11: memref<32x32xf32, #tpu.memory_space<vmem>>, %arg12: memref<16x32xf32, #tpu.memory_space<vmem>>, %arg13: memref<8x32xf32, #tpu.memory_space<vmem>>, %arg14: memref<8x32xf32, #tpu.memory_space<vmem>>, %arg15: memref<1x32xf32, #tpu.memory_space<vmem>>, %arg16: memref<1x32xf32, #tpu.memory_space<vmem>>, %arg17: memref<16x32xf32, #tpu.memory_space<vmem>>) attributes {dimension_semantics = [], scalar_prefetch = 0 : i64, scratch_operands = 0 : i64, tpu.core_type = #tpu.core_type<tc>} {
    %c0 = arith.constant 0 : index
    %c0_0 = arith.constant 0 : index
    %0 = vector.load %arg0[%c0, %c0_0] : memref<8x32xf32, #tpu.memory_space<vmem>>, vector<8x32xf32>
    %c0_1 = arith.constant 0 : index
    %c0_2 = arith.constant 0 : index
    %1 = vector.load %arg5[%c0_1, %c0_2] : memref<19x32xf32, #tpu.memory_space<vmem>>, vector<19x32xf32>
    %c0_3 = arith.constant 0 : index
    %c0_4 = arith.constant 0 : index
    %2 = vector.load %arg11[%c0_3, %c0_4] : memref<32x32xf32, #tpu.memory_space<vmem>>, vector<32x32xf32>
    %c0_5 = arith.constant 0 : index
    %c0_6 = arith.constant 0 : index
    %3 = vector.load %arg12[%c0_5, %c0_6] : memref<16x32xf32, #tpu.memory_space<vmem>>, vector<16x32xf32>
    %4 = tpu.iota {dimensions = array<i32: 0>} : vector<8x8xi32>
    %5 = tpu.iota {dimensions = array<i32: 1>} : vector<8x8xi32>
    %c1_i32 = arith.constant 1 : i32
    %6 = vector.broadcast %c1_i32 : i32 to vector<8x8xi32>
    %7 = arith.addi %5, %6 : vector<8x8xi32>
    %8 = arith.cmpi eq, %4, %7 : vector<8x8xi32>
    %9 = arith.extui %8 : vector<8x8xi1> to vector<8x8xi32>
    %10 = arith.sitofp %9 : vector<8x8xi32> to vector<8x8xf32>
    %11 = tpu.iota {dimensions = array<i32: 0>} : vector<8x32xi32>
    %c0_i32 = arith.constant 0 : i32
    %12 = vector.broadcast %c0_i32 : i32 to vector<8x32xi32>
    %13 = arith.cmpi eq, %11, %12 : vector<8x32xi32>
    %14 = arith.extui %13 : vector<8x32xi1> to vector<8x32xi32>
    %15 = arith.sitofp %14 : vector<8x32xi32> to vector<8x32xf32>
    %16 = vector.extract_strided_slice %1 {offsets = [0, 0], sizes = [1, 32], strides = [1, 1]} : vector<19x32xf32> to vector<1x32xf32>
    %17 = vector.extract_strided_slice %1 {offsets = [1, 0], sizes = [1, 32], strides = [1, 1]} : vector<19x32xf32> to vector<1x32xf32>
    %cst = arith.constant dense<0.000000e+00> : vector<8xf32>
    %18 = vector.multi_reduction <add>, %0, %cst [1] : vector<8x32xf32> to vector<8xf32>
    %19 = vector.shape_cast %18 : vector<8xf32> to vector<8x1xf32>
    %cst_7 = arith.constant 3.200000e+01 : f32
    %20 = vector.broadcast %cst_7 : f32 to vector<8x1xf32>
    %21 = arith.divf %19, %20 : vector<8x1xf32>
    %22 = vector.broadcast %21 : vector<8x1xf32> to vector<8x32xf32>
    %23 = arith.subf %0, %22 : vector<8x32xf32>
    %24 = arith.mulf %23, %23 : vector<8x32xf32>
    %cst_8 = arith.constant dense<0.000000e+00> : vector<8xf32>
    %25 = vector.multi_reduction <add>, %24, %cst_8 [1] : vector<8x32xf32> to vector<8xf32>
    %26 = vector.shape_cast %25 : vector<8xf32> to vector<8x1xf32>
    %cst_9 = arith.constant 3.200000e+01 : f32
    %27 = vector.broadcast %cst_9 : f32 to vector<8x1xf32>
    %28 = arith.divf %26, %27 : vector<8x1xf32>
    %29 = vector.broadcast %21 : vector<8x1xf32> to vector<8x32xf32>
    %30 = arith.subf %0, %29 : vector<8x32xf32>
    %cst_10 = arith.constant 9.99999974E-6 : f32
    %31 = vector.broadcast %cst_10 : f32 to vector<8x1xf32>
    %32 = arith.addf %28, %31 : vector<8x1xf32>
    %33 = math.sqrt %32 : vector<8x1xf32>
    %34 = vector.broadcast %33 : vector<8x1xf32> to vector<8x32xf32>
    %35 = arith.divf %30, %34 : vector<8x32xf32>
    %36 = vector.broadcast %16 : vector<1x32xf32> to vector<8x32xf32>
    %37 = arith.mulf %35, %36 : vector<8x32xf32>
    %38 = vector.broadcast %17 : vector<1x32xf32> to vector<8x32xf32>
    %39 = arith.addf %37, %38 : vector<8x32xf32>
    %cst_11 = arith.constant dense<0.000000e+00> : vector<8x32xf32>
    %40 = tpu.matmul %10, %39, %cst_11 {dimension_numbers = #tpu.dot_dimension_numbers<[1], [0], [0], [1], [0, 0, 1, 1], [], []>} : vector<8x8xf32>, vector<8x32xf32>, vector<8x32xf32> -> vector<8x32xf32>
    %c0_12 = arith.constant 0 : index
    %c0_13 = arith.constant 0 : index
    %41 = vector.load %arg2[%c0_12, %c0_13] : memref<1x32xf32, #tpu.memory_space<vmem>>, vector<1x32xf32>
    %42 = vector.broadcast %41 : vector<1x32xf32> to vector<8x32xf32>
    %43 = arith.mulf %15, %42 : vector<8x32xf32>
    %44 = arith.addf %40, %43 : vector<8x32xf32>
    %45 = arith.subf %44, %39 : vector<8x32xf32>
    %46 = vector.extract_strided_slice %1 {offsets = [13, 0], sizes = [1, 32], strides = [1, 1]} : vector<19x32xf32> to vector<1x32xf32>
    %47 = vector.broadcast %46 : vector<1x32xf32> to vector<8x32xf32>
    %48 = arith.mulf %45, %47 : vector<8x32xf32>
    %49 = arith.addf %39, %48 : vector<8x32xf32>
    %50 = vector.extract_strided_slice %1 {offsets = [14, 0], sizes = [1, 32], strides = [1, 1]} : vector<19x32xf32> to vector<1x32xf32>
    %51 = vector.broadcast %50 : vector<1x32xf32> to vector<8x32xf32>
    %52 = arith.mulf %45, %51 : vector<8x32xf32>
    %53 = arith.addf %39, %52 : vector<8x32xf32>
    %54 = vector.extract_strided_slice %1 {offsets = [15, 0], sizes = [1, 32], strides = [1, 1]} : vector<19x32xf32> to vector<1x32xf32>
    %55 = vector.broadcast %54 : vector<1x32xf32> to vector<8x32xf32>
    %56 = arith.mulf %45, %55 : vector<8x32xf32>
    %57 = arith.addf %39, %56 : vector<8x32xf32>
    %58 = vector.extract_strided_slice %1 {offsets = [16, 0], sizes = [1, 32], strides = [1, 1]} : vector<19x32xf32> to vector<1x32xf32>
    %59 = vector.broadcast %58 : vector<1x32xf32> to vector<8x32xf32>
    %60 = arith.mulf %45, %59 : vector<8x32xf32>
    %61 = arith.addf %39, %60 : vector<8x32xf32>
    %62 = vector.extract_strided_slice %1 {offsets = [17, 0], sizes = [1, 32], strides = [1, 1]} : vector<19x32xf32> to vector<1x32xf32>
    %63 = vector.broadcast %62 : vector<1x32xf32> to vector<8x32xf32>
    %64 = arith.mulf %45, %63 : vector<8x32xf32>
    %65 = arith.addf %39, %64 : vector<8x32xf32>
    %66 = vector.extract_strided_slice %1 {offsets = [18, 0], sizes = [1, 32], strides = [1, 1]} : vector<19x32xf32> to vector<1x32xf32>
    %67 = vector.broadcast %66 : vector<1x32xf32> to vector<8x32xf32>
    %68 = arith.mulf %45, %67 : vector<8x32xf32>
    %69 = arith.addf %39, %68 : vector<8x32xf32>
    %70 = tpu.concatenate %49, %53, %57, %61, %65, %69 in 0 : vector<8x32xf32>, vector<8x32xf32>, vector<8x32xf32>, vector<8x32xf32>, vector<8x32xf32>, vector<8x32xf32> -> vector<48x32xf32>
    %c0_14 = arith.constant 0 : index
    %c0_15 = arith.constant 0 : index
    %71 = vector.load %arg6[%c0_14, %c0_15] : memref<32x160xf32, #tpu.memory_space<vmem>>, vector<32x160xf32>
    %cst_16 = arith.constant dense<0.000000e+00> : vector<48x160xf32>
    %72 = tpu.matmul %70, %71, %cst_16 {dimension_numbers = #tpu.dot_dimension_numbers<[1], [0], [0], [1], [0, 0, 1, 1], [], []>} : vector<48x32xf32>, vector<32x160xf32>, vector<48x160xf32> -> vector<48x160xf32>
    %73 = vector.extract_strided_slice %72 {offsets = [0, 0], sizes = [8, 32], strides = [1, 1]} : vector<48x160xf32> to vector<8x32xf32>
    %74 = vector.extract_strided_slice %72 {offsets = [8, 96], sizes = [8, 16], strides = [1, 1]} : vector<48x160xf32> to vector<8x16xf32>
    %75 = vector.extract_strided_slice %72 {offsets = [16, 32], sizes = [8, 32], strides = [1, 1]} : vector<48x160xf32> to vector<8x32xf32>
    %76 = vector.extract_strided_slice %72 {offsets = [24, 64], sizes = [8, 32], strides = [1, 1]} : vector<48x160xf32> to vector<8x32xf32>
    %77 = vector.extract_strided_slice %72 {offsets = [24, 144], sizes = [8, 16], strides = [1, 1]} : vector<48x160xf32> to vector<8x16xf32>
    %78 = vector.extract_strided_slice %72 {offsets = [32, 112], sizes = [8, 16], strides = [1, 1]} : vector<48x160xf32> to vector<8x16xf32>
    %79 = vector.extract_strided_slice %72 {offsets = [40, 128], sizes = [8, 16], strides = [1, 1]} : vector<48x160xf32> to vector<8x16xf32>
    %80 = math.tanh %74 : vector<8x16xf32>
    %81 = arith.negf %79 : vector<8x16xf32>
    %82 = math.exp %81 : vector<8x16xf32>
    %cst_17 = arith.constant 1.000000e+00 : f32
    %83 = vector.broadcast %cst_17 : f32 to vector<8x16xf32>
    %84 = arith.addf %83, %82 : vector<8x16xf32>
    %85 = arith.divf %83, %84 : vector<8x16xf32>
    %86 = tpu.concatenate %80, %78, %85, %77 in 0 : vector<8x16xf32>, vector<8x16xf32>, vector<8x16xf32>, vector<8x16xf32> -> vector<32x16xf32>
    %c0_18 = arith.constant 0 : index
    %c0_19 = arith.constant 0 : index
    %87 = vector.load %arg7[%c0_18, %c0_19] : memref<16x128xf32, #tpu.memory_space<vmem>>, vector<16x128xf32>
    %cst_20 = arith.constant dense<0.000000e+00> : vector<32x128xf32>
    %88 = tpu.matmul %86, %87, %cst_20 {dimension_numbers = #tpu.dot_dimension_numbers<[1], [0], [0], [1], [0, 0, 1, 1], [], []>} : vector<32x16xf32>, vector<16x128xf32>, vector<32x128xf32> -> vector<32x128xf32>
    %89 = vector.extract_strided_slice %88 {offsets = [0, 0], sizes = [8, 32], strides = [1, 1]} : vector<32x128xf32> to vector<8x32xf32>
    %90 = vector.extract_strided_slice %88 {offsets = [8, 32], sizes = [8, 32], strides = [1, 1]} : vector<32x128xf32> to vector<8x32xf32>
    %91 = vector.extract_strided_slice %88 {offsets = [16, 64], sizes = [8, 32], strides = [1, 1]} : vector<32x128xf32> to vector<8x32xf32>
    %92 = vector.extract_strided_slice %88 {offsets = [24, 96], sizes = [8, 32], strides = [1, 1]} : vector<32x128xf32> to vector<8x32xf32>
    %93 = vector.extract_strided_slice %1 {offsets = [4, 0], sizes = [1, 32], strides = [1, 1]} : vector<19x32xf32> to vector<1x32xf32>
    %94 = vector.broadcast %93 : vector<1x32xf32> to vector<8x32xf32>
    %95 = arith.addf %94, %89 : vector<8x32xf32>
    %96 = arith.negf %95 : vector<8x32xf32>
    %97 = math.exp %96 : vector<8x32xf32>
    %cst_21 = arith.constant 1.000000e+00 : f32
    %98 = vector.broadcast %cst_21 : f32 to vector<8x32xf32>
    %99 = arith.addf %98, %97 : vector<8x32xf32>
    %100 = arith.divf %98, %99 : vector<8x32xf32>
    %cst_22 = arith.constant -6.065310e-01 : f32
    %101 = vector.broadcast %cst_22 : f32 to vector<8x32xf32>
    %102 = arith.mulf %101, %100 : vector<8x32xf32>
    %103 = math.exp %102 : vector<8x32xf32>
    %104 = vector.extract_strided_slice %1 {offsets = [5, 0], sizes = [1, 32], strides = [1, 1]} : vector<19x32xf32> to vector<1x32xf32>
    %105 = vector.broadcast %104 : vector<1x32xf32> to vector<8x32xf32>
    %106 = arith.addf %105, %90 : vector<8x32xf32>
    %107 = arith.negf %106 : vector<8x32xf32>
    %108 = math.exp %107 : vector<8x32xf32>
    %cst_23 = arith.constant 1.000000e+00 : f32
    %109 = vector.broadcast %cst_23 : f32 to vector<8x32xf32>
    %110 = arith.addf %109, %108 : vector<8x32xf32>
    %111 = arith.divf %109, %110 : vector<8x32xf32>
    %112 = vector.extract_strided_slice %1 {offsets = [7, 0], sizes = [1, 32], strides = [1, 1]} : vector<19x32xf32> to vector<1x32xf32>
    %113 = vector.broadcast %112 : vector<1x32xf32> to vector<8x32xf32>
    %114 = arith.mulf %75, %113 : vector<8x32xf32>
    %115 = arith.mulf %114, %114 : vector<8x32xf32>
    %cst_24 = arith.constant dense<0.000000e+00> : vector<8x32xf32>
    %116 = tpu.matmul %115, %2, %cst_24 {dimension_numbers = #tpu.dot_dimension_numbers<[1], [0], [0], [1], [0, 0, 1, 1], [], []>} : vector<8x32xf32>, vector<32x32xf32>, vector<8x32xf32> -> vector<8x32xf32>
    %117 = math.sqrt %116 : vector<8x32xf32>
    %cst_25 = arith.constant 9.99999996E-13 : f32
    %118 = vector.broadcast %cst_25 : f32 to vector<8x32xf32>
    %119 = arith.maximumf %117, %118 : vector<8x32xf32>
    %120 = arith.divf %114, %119 : vector<8x32xf32>
    %cst_26 = arith.constant 1.000000e+00 : f32
    %121 = vector.broadcast %cst_26 : f32 to vector<8x32xf32>
    %122 = arith.subf %111, %121 : vector<8x32xf32>
    %123 = vector.extract_strided_slice %1 {offsets = [8, 0], sizes = [1, 32], strides = [1, 1]} : vector<19x32xf32> to vector<1x32xf32>
    %124 = vector.broadcast %123 : vector<1x32xf32> to vector<8x32xf32>
    %125 = arith.mulf %122, %124 : vector<8x32xf32>
    %cst_27 = arith.constant 1.000000e+00 : f32
    %126 = vector.broadcast %cst_27 : f32 to vector<8x32xf32>
    %127 = arith.addf %126, %125 : vector<8x32xf32>
    %128 = arith.mulf %75, %127 : vector<8x32xf32>
    %c0_28 = arith.constant 0 : index
    %c0_29 = arith.constant 0 : index
    %129 = vector.load %arg1[%c0_28, %c0_29] : memref<8x32xf32, #tpu.memory_space<vmem>>, vector<8x32xf32>
    %130 = arith.subf %129, %76 : vector<8x32xf32>
    %131 = vector.extract_strided_slice %1 {offsets = [6, 0], sizes = [1, 32], strides = [1, 1]} : vector<19x32xf32> to vector<1x32xf32>
    %132 = vector.broadcast %131 : vector<1x32xf32> to vector<8x32xf32>
    %133 = arith.addf %132, %92 : vector<8x32xf32>
    %134 = arith.negf %133 : vector<8x32xf32>
    %135 = math.exp %134 : vector<8x32xf32>
    %cst_30 = arith.constant 1.000000e+00 : f32
    %136 = vector.broadcast %cst_30 : f32 to vector<8x32xf32>
    %137 = arith.addf %136, %135 : vector<8x32xf32>
    %138 = arith.divf %136, %137 : vector<8x32xf32>
    %139 = arith.mulf %130, %138 : vector<8x32xf32>
    %140 = arith.addf %76, %139 : vector<8x32xf32>
    %c0_31 = arith.constant 0 : index
    %c0_32 = arith.constant 0 : index
    %141 = vector.load %arg14[%c0_31, %c0_32] : memref<8x32xf32, #tpu.memory_space<vmem>>, vector<8x32xf32>
    tpu.vector_store %arg14[%c0_31, %c0_32], %129 {strides = array<i32>} : memref<8x32xf32, #tpu.memory_space<vmem>>, vector<8x32xf32>,
    %cst_33 = arith.constant 0.000000e+00 : f32
    %142 = vector.broadcast %cst_33 : f32 to vector<8x32xf32>
    %143 = arith.subf %142, %120 : vector<8x32xf32>
    %144 = arith.mulf %120, %111 : vector<8x32xf32>
    %145 = vector.shape_cast %3 : vector<16x32xf32> to vector<1x16x32xf32>
    %146 = vector.shape_cast %140 : vector<8x32xf32> to vector<8x1x32xf32>
    %147 = vector.broadcast %145 : vector<1x16x32xf32> to vector<8x16x32xf32>
    %148 = vector.broadcast %146 : vector<8x1x32xf32> to vector<8x16x32xf32>
    %149 = arith.mulf %147, %148 : vector<8x16x32xf32>
    %150 = vector.shape_cast %149 : vector<8x16x32xf32> to vector<128x32xf32>
    %cst_34 = arith.constant dense<0.000000e+00> : vector<128x32xf32>
    %151 = tpu.matmul %150, %2, %cst_34 {dimension_numbers = #tpu.dot_dimension_numbers<[1], [0], [0], [1], [0, 0, 1, 1], [], []>} : vector<128x32xf32>, vector<32x32xf32>, vector<128x32xf32> -> vector<128x32xf32>
    %152 = vector.shape_cast %151 : vector<128x32xf32> to vector<8x16x32xf32>
    %153 = vector.shape_cast %128 : vector<8x32xf32> to vector<8x1x32xf32>
    %154 = vector.broadcast %153 : vector<8x1x32xf32> to vector<8x16x32xf32>
    %155 = arith.mulf %152, %154 : vector<8x16x32xf32>
    %c0_35 = arith.constant 0 : index
    %c0_36 = arith.constant 0 : index
    %156 = vector.load %arg4[%c0_35, %c0_36] : memref<16x32xf32, #tpu.memory_space<vmem>>, vector<16x32xf32>
    %157 = vector.extract_strided_slice %143 {offsets = [0, 0], sizes = [1, 32], strides = [1, 1]} : vector<8x32xf32> to vector<1x32xf32>
    %158 = vector.broadcast %157 : vector<1x32xf32> to vector<16x32xf32>
    %159 = arith.mulf %156, %158 : vector<16x32xf32>
    %cst_37 = arith.constant dense<0.000000e+00> : vector<16x32xf32>
    %160 = tpu.matmul %159, %2, %cst_37 {dimension_numbers = #tpu.dot_dimension_numbers<[1], [0], [0], [1], [0, 0, 1, 1], [], []>} : vector<16x32xf32>, vector<32x32xf32>, vector<16x32xf32> -> vector<16x32xf32>
    %161 = vector.extract_strided_slice %103 {offsets = [0, 0], sizes = [1, 32], strides = [1, 1]} : vector<8x32xf32> to vector<1x32xf32>
    %162 = vector.broadcast %161 : vector<1x32xf32> to vector<16x32xf32>
    %163 = arith.mulf %156, %162 : vector<16x32xf32>
    %164 = vector.extract_strided_slice %144 {offsets = [0, 0], sizes = [1, 32], strides = [1, 1]} : vector<8x32xf32> to vector<1x32xf32>
    %165 = vector.broadcast %164 : vector<1x32xf32> to vector<16x32xf32>
    %166 = arith.mulf %160, %165 : vector<16x32xf32>
    %167 = arith.addf %163, %166 : vector<16x32xf32>
    %168 = vector.extract_strided_slice %155 {offsets = [0, 0, 0], sizes = [1, 16, 32], strides = [1, 1, 1]} : vector<8x16x32xf32> to vector<1x16x32xf32>
    %169 = vector.shape_cast %168 : vector<1x16x32xf32> to vector<16x32xf32>
    %170 = arith.addf %167, %169 : vector<16x32xf32>
    %171 = vector.extract_strided_slice %73 {offsets = [0, 0], sizes = [1, 32], strides = [1, 1]} : vector<8x32xf32> to vector<1x32xf32>
    %172 = vector.broadcast %171 : vector<1x32xf32> to vector<16x32xf32>
    %173 = arith.mulf %170, %172 : vector<16x32xf32>
    %cst_38 = arith.constant dense<0.000000e+00> : vector<16x32xf32>
    %174 = tpu.matmul %173, %2, %cst_38 {dimension_numbers = #tpu.dot_dimension_numbers<[1], [0], [0], [1], [0, 0, 1, 1], [], []>} : vector<16x32xf32>, vector<32x32xf32>, vector<16x32xf32> -> vector<16x32xf32>
    %175 = vector.extract_strided_slice %143 {offsets = [1, 0], sizes = [1, 32], strides = [1, 1]} : vector<8x32xf32> to vector<1x32xf32>
    %176 = vector.broadcast %175 : vector<1x32xf32> to vector<16x32xf32>
    %177 = arith.mulf %170, %176 : vector<16x32xf32>
    %cst_39 = arith.constant dense<0.000000e+00> : vector<16x32xf32>
    %178 = tpu.matmul %177, %2, %cst_39 {dimension_numbers = #tpu.dot_dimension_numbers<[1], [0], [0], [1], [0, 0, 1, 1], [], []>} : vector<16x32xf32>, vector<32x32xf32>, vector<16x32xf32> -> vector<16x32xf32>
    %179 = vector.extract_strided_slice %103 {offsets = [1, 0], sizes = [1, 32], strides = [1, 1]} : vector<8x32xf32> to vector<1x32xf32>
    %180 = vector.broadcast %179 : vector<1x32xf32> to vector<16x32xf32>
    %181 = arith.mulf %170, %180 : vector<16x32xf32>
    %182 = vector.extract_strided_slice %144 {offsets = [1, 0], sizes = [1, 32], strides = [1, 1]} : vector<8x32xf32> to vector<1x32xf32>
    %183 = vector.broadcast %182 : vector<1x32xf32> to vector<16x32xf32>
    %184 = arith.mulf %178, %183 : vector<16x32xf32>
    %185 = arith.addf %181, %184 : vector<16x32xf32>
    %186 = vector.extract_strided_slice %155 {offsets = [1, 0, 0], sizes = [1, 16, 32], strides = [1, 1, 1]} : vector<8x16x32xf32> to vector<1x16x32xf32>
    %187 = vector.shape_cast %186 : vector<1x16x32xf32> to vector<16x32xf32>
    %188 = arith.addf %185, %187 : vector<16x32xf32>
    %189 = vector.extract_strided_slice %73 {offsets = [1, 0], sizes = [1, 32], strides = [1, 1]} : vector<8x32xf32> to vector<1x32xf32>
    %190 = vector.broadcast %189 : vector<1x32xf32> to vector<16x32xf32>
    %191 = arith.mulf %188, %190 : vector<16x32xf32>
    %cst_40 = arith.constant dense<0.000000e+00> : vector<16x32xf32>
    %192 = tpu.matmul %191, %2, %cst_40 {dimension_numbers = #tpu.dot_dimension_numbers<[1], [0], [0], [1], [0, 0, 1, 1], [], []>} : vector<16x32xf32>, vector<32x32xf32>, vector<16x32xf32> -> vector<16x32xf32>
    %193 = vector.extract_strided_slice %143 {offsets = [2, 0], sizes = [1, 32], strides = [1, 1]} : vector<8x32xf32> to vector<1x32xf32>
    %194 = vector.broadcast %193 : vector<1x32xf32> to vector<16x32xf32>
    %195 = arith.mulf %188, %194 : vector<16x32xf32>
    %cst_41 = arith.constant dense<0.000000e+00> : vector<16x32xf32>
    %196 = tpu.matmul %195, %2, %cst_41 {dimension_numbers = #tpu.dot_dimension_numbers<[1], [0], [0], [1], [0, 0, 1, 1], [], []>} : vector<16x32xf32>, vector<32x32xf32>, vector<16x32xf32> -> vector<16x32xf32>
    %197 = vector.extract_strided_slice %103 {offsets = [2, 0], sizes = [1, 32], strides = [1, 1]} : vector<8x32xf32> to vector<1x32xf32>
    %198 = vector.broadcast %197 : vector<1x32xf32> to vector<16x32xf32>
    %199 = arith.mulf %188, %198 : vector<16x32xf32>
    %200 = vector.extract_strided_slice %144 {offsets = [2, 0], sizes = [1, 32], strides = [1, 1]} : vector<8x32xf32> to vector<1x32xf32>
    %201 = vector.broadcast %200 : vector<1x32xf32> to vector<16x32xf32>
    %202 = arith.mulf %196, %201 : vector<16x32xf32>
    %203 = arith.addf %199, %202 : vector<16x32xf32>
    %204 = vector.extract_strided_slice %155 {offsets = [2, 0, 0], sizes = [1, 16, 32], strides = [1, 1, 1]} : vector<8x16x32xf32> to vector<1x16x32xf32>
    %205 = vector.shape_cast %204 : vector<1x16x32xf32> to vector<16x32xf32>
    %206 = arith.addf %203, %205 : vector<16x32xf32>
    %207 = vector.extract_strided_slice %73 {offsets = [2, 0], sizes = [1, 32], strides = [1, 1]} : vector<8x32xf32> to vector<1x32xf32>
    %208 = vector.broadcast %207 : vector<1x32xf32> to vector<16x32xf32>
    %209 = arith.mulf %206, %208 : vector<16x32xf32>
    %cst_42 = arith.constant dense<0.000000e+00> : vector<16x32xf32>
    %210 = tpu.matmul %209, %2, %cst_42 {dimension_numbers = #tpu.dot_dimension_numbers<[1], [0], [0], [1], [0, 0, 1, 1], [], []>} : vector<16x32xf32>, vector<32x32xf32>, vector<16x32xf32> -> vector<16x32xf32>
    %211 = vector.extract_strided_slice %143 {offsets = [3, 0], sizes = [1, 32], strides = [1, 1]} : vector<8x32xf32> to vector<1x32xf32>
    %212 = vector.broadcast %211 : vector<1x32xf32> to vector<16x32xf32>
    %213 = arith.mulf %206, %212 : vector<16x32xf32>
    %cst_43 = arith.constant dense<0.000000e+00> : vector<16x32xf32>
    %214 = tpu.matmul %213, %2, %cst_43 {dimension_numbers = #tpu.dot_dimension_numbers<[1], [0], [0], [1], [0, 0, 1, 1], [], []>} : vector<16x32xf32>, vector<32x32xf32>, vector<16x32xf32> -> vector<16x32xf32>
    %215 = vector.extract_strided_slice %103 {offsets = [3, 0], sizes = [1, 32], strides = [1, 1]} : vector<8x32xf32> to vector<1x32xf32>
    %216 = vector.broadcast %215 : vector<1x32xf32> to vector<16x32xf32>
    %217 = arith.mulf %206, %216 : vector<16x32xf32>
    %218 = vector.extract_strided_slice %144 {offsets = [3, 0], sizes = [1, 32], strides = [1, 1]} : vector<8x32xf32> to vector<1x32xf32>
    %219 = vector.broadcast %218 : vector<1x32xf32> to vector<16x32xf32>
    %220 = arith.mulf %214, %219 : vector<16x32xf32>
    %221 = arith.addf %217, %220 : vector<16x32xf32>
    %222 = vector.extract_strided_slice %155 {offsets = [3, 0, 0], sizes = [1, 16, 32], strides = [1, 1, 1]} : vector<8x16x32xf32> to vector<1x16x32xf32>
    %223 = vector.shape_cast %222 : vector<1x16x32xf32> to vector<16x32xf32>
    %224 = arith.addf %221, %223 : vector<16x32xf32>
    %225 = vector.extract_strided_slice %73 {offsets = [3, 0], sizes = [1, 32], strides = [1, 1]} : vector<8x32xf32> to vector<1x32xf32>
    %226 = vector.broadcast %225 : vector<1x32xf32> to vector<16x32xf32>
    %227 = arith.mulf %224, %226 : vector<16x32xf32>
    %cst_44 = arith.constant dense<0.000000e+00> : vector<16x32xf32>
    %228 = tpu.matmul %227, %2, %cst_44 {dimension_numbers = #tpu.dot_dimension_numbers<[1], [0], [0], [1], [0, 0, 1, 1], [], []>} : vector<16x32xf32>, vector<32x32xf32>, vector<16x32xf32> -> vector<16x32xf32>
    %229 = vector.extract_strided_slice %143 {offsets = [4, 0], sizes = [1, 32], strides = [1, 1]} : vector<8x32xf32> to vector<1x32xf32>
    %230 = vector.broadcast %229 : vector<1x32xf32> to vector<16x32xf32>
    %231 = arith.mulf %224, %230 : vector<16x32xf32>
    %cst_45 = arith.constant dense<0.000000e+00> : vector<16x32xf32>
    %232 = tpu.matmul %231, %2, %cst_45 {dimension_numbers = #tpu.dot_dimension_numbers<[1], [0], [0], [1], [0, 0, 1, 1], [], []>} : vector<16x32xf32>, vector<32x32xf32>, vector<16x32xf32> -> vector<16x32xf32>
    %233 = vector.extract_strided_slice %103 {offsets = [4, 0], sizes = [1, 32], strides = [1, 1]} : vector<8x32xf32> to vector<1x32xf32>
    %234 = vector.broadcast %233 : vector<1x32xf32> to vector<16x32xf32>
    %235 = arith.mulf %224, %234 : vector<16x32xf32>
    %236 = vector.extract_strided_slice %144 {offsets = [4, 0], sizes = [1, 32], strides = [1, 1]} : vector<8x32xf32> to vector<1x32xf32>
    %237 = vector.broadcast %236 : vector<1x32xf32> to vector<16x32xf32>
    %238 = arith.mulf %232, %237 : vector<16x32xf32>
    %239 = arith.addf %235, %238 : vector<16x32xf32>
    %240 = vector.extract_strided_slice %155 {offsets = [4, 0, 0], sizes = [1, 16, 32], strides = [1, 1, 1]} : vector<8x16x32xf32> to vector<1x16x32xf32>
    %241 = vector.shape_cast %240 : vector<1x16x32xf32> to vector<16x32xf32>
    %242 = arith.addf %239, %241 : vector<16x32xf32>
    %243 = vector.extract_strided_slice %73 {offsets = [4, 0], sizes = [1, 32], strides = [1, 1]} : vector<8x32xf32> to vector<1x32xf32>
    %244 = vector.broadcast %243 : vector<1x32xf32> to vector<16x32xf32>
    %245 = arith.mulf %242, %244 : vector<16x32xf32>
    %cst_46 = arith.constant dense<0.000000e+00> : vector<16x32xf32>
    %246 = tpu.matmul %245, %2, %cst_46 {dimension_numbers = #tpu.dot_dimension_numbers<[1], [0], [0], [1], [0, 0, 1, 1], [], []>} : vector<16x32xf32>, vector<32x32xf32>, vector<16x32xf32> -> vector<16x32xf32>
    %247 = vector.extract_strided_slice %143 {offsets = [5, 0], sizes = [1, 32], strides = [1, 1]} : vector<8x32xf32> to vector<1x32xf32>
    %248 = vector.broadcast %247 : vector<1x32xf32> to vector<16x32xf32>
    %249 = arith.mulf %242, %248 : vector<16x32xf32>
    %cst_47 = arith.constant dense<0.000000e+00> : vector<16x32xf32>
    %250 = tpu.matmul %249, %2, %cst_47 {dimension_numbers = #tpu.dot_dimension_numbers<[1], [0], [0], [1], [0, 0, 1, 1], [], []>} : vector<16x32xf32>, vector<32x32xf32>, vector<16x32xf32> -> vector<16x32xf32>
    %251 = vector.extract_strided_slice %103 {offsets = [5, 0], sizes = [1, 32], strides = [1, 1]} : vector<8x32xf32> to vector<1x32xf32>
    %252 = vector.broadcast %251 : vector<1x32xf32> to vector<16x32xf32>
    %253 = arith.mulf %242, %252 : vector<16x32xf32>
    %254 = vector.extract_strided_slice %144 {offsets = [5, 0], sizes = [1, 32], strides = [1, 1]} : vector<8x32xf32> to vector<1x32xf32>
    %255 = vector.broadcast %254 : vector<1x32xf32> to vector<16x32xf32>
    %256 = arith.mulf %250, %255 : vector<16x32xf32>
    %257 = arith.addf %253, %256 : vector<16x32xf32>
    %258 = vector.extract_strided_slice %155 {offsets = [5, 0, 0], sizes = [1, 16, 32], strides = [1, 1, 1]} : vector<8x16x32xf32> to vector<1x16x32xf32>
    %259 = vector.shape_cast %258 : vector<1x16x32xf32> to vector<16x32xf32>
    %260 = arith.addf %257, %259 : vector<16x32xf32>
    %261 = vector.extract_strided_slice %73 {offsets = [5, 0], sizes = [1, 32], strides = [1, 1]} : vector<8x32xf32> to vector<1x32xf32>
    %262 = vector.broadcast %261 : vector<1x32xf32> to vector<16x32xf32>
    %263 = arith.mulf %260, %262 : vector<16x32xf32>
    %cst_48 = arith.constant dense<0.000000e+00> : vector<16x32xf32>
    %264 = tpu.matmul %263, %2, %cst_48 {dimension_numbers = #tpu.dot_dimension_numbers<[1], [0], [0], [1], [0, 0, 1, 1], [], []>} : vector<16x32xf32>, vector<32x32xf32>, vector<16x32xf32> -> vector<16x32xf32>
    %265 = vector.extract_strided_slice %143 {offsets = [6, 0], sizes = [1, 32], strides = [1, 1]} : vector<8x32xf32> to vector<1x32xf32>
    %266 = vector.broadcast %265 : vector<1x32xf32> to vector<16x32xf32>
    %267 = arith.mulf %260, %266 : vector<16x32xf32>
    %cst_49 = arith.constant dense<0.000000e+00> : vector<16x32xf32>
    %268 = tpu.matmul %267, %2, %cst_49 {dimension_numbers = #tpu.dot_dimension_numbers<[1], [0], [0], [1], [0, 0, 1, 1], [], []>} : vector<16x32xf32>, vector<32x32xf32>, vector<16x32xf32> -> vector<16x32xf32>
    %269 = vector.extract_strided_slice %103 {offsets = [6, 0], sizes = [1, 32], strides = [1, 1]} : vector<8x32xf32> to vector<1x32xf32>
    %270 = vector.broadcast %269 : vector<1x32xf32> to vector<16x32xf32>
    %271 = arith.mulf %260, %270 : vector<16x32xf32>
    %272 = vector.extract_strided_slice %144 {offsets = [6, 0], sizes = [1, 32], strides = [1, 1]} : vector<8x32xf32> to vector<1x32xf32>
    %273 = vector.broadcast %272 : vector<1x32xf32> to vector<16x32xf32>
    %274 = arith.mulf %268, %273 : vector<16x32xf32>
    %275 = arith.addf %271, %274 : vector<16x32xf32>
    %276 = vector.extract_strided_slice %155 {offsets = [6, 0, 0], sizes = [1, 16, 32], strides = [1, 1, 1]} : vector<8x16x32xf32> to vector<1x16x32xf32>
    %277 = vector.shape_cast %276 : vector<1x16x32xf32> to vector<16x32xf32>
    %278 = arith.addf %275, %277 : vector<16x32xf32>
    %279 = vector.extract_strided_slice %73 {offsets = [6, 0], sizes = [1, 32], strides = [1, 1]} : vector<8x32xf32> to vector<1x32xf32>
    %280 = vector.broadcast %279 : vector<1x32xf32> to vector<16x32xf32>
    %281 = arith.mulf %278, %280 : vector<16x32xf32>
    %cst_50 = arith.constant dense<0.000000e+00> : vector<16x32xf32>
    %282 = tpu.matmul %281, %2, %cst_50 {dimension_numbers = #tpu.dot_dimension_numbers<[1], [0], [0], [1], [0, 0, 1, 1], [], []>} : vector<16x32xf32>, vector<32x32xf32>, vector<16x32xf32> -> vector<16x32xf32>
    %283 = vector.extract_strided_slice %143 {offsets = [7, 0], sizes = [1, 32], strides = [1, 1]} : vector<8x32xf32> to vector<1x32xf32>
    %284 = vector.broadcast %283 : vector<1x32xf32> to vector<16x32xf32>
    %285 = arith.mulf %278, %284 : vector<16x32xf32>
    %cst_51 = arith.constant dense<0.000000e+00> : vector<16x32xf32>
    %286 = tpu.matmul %285, %2, %cst_51 {dimension_numbers = #tpu.dot_dimension_numbers<[1], [0], [0], [1], [0, 0, 1, 1], [], []>} : vector<16x32xf32>, vector<32x32xf32>, vector<16x32xf32> -> vector<16x32xf32>
    %287 = vector.extract_strided_slice %103 {offsets = [7, 0], sizes = [1, 32], strides = [1, 1]} : vector<8x32xf32> to vector<1x32xf32>
    %288 = vector.broadcast %287 : vector<1x32xf32> to vector<16x32xf32>
    %289 = arith.mulf %278, %288 : vector<16x32xf32>
    %290 = vector.extract_strided_slice %144 {offsets = [7, 0], sizes = [1, 32], strides = [1, 1]} : vector<8x32xf32> to vector<1x32xf32>
    %291 = vector.broadcast %290 : vector<1x32xf32> to vector<16x32xf32>
    %292 = arith.mulf %286, %291 : vector<16x32xf32>
    %293 = arith.addf %289, %292 : vector<16x32xf32>
    %294 = vector.extract_strided_slice %155 {offsets = [7, 0, 0], sizes = [1, 16, 32], strides = [1, 1, 1]} : vector<8x16x32xf32> to vector<1x16x32xf32>
    %295 = vector.shape_cast %294 : vector<1x16x32xf32> to vector<16x32xf32>
    %296 = arith.addf %293, %295 : vector<16x32xf32>
    %297 = vector.extract_strided_slice %73 {offsets = [7, 0], sizes = [1, 32], strides = [1, 1]} : vector<8x32xf32> to vector<1x32xf32>
    %298 = vector.broadcast %297 : vector<1x32xf32> to vector<16x32xf32>
    %299 = arith.mulf %296, %298 : vector<16x32xf32>
    %cst_52 = arith.constant dense<0.000000e+00> : vector<16x32xf32>
    %300 = tpu.matmul %299, %2, %cst_52 {dimension_numbers = #tpu.dot_dimension_numbers<[1], [0], [0], [1], [0, 0, 1, 1], [], []>} : vector<16x32xf32>, vector<32x32xf32>, vector<16x32xf32> -> vector<16x32xf32>
    %c0_53 = arith.constant 0 : index
    %c0_54 = arith.constant 0 : index
    %301 = vector.load %arg17[%c0_53, %c0_54] : memref<16x32xf32, #tpu.memory_space<vmem>>, vector<16x32xf32>
    tpu.vector_store %arg17[%c0_53, %c0_54], %296 {strides = array<i32>} : memref<16x32xf32, #tpu.memory_space<vmem>>, vector<16x32xf32>,
    %302 = vector.shape_cast %174 : vector<16x32xf32> to vector<1x16x32xf32>
    %303 = vector.shape_cast %192 : vector<16x32xf32> to vector<1x16x32xf32>
    %304 = vector.shape_cast %210 : vector<16x32xf32> to vector<1x16x32xf32>
    %305 = vector.shape_cast %228 : vector<16x32xf32> to vector<1x16x32xf32>
    %306 = vector.shape_cast %246 : vector<16x32xf32> to vector<1x16x32xf32>
    %307 = vector.shape_cast %264 : vector<16x32xf32> to vector<1x16x32xf32>
    %308 = vector.shape_cast %282 : vector<16x32xf32> to vector<1x16x32xf32>
    %309 = vector.shape_cast %300 : vector<16x32xf32> to vector<1x16x32xf32>
    %310 = tpu.concatenate %302, %303, %304, %305, %306, %307, %308, %309 in 0 : vector<1x16x32xf32>, vector<1x16x32xf32>, vector<1x16x32xf32>, vector<1x16x32xf32>, vector<1x16x32xf32>, vector<1x16x32xf32>, vector<1x16x32xf32>, vector<1x16x32xf32> -> vector<8x16x32xf32>
    %311 = vector.shape_cast %3 : vector<16x32xf32> to vector<1x16x32xf32>
    %312 = vector.broadcast %311 : vector<1x16x32xf32> to vector<8x16x32xf32>
    %313 = arith.mulf %312, %310 : vector<8x16x32xf32>
    %cst_55 = arith.constant dense<0.000000e+00> : vector<8x32xf32>
    %314 = vector.multi_reduction <add>, %313, %cst_55 [1] : vector<8x16x32xf32> to vector<8x32xf32>
    %cst_56 = arith.constant dense<0.000000e+00> : vector<8x32xf32>
    %315 = tpu.matmul %314, %2, %cst_56 {dimension_numbers = #tpu.dot_dimension_numbers<[1], [0], [0], [1], [0, 0, 1, 1], [], []>} : vector<8x32xf32>, vector<32x32xf32>, vector<8x32xf32> -> vector<8x32xf32>
    %cst_57 = arith.constant 6.250000e-02 : f32
    %316 = vector.broadcast %cst_57 : f32 to vector<8x32xf32>
    %317 = arith.mulf %315, %316 : vector<8x32xf32>
    %318 = arith.subf %314, %317 : vector<8x32xf32>
    %319 = arith.mulf %318, %318 : vector<8x32xf32>
    %cst_58 = arith.constant dense<0.000000e+00> : vector<8x32xf32>
    %320 = tpu.matmul %319, %2, %cst_58 {dimension_numbers = #tpu.dot_dimension_numbers<[1], [0], [0], [1], [0, 0, 1, 1], [], []>} : vector<8x32xf32>, vector<32x32xf32>, vector<8x32xf32> -> vector<8x32xf32>
    %cst_59 = arith.constant 6.250000e-02 : f32
    %321 = vector.broadcast %cst_59 : f32 to vector<8x32xf32>
    %322 = arith.mulf %320, %321 : vector<8x32xf32>
    %cst_60 = arith.constant 6.400000e-04 : f32
    %323 = vector.broadcast %cst_60 : f32 to vector<8x32xf32>
    %324 = arith.addf %322, %323 : vector<8x32xf32>
    %325 = math.sqrt %324 : vector<8x32xf32>
    %326 = arith.divf %318, %325 : vector<8x32xf32>
    %327 = vector.extract_strided_slice %1 {offsets = [10, 0], sizes = [1, 32], strides = [1, 1]} : vector<19x32xf32> to vector<1x32xf32>
    %328 = vector.broadcast %327 : vector<1x32xf32> to vector<8x32xf32>
    %329 = arith.mulf %326, %328 : vector<8x32xf32>
    %330 = vector.extract_strided_slice %1 {offsets = [11, 0], sizes = [1, 32], strides = [1, 1]} : vector<19x32xf32> to vector<1x32xf32>
    %331 = vector.broadcast %330 : vector<1x32xf32> to vector<8x32xf32>
    %332 = arith.addf %329, %331 : vector<8x32xf32>
    %333 = arith.mulf %73, %128 : vector<8x32xf32>
    %334 = vector.extract_strided_slice %1 {offsets = [9, 0], sizes = [1, 32], strides = [1, 1]} : vector<19x32xf32> to vector<1x32xf32>
    %335 = vector.broadcast %334 : vector<1x32xf32> to vector<8x32xf32>
    %336 = arith.mulf %333, %335 : vector<8x32xf32>
    %cst_61 = arith.constant dense<0.000000e+00> : vector<8x32xf32>
    %337 = tpu.matmul %336, %2, %cst_61 {dimension_numbers = #tpu.dot_dimension_numbers<[1], [0], [0], [1], [0, 0, 1, 1], [], []>} : vector<8x32xf32>, vector<32x32xf32>, vector<8x32xf32> -> vector<8x32xf32>
    %338 = arith.mulf %337, %140 : vector<8x32xf32>
    %339 = arith.addf %332, %338 : vector<8x32xf32>
    %340 = arith.mulf %339, %91 : vector<8x32xf32>
    %c0_62 = arith.constant 0 : index
    %c0_63 = arith.constant 0 : index
    %341 = vector.load %arg8[%c0_62, %c0_63] : memref<32x32xf32, #tpu.memory_space<vmem>>, vector<32x32xf32>
    %cst_64 = arith.constant dense<0.000000e+00> : vector<8x32xf32>
    %342 = tpu.matmul %340, %341, %cst_64 {dimension_numbers = #tpu.dot_dimension_numbers<[1], [0], [0], [1], [0, 0, 1, 1], [], []>} : vector<8x32xf32>, vector<32x32xf32>, vector<8x32xf32> -> vector<8x32xf32>
    %343 = arith.addf %0, %342 : vector<8x32xf32>
    %344 = vector.extract_strided_slice %1 {offsets = [2, 0], sizes = [1, 32], strides = [1, 1]} : vector<19x32xf32> to vector<1x32xf32>
    %345 = vector.extract_strided_slice %1 {offsets = [3, 0], sizes = [1, 32], strides = [1, 1]} : vector<19x32xf32> to vector<1x32xf32>
    %cst_65 = arith.constant dense<0.000000e+00> : vector<8xf32>
    %346 = vector.multi_reduction <add>, %343, %cst_65 [1] : vector<8x32xf32> to vector<8xf32>
    %347 = vector.shape_cast %346 : vector<8xf32> to vector<8x1xf32>
    %cst_66 = arith.constant 3.200000e+01 : f32
    %348 = vector.broadcast %cst_66 : f32 to vector<8x1xf32>
    %349 = arith.divf %347, %348 : vector<8x1xf32>
    %350 = vector.broadcast %349 : vector<8x1xf32> to vector<8x32xf32>
    %351 = arith.subf %343, %350 : vector<8x32xf32>
    %352 = arith.mulf %351, %351 : vector<8x32xf32>
    %cst_67 = arith.constant dense<0.000000e+00> : vector<8xf32>
    %353 = vector.multi_reduction <add>, %352, %cst_67 [1] : vector<8x32xf32> to vector<8xf32>
    %354 = vector.shape_cast %353 : vector<8xf32> to vector<8x1xf32>
    %cst_68 = arith.constant 3.200000e+01 : f32
    %355 = vector.broadcast %cst_68 : f32 to vector<8x1xf32>
    %356 = arith.divf %354, %355 : vector<8x1xf32>
    %357 = vector.broadcast %349 : vector<8x1xf32> to vector<8x32xf32>
    %358 = arith.subf %343, %357 : vector<8x32xf32>
    %cst_69 = arith.constant 9.99999974E-6 : f32
    %359 = vector.broadcast %cst_69 : f32 to vector<8x1xf32>
    %360 = arith.addf %356, %359 : vector<8x1xf32>
    %361 = math.sqrt %360 : vector<8x1xf32>
    %362 = vector.broadcast %361 : vector<8x1xf32> to vector<8x32xf32>
    %363 = arith.divf %358, %362 : vector<8x32xf32>
    %364 = vector.broadcast %344 : vector<1x32xf32> to vector<8x32xf32>
    %365 = arith.mulf %363, %364 : vector<8x32xf32>
    %366 = vector.broadcast %345 : vector<1x32xf32> to vector<8x32xf32>
    %367 = arith.addf %365, %366 : vector<8x32xf32>
    %cst_70 = arith.constant dense<0.000000e+00> : vector<8x32xf32>
    %368 = tpu.matmul %10, %367, %cst_70 {dimension_numbers = #tpu.dot_dimension_numbers<[1], [0], [0], [1], [0, 0, 1, 1], [], []>} : vector<8x8xf32>, vector<8x32xf32>, vector<8x32xf32> -> vector<8x32xf32>
    %c0_71 = arith.constant 0 : index
    %c0_72 = arith.constant 0 : index
    %369 = vector.load %arg3[%c0_71, %c0_72] : memref<1x32xf32, #tpu.memory_space<vmem>>, vector<1x32xf32>
    %370 = vector.broadcast %369 : vector<1x32xf32> to vector<8x32xf32>
    %371 = arith.mulf %15, %370 : vector<8x32xf32>
    %372 = arith.addf %368, %371 : vector<8x32xf32>
    %373 = arith.subf %372, %367 : vector<8x32xf32>
    %374 = vector.extract_strided_slice %1 {offsets = [12, 0], sizes = [1, 32], strides = [1, 1]} : vector<19x32xf32> to vector<1x32xf32>
    %375 = vector.broadcast %374 : vector<1x32xf32> to vector<8x32xf32>
    %376 = arith.mulf %373, %375 : vector<8x32xf32>
    %377 = arith.addf %367, %376 : vector<8x32xf32>
    %c0_73 = arith.constant 0 : index
    %c0_74 = arith.constant 0 : index
    %378 = vector.load %arg9[%c0_73, %c0_74] : memref<32x128xf32, #tpu.memory_space<vmem>>, vector<32x128xf32>
    %cst_75 = arith.constant dense<0.000000e+00> : vector<8x128xf32>
    %379 = tpu.matmul %377, %378, %cst_75 {dimension_numbers = #tpu.dot_dimension_numbers<[1], [0], [0], [1], [0, 0, 1, 1], [], []>} : vector<8x32xf32>, vector<32x128xf32>, vector<8x128xf32> -> vector<8x128xf32>
    %cst_76 = arith.constant 0.000000e+00 : f32
    %380 = vector.broadcast %cst_76 : f32 to vector<8x128xf32>
    %381 = arith.maximumf %379, %380 : vector<8x128xf32>
    %382 = arith.mulf %381, %381 : vector<8x128xf32>
    %c0_77 = arith.constant 0 : index
    %c0_78 = arith.constant 0 : index
    %383 = vector.load %arg10[%c0_77, %c0_78] : memref<128x32xf32, #tpu.memory_space<vmem>>, vector<128x32xf32>
    %cst_79 = arith.constant dense<0.000000e+00> : vector<8x32xf32>
    %384 = tpu.matmul %382, %383, %cst_79 {dimension_numbers = #tpu.dot_dimension_numbers<[1], [0], [0], [1], [0, 0, 1, 1], [], []>} : vector<8x128xf32>, vector<128x32xf32>, vector<8x32xf32> -> vector<8x32xf32>
    %385 = arith.addf %343, %384 : vector<8x32xf32>
    %c0_80 = arith.constant 0 : index
    %c0_81 = arith.constant 0 : index
    %386 = vector.load %arg13[%c0_80, %c0_81] : memref<8x32xf32, #tpu.memory_space<vmem>>, vector<8x32xf32>
    tpu.vector_store %arg13[%c0_80, %c0_81], %385 {strides = array<i32>} : memref<8x32xf32, #tpu.memory_space<vmem>>, vector<8x32xf32>,
    %387 = vector.extract_strided_slice %39 {offsets = [7, 0], sizes = [1, 32], strides = [1, 1]} : vector<8x32xf32> to vector<1x32xf32>
    %c0_82 = arith.constant 0 : index
    %c0_83 = arith.constant 0 : index
    %388 = vector.load %arg15[%c0_82, %c0_83] : memref<1x32xf32, #tpu.memory_space<vmem>>, vector<1x32xf32>
    tpu.vector_store %arg15[%c0_82, %c0_83], %387 {strides = array<i32>} : memref<1x32xf32, #tpu.memory_space<vmem>>, vector<1x32xf32>,
    %389 = vector.extract_strided_slice %367 {offsets = [7, 0], sizes = [1, 32], strides = [1, 1]} : vector<8x32xf32> to vector<1x32xf32>
    %c0_84 = arith.constant 0 : index
    %c0_85 = arith.constant 0 : index
    %390 = vector.load %arg16[%c0_84, %c0_85] : memref<1x32xf32, #tpu.memory_space<vmem>>, vector<1x32xf32>
    tpu.vector_store %arg16[%c0_84, %c0_85], %389 {strides = array<i32>} : memref<1x32xf32, #tpu.memory_space<vmem>>, vector<1x32xf32>,
    return
  }
}

module attributes {stable_mosaic.version = 11 : i64} {
  func.func @_block_kernel(%arg0: memref<8x32xf32, #tpu.memory_space<vmem>>, %arg1: memref<8x32xf32, #tpu.memory_space<vmem>>, %arg2: memref<1x32xf32, #tpu.memory_space<vmem>>, %arg3: memref<1x32xf32, #tpu.memory_space<vmem>>, %arg4: memref<16x32xf32, #tpu.memory_space<vmem>>, %arg5: memref<19x32xf32, #tpu.memory_space<vmem>>, %arg6: memref<32x160xf32, #tpu.memory_space<vmem>>, %arg7: memref<16x128xf32, #tpu.memory_space<vmem>>, %arg8: memref<32x32xf32, #tpu.memory_space<vmem>>, %arg9: memref<32x128xf32, #tpu.memory_space<vmem>>, %arg10: memref<128x32xf32, #tpu.memory_space<vmem>>, %arg11: memref<32x32xf32, #tpu.memory_space<vmem>>, %arg12: memref<16x32xf32, #tpu.memory_space<vmem>>, %arg13: memref<8x32xf32, #tpu.memory_space<vmem>>, %arg14: memref<8x32xf32, #tpu.memory_space<vmem>>, %arg15: memref<1x32xf32, #tpu.memory_space<vmem>>, %arg16: memref<1x32xf32, #tpu.memory_space<vmem>>, %arg17: memref<16x32xf32, #tpu.memory_space<vmem>>) attributes {dimension_semantics = [], scalar_prefetch = 0 : i64, scratch_operands = 0 : i64, tpu.core_type = #tpu.core_type<tc>} {
    %c0 = arith.constant 0 : index
    %c0_0 = arith.constant 0 : index
    %0 = vector.load %arg0[%c0, %c0_0] : memref<8x32xf32, #tpu.memory_space<vmem>>, vector<8x32xf32>
    %c0_1 = arith.constant 0 : index
    %c0_2 = arith.constant 0 : index
    %1 = vector.load %arg5[%c0_1, %c0_2] : memref<19x32xf32, #tpu.memory_space<vmem>>, vector<19x32xf32>
    %c0_3 = arith.constant 0 : index
    %c0_4 = arith.constant 0 : index
    %2 = vector.load %arg11[%c0_3, %c0_4] : memref<32x32xf32, #tpu.memory_space<vmem>>, vector<32x32xf32>
    %c0_5 = arith.constant 0 : index
    %c0_6 = arith.constant 0 : index
    %3 = vector.load %arg12[%c0_5, %c0_6] : memref<16x32xf32, #tpu.memory_space<vmem>>, vector<16x32xf32>
    %4 = tpu.iota {dimensions = array<i32: 0>} : vector<8x8xi32>
    %5 = tpu.iota {dimensions = array<i32: 1>} : vector<8x8xi32>
    %c1_i32 = arith.constant 1 : i32
    %6 = vector.broadcast %c1_i32 : i32 to vector<8x8xi32>
    %7 = arith.addi %5, %6 : vector<8x8xi32>
    %8 = arith.cmpi eq, %4, %7 : vector<8x8xi32>
    %9 = arith.extui %8 : vector<8x8xi1> to vector<8x8xi32>
    %10 = arith.sitofp %9 : vector<8x8xi32> to vector<8x8xf32>
    %11 = tpu.iota {dimensions = array<i32: 0>} : vector<8x32xi32>
    %c0_i32 = arith.constant 0 : i32
    %12 = vector.broadcast %c0_i32 : i32 to vector<8x32xi32>
    %13 = arith.cmpi eq, %11, %12 : vector<8x32xi32>
    %14 = arith.extui %13 : vector<8x32xi1> to vector<8x32xi32>
    %15 = arith.sitofp %14 : vector<8x32xi32> to vector<8x32xf32>
    %16 = vector.extract_strided_slice %1 {offsets = [0, 0], sizes = [1, 32], strides = [1, 1]} : vector<19x32xf32> to vector<1x32xf32>
    %17 = vector.extract_strided_slice %1 {offsets = [1, 0], sizes = [1, 32], strides = [1, 1]} : vector<19x32xf32> to vector<1x32xf32>
    %cst = arith.constant dense<0.000000e+00> : vector<8xf32>
    %18 = vector.multi_reduction <add>, %0, %cst [1] : vector<8x32xf32> to vector<8xf32>
    %19 = vector.shape_cast %18 : vector<8xf32> to vector<8x1xf32>
    %cst_7 = arith.constant 3.200000e+01 : f32
    %20 = vector.broadcast %cst_7 : f32 to vector<8x1xf32>
    %21 = arith.divf %19, %20 : vector<8x1xf32>
    %22 = vector.broadcast %21 : vector<8x1xf32> to vector<8x32xf32>
    %23 = arith.subf %0, %22 : vector<8x32xf32>
    %24 = arith.mulf %23, %23 : vector<8x32xf32>
    %cst_8 = arith.constant dense<0.000000e+00> : vector<8xf32>
    %25 = vector.multi_reduction <add>, %24, %cst_8 [1] : vector<8x32xf32> to vector<8xf32>
    %26 = vector.shape_cast %25 : vector<8xf32> to vector<8x1xf32>
    %cst_9 = arith.constant 3.200000e+01 : f32
    %27 = vector.broadcast %cst_9 : f32 to vector<8x1xf32>
    %28 = arith.divf %26, %27 : vector<8x1xf32>
    %29 = vector.broadcast %21 : vector<8x1xf32> to vector<8x32xf32>
    %30 = arith.subf %0, %29 : vector<8x32xf32>
    %cst_10 = arith.constant 9.99999974E-6 : f32
    %31 = vector.broadcast %cst_10 : f32 to vector<8x1xf32>
    %32 = arith.addf %28, %31 : vector<8x1xf32>
    %33 = math.sqrt %32 : vector<8x1xf32>
    %34 = vector.broadcast %33 : vector<8x1xf32> to vector<8x32xf32>
    %35 = arith.divf %30, %34 : vector<8x32xf32>
    %36 = vector.broadcast %16 : vector<1x32xf32> to vector<8x32xf32>
    %37 = arith.mulf %35, %36 : vector<8x32xf32>
    %38 = vector.broadcast %17 : vector<1x32xf32> to vector<8x32xf32>
    %39 = arith.addf %37, %38 : vector<8x32xf32>
    %cst_11 = arith.constant dense<0.000000e+00> : vector<8x32xf32>
    %40 = tpu.matmul %10, %39, %cst_11 {dimension_numbers = #tpu.dot_dimension_numbers<[1], [0], [0], [1], [0, 0, 1, 1], [], []>} : vector<8x8xf32>, vector<8x32xf32>, vector<8x32xf32> -> vector<8x32xf32>
    %c0_12 = arith.constant 0 : index
    %c0_13 = arith.constant 0 : index
    %41 = vector.load %arg2[%c0_12, %c0_13] : memref<1x32xf32, #tpu.memory_space<vmem>>, vector<1x32xf32>
    %42 = vector.broadcast %41 : vector<1x32xf32> to vector<8x32xf32>
    %43 = arith.mulf %15, %42 : vector<8x32xf32>
    %44 = arith.addf %40, %43 : vector<8x32xf32>
    %45 = arith.subf %44, %39 : vector<8x32xf32>
    %46 = vector.extract_strided_slice %1 {offsets = [13, 0], sizes = [1, 32], strides = [1, 1]} : vector<19x32xf32> to vector<1x32xf32>
    %47 = vector.broadcast %46 : vector<1x32xf32> to vector<8x32xf32>
    %48 = arith.mulf %45, %47 : vector<8x32xf32>
    %49 = arith.addf %39, %48 : vector<8x32xf32>
    %50 = vector.extract_strided_slice %1 {offsets = [14, 0], sizes = [1, 32], strides = [1, 1]} : vector<19x32xf32> to vector<1x32xf32>
    %51 = vector.broadcast %50 : vector<1x32xf32> to vector<8x32xf32>
    %52 = arith.mulf %45, %51 : vector<8x32xf32>
    %53 = arith.addf %39, %52 : vector<8x32xf32>
    %54 = vector.extract_strided_slice %1 {offsets = [15, 0], sizes = [1, 32], strides = [1, 1]} : vector<19x32xf32> to vector<1x32xf32>
    %55 = vector.broadcast %54 : vector<1x32xf32> to vector<8x32xf32>
    %56 = arith.mulf %45, %55 : vector<8x32xf32>
    %57 = arith.addf %39, %56 : vector<8x32xf32>
    %58 = vector.extract_strided_slice %1 {offsets = [16, 0], sizes = [1, 32], strides = [1, 1]} : vector<19x32xf32> to vector<1x32xf32>
    %59 = vector.broadcast %58 : vector<1x32xf32> to vector<8x32xf32>
    %60 = arith.mulf %45, %59 : vector<8x32xf32>
    %61 = arith.addf %39, %60 : vector<8x32xf32>
    %62 = vector.extract_strided_slice %1 {offsets = [17, 0], sizes = [1, 32], strides = [1, 1]} : vector<19x32xf32> to vector<1x32xf32>
    %63 = vector.broadcast %62 : vector<1x32xf32> to vector<8x32xf32>
    %64 = arith.mulf %45, %63 : vector<8x32xf32>
    %65 = arith.addf %39, %64 : vector<8x32xf32>
    %66 = vector.extract_strided_slice %1 {offsets = [18, 0], sizes = [1, 32], strides = [1, 1]} : vector<19x32xf32> to vector<1x32xf32>
    %67 = vector.broadcast %66 : vector<1x32xf32> to vector<8x32xf32>
    %68 = arith.mulf %45, %67 : vector<8x32xf32>
    %69 = arith.addf %39, %68 : vector<8x32xf32>
    %70 = tpu.concatenate %49, %53, %57, %61, %65, %69 in 0 : vector<8x32xf32>, vector<8x32xf32>, vector<8x32xf32>, vector<8x32xf32>, vector<8x32xf32>, vector<8x32xf32> -> vector<48x32xf32>
    %c0_14 = arith.constant 0 : index
    %c0_15 = arith.constant 0 : index
    %71 = vector.load %arg6[%c0_14, %c0_15] : memref<32x160xf32, #tpu.memory_space<vmem>>, vector<32x160xf32>
    %cst_16 = arith.constant dense<0.000000e+00> : vector<48x160xf32>
    %72 = tpu.matmul %70, %71, %cst_16 {dimension_numbers = #tpu.dot_dimension_numbers<[1], [0], [0], [1], [0, 0, 1, 1], [], []>} : vector<48x32xf32>, vector<32x160xf32>, vector<48x160xf32> -> vector<48x160xf32>
    %73 = vector.extract_strided_slice %72 {offsets = [0, 0], sizes = [8, 32], strides = [1, 1]} : vector<48x160xf32> to vector<8x32xf32>
    %74 = vector.extract_strided_slice %72 {offsets = [8, 96], sizes = [8, 16], strides = [1, 1]} : vector<48x160xf32> to vector<8x16xf32>
    %75 = vector.extract_strided_slice %72 {offsets = [16, 32], sizes = [8, 32], strides = [1, 1]} : vector<48x160xf32> to vector<8x32xf32>
    %76 = vector.extract_strided_slice %72 {offsets = [24, 64], sizes = [8, 32], strides = [1, 1]} : vector<48x160xf32> to vector<8x32xf32>
    %77 = vector.extract_strided_slice %72 {offsets = [24, 144], sizes = [8, 16], strides = [1, 1]} : vector<48x160xf32> to vector<8x16xf32>
    %78 = vector.extract_strided_slice %72 {offsets = [32, 112], sizes = [8, 16], strides = [1, 1]} : vector<48x160xf32> to vector<8x16xf32>
    %79 = vector.extract_strided_slice %72 {offsets = [40, 128], sizes = [8, 16], strides = [1, 1]} : vector<48x160xf32> to vector<8x16xf32>
    %80 = math.tanh %74 : vector<8x16xf32>
    %81 = arith.negf %79 : vector<8x16xf32>
    %82 = math.exp %81 : vector<8x16xf32>
    %cst_17 = arith.constant 1.000000e+00 : f32
    %83 = vector.broadcast %cst_17 : f32 to vector<8x16xf32>
    %84 = arith.addf %83, %82 : vector<8x16xf32>
    %85 = arith.divf %83, %84 : vector<8x16xf32>
    %86 = tpu.concatenate %80, %78, %85, %77 in 0 : vector<8x16xf32>, vector<8x16xf32>, vector<8x16xf32>, vector<8x16xf32> -> vector<32x16xf32>
    %c0_18 = arith.constant 0 : index
    %c0_19 = arith.constant 0 : index
    %87 = vector.load %arg7[%c0_18, %c0_19] : memref<16x128xf32, #tpu.memory_space<vmem>>, vector<16x128xf32>
    %cst_20 = arith.constant dense<0.000000e+00> : vector<32x128xf32>
    %88 = tpu.matmul %86, %87, %cst_20 {dimension_numbers = #tpu.dot_dimension_numbers<[1], [0], [0], [1], [0, 0, 1, 1], [], []>} : vector<32x16xf32>, vector<16x128xf32>, vector<32x128xf32> -> vector<32x128xf32>
    %89 = vector.extract_strided_slice %88 {offsets = [0, 0], sizes = [8, 32], strides = [1, 1]} : vector<32x128xf32> to vector<8x32xf32>
    %90 = vector.extract_strided_slice %88 {offsets = [8, 32], sizes = [8, 32], strides = [1, 1]} : vector<32x128xf32> to vector<8x32xf32>
    %91 = vector.extract_strided_slice %88 {offsets = [16, 64], sizes = [8, 32], strides = [1, 1]} : vector<32x128xf32> to vector<8x32xf32>
    %92 = vector.extract_strided_slice %1 {offsets = [4, 0], sizes = [1, 32], strides = [1, 1]} : vector<19x32xf32> to vector<1x32xf32>
    %93 = vector.broadcast %92 : vector<1x32xf32> to vector<8x32xf32>
    %94 = arith.addf %93, %89 : vector<8x32xf32>
    %95 = arith.negf %94 : vector<8x32xf32>
    %96 = math.exp %95 : vector<8x32xf32>
    %cst_21 = arith.constant 1.000000e+00 : f32
    %97 = vector.broadcast %cst_21 : f32 to vector<8x32xf32>
    %98 = arith.addf %97, %96 : vector<8x32xf32>
    %99 = arith.divf %97, %98 : vector<8x32xf32>
    %cst_22 = arith.constant -6.065310e-01 : f32
    %100 = vector.broadcast %cst_22 : f32 to vector<8x32xf32>
    %101 = arith.mulf %100, %99 : vector<8x32xf32>
    %102 = math.exp %101 : vector<8x32xf32>
    %103 = vector.extract_strided_slice %1 {offsets = [5, 0], sizes = [1, 32], strides = [1, 1]} : vector<19x32xf32> to vector<1x32xf32>
    %104 = vector.broadcast %103 : vector<1x32xf32> to vector<8x32xf32>
    %105 = arith.addf %104, %90 : vector<8x32xf32>
    %106 = arith.negf %105 : vector<8x32xf32>
    %107 = math.exp %106 : vector<8x32xf32>
    %cst_23 = arith.constant 1.000000e+00 : f32
    %108 = vector.broadcast %cst_23 : f32 to vector<8x32xf32>
    %109 = arith.addf %108, %107 : vector<8x32xf32>
    %110 = arith.divf %108, %109 : vector<8x32xf32>
    %111 = vector.extract_strided_slice %1 {offsets = [7, 0], sizes = [1, 32], strides = [1, 1]} : vector<19x32xf32> to vector<1x32xf32>
    %112 = vector.broadcast %111 : vector<1x32xf32> to vector<8x32xf32>
    %113 = arith.mulf %75, %112 : vector<8x32xf32>
    %114 = arith.mulf %113, %113 : vector<8x32xf32>
    %cst_24 = arith.constant dense<0.000000e+00> : vector<8x32xf32>
    %115 = tpu.matmul %114, %2, %cst_24 {dimension_numbers = #tpu.dot_dimension_numbers<[1], [0], [0], [1], [0, 0, 1, 1], [], []>} : vector<8x32xf32>, vector<32x32xf32>, vector<8x32xf32> -> vector<8x32xf32>
    %116 = math.sqrt %115 : vector<8x32xf32>
    %cst_25 = arith.constant 9.99999996E-13 : f32
    %117 = vector.broadcast %cst_25 : f32 to vector<8x32xf32>
    %118 = arith.maximumf %116, %117 : vector<8x32xf32>
    %119 = arith.divf %113, %118 : vector<8x32xf32>
    %cst_26 = arith.constant 1.000000e+00 : f32
    %120 = vector.broadcast %cst_26 : f32 to vector<8x32xf32>
    %121 = arith.subf %110, %120 : vector<8x32xf32>
    %122 = vector.extract_strided_slice %1 {offsets = [8, 0], sizes = [1, 32], strides = [1, 1]} : vector<19x32xf32> to vector<1x32xf32>
    %123 = vector.broadcast %122 : vector<1x32xf32> to vector<8x32xf32>
    %124 = arith.mulf %121, %123 : vector<8x32xf32>
    %cst_27 = arith.constant 1.000000e+00 : f32
    %125 = vector.broadcast %cst_27 : f32 to vector<8x32xf32>
    %126 = arith.addf %125, %124 : vector<8x32xf32>
    %127 = arith.mulf %75, %126 : vector<8x32xf32>
    %c0_28 = arith.constant 0 : index
    %c0_29 = arith.constant 0 : index
    %128 = vector.load %arg14[%c0_28, %c0_29] : memref<8x32xf32, #tpu.memory_space<vmem>>, vector<8x32xf32>
    tpu.vector_store %arg14[%c0_28, %c0_29], %76 {strides = array<i32>} : memref<8x32xf32, #tpu.memory_space<vmem>>, vector<8x32xf32>,
    %cst_30 = arith.constant 0.000000e+00 : f32
    %129 = vector.broadcast %cst_30 : f32 to vector<8x32xf32>
    %130 = arith.subf %129, %119 : vector<8x32xf32>
    %131 = arith.mulf %119, %110 : vector<8x32xf32>
    %132 = vector.shape_cast %3 : vector<16x32xf32> to vector<1x16x32xf32>
    %133 = vector.shape_cast %76 : vector<8x32xf32> to vector<8x1x32xf32>
    %134 = vector.broadcast %132 : vector<1x16x32xf32> to vector<8x16x32xf32>
    %135 = vector.broadcast %133 : vector<8x1x32xf32> to vector<8x16x32xf32>
    %136 = arith.mulf %134, %135 : vector<8x16x32xf32>
    %137 = vector.shape_cast %136 : vector<8x16x32xf32> to vector<128x32xf32>
    %cst_31 = arith.constant dense<0.000000e+00> : vector<128x32xf32>
    %138 = tpu.matmul %137, %2, %cst_31 {dimension_numbers = #tpu.dot_dimension_numbers<[1], [0], [0], [1], [0, 0, 1, 1], [], []>} : vector<128x32xf32>, vector<32x32xf32>, vector<128x32xf32> -> vector<128x32xf32>
    %139 = vector.shape_cast %138 : vector<128x32xf32> to vector<8x16x32xf32>
    %140 = vector.shape_cast %127 : vector<8x32xf32> to vector<8x1x32xf32>
    %141 = vector.broadcast %140 : vector<8x1x32xf32> to vector<8x16x32xf32>
    %142 = arith.mulf %139, %141 : vector<8x16x32xf32>
    %c0_32 = arith.constant 0 : index
    %c0_33 = arith.constant 0 : index
    %143 = vector.load %arg4[%c0_32, %c0_33] : memref<16x32xf32, #tpu.memory_space<vmem>>, vector<16x32xf32>
    %144 = vector.extract_strided_slice %130 {offsets = [0, 0], sizes = [1, 32], strides = [1, 1]} : vector<8x32xf32> to vector<1x32xf32>
    %145 = vector.broadcast %144 : vector<1x32xf32> to vector<16x32xf32>
    %146 = arith.mulf %143, %145 : vector<16x32xf32>
    %cst_34 = arith.constant dense<0.000000e+00> : vector<16x32xf32>
    %147 = tpu.matmul %146, %2, %cst_34 {dimension_numbers = #tpu.dot_dimension_numbers<[1], [0], [0], [1], [0, 0, 1, 1], [], []>} : vector<16x32xf32>, vector<32x32xf32>, vector<16x32xf32> -> vector<16x32xf32>
    %148 = vector.extract_strided_slice %102 {offsets = [0, 0], sizes = [1, 32], strides = [1, 1]} : vector<8x32xf32> to vector<1x32xf32>
    %149 = vector.broadcast %148 : vector<1x32xf32> to vector<16x32xf32>
    %150 = arith.mulf %143, %149 : vector<16x32xf32>
    %151 = vector.extract_strided_slice %131 {offsets = [0, 0], sizes = [1, 32], strides = [1, 1]} : vector<8x32xf32> to vector<1x32xf32>
    %152 = vector.broadcast %151 : vector<1x32xf32> to vector<16x32xf32>
    %153 = arith.mulf %147, %152 : vector<16x32xf32>
    %154 = arith.addf %150, %153 : vector<16x32xf32>
    %155 = vector.extract_strided_slice %142 {offsets = [0, 0, 0], sizes = [1, 16, 32], strides = [1, 1, 1]} : vector<8x16x32xf32> to vector<1x16x32xf32>
    %156 = vector.shape_cast %155 : vector<1x16x32xf32> to vector<16x32xf32>
    %157 = arith.addf %154, %156 : vector<16x32xf32>
    %158 = vector.extract_strided_slice %73 {offsets = [0, 0], sizes = [1, 32], strides = [1, 1]} : vector<8x32xf32> to vector<1x32xf32>
    %159 = vector.broadcast %158 : vector<1x32xf32> to vector<16x32xf32>
    %160 = arith.mulf %157, %159 : vector<16x32xf32>
    %cst_35 = arith.constant dense<0.000000e+00> : vector<16x32xf32>
    %161 = tpu.matmul %160, %2, %cst_35 {dimension_numbers = #tpu.dot_dimension_numbers<[1], [0], [0], [1], [0, 0, 1, 1], [], []>} : vector<16x32xf32>, vector<32x32xf32>, vector<16x32xf32> -> vector<16x32xf32>
    %162 = vector.extract_strided_slice %130 {offsets = [1, 0], sizes = [1, 32], strides = [1, 1]} : vector<8x32xf32> to vector<1x32xf32>
    %163 = vector.broadcast %162 : vector<1x32xf32> to vector<16x32xf32>
    %164 = arith.mulf %157, %163 : vector<16x32xf32>
    %cst_36 = arith.constant dense<0.000000e+00> : vector<16x32xf32>
    %165 = tpu.matmul %164, %2, %cst_36 {dimension_numbers = #tpu.dot_dimension_numbers<[1], [0], [0], [1], [0, 0, 1, 1], [], []>} : vector<16x32xf32>, vector<32x32xf32>, vector<16x32xf32> -> vector<16x32xf32>
    %166 = vector.extract_strided_slice %102 {offsets = [1, 0], sizes = [1, 32], strides = [1, 1]} : vector<8x32xf32> to vector<1x32xf32>
    %167 = vector.broadcast %166 : vector<1x32xf32> to vector<16x32xf32>
    %168 = arith.mulf %157, %167 : vector<16x32xf32>
    %169 = vector.extract_strided_slice %131 {offsets = [1, 0], sizes = [1, 32], strides = [1, 1]} : vector<8x32xf32> to vector<1x32xf32>
    %170 = vector.broadcast %169 : vector<1x32xf32> to vector<16x32xf32>
    %171 = arith.mulf %165, %170 : vector<16x32xf32>
    %172 = arith.addf %168, %171 : vector<16x32xf32>
    %173 = vector.extract_strided_slice %142 {offsets = [1, 0, 0], sizes = [1, 16, 32], strides = [1, 1, 1]} : vector<8x16x32xf32> to vector<1x16x32xf32>
    %174 = vector.shape_cast %173 : vector<1x16x32xf32> to vector<16x32xf32>
    %175 = arith.addf %172, %174 : vector<16x32xf32>
    %176 = vector.extract_strided_slice %73 {offsets = [1, 0], sizes = [1, 32], strides = [1, 1]} : vector<8x32xf32> to vector<1x32xf32>
    %177 = vector.broadcast %176 : vector<1x32xf32> to vector<16x32xf32>
    %178 = arith.mulf %175, %177 : vector<16x32xf32>
    %cst_37 = arith.constant dense<0.000000e+00> : vector<16x32xf32>
    %179 = tpu.matmul %178, %2, %cst_37 {dimension_numbers = #tpu.dot_dimension_numbers<[1], [0], [0], [1], [0, 0, 1, 1], [], []>} : vector<16x32xf32>, vector<32x32xf32>, vector<16x32xf32> -> vector<16x32xf32>
    %180 = vector.extract_strided_slice %130 {offsets = [2, 0], sizes = [1, 32], strides = [1, 1]} : vector<8x32xf32> to vector<1x32xf32>
    %181 = vector.broadcast %180 : vector<1x32xf32> to vector<16x32xf32>
    %182 = arith.mulf %175, %181 : vector<16x32xf32>
    %cst_38 = arith.constant dense<0.000000e+00> : vector<16x32xf32>
    %183 = tpu.matmul %182, %2, %cst_38 {dimension_numbers = #tpu.dot_dimension_numbers<[1], [0], [0], [1], [0, 0, 1, 1], [], []>} : vector<16x32xf32>, vector<32x32xf32>, vector<16x32xf32> -> vector<16x32xf32>
    %184 = vector.extract_strided_slice %102 {offsets = [2, 0], sizes = [1, 32], strides = [1, 1]} : vector<8x32xf32> to vector<1x32xf32>
    %185 = vector.broadcast %184 : vector<1x32xf32> to vector<16x32xf32>
    %186 = arith.mulf %175, %185 : vector<16x32xf32>
    %187 = vector.extract_strided_slice %131 {offsets = [2, 0], sizes = [1, 32], strides = [1, 1]} : vector<8x32xf32> to vector<1x32xf32>
    %188 = vector.broadcast %187 : vector<1x32xf32> to vector<16x32xf32>
    %189 = arith.mulf %183, %188 : vector<16x32xf32>
    %190 = arith.addf %186, %189 : vector<16x32xf32>
    %191 = vector.extract_strided_slice %142 {offsets = [2, 0, 0], sizes = [1, 16, 32], strides = [1, 1, 1]} : vector<8x16x32xf32> to vector<1x16x32xf32>
    %192 = vector.shape_cast %191 : vector<1x16x32xf32> to vector<16x32xf32>
    %193 = arith.addf %190, %192 : vector<16x32xf32>
    %194 = vector.extract_strided_slice %73 {offsets = [2, 0], sizes = [1, 32], strides = [1, 1]} : vector<8x32xf32> to vector<1x32xf32>
    %195 = vector.broadcast %194 : vector<1x32xf32> to vector<16x32xf32>
    %196 = arith.mulf %193, %195 : vector<16x32xf32>
    %cst_39 = arith.constant dense<0.000000e+00> : vector<16x32xf32>
    %197 = tpu.matmul %196, %2, %cst_39 {dimension_numbers = #tpu.dot_dimension_numbers<[1], [0], [0], [1], [0, 0, 1, 1], [], []>} : vector<16x32xf32>, vector<32x32xf32>, vector<16x32xf32> -> vector<16x32xf32>
    %198 = vector.extract_strided_slice %130 {offsets = [3, 0], sizes = [1, 32], strides = [1, 1]} : vector<8x32xf32> to vector<1x32xf32>
    %199 = vector.broadcast %198 : vector<1x32xf32> to vector<16x32xf32>
    %200 = arith.mulf %193, %199 : vector<16x32xf32>
    %cst_40 = arith.constant dense<0.000000e+00> : vector<16x32xf32>
    %201 = tpu.matmul %200, %2, %cst_40 {dimension_numbers = #tpu.dot_dimension_numbers<[1], [0], [0], [1], [0, 0, 1, 1], [], []>} : vector<16x32xf32>, vector<32x32xf32>, vector<16x32xf32> -> vector<16x32xf32>
    %202 = vector.extract_strided_slice %102 {offsets = [3, 0], sizes = [1, 32], strides = [1, 1]} : vector<8x32xf32> to vector<1x32xf32>
    %203 = vector.broadcast %202 : vector<1x32xf32> to vector<16x32xf32>
    %204 = arith.mulf %193, %203 : vector<16x32xf32>
    %205 = vector.extract_strided_slice %131 {offsets = [3, 0], sizes = [1, 32], strides = [1, 1]} : vector<8x32xf32> to vector<1x32xf32>
    %206 = vector.broadcast %205 : vector<1x32xf32> to vector<16x32xf32>
    %207 = arith.mulf %201, %206 : vector<16x32xf32>
    %208 = arith.addf %204, %207 : vector<16x32xf32>
    %209 = vector.extract_strided_slice %142 {offsets = [3, 0, 0], sizes = [1, 16, 32], strides = [1, 1, 1]} : vector<8x16x32xf32> to vector<1x16x32xf32>
    %210 = vector.shape_cast %209 : vector<1x16x32xf32> to vector<16x32xf32>
    %211 = arith.addf %208, %210 : vector<16x32xf32>
    %212 = vector.extract_strided_slice %73 {offsets = [3, 0], sizes = [1, 32], strides = [1, 1]} : vector<8x32xf32> to vector<1x32xf32>
    %213 = vector.broadcast %212 : vector<1x32xf32> to vector<16x32xf32>
    %214 = arith.mulf %211, %213 : vector<16x32xf32>
    %cst_41 = arith.constant dense<0.000000e+00> : vector<16x32xf32>
    %215 = tpu.matmul %214, %2, %cst_41 {dimension_numbers = #tpu.dot_dimension_numbers<[1], [0], [0], [1], [0, 0, 1, 1], [], []>} : vector<16x32xf32>, vector<32x32xf32>, vector<16x32xf32> -> vector<16x32xf32>
    %216 = vector.extract_strided_slice %130 {offsets = [4, 0], sizes = [1, 32], strides = [1, 1]} : vector<8x32xf32> to vector<1x32xf32>
    %217 = vector.broadcast %216 : vector<1x32xf32> to vector<16x32xf32>
    %218 = arith.mulf %211, %217 : vector<16x32xf32>
    %cst_42 = arith.constant dense<0.000000e+00> : vector<16x32xf32>
    %219 = tpu.matmul %218, %2, %cst_42 {dimension_numbers = #tpu.dot_dimension_numbers<[1], [0], [0], [1], [0, 0, 1, 1], [], []>} : vector<16x32xf32>, vector<32x32xf32>, vector<16x32xf32> -> vector<16x32xf32>
    %220 = vector.extract_strided_slice %102 {offsets = [4, 0], sizes = [1, 32], strides = [1, 1]} : vector<8x32xf32> to vector<1x32xf32>
    %221 = vector.broadcast %220 : vector<1x32xf32> to vector<16x32xf32>
    %222 = arith.mulf %211, %221 : vector<16x32xf32>
    %223 = vector.extract_strided_slice %131 {offsets = [4, 0], sizes = [1, 32], strides = [1, 1]} : vector<8x32xf32> to vector<1x32xf32>
    %224 = vector.broadcast %223 : vector<1x32xf32> to vector<16x32xf32>
    %225 = arith.mulf %219, %224 : vector<16x32xf32>
    %226 = arith.addf %222, %225 : vector<16x32xf32>
    %227 = vector.extract_strided_slice %142 {offsets = [4, 0, 0], sizes = [1, 16, 32], strides = [1, 1, 1]} : vector<8x16x32xf32> to vector<1x16x32xf32>
    %228 = vector.shape_cast %227 : vector<1x16x32xf32> to vector<16x32xf32>
    %229 = arith.addf %226, %228 : vector<16x32xf32>
    %230 = vector.extract_strided_slice %73 {offsets = [4, 0], sizes = [1, 32], strides = [1, 1]} : vector<8x32xf32> to vector<1x32xf32>
    %231 = vector.broadcast %230 : vector<1x32xf32> to vector<16x32xf32>
    %232 = arith.mulf %229, %231 : vector<16x32xf32>
    %cst_43 = arith.constant dense<0.000000e+00> : vector<16x32xf32>
    %233 = tpu.matmul %232, %2, %cst_43 {dimension_numbers = #tpu.dot_dimension_numbers<[1], [0], [0], [1], [0, 0, 1, 1], [], []>} : vector<16x32xf32>, vector<32x32xf32>, vector<16x32xf32> -> vector<16x32xf32>
    %234 = vector.extract_strided_slice %130 {offsets = [5, 0], sizes = [1, 32], strides = [1, 1]} : vector<8x32xf32> to vector<1x32xf32>
    %235 = vector.broadcast %234 : vector<1x32xf32> to vector<16x32xf32>
    %236 = arith.mulf %229, %235 : vector<16x32xf32>
    %cst_44 = arith.constant dense<0.000000e+00> : vector<16x32xf32>
    %237 = tpu.matmul %236, %2, %cst_44 {dimension_numbers = #tpu.dot_dimension_numbers<[1], [0], [0], [1], [0, 0, 1, 1], [], []>} : vector<16x32xf32>, vector<32x32xf32>, vector<16x32xf32> -> vector<16x32xf32>
    %238 = vector.extract_strided_slice %102 {offsets = [5, 0], sizes = [1, 32], strides = [1, 1]} : vector<8x32xf32> to vector<1x32xf32>
    %239 = vector.broadcast %238 : vector<1x32xf32> to vector<16x32xf32>
    %240 = arith.mulf %229, %239 : vector<16x32xf32>
    %241 = vector.extract_strided_slice %131 {offsets = [5, 0], sizes = [1, 32], strides = [1, 1]} : vector<8x32xf32> to vector<1x32xf32>
    %242 = vector.broadcast %241 : vector<1x32xf32> to vector<16x32xf32>
    %243 = arith.mulf %237, %242 : vector<16x32xf32>
    %244 = arith.addf %240, %243 : vector<16x32xf32>
    %245 = vector.extract_strided_slice %142 {offsets = [5, 0, 0], sizes = [1, 16, 32], strides = [1, 1, 1]} : vector<8x16x32xf32> to vector<1x16x32xf32>
    %246 = vector.shape_cast %245 : vector<1x16x32xf32> to vector<16x32xf32>
    %247 = arith.addf %244, %246 : vector<16x32xf32>
    %248 = vector.extract_strided_slice %73 {offsets = [5, 0], sizes = [1, 32], strides = [1, 1]} : vector<8x32xf32> to vector<1x32xf32>
    %249 = vector.broadcast %248 : vector<1x32xf32> to vector<16x32xf32>
    %250 = arith.mulf %247, %249 : vector<16x32xf32>
    %cst_45 = arith.constant dense<0.000000e+00> : vector<16x32xf32>
    %251 = tpu.matmul %250, %2, %cst_45 {dimension_numbers = #tpu.dot_dimension_numbers<[1], [0], [0], [1], [0, 0, 1, 1], [], []>} : vector<16x32xf32>, vector<32x32xf32>, vector<16x32xf32> -> vector<16x32xf32>
    %252 = vector.extract_strided_slice %130 {offsets = [6, 0], sizes = [1, 32], strides = [1, 1]} : vector<8x32xf32> to vector<1x32xf32>
    %253 = vector.broadcast %252 : vector<1x32xf32> to vector<16x32xf32>
    %254 = arith.mulf %247, %253 : vector<16x32xf32>
    %cst_46 = arith.constant dense<0.000000e+00> : vector<16x32xf32>
    %255 = tpu.matmul %254, %2, %cst_46 {dimension_numbers = #tpu.dot_dimension_numbers<[1], [0], [0], [1], [0, 0, 1, 1], [], []>} : vector<16x32xf32>, vector<32x32xf32>, vector<16x32xf32> -> vector<16x32xf32>
    %256 = vector.extract_strided_slice %102 {offsets = [6, 0], sizes = [1, 32], strides = [1, 1]} : vector<8x32xf32> to vector<1x32xf32>
    %257 = vector.broadcast %256 : vector<1x32xf32> to vector<16x32xf32>
    %258 = arith.mulf %247, %257 : vector<16x32xf32>
    %259 = vector.extract_strided_slice %131 {offsets = [6, 0], sizes = [1, 32], strides = [1, 1]} : vector<8x32xf32> to vector<1x32xf32>
    %260 = vector.broadcast %259 : vector<1x32xf32> to vector<16x32xf32>
    %261 = arith.mulf %255, %260 : vector<16x32xf32>
    %262 = arith.addf %258, %261 : vector<16x32xf32>
    %263 = vector.extract_strided_slice %142 {offsets = [6, 0, 0], sizes = [1, 16, 32], strides = [1, 1, 1]} : vector<8x16x32xf32> to vector<1x16x32xf32>
    %264 = vector.shape_cast %263 : vector<1x16x32xf32> to vector<16x32xf32>
    %265 = arith.addf %262, %264 : vector<16x32xf32>
    %266 = vector.extract_strided_slice %73 {offsets = [6, 0], sizes = [1, 32], strides = [1, 1]} : vector<8x32xf32> to vector<1x32xf32>
    %267 = vector.broadcast %266 : vector<1x32xf32> to vector<16x32xf32>
    %268 = arith.mulf %265, %267 : vector<16x32xf32>
    %cst_47 = arith.constant dense<0.000000e+00> : vector<16x32xf32>
    %269 = tpu.matmul %268, %2, %cst_47 {dimension_numbers = #tpu.dot_dimension_numbers<[1], [0], [0], [1], [0, 0, 1, 1], [], []>} : vector<16x32xf32>, vector<32x32xf32>, vector<16x32xf32> -> vector<16x32xf32>
    %270 = vector.extract_strided_slice %130 {offsets = [7, 0], sizes = [1, 32], strides = [1, 1]} : vector<8x32xf32> to vector<1x32xf32>
    %271 = vector.broadcast %270 : vector<1x32xf32> to vector<16x32xf32>
    %272 = arith.mulf %265, %271 : vector<16x32xf32>
    %cst_48 = arith.constant dense<0.000000e+00> : vector<16x32xf32>
    %273 = tpu.matmul %272, %2, %cst_48 {dimension_numbers = #tpu.dot_dimension_numbers<[1], [0], [0], [1], [0, 0, 1, 1], [], []>} : vector<16x32xf32>, vector<32x32xf32>, vector<16x32xf32> -> vector<16x32xf32>
    %274 = vector.extract_strided_slice %102 {offsets = [7, 0], sizes = [1, 32], strides = [1, 1]} : vector<8x32xf32> to vector<1x32xf32>
    %275 = vector.broadcast %274 : vector<1x32xf32> to vector<16x32xf32>
    %276 = arith.mulf %265, %275 : vector<16x32xf32>
    %277 = vector.extract_strided_slice %131 {offsets = [7, 0], sizes = [1, 32], strides = [1, 1]} : vector<8x32xf32> to vector<1x32xf32>
    %278 = vector.broadcast %277 : vector<1x32xf32> to vector<16x32xf32>
    %279 = arith.mulf %273, %278 : vector<16x32xf32>
    %280 = arith.addf %276, %279 : vector<16x32xf32>
    %281 = vector.extract_strided_slice %142 {offsets = [7, 0, 0], sizes = [1, 16, 32], strides = [1, 1, 1]} : vector<8x16x32xf32> to vector<1x16x32xf32>
    %282 = vector.shape_cast %281 : vector<1x16x32xf32> to vector<16x32xf32>
    %283 = arith.addf %280, %282 : vector<16x32xf32>
    %284 = vector.extract_strided_slice %73 {offsets = [7, 0], sizes = [1, 32], strides = [1, 1]} : vector<8x32xf32> to vector<1x32xf32>
    %285 = vector.broadcast %284 : vector<1x32xf32> to vector<16x32xf32>
    %286 = arith.mulf %283, %285 : vector<16x32xf32>
    %cst_49 = arith.constant dense<0.000000e+00> : vector<16x32xf32>
    %287 = tpu.matmul %286, %2, %cst_49 {dimension_numbers = #tpu.dot_dimension_numbers<[1], [0], [0], [1], [0, 0, 1, 1], [], []>} : vector<16x32xf32>, vector<32x32xf32>, vector<16x32xf32> -> vector<16x32xf32>
    %c0_50 = arith.constant 0 : index
    %c0_51 = arith.constant 0 : index
    %288 = vector.load %arg17[%c0_50, %c0_51] : memref<16x32xf32, #tpu.memory_space<vmem>>, vector<16x32xf32>
    tpu.vector_store %arg17[%c0_50, %c0_51], %283 {strides = array<i32>} : memref<16x32xf32, #tpu.memory_space<vmem>>, vector<16x32xf32>,
    %289 = vector.shape_cast %161 : vector<16x32xf32> to vector<1x16x32xf32>
    %290 = vector.shape_cast %179 : vector<16x32xf32> to vector<1x16x32xf32>
    %291 = vector.shape_cast %197 : vector<16x32xf32> to vector<1x16x32xf32>
    %292 = vector.shape_cast %215 : vector<16x32xf32> to vector<1x16x32xf32>
    %293 = vector.shape_cast %233 : vector<16x32xf32> to vector<1x16x32xf32>
    %294 = vector.shape_cast %251 : vector<16x32xf32> to vector<1x16x32xf32>
    %295 = vector.shape_cast %269 : vector<16x32xf32> to vector<1x16x32xf32>
    %296 = vector.shape_cast %287 : vector<16x32xf32> to vector<1x16x32xf32>
    %297 = tpu.concatenate %289, %290, %291, %292, %293, %294, %295, %296 in 0 : vector<1x16x32xf32>, vector<1x16x32xf32>, vector<1x16x32xf32>, vector<1x16x32xf32>, vector<1x16x32xf32>, vector<1x16x32xf32>, vector<1x16x32xf32>, vector<1x16x32xf32> -> vector<8x16x32xf32>
    %298 = vector.shape_cast %3 : vector<16x32xf32> to vector<1x16x32xf32>
    %299 = vector.broadcast %298 : vector<1x16x32xf32> to vector<8x16x32xf32>
    %300 = arith.mulf %299, %297 : vector<8x16x32xf32>
    %cst_52 = arith.constant dense<0.000000e+00> : vector<8x32xf32>
    %301 = vector.multi_reduction <add>, %300, %cst_52 [1] : vector<8x16x32xf32> to vector<8x32xf32>
    %cst_53 = arith.constant dense<0.000000e+00> : vector<8x32xf32>
    %302 = tpu.matmul %301, %2, %cst_53 {dimension_numbers = #tpu.dot_dimension_numbers<[1], [0], [0], [1], [0, 0, 1, 1], [], []>} : vector<8x32xf32>, vector<32x32xf32>, vector<8x32xf32> -> vector<8x32xf32>
    %cst_54 = arith.constant 6.250000e-02 : f32
    %303 = vector.broadcast %cst_54 : f32 to vector<8x32xf32>
    %304 = arith.mulf %302, %303 : vector<8x32xf32>
    %305 = arith.subf %301, %304 : vector<8x32xf32>
    %306 = arith.mulf %305, %305 : vector<8x32xf32>
    %cst_55 = arith.constant dense<0.000000e+00> : vector<8x32xf32>
    %307 = tpu.matmul %306, %2, %cst_55 {dimension_numbers = #tpu.dot_dimension_numbers<[1], [0], [0], [1], [0, 0, 1, 1], [], []>} : vector<8x32xf32>, vector<32x32xf32>, vector<8x32xf32> -> vector<8x32xf32>
    %cst_56 = arith.constant 6.250000e-02 : f32
    %308 = vector.broadcast %cst_56 : f32 to vector<8x32xf32>
    %309 = arith.mulf %307, %308 : vector<8x32xf32>
    %cst_57 = arith.constant 6.400000e-04 : f32
    %310 = vector.broadcast %cst_57 : f32 to vector<8x32xf32>
    %311 = arith.addf %309, %310 : vector<8x32xf32>
    %312 = math.sqrt %311 : vector<8x32xf32>
    %313 = arith.divf %305, %312 : vector<8x32xf32>
    %314 = vector.extract_strided_slice %1 {offsets = [10, 0], sizes = [1, 32], strides = [1, 1]} : vector<19x32xf32> to vector<1x32xf32>
    %315 = vector.broadcast %314 : vector<1x32xf32> to vector<8x32xf32>
    %316 = arith.mulf %313, %315 : vector<8x32xf32>
    %317 = vector.extract_strided_slice %1 {offsets = [11, 0], sizes = [1, 32], strides = [1, 1]} : vector<19x32xf32> to vector<1x32xf32>
    %318 = vector.broadcast %317 : vector<1x32xf32> to vector<8x32xf32>
    %319 = arith.addf %316, %318 : vector<8x32xf32>
    %320 = arith.mulf %73, %127 : vector<8x32xf32>
    %321 = vector.extract_strided_slice %1 {offsets = [9, 0], sizes = [1, 32], strides = [1, 1]} : vector<19x32xf32> to vector<1x32xf32>
    %322 = vector.broadcast %321 : vector<1x32xf32> to vector<8x32xf32>
    %323 = arith.mulf %320, %322 : vector<8x32xf32>
    %cst_58 = arith.constant dense<0.000000e+00> : vector<8x32xf32>
    %324 = tpu.matmul %323, %2, %cst_58 {dimension_numbers = #tpu.dot_dimension_numbers<[1], [0], [0], [1], [0, 0, 1, 1], [], []>} : vector<8x32xf32>, vector<32x32xf32>, vector<8x32xf32> -> vector<8x32xf32>
    %325 = arith.mulf %324, %76 : vector<8x32xf32>
    %326 = arith.addf %319, %325 : vector<8x32xf32>
    %327 = arith.mulf %326, %91 : vector<8x32xf32>
    %c0_59 = arith.constant 0 : index
    %c0_60 = arith.constant 0 : index
    %328 = vector.load %arg8[%c0_59, %c0_60] : memref<32x32xf32, #tpu.memory_space<vmem>>, vector<32x32xf32>
    %cst_61 = arith.constant dense<0.000000e+00> : vector<8x32xf32>
    %329 = tpu.matmul %327, %328, %cst_61 {dimension_numbers = #tpu.dot_dimension_numbers<[1], [0], [0], [1], [0, 0, 1, 1], [], []>} : vector<8x32xf32>, vector<32x32xf32>, vector<8x32xf32> -> vector<8x32xf32>
    %330 = arith.addf %0, %329 : vector<8x32xf32>
    %331 = vector.extract_strided_slice %1 {offsets = [2, 0], sizes = [1, 32], strides = [1, 1]} : vector<19x32xf32> to vector<1x32xf32>
    %332 = vector.extract_strided_slice %1 {offsets = [3, 0], sizes = [1, 32], strides = [1, 1]} : vector<19x32xf32> to vector<1x32xf32>
    %cst_62 = arith.constant dense<0.000000e+00> : vector<8xf32>
    %333 = vector.multi_reduction <add>, %330, %cst_62 [1] : vector<8x32xf32> to vector<8xf32>
    %334 = vector.shape_cast %333 : vector<8xf32> to vector<8x1xf32>
    %cst_63 = arith.constant 3.200000e+01 : f32
    %335 = vector.broadcast %cst_63 : f32 to vector<8x1xf32>
    %336 = arith.divf %334, %335 : vector<8x1xf32>
    %337 = vector.broadcast %336 : vector<8x1xf32> to vector<8x32xf32>
    %338 = arith.subf %330, %337 : vector<8x32xf32>
    %339 = arith.mulf %338, %338 : vector<8x32xf32>
    %cst_64 = arith.constant dense<0.000000e+00> : vector<8xf32>
    %340 = vector.multi_reduction <add>, %339, %cst_64 [1] : vector<8x32xf32> to vector<8xf32>
    %341 = vector.shape_cast %340 : vector<8xf32> to vector<8x1xf32>
    %cst_65 = arith.constant 3.200000e+01 : f32
    %342 = vector.broadcast %cst_65 : f32 to vector<8x1xf32>
    %343 = arith.divf %341, %342 : vector<8x1xf32>
    %344 = vector.broadcast %336 : vector<8x1xf32> to vector<8x32xf32>
    %345 = arith.subf %330, %344 : vector<8x32xf32>
    %cst_66 = arith.constant 9.99999974E-6 : f32
    %346 = vector.broadcast %cst_66 : f32 to vector<8x1xf32>
    %347 = arith.addf %343, %346 : vector<8x1xf32>
    %348 = math.sqrt %347 : vector<8x1xf32>
    %349 = vector.broadcast %348 : vector<8x1xf32> to vector<8x32xf32>
    %350 = arith.divf %345, %349 : vector<8x32xf32>
    %351 = vector.broadcast %331 : vector<1x32xf32> to vector<8x32xf32>
    %352 = arith.mulf %350, %351 : vector<8x32xf32>
    %353 = vector.broadcast %332 : vector<1x32xf32> to vector<8x32xf32>
    %354 = arith.addf %352, %353 : vector<8x32xf32>
    %cst_67 = arith.constant dense<0.000000e+00> : vector<8x32xf32>
    %355 = tpu.matmul %10, %354, %cst_67 {dimension_numbers = #tpu.dot_dimension_numbers<[1], [0], [0], [1], [0, 0, 1, 1], [], []>} : vector<8x8xf32>, vector<8x32xf32>, vector<8x32xf32> -> vector<8x32xf32>
    %c0_68 = arith.constant 0 : index
    %c0_69 = arith.constant 0 : index
    %356 = vector.load %arg3[%c0_68, %c0_69] : memref<1x32xf32, #tpu.memory_space<vmem>>, vector<1x32xf32>
    %357 = vector.broadcast %356 : vector<1x32xf32> to vector<8x32xf32>
    %358 = arith.mulf %15, %357 : vector<8x32xf32>
    %359 = arith.addf %355, %358 : vector<8x32xf32>
    %360 = arith.subf %359, %354 : vector<8x32xf32>
    %361 = vector.extract_strided_slice %1 {offsets = [12, 0], sizes = [1, 32], strides = [1, 1]} : vector<19x32xf32> to vector<1x32xf32>
    %362 = vector.broadcast %361 : vector<1x32xf32> to vector<8x32xf32>
    %363 = arith.mulf %360, %362 : vector<8x32xf32>
    %364 = arith.addf %354, %363 : vector<8x32xf32>
    %c0_70 = arith.constant 0 : index
    %c0_71 = arith.constant 0 : index
    %365 = vector.load %arg9[%c0_70, %c0_71] : memref<32x128xf32, #tpu.memory_space<vmem>>, vector<32x128xf32>
    %cst_72 = arith.constant dense<0.000000e+00> : vector<8x128xf32>
    %366 = tpu.matmul %364, %365, %cst_72 {dimension_numbers = #tpu.dot_dimension_numbers<[1], [0], [0], [1], [0, 0, 1, 1], [], []>} : vector<8x32xf32>, vector<32x128xf32>, vector<8x128xf32> -> vector<8x128xf32>
    %cst_73 = arith.constant 0.000000e+00 : f32
    %367 = vector.broadcast %cst_73 : f32 to vector<8x128xf32>
    %368 = arith.maximumf %366, %367 : vector<8x128xf32>
    %369 = arith.mulf %368, %368 : vector<8x128xf32>
    %c0_74 = arith.constant 0 : index
    %c0_75 = arith.constant 0 : index
    %370 = vector.load %arg10[%c0_74, %c0_75] : memref<128x32xf32, #tpu.memory_space<vmem>>, vector<128x32xf32>
    %cst_76 = arith.constant dense<0.000000e+00> : vector<8x32xf32>
    %371 = tpu.matmul %369, %370, %cst_76 {dimension_numbers = #tpu.dot_dimension_numbers<[1], [0], [0], [1], [0, 0, 1, 1], [], []>} : vector<8x128xf32>, vector<128x32xf32>, vector<8x32xf32> -> vector<8x32xf32>
    %372 = arith.addf %330, %371 : vector<8x32xf32>
    %c0_77 = arith.constant 0 : index
    %c0_78 = arith.constant 0 : index
    %373 = vector.load %arg13[%c0_77, %c0_78] : memref<8x32xf32, #tpu.memory_space<vmem>>, vector<8x32xf32>
    tpu.vector_store %arg13[%c0_77, %c0_78], %372 {strides = array<i32>} : memref<8x32xf32, #tpu.memory_space<vmem>>, vector<8x32xf32>,
    %374 = vector.extract_strided_slice %39 {offsets = [7, 0], sizes = [1, 32], strides = [1, 1]} : vector<8x32xf32> to vector<1x32xf32>
    %c0_79 = arith.constant 0 : index
    %c0_80 = arith.constant 0 : index
    %375 = vector.load %arg15[%c0_79, %c0_80] : memref<1x32xf32, #tpu.memory_space<vmem>>, vector<1x32xf32>
    tpu.vector_store %arg15[%c0_79, %c0_80], %374 {strides = array<i32>} : memref<1x32xf32, #tpu.memory_space<vmem>>, vector<1x32xf32>,
    %376 = vector.extract_strided_slice %354 {offsets = [7, 0], sizes = [1, 32], strides = [1, 1]} : vector<8x32xf32> to vector<1x32xf32>
    %c0_81 = arith.constant 0 : index
    %c0_82 = arith.constant 0 : index
    %377 = vector.load %arg16[%c0_81, %c0_82] : memref<1x32xf32, #tpu.memory_space<vmem>>, vector<1x32xf32>
    tpu.vector_store %arg16[%c0_81, %c0_82], %376 {strides = array<i32>} : memref<1x32xf32, #tpu.memory_space<vmem>>, vector<1x32xf32>,
    return
  }
}

</mosaic_0001>

<llo_original>
// kernel: forward_seq.5
$region0: #{forward_seq.5}
  #allocation0 [shape = 'u32[]', space=smem, size = 0x4, offset = 0x4, fixed_abs, tag = 'smem constant byte address 0x4 - core index']
  #allocation1 [shape = 'u32[144,128]{1,0:T(1,128)}', space=vmem, size = 0x12000, scoped, tag = 'internal scratch']
  %s0 = inlined_call_operand.vmem [shape: f32[1,32], index: 0, kind: input, shape index: {}]
  %s1 = inlined_call_operand.vmem [shape: f32[1,32], index: 1, kind: input, shape index: {}]
  %s2 = inlined_call_operand.vmem [shape: f32[1,32], index: 2, kind: input, shape index: {}]
  %s3 = inlined_call_operand.vmem [shape: f32[32,128], index: 3, kind: input, shape index: {}]
  %s4 = inlined_call_operand.vmem [shape: f32[1,128], index: 4, kind: output, shape index: {}]
  %s5 = sld [smem:[#allocation0]]
  $region26: #{forward_seq.5} parent=0
    _
  %s7 = ssub.s32 1, %s5
  %s8 = scalar_select 0, %s7, %s5
  // Predicated region
  $region2: #{forward_seq.5} parent=0 // pred_check
    _
  $region3: #{forward_seq.5} parent=0 // pred_check_branch
    %10 = sbr.rel (0) target = $region5
  $region4: #{forward_seq.5} parent=0 // pred_region
    _
  $region5: #{forward_seq.5} parent=0 // pred_fallthru
    _
  // Predicated region
  $region6: #{forward_seq.5} parent=0 // pred_check
    _
  $region7: #{forward_seq.5} parent=0 // pred_check_branch
    %12 = sbr.rel (0) target = $region9
  $region8: #{forward_seq.5} parent=0 // pred_region
    _
  $region9: #{forward_seq.5} parent=0 // pred_fallthru
    _
  // Predicated region
  $region10: #{forward_seq.5} parent=0 // pred_check
    _
  $region11: #{forward_seq.5} parent=0 // pred_check_branch
    %14 = sbr.rel (0) target = $region13
  $region12: #{forward_seq.5} parent=0 // pred_region
    _
  $region13: #{forward_seq.5} parent=0 // pred_fallthru
    _
  // Predicated region
  $region14: #{forward_seq.5} parent=0 // pred_check
    _
  $region15: #{forward_seq.5} parent=0 // pred_check_branch
    %16 = sbr.rel (0) target = $region17
  $region16: #{forward_seq.5} parent=0 // pred_region
    _
  $region17: #{forward_seq.5} parent=0 // pred_fallthru
    _
  %v17 = vld [vmem:[%s0] sm:$0x1]
  %vm18 = vcmask 253952
  %v19 = vsel %vm18, %v17, 0.0
  %20 = vadd.xlane.f32.xlu0 %v19
  %v21 = vpop.xlane.xlu0 %20
  %v22 = vrcp.pop 32.0
  %v23 = vmul.f32 %v21, %v22
  %v24 = vsub.f32 %v17, %v23
  %v25 = vmul.f32 %v24, %v24
  %v26 = vsel %vm18, %v25, 0.0
  %27 = vadd.xlane.f32.xlu0 %v26
  %v28 = vpop.xlane.xlu0 %27
  %v29 = vmul.f32 %v28, %v22
  %v30 = vadd.f32 %v29, 1e-05
  %v31 = vrsqrt.pop %v30
  %v32 = vmul.f32 %v30, %v31
  %vm33 = vcmp.eq.f32.partialorder %v30, inf
  %v34 = vsel %vm33, %v30, %v32
  %vm35 = vcmp.eq.f32.partialorder %v30, 0.0
  %v36 = vand.u32 %v30, 2147483648
  %v37 = vsel %vm35, %v36, %v34
  %v38 = vrcp.pop %v37
  %v39 = vmul.f32 %v24, %v38
  %v40 = vld [vmem:[%s1] sm:$0x1]
  %v41 = vmul.f32 %v39, %v40
  %v42 = vld [vmem:[%s2] sm:$0x1]
  %v43 = vadd.f32 %v41, %v42
  %v44 = vld [vmem:[%s3] sm:$0xff]
  %v45 = vld [vmem:[%s3 + $0x8] sm:$0xff]
  %v46 = vld [vmem:[%s3 + $0x10] sm:$0xff]
  %v47 = vld [vmem:[%s3 + $0x18] sm:$0xff]
  %vm48 = vcmask 261120
  %v50 = vsel %vm48, %v43, 0
  %52 = vmatprep.subr.mxu0 0.0
  %53 = vmatpush1.msra.mxu0 0.0
  %54 = vmatprep.subr.mxu0 0.0
  %55 = vmatpush1.msra.mxu0 0.0
  %56 = vmatprep.subr.mxu0 0.0
  %57 = vmatpush1.msra.mxu0 0.0
  %58 = vmatprep.subr.mxu0 0.0
  %59 = vmatpush1.msra.mxu0 0.0
  %60 = vmatprep.subr.mxu0 0.0
  %61 = vmatpush1.msra.mxu0 0.0
  %62 = vmatprep.subr.mxu0 0.0
  %63 = vmatpush1.msra.mxu0 0.0
  %64 = vmatprep.subr.mxu0 0.0
  %65 = vmatpush1.msra.mxu0 0.0
  %66 = vmatprep.subr.mxu0 0.0
  %67 = vmatpush1.msra.mxu0 0.0
  %68 = vmatprep.subr.mxu0 0.0
  %69 = vmatpush1.msra.mxu0 0.0
  %70 = vmatprep.subr.mxu0 0.0
  %71 = vmatpush1.msra.mxu0 0.0
  %72 = vmatprep.subr.mxu0 0.0
  %73 = vmatpush1.msra.mxu0 0.0
  %74 = vmatprep.subr.mxu0 0.0
  %75 = vmatpush1.msra.mxu0 0.0
  %76 = vmatprep.subr.mxu0 0.0
  %77 = vmatpush1.msra.mxu0 %v47
  %78 = vmatprep.subr.mxu0 0.0
  %79 = vmatpush1.msra.mxu0 %v46
  %80 = vmatprep.subr.mxu0 0.0
  %81 = vmatpush1.msra.mxu0 %v45
  %82 = vmatprep.subr.mxu0 0.0
  %83 = vmatpush1.msra.mxu0 %v44
  %84 = vmatprep.subr.mxu0 0.0
  %85 = vmatpush2.msra.mxu0 0.0
  %86 = vmatprep.subr.mxu0 0.0
  %87 = vmatpush2.msra.mxu0 0.0
  %88 = vmatprep.subr.mxu0 0.0
  %89 = vmatpush2.msra.mxu0 0.0
  %90 = vmatprep.subr.mxu0 0.0
  %91 = vmatpush2.msra.mxu0 0.0
  %92 = vmatprep.subr.mxu0 0.0
  %93 = vmatpush2.msra.mxu0 0.0
  %94 = vmatprep.subr.mxu0 0.0
  %95 = vmatpush2.msra.mxu0 0.0
  %96 = vmatprep.subr.mxu0 0.0
  %97 = vmatpush2.msra.mxu0 0.0
  %98 = vmatprep.subr.mxu0 0.0
  %99 = vmatpush2.msra.mxu0 0.0
  %100 = vmatprep.subr.mxu0 0.0
  %101 = vmatpush2.msra.mxu0 0.0
  %102 = vmatprep.subr.mxu0 0.0
  %103 = vmatpush2.msra.mxu0 0.0
  %104 = vmatprep.subr.mxu0 0.0
  %105 = vmatpush2.msra.mxu0 0.0
  %106 = vmatprep.subr.mxu0 0.0
  %107 = vmatpush2.msra.mxu0 0.0
  %108 = vmatprep.subr.mxu0 0.0
  %109 = vmatpush2.msra.mxu0 0.0
  %110 = vmatprep.subr.mxu0 0.0
  %111 = vmatpush2.msra.mxu0 0.0
  %112 = vmatprep.subr.mxu0 0.0
  %113 = vmatpush2.msra.mxu0 0.0
  %114 = vmatprep.subr.mxu0 0.0
  %115 = vmatpush2.msra.mxu0 0.0
  %116 = vmatprep.mubr.f32.mxu0 0.0
  %117 = vmatmul.mubr.f32.gmra.mxu0 %v50
  %v118 = vpop.f32.mrf.mxu0
  %v119 = vadd.f32 0.0, %v118
  %v120 = vpop.f32.mrf.mxu0
  %121 = vdwg.mxu0
  %122 = vst [vmem:[%s4] sm:$0x1] %v119
  // Predicated region
  $region18: #{forward_seq.5} parent=0 // pred_check
    _
  $region19: #{forward_seq.5} parent=0 // pred_check_branch
    %124 = sbr.rel (0) target = $region21
  $region20: #{forward_seq.5} parent=0 // pred_region
    _
  $region21: #{forward_seq.5} parent=0 // pred_fallthru
    _
  // Predicated region
  $region22: #{forward_seq.5} parent=0 // pred_check
    _
  $region23: #{forward_seq.5} parent=0 // pred_check_branch
    %126 = sbr.rel (0) target = $region25
  $region24: #{forward_seq.5} parent=0 // pred_region
    _
  $region25: #{forward_seq.5} parent=0 // pred_fallthru
    _

// kernel: forward_seq.3
$region0: #{forward_seq.3}
  #allocation0 [shape = 'u32[]', space=smem, size = 0x4, offset = 0x4, fixed_abs, tag = 'smem constant byte address 0x4 - core index']
  #allocation1 [shape = 'u32[144,128]{1,0:T(1,128)}', space=vmem, size = 0x12000, scoped, tag = 'internal scratch']
  %s0 = inlined_call_operand.vmem [shape: f32[8,32], index: 0, kind: input, shape index: {}]
  %s1 = inlined_call_operand.vmem [shape: f32[8,32], index: 1, kind: input, shape index: {}]
  %s2 = inlined_call_operand.vmem [shape: f32[1,32], index: 2, kind: input, shape index: {}]
  %s3 = inlined_call_operand.vmem [shape: f32[1,32], index: 3, kind: input, shape index: {}]
  %s4 = inlined_call_operand.vmem [shape: f32[16,32], index: 4, kind: input, shape index: {}]
  %s5 = inlined_call_operand.vmem [shape: f32[19,32], index: 5, kind: input, shape index: {}]
  %s6 = inlined_call_operand.vmem [shape: f32[32,160], index: 6, kind: input, shape index: {}]
  %s7 = inlined_call_operand.vmem [shape: f32[16,128], index: 7, kind: input, shape index: {}]
  %s8 = inlined_call_operand.vmem [shape: f32[32,32], index: 8, kind: input, shape index: {}]
  %s9 = inlined_call_operand.vmem [shape: f32[32,128], index: 9, kind: input, shape index: {}]
  %s10 = inlined_call_operand.vmem [shape: f32[128,32], index: 10, kind: input, shape index: {}]
  %s11 = inlined_call_operand.vmem [shape: f32[32,32], index: 11, kind: input, shape index: {}]
  %s12 = inlined_call_operand.vmem [shape: f32[16,32], index: 12, kind: input, shape index: {}]
  %s13 = inlined_call_operand.vmem [shape: f32[8,32], index: 13, kind: output, shape index: {0}]
  %s14 = inlined_call_operand.vmem [shape: f32[8,32], index: 14, kind: output, shape index: {1}]
  %s15 = inlined_call_operand.hbm [shape: f32[1,32], index: 15, kind: output, shape index: {2}]
  %s16 = inlined_call_operand.hbm [shape: f32[1,32], index: 16, kind: output, shape index: {3}]
  %s17 = inlined_call_operand.vmem [shape: f32[16,32], index: 17, kind: output, shape index: {4}]
  %18 = xla_tuple %s13, %s14, %s15, %s16, %s17
  %s19 = sld [smem:[#allocation0]]
  $region94: #{forward_seq.3} parent=0
    _
  %s21 = ssub.s32 1, %s19
  %s22 = scalar_select 0, %s21, %s19
  $region1: #{forward_seq.3} parent=0
    #allocation2 [shape = 'u8[512]{0}', space=vmem, size = 0x400, scoped, tag = 'output window, operand 2, single buffered']
    #allocation3 [shape = 's32[1]{0}', space=sflag, size = 0x4, scoped, tag = 'scoped memory for forward_seq.3']
    #allocation4 [shape = 'u8[512]{0}', space=vmem, size = 0x400, scoped, tag = 'output window, operand 3, single buffered']
    #allocation5 [shape = 's32[1]{0}', space=sflag, size = 0x4, scoped, tag = 'scoped memory for forward_seq.3']
    %23 = vsyncpa [#allocation3], 0
    %24 = vsyncpa [#allocation5], 0
    // Predicated region
    $region2: #{forward_seq.3} parent=1 // pred_check
      _
    $region3: #{forward_seq.3} parent=1 // pred_check_branch
      %26 = sbr.rel (0) target = $region5
    $region4: #{forward_seq.3} parent=1 // pred_region
      _
    $region5: #{forward_seq.3} parent=1 // pred_fallthru
      _
    // Predicated region
    $region6: #{forward_seq.3} parent=1 // pred_check
      _
    $region7: #{forward_seq.3} parent=1 // pred_check_branch
      %28 = sbr.rel (0) target = $region9
    $region8: #{forward_seq.3} parent=1 // pred_region
      _
    $region9: #{forward_seq.3} parent=1 // pred_fallthru
      _
    // Predicated region
    $region10: #{forward_seq.3} parent=1 // pred_check
      _
    $region11: #{forward_seq.3} parent=1 // pred_check_branch
      %30 = sbr.rel (0) target = $region13
    $region12: #{forward_seq.3} parent=1 // pred_region
      _
    $region13: #{forward_seq.3} parent=1 // pred_fallthru
      _
    // Predicated region
    $region14: #{forward_seq.3} parent=1 // pred_check
      _
    $region15: #{forward_seq.3} parent=1 // pred_check_branch
      %32 = sbr.rel (0) target = $region17
    $region16: #{forward_seq.3} parent=1 // pred_region
      _
    $region17: #{forward_seq.3} parent=1 // pred_fallthru
      _
    // Predicated region
    $region18: #{forward_seq.3} parent=1 // pred_check
      _
    $region19: #{forward_seq.3} parent=1 // pred_check_branch
      %34 = sbr.rel (0) target = $region21
    $region20: #{forward_seq.3} parent=1 // pred_region
      _
    $region21: #{forward_seq.3} parent=1 // pred_fallthru
      _
    // Predicated region
    $region22: #{forward_seq.3} parent=1 // pred_check
      _
    $region23: #{forward_seq.3} parent=1 // pred_check_branch
      %36 = sbr.rel (0) target = $region25
    $region24: #{forward_seq.3} parent=1 // pred_region
      _
    $region25: #{forward_seq.3} parent=1 // pred_fallthru
      _
    // Predicated region
    $region26: #{forward_seq.3} parent=1 // pred_check
      _
    $region27: #{forward_seq.3} parent=1 // pred_check_branch
      %38 = sbr.rel (0) target = $region29
    $region28: #{forward_seq.3} parent=1 // pred_region
      _
    $region29: #{forward_seq.3} parent=1 // pred_fallthru
      _
    // Predicated region
    $region30: #{forward_seq.3} parent=1 // pred_check
      _
    $region31: #{forward_seq.3} parent=1 // pred_check_branch
      %40 = sbr.rel (0) target = $region33
    $region32: #{forward_seq.3} parent=1 // pred_region
      _
    $region33: #{forward_seq.3} parent=1 // pred_fallthru
      _
    // Predicated region
    $region34: #{forward_seq.3} parent=1 // pred_check
      _
    $region35: #{forward_seq.3} parent=1 // pred_check_branch
      %42 = sbr.rel (0) target = $region37
    $region36: #{forward_seq.3} parent=1 // pred_region
      _
    $region37: #{forward_seq.3} parent=1 // pred_fallthru
      _
    // Predicated region
    $region38: #{forward_seq.3} parent=1 // pred_check
      _
    $region39: #{forward_seq.3} parent=1 // pred_check_branch
      %44 = sbr.rel (0) target = $region41
    $region40: #{forward_seq.3} parent=1 // pred_region
      _
    $region41: #{forward_seq.3} parent=1 // pred_fallthru
      _
    // Predicated region
    $region42: #{forward_seq.3} parent=1 // pred_check
      _
    $region43: #{forward_seq.3} parent=1 // pred_check_branch
      %46 = sbr.rel (0) target = $region45
    $region44: #{forward_seq.3} parent=1 // pred_region
      _
    $region45: #{forward_seq.3} parent=1 // pred_fallthru
      _
    // Predicated region
    $region46: #{forward_seq.3} parent=1 // pred_check
      _
    $region47: #{forward_seq.3} parent=1 // pred_check_branch
      %48 = sbr.rel (0) target = $region49
    $region48: #{forward_seq.3} parent=1 // pred_region
      _
    $region49: #{forward_seq.3} parent=1 // pred_fallthru
      _
    // Predicated region
    $region50: #{forward_seq.3} parent=1 // pred_check
      _
    $region51: #{forward_seq.3} parent=1 // pred_check_branch
      %50 = sbr.rel (0) target = $region53
    $region52: #{forward_seq.3} parent=1 // pred_region
      _
    $region53: #{forward_seq.3} parent=1 // pred_fallthru
      _
    %v51 = vld [vmem:[%s0] sm:$0xff]
    %v52 = vld [vmem:[%s5] sm:$0xff]
    %v53 = vld [vmem:[%s5 + $0x8] sm:$0xff]
    %v54 = vld [vmem:[%s5 + $0x10] sm:$0x7]
    %v55 = vld [vmem:[%s11] sm:$0xff]
    %v56 = vld [vmem:[%s11 + $0x8] sm:$0xff]
    %v57 = vld [vmem:[%s11 + $0x10] sm:$0xff]
    %v58 = vld [vmem:[%s11 + $0x18] sm:$0xff]
    %v59 = vld [vmem:[%s12] sm:$0xff]
    %v60 = vld [vmem:[%s12 + $0x8] sm:$0xff]
    %v61 = vlaneseq
    %v62 = vshrl.u32 %v61, 7
    %v63 = vlaneseq
    %v64 = vand.u32 %v63, 127
    %v65 = vadd.s32 %v64, 1
    %vm66 = vcmp.eq.s32.totalorder %v62, %v65
    %v67 = vsel %vm66, 1, 0
    %v68 = vcvt.s32.f32 %v67
    %vm69 = vcmp.eq.s32.totalorder %v62, 0
    %v70 = vsel %vm69, 1, 0
    %v71 = vcvt.s32.f32 %v70
    %vm72 = vcmask 261120
    %v73 = vsel %vm72, %v51, 0.0
    %74 = vadd.xlane.f32.xlu0 %v73
    %v75 = vpop.xlane.xlu0 %74
    %v76 = vrcp.pop 32.0
    %v77 = vmul.f32 %v75, %v76
    %v78 = vsub.f32 %v51, %v77
    %v79 = vmul.f32 %v78, %v78
    %v80 = vsel %vm72, %v79, 0.0
    %81 = vadd.xlane.f32.xlu0 %v80
    %v82 = vpop.xlane.xlu0 %81
    %v83 = vmul.f32 %v82, %v76
    %v84 = vadd.f32 %v83, 1e-05
    %v85 = vrsqrt.pop %v84
    %v86 = vmul.f32 %v84, %v85
    %vm87 = vcmp.eq.f32.partialorder %v84, inf
    %v88 = vsel %vm87, %v84, %v86
    %vm89 = vcmp.eq.f32.partialorder %v84, 0.0
    %v90 = vand.u32 %v84, 2147483648
    %v91 = vsel %vm89, %v90, %v88
    %v92 = vrcp.pop %v91
    %v93 = vmul.f32 %v78, %v92
    %v94 = vlaneseq
    %v95 = vshrl.u32 %v94, 7
    %v96 = vsub.s32 0, %v95
    %v97 = vrot.slane %v52, %v96
    %v98 = vmul.f32 %v93, %v97
    %v99 = vlaneseq
    %v100 = vshrl.u32 %v99, 7
    %v101 = vsub.s32 1, %v100
    %v102 = vrot.slane %v52, %v101
    %v103 = vadd.f32 %v98, %v102
    %v104 = vld [vmem:[%s2] sm:$0x1]
    %v106 = vlaneseq
    %v107 = vshrl.u32 %v106, 7
    %v108 = vsub.s32 0, %v107
    %v109 = vrot.slane %v104, %v108
    %v111 = vmul.f32 %v71, %v109
    %vm112 = vcmask 64512
    %v114 = vsel %vm112, %v68, 0
    %116 = vmatprep.subr.mxu0 0.0
    %117 = vmatpush1.msra.mxu0 0.0
    %118 = vmatprep.subr.mxu0 0.0
    %119 = vmatpush1.msra.mxu0 0.0
    %120 = vmatprep.subr.mxu0 0.0
    %121 = vmatpush1.msra.mxu0 0.0
    %122 = vmatprep.subr.mxu0 0.0
    %123 = vmatpush1.msra.mxu0 0.0
    %124 = vmatprep.subr.mxu0 0.0
    %125 = vmatpush1.msra.mxu0 0.0
    %126 = vmatprep.subr.mxu0 0.0
    %127 = vmatpush1.msra.mxu0 0.0
    %128 = vmatprep.subr.mxu0 0.0
    %129 = vmatpush1.msra.mxu0 0.0
    %130 = vmatprep.subr.mxu0 0.0
    %131 = vmatpush1.msra.mxu0 0.0
    %132 = vmatprep.subr.mxu0 0.0
    %133 = vmatpush1.msra.mxu0 0.0
    %134 = vmatprep.subr.mxu0 0.0
    %135 = vmatpush1.msra.mxu0 0.0
    %136 = vmatprep.subr.mxu0 0.0
    %137 = vmatpush1.msra.mxu0 0.0
    %138 = vmatprep.subr.mxu0 0.0
    %139 = vmatpush1.msra.mxu0 0.0
    %140 = vmatprep.subr.mxu0 0.0
    %141 = vmatpush1.msra.mxu0 0.0
    %142 = vmatprep.subr.mxu0 0.0
    %143 = vmatpush1.msra.mxu0 0.0
    %144 = vmatprep.subr.mxu0 0.0
    %145 = vmatpush1.msra.mxu0 0.0
    %146 = vmatprep.subr.mxu0 0.0
    %147 = vmatpush1.msra.mxu0 %v103
    %148 = vmatprep.subr.mxu0 0.0
    %149 = vmatpush2.msra.mxu0 0.0
    %150 = vmatprep.subr.mxu0 0.0
    %151 = vmatpush2.msra.mxu0 0.0
    %152 = vmatprep.subr.mxu0 0.0
    %153 = vmatpush2.msra.mxu0 0.0
    %154 = vmatprep.subr.mxu0 0.0
    %155 = vmatpush2.msra.mxu0 0.0
    %156 = vmatprep.subr.mxu0 0.0
    %157 = vmatpush2.msra.mxu0 0.0
    %158 = vmatprep.subr.mxu0 0.0
    %159 = vmatpush2.msra.mxu0 0.0
    %160 = vmatprep.subr.mxu0 0.0
    %161 = vmatpush2.msra.mxu0 0.0
    %162 = vmatprep.subr.mxu0 0.0
    %163 = vmatpush2.msra.mxu0 0.0
    %164 = vmatprep.subr.mxu0 0.0
    %165 = vmatpush2.msra.mxu0 0.0
    %166 = vmatprep.subr.mxu0 0.0
    %167 = vmatpush2.msra.mxu0 0.0
    %168 = vmatprep.subr.mxu0 0.0
    %169 = vmatpush2.msra.mxu0 0.0
    %170 = vmatprep.subr.mxu0 0.0
    %171 = vmatpush2.msra.mxu0 0.0
    %172 = vmatprep.subr.mxu0 0.0
    %173 = vmatpush2.msra.mxu0 0.0
    %174 = vmatprep.subr.mxu0 0.0
    %175 = vmatpush2.msra.mxu0 0.0
    %176 = vmatprep.subr.mxu0 0.0
    %177 = vmatpush2.msra.mxu0 0.0
    %178 = vmatprep.subr.mxu0 0.0
    %179 = vmatpush2.msra.mxu0 0.0
    %180 = vmatprep.mubr.f32.mxu0 0.0
    %181 = vmatmul.mubr.f32.gmra.mxu0 %v114
    %v182 = vpop.f32.mrf.mxu0
    %v183 = vadd.f32 %v111, %v182
    %v184 = vpop.f32.mrf.mxu0
    %185 = vdwg.mxu0
    %v186 = vsub.f32 %v183, %v103
    %v187 = vlaneseq
    %v188 = vshrl.u32 %v187, 7
    %v189 = vsub.s32 5, %v188
    %v190 = vrot.slane %v53, %v189
    %v191 = vmul.f32 %v186, %v190
    %v192 = vadd.f32 %v103, %v191
    %v193 = vlaneseq
    %v194 = vshrl.u32 %v193, 7
    %v195 = vsub.s32 6, %v194
    %v196 = vrot.slane %v53, %v195
    %v197 = vmul.f32 %v186, %v196
    %v198 = vadd.f32 %v103, %v197
    %v199 = vlaneseq
    %v200 = vshrl.u32 %v199, 7
    %v201 = vsub.s32 7, %v200
    %v202 = vrot.slane %v53, %v201
    %v203 = vmul.f32 %v186, %v202
    %v204 = vadd.f32 %v103, %v203
    %v205 = vlaneseq
    %v206 = vshrl.u32 %v205, 7
    %v207 = vsub.s32 0, %v206
    %v208 = vrot.slane %v54, %v207
    %v209 = vmul.f32 %v186, %v208
    %v210 = vadd.f32 %v103, %v209
    %v211 = vlaneseq
    %v212 = vshrl.u32 %v211, 7
    %v213 = vsub.s32 1, %v212
    %v214 = vrot.slane %v54, %v213
    %v215 = vmul.f32 %v186, %v214
    %v216 = vadd.f32 %v103, %v215
    %v217 = vlaneseq
    %v218 = vshrl.u32 %v217, 7
    %v219 = vsub.s32 2, %v218
    %v220 = vrot.slane %v54, %v219
    %v221 = vmul.f32 %v186, %v220
    %v222 = vadd.f32 %v103, %v221
    %v223 = vld [vmem:[%s6] sm:$0xff]
    %v224 = vld [vmem:[%s6 + $0x8] sm:$0xff]
    %v225 = vld [vmem:[%s6 + $0x10] sm:$0xff]
    %v226 = vld [vmem:[%s6 + $0x18] sm:$0xff]
    %v227 = vld [vmem:[%s6 + $0x20] sm:$0xff]
    %v228 = vld [vmem:[%s6 + $0x28] sm:$0xff]
    %v229 = vld [vmem:[%s6 + $0x30] sm:$0xff]
    %v230 = vld [vmem:[%s6 + $0x38] sm:$0xff]
    %v232 = vsel %vm72, %v192, 0
    %v235 = vsel %vm72, %v198, 0
    %v238 = vsel %vm72, %v204, 0
    %v241 = vsel %vm72, %v210, 0
    %v244 = vsel %vm72, %v216, 0
    %v247 = vsel %vm72, %v222, 0
    %249 = vmatprep.subr.mxu0 0.0
    %250 = vmatpush1.msra.mxu0 0.0
    %251 = vmatprep.subr.mxu0 0.0
    %252 = vmatpush1.msra.mxu0 0.0
    %253 = vmatprep.subr.mxu0 0.0
    %254 = vmatpush1.msra.mxu0 0.0
    %255 = vmatprep.subr.mxu0 0.0
    %256 = vmatpush1.msra.mxu0 0.0
    %257 = vmatprep.subr.mxu0 0.0
    %258 = vmatpush1.msra.mxu0 0.0
    %259 = vmatprep.subr.mxu0 0.0
    %260 = vmatpush1.msra.mxu0 0.0
    %261 = vmatprep.subr.mxu0 0.0
    %262 = vmatpush1.msra.mxu0 0.0
    %263 = vmatprep.subr.mxu0 0.0
    %264 = vmatpush1.msra.mxu0 0.0
    %265 = vmatprep.subr.mxu0 0.0
    %266 = vmatpush1.msra.mxu0 0.0
    %267 = vmatprep.subr.mxu0 0.0
    %268 = vmatpush1.msra.mxu0 0.0
    %269 = vmatprep.subr.mxu0 0.0
    %270 = vmatpush1.msra.mxu0 0.0
    %271 = vmatprep.subr.mxu0 0.0
    %272 = vmatpush1.msra.mxu0 0.0
    %273 = vmatprep.subr.mxu0 %v230
    %274 = vmatpush1.msra.mxu0 %v229
    %275 = vmatprep.subr.mxu0 %v228
    %276 = vmatpush1.msra.mxu0 %v227
    %277 = vmatprep.subr.mxu0 %v226
    %278 = vmatpush1.msra.mxu0 %v225
    %279 = vmatprep.subr.mxu0 %v224
    %280 = vmatpush1.msra.mxu0 %v223
    %281 = vmatprep.subr.mxu0 0.0
    %282 = vmatpush2.msra.mxu0 0.0
    %283 = vmatprep.subr.mxu0 0.0
    %284 = vmatpush2.msra.mxu0 0.0
    %285 = vmatprep.subr.mxu0 0.0
    %286 = vmatpush2.msra.mxu0 0.0
    %287 = vmatprep.subr.mxu0 0.0
    %288 = vmatpush2.msra.mxu0 0.0
    %289 = vmatprep.subr.mxu0 0.0
    %290 = vmatpush2.msra.mxu0 0.0
    %291 = vmatprep.subr.mxu0 0.0
    %292 = vmatpush2.msra.mxu0 0.0
    %293 = vmatprep.subr.mxu0 0.0
    %294 = vmatpush2.msra.mxu0 0.0
    %295 = vmatprep.subr.mxu0 0.0
    %296 = vmatpush2.msra.mxu0 0.0
    %297 = vmatprep.subr.mxu0 0.0
    %298 = vmatpush2.msra.mxu0 0.0
    %299 = vmatprep.subr.mxu0 0.0
    %300 = vmatpush2.msra.mxu0 0.0
    %301 = vmatprep.subr.mxu0 0.0
    %302 = vmatpush2.msra.mxu0 0.0
    %303 = vmatprep.subr.mxu0 0.0
    %304 = vmatpush2.msra.mxu0 0.0
    %305 = vmatprep.subr.mxu0 0.0
    %306 = vmatpush2.msra.mxu0 0.0
    %307 = vmatprep.subr.mxu0 0.0
    %308 = vmatpush2.msra.mxu0 0.0
    %309 = vmatprep.subr.mxu0 0.0
    %310 = vmatpush2.msra.mxu0 0.0
    %311 = vmatprep.subr.mxu0 0.0
    %312 = vmatpush2.msra.mxu0 0.0
    %313 = vmatprep.mubr.f32.mxu0 0.0
    %314 = vmatmul.mubr.f32.gmra.mxu0 %v232
    %v315 = vpop.f32.mrf.mxu0
    %v316 = vadd.f32 0.0, %v315
    %v317 = vpop.f32.mrf.mxu0
    %318 = vmatprep.mubr.f32.mxu0 0.0
    %319 = vmatmul.mubr.f32.gmra.mxu0 %v235
    %v320 = vpop.f32.mrf.mxu0
    %v321 = vadd.f32 0.0, %v320
    %v322 = vpop.f32.mrf.mxu0
    %323 = vmatprep.mubr.f32.mxu0 0.0
    %324 = vmatmul.mubr.f32.gmra.mxu0 %v238
    %v325 = vpop.f32.mrf.mxu0
    %v326 = vadd.f32 0.0, %v325
    %v327 = vpop.f32.mrf.mxu0
    %328 = vmatprep.mubr.f32.mxu0 0.0
    %329 = vmatmul.mubr.f32.gmra.mxu0 %v241
    %v330 = vpop.f32.mrf.mxu0
    %v331 = vadd.f32 0.0, %v330
    %v332 = vpop.f32.mrf.mxu0
    %v333 = vadd.f32 0.0, %v332
    %334 = vmatprep.mubr.f32.mxu0 0.0
    %335 = vmatmul.mubr.f32.gmra.mxu0 %v244
    %v336 = vpop.f32.mrf.mxu0
    %v337 = vadd.f32 0.0, %v336
    %v338 = vpop.f32.mrf.mxu0
    %339 = vmatprep.mubr.f32.mxu0 0.0
    %340 = vmatmul.mubr.f32.gmra.mxu0 %v247
    %v341 = vpop.f32.mrf.mxu0
    %v342 = vpop.f32.mrf.mxu0
    %v343 = vadd.f32 0.0, %v342
    %344 = vdwg.mxu0
    %v345 = vtanh.pop %v321
    %v346 = vxor.u32 %v343, 2147483648
    %v347 = vmul.f32 %v346, 1.442695
    %v348 = vpow.pop %v347
    %v349 = vadd.f32 %v348, 1.0
    %v350 = vrcp.pop %v349
    %v351 = vmul.f32 1.0, %v350
    %353 = vrot.lane.b32.xlu0 %v337, 112
    %v354 = vpop.permute.xlu0 %353
    %356 = vrot.lane.b32.xlu0 %v351, 96
    %v357 = vpop.permute.xlu0 %356
    %359 = vrot.lane.b32.xlu0 %v333, 80
    %v360 = vpop.permute.xlu0 %359
    %v361 = vld [vmem:[%s7] sm:$0xff]
    %v362 = vld [vmem:[%s7 + $0x8] sm:$0xff]
    %364 = vrot.lane.b32.xlu0 %v345, 32
    %v365 = vpop.permute.xlu0 %364
    %366 = vrot.lane.b32.xlu0 %v354, 32
    %v367 = vpop.permute.xlu0 %366
    %368 = vrot.lane.b32.xlu0 %v357, 32
    %v369 = vpop.permute.xlu0 %368
    %370 = vrot.lane.b32.xlu0 %v360, 32
    %v371 = vpop.permute.xlu0 %370
    %vm372 = vcmask 130048
    %v373 = vsel %vm372, %v365, 0
    %v375 = vsel %vm372, %v367, 0
    %v377 = vsel %vm372, %v369, 0
    %v379 = vsel %vm372, %v371, 0
    %381 = vmatprep.subr.mxu0 0.0
    %382 = vmatpush1.msra.mxu0 0.0
    %383 = vmatprep.subr.mxu0 0.0
    %384 = vmatpush1.msra.mxu0 0.0
    %385 = vmatprep.subr.mxu0 0.0
    %386 = vmatpush1.msra.mxu0 0.0
    %387 = vmatprep.subr.mxu0 0.0
    %388 = vmatpush1.msra.mxu0 0.0
    %389 = vmatprep.subr.mxu0 0.0
    %390 = vmatpush1.msra.mxu0 0.0
    %391 = vmatprep.subr.mxu0 0.0
    %392 = vmatpush1.msra.mxu0 0.0
    %393 = vmatprep.subr.mxu0 0.0
    %394 = vmatpush1.msra.mxu0 0.0
    %395 = vmatprep.subr.mxu0 0.0
    %396 = vmatpush1.msra.mxu0 0.0
    %397 = vmatprep.subr.mxu0 0.0
    %398 = vmatpush1.msra.mxu0 0.0
    %399 = vmatprep.subr.mxu0 0.0
    %400 = vmatpush1.msra.mxu0 0.0
    %401 = vmatprep.subr.mxu0 0.0
    %402 = vmatpush1.msra.mxu0 0.0
    %403 = vmatprep.subr.mxu0 0.0
    %404 = vmatpush1.msra.mxu0 0.0
    %405 = vmatprep.subr.mxu0 0.0
    %406 = vmatpush1.msra.mxu0 0.0
    %407 = vmatprep.subr.mxu0 0.0
    %408 = vmatpush1.msra.mxu0 0.0
    %409 = vmatprep.subr.mxu0 0.0
    %410 = vmatpush1.msra.mxu0 %v362
    %411 = vmatprep.subr.mxu0 0.0
    %412 = vmatpush1.msra.mxu0 %v361
    %413 = vmatprep.subr.mxu0 0.0
    %414 = vmatpush2.msra.mxu0 0.0
    %415 = vmatprep.subr.mxu0 0.0
    %416 = vmatpush2.msra.mxu0 0.0
    %417 = vmatprep.subr.mxu0 0.0
    %418 = vmatpush2.msra.mxu0 0.0
    %419 = vmatprep.subr.mxu0 0.0
    %420 = vmatpush2.msra.mxu0 0.0
    %421 = vmatprep.subr.mxu0 0.0
    %422 = vmatpush2.msra.mxu0 0.0
    %423 = vmatprep.subr.mxu0 0.0
    %424 = vmatpush2.msra.mxu0 0.0
    %425 = vmatprep.subr.mxu0 0.0
    %426 = vmatpush2.msra.mxu0 0.0
    %427 = vmatprep.subr.mxu0 0.0
    %428 = vmatpush2.msra.mxu0 0.0
    %429 = vmatprep.subr.mxu0 0.0
    %430 = vmatpush2.msra.mxu0 0.0
    %431 = vmatprep.subr.mxu0 0.0
    %432 = vmatpush2.msra.mxu0 0.0
    %433 = vmatprep.subr.mxu0 0.0
    %434 = vmatpush2.msra.mxu0 0.0
    %435 = vmatprep.subr.mxu0 0.0
    %436 = vmatpush2.msra.mxu0 0.0
    %437 = vmatprep.subr.mxu0 0.0
    %438 = vmatpush2.msra.mxu0 0.0
    %439 = vmatprep.subr.mxu0 0.0
    %440 = vmatpush2.msra.mxu0 0.0
    %441 = vmatprep.subr.mxu0 0.0
    %442 = vmatpush2.msra.mxu0 0.0
    %443 = vmatprep.subr.mxu0 0.0
    %444 = vmatpush2.msra.mxu0 0.0
    %445 = vmatprep.mubr.f32.mxu0 0.0
    %446 = vmatmul.mubr.f32.gmra.mxu0 %v373
    %v447 = vpop.f32.mrf.mxu0
    %v448 = vadd.f32 0.0, %v447
    %v449 = vpop.f32.mrf.mxu0
    %450 = vmatprep.mubr.f32.mxu0 0.0
    %451 = vmatmul.mubr.f32.gmra.mxu0 %v375
    %v452 = vpop.f32.mrf.mxu0
    %v453 = vadd.f32 0.0, %v452
    %v454 = vpop.f32.mrf.mxu0
    %455 = vmatprep.mubr.f32.mxu0 0.0
    %456 = vmatmul.mubr.f32.gmra.mxu0 %v377
    %v457 = vpop.f32.mrf.mxu0
    %v458 = vadd.f32 0.0, %v457
    %v459 = vpop.f32.mrf.mxu0
    %460 = vmatprep.mubr.f32.mxu0 0.0
    %461 = vmatmul.mubr.f32.gmra.mxu0 %v379
    %v462 = vpop.f32.mrf.mxu0
    %v463 = vpop.f32.mrf.mxu0
    %464 = vdwg.mxu0
    %v465 = vlaneseq
    %v466 = vshrl.u32 %v465, 7
    %v467 = vsub.s32 4, %v466
    %v468 = vrot.slane %v52, %v467
    %v469 = vadd.f32 %v468, %v448
    %v470 = vxor.u32 %v469, 2147483648
    %v471 = vmul.f32 %v470, 1.442695
    %v472 = vpow.pop %v471
    %v473 = vadd.f32 %v472, 1.0
    %v474 = vrcp.pop %v473
    %v475 = vmul.f32 1.0, %v474
    %v476 = vmul.f32 %v475, -0.606531
    %v477 = vmul.f32 %v476, 1.442695
    %v478 = vpow.pop %v477
    %v479 = vlaneseq
    %v480 = vshrl.u32 %v479, 7
    %v481 = vsub.s32 5, %v480
    %v482 = vrot.slane %v52, %v481
    %484 = vrot.lane.b32.xlu0 %v453, 96
    %v485 = vpop.permute.xlu0 %484
    %v487 = vadd.f32 %v482, %v485
    %v488 = vxor.u32 %v487, 2147483648
    %v489 = vmul.f32 %v488, 1.442695
    %v490 = vpow.pop %v489
    %v491 = vadd.f32 %v490, 1.0
    %v492 = vrcp.pop %v491
    %v493 = vmul.f32 1.0, %v492
    %v494 = vlaneseq
    %v495 = vshrl.u32 %v494, 7
    %v496 = vsub.s32 7, %v495
    %v497 = vrot.slane %v52, %v496
    %499 = vrot.lane.b32.xlu0 %v497, 32
    %v500 = vpop.permute.xlu0 %499
    %v502 = vmul.f32 %v326, %v500
    %v503 = vmul.f32 %v502, %v502
    %505 = vrot.lane.b32.xlu0 %v503, 96
    %v506 = vpop.permute.xlu0 %505
    %v507 = vsel %vm72, %v506, 0
    %509 = vmatprep.subr.mxu0 0.0
    %510 = vmatpush1.msra.mxu0 0.0
    %511 = vmatprep.subr.mxu0 0.0
    %512 = vmatpush1.msra.mxu0 0.0
    %513 = vmatprep.subr.mxu0 0.0
    %514 = vmatpush1.msra.mxu0 0.0
    %515 = vmatprep.subr.mxu0 0.0
    %516 = vmatpush1.msra.mxu0 0.0
    %517 = vmatprep.subr.mxu0 0.0
    %518 = vmatpush1.msra.mxu0 0.0
    %519 = vmatprep.subr.mxu0 0.0
    %520 = vmatpush1.msra.mxu0 0.0
    %521 = vmatprep.subr.mxu0 0.0
    %522 = vmatpush1.msra.mxu0 0.0
    %523 = vmatprep.subr.mxu0 0.0
    %524 = vmatpush1.msra.mxu0 0.0
    %525 = vmatprep.subr.mxu0 0.0
    %526 = vmatpush1.msra.mxu0 0.0
    %527 = vmatprep.subr.mxu0 0.0
    %528 = vmatpush1.msra.mxu0 0.0
    %529 = vmatprep.subr.mxu0 0.0
    %530 = vmatpush1.msra.mxu0 0.0
    %531 = vmatprep.subr.mxu0 0.0
    %532 = vmatpush1.msra.mxu0 0.0
    %533 = vmatprep.subr.mxu0 0.0
    %534 = vmatpush1.msra.mxu0 %v58
    %535 = vmatprep.subr.mxu0 0.0
    %536 = vmatpush1.msra.mxu0 %v57
    %537 = vmatprep.subr.mxu0 0.0
    %538 = vmatpush1.msra.mxu0 %v56
    %539 = vmatprep.subr.mxu0 0.0
    %540 = vmatpush1.msra.mxu0 %v55
    %541 = vmatprep.subr.mxu0 0.0
    %542 = vmatpush2.msra.mxu0 0.0
    %543 = vmatprep.subr.mxu0 0.0
    %544 = vmatpush2.msra.mxu0 0.0
    %545 = vmatprep.subr.mxu0 0.0
    %546 = vmatpush2.msra.mxu0 0.0
    %547 = vmatprep.subr.mxu0 0.0
    %548 = vmatpush2.msra.mxu0 0.0
    %549 = vmatprep.subr.mxu0 0.0
    %550 = vmatpush2.msra.mxu0 0.0
    %551 = vmatprep.subr.mxu0 0.0
    %552 = vmatpush2.msra.mxu0 0.0
    %553 = vmatprep.subr.mxu0 0.0
    %554 = vmatpush2.msra.mxu0 0.0
    %555 = vmatprep.subr.mxu0 0.0
    %556 = vmatpush2.msra.mxu0 0.0
    %557 = vmatprep.subr.mxu0 0.0
    %558 = vmatpush2.msra.mxu0 0.0
    %559 = vmatprep.subr.mxu0 0.0
    %560 = vmatpush2.msra.mxu0 0.0
    %561 = vmatprep.subr.mxu0 0.0
    %562 = vmatpush2.msra.mxu0 0.0
    %563 = vmatprep.subr.mxu0 0.0
    %564 = vmatpush2.msra.mxu0 0.0
    %565 = vmatprep.subr.mxu0 0.0
    %566 = vmatpush2.msra.mxu0 0.0
    %567 = vmatprep.subr.mxu0 0.0
    %568 = vmatpush2.msra.mxu0 0.0
    %569 = vmatprep.subr.mxu0 0.0
    %570 = vmatpush2.msra.mxu0 0.0
    %571 = vmatprep.subr.mxu0 0.0
    %572 = vmatpush2.msra.mxu0 0.0
    %573 = vmatprep.mubr.f32.mxu0 0.0
    %574 = vmatmul.mubr.f32.gmra.mxu0 %v507
    %v575 = vpop.f32.mrf.mxu0
    %v576 = vadd.f32 0.0, %v575
    %v577 = vpop.f32.mrf.mxu0
    %578 = vdwg.mxu0
    %v579 = vrsqrt.pop %v576
    %v580 = vmul.f32 %v576, %v579
    %vm581 = vcmp.eq.f32.partialorder %v576, inf
    %v582 = vsel %vm581, %v576, %v580
    %vm583 = vcmp.eq.f32.partialorder %v576, 0.0
    %v584 = vand.u32 %v576, 2147483648
    %v585 = vsel %vm583, %v584, %v582
    %v586 = vmax.f32 %v585, 1e-12
    %588 = vrot.lane.b32.xlu0 %v586, 32
    %v589 = vpop.permute.xlu0 %588
    %v591 = vrcp.pop %v589
    %v592 = vmul.f32 %v502, %v591
    %v593 = vsub.f32 %v493, 1.0
    %v594 = vlaneseq
    %v595 = vshrl.u32 %v594, 7
    %v596 = vsub.s32 0, %v595
    %v597 = vrot.slane %v53, %v596
    %v598 = vmul.f32 %v593, %v597
    %v599 = vadd.f32 %v598, 1.0
    %601 = vrot.lane.b32.xlu0 %v599, 32
    %v602 = vpop.permute.xlu0 %601
    %v604 = vmul.f32 %v326, %v602
    %606 = vrot.lane.b32.xlu0 %v331, 64
    %v607 = vpop.permute.xlu0 %606
    %609 = vst.msk [vmem:[%s14] sm:$0xff] %vm72, %v607
    %v610 = vsub.f32 0.0, %v592
    %612 = vrot.lane.b32.xlu0 %v493, 32
    %v613 = vpop.permute.xlu0 %612
    %v615 = vmul.f32 %v592, %v613
    %v616 = vcombine.high %v331, %v331
    %v618 = vunpack.c.l.s4 1966171168
    %v619 = vunpack.c.0.s8 %v618
    %v620 = vlaneseq
    %v621 = vshrl.u32 %v620, 7
    %v622 = vsub.s32 %v619, %v621
    %v623 = vrot.slane %v331, %v622
    %v625 = vunpack.c.l.s4 1966171168
    %v626 = vunpack.c.0.s8 %v625
    %v627 = vlaneseq
    %v628 = vshrl.u32 %v627, 7
    %v629 = vsub.s32 %v626, %v628
    %v630 = vrot.slane %v616, %v629
    %v631 = vcombine.high %v623, %v623
    %v632 = vcombine.high %v630, %v630
    %v634 = vunpack.c.l.s4 1966171168
    %v635 = vunpack.c.0.s8 %v634
    %v636 = vlaneseq
    %v637 = vshrl.u32 %v636, 7
    %v638 = vsub.s32 %v635, %v637
    %v639 = vrot.slane %v623, %v638
    %v641 = vunpack.c.l.s4 1966171168
    %v642 = vunpack.c.0.s8 %v641
    %v643 = vlaneseq
    %v644 = vshrl.u32 %v643, 7
    %v645 = vsub.s32 %v642, %v644
    %v646 = vrot.slane %v630, %v645
    %v648 = vunpack.c.l.s4 1966171168
    %v649 = vunpack.c.0.s8 %v648
    %v650 = vlaneseq
    %v651 = vshrl.u32 %v650, 7
    %v652 = vsub.s32 %v649, %v651
    %v653 = vrot.slane %v631, %v652
    %v655 = vunpack.c.l.s4 1966171168
    %v656 = vunpack.c.0.s8 %v655
    %v657 = vlaneseq
    %v658 = vshrl.u32 %v657, 7
    %v659 = vsub.s32 %v656, %v658
    %v660 = vrot.slane %v632, %v659
    %v661 = vcombine.high %v639, %v639
    %v662 = vcombine.high %v646, %v646
    %v663 = vcombine.high %v653, %v653
    %v664 = vcombine.high %v660, %v660
    %v665 = vlaneseq
    %v666 = vshrl.u32 %v665, 7
    %v667 = vsub.s32 0, %v666
    %v668 = vrot.slane %v639, %v667
    %v669 = vlaneseq
    %v670 = vshrl.u32 %v669, 7
    %v671 = vsub.s32 0, %v670
    %v672 = vrot.slane %v653, %v671
    %v673 = vlaneseq
    %v674 = vshrl.u32 %v673, 7
    %v675 = vsub.s32 0, %v674
    %v676 = vrot.slane %v661, %v675
    %v677 = vlaneseq
    %v678 = vshrl.u32 %v677, 7
    %v679 = vsub.s32 0, %v678
    %v680 = vrot.slane %v663, %v679
    %v681 = vlaneseq
    %v682 = vshrl.u32 %v681, 7
    %v683 = vsub.s32 0, %v682
    %v684 = vrot.slane %v646, %v683
    %v685 = vlaneseq
    %v686 = vshrl.u32 %v685, 7
    %v687 = vsub.s32 0, %v686
    %v688 = vrot.slane %v660, %v687
    %v689 = vlaneseq
    %v690 = vshrl.u32 %v689, 7
    %v691 = vsub.s32 0, %v690
    %v692 = vrot.slane %v662, %v691
    %v693 = vlaneseq
    %v694 = vshrl.u32 %v693, 7
    %v695 = vsub.s32 0, %v694
    %v696 = vrot.slane %v664, %v695
    %697 = vrot.lane.b32.xlu0 %v668, 64
    %v698 = vpop.permute.xlu0 %697
    %699 = vrot.lane.b32.xlu0 %v672, 64
    %v700 = vpop.permute.xlu0 %699
    %701 = vrot.lane.b32.xlu0 %v676, 64
    %v702 = vpop.permute.xlu0 %701
    %703 = vrot.lane.b32.xlu0 %v680, 64
    %v704 = vpop.permute.xlu0 %703
    %705 = vrot.lane.b32.xlu0 %v684, 64
    %v706 = vpop.permute.xlu0 %705
    %707 = vrot.lane.b32.xlu0 %v688, 64
    %v708 = vpop.permute.xlu0 %707
    %709 = vrot.lane.b32.xlu0 %v692, 64
    %v710 = vpop.permute.xlu0 %709
    %711 = vrot.lane.b32.xlu0 %v696, 64
    %v712 = vpop.permute.xlu0 %711
    %v721 = vmul.f32 %v59, %v698
    %v722 = vmul.f32 %v60, %v698
    %v723 = vmul.f32 %v59, %v700
    %v724 = vmul.f32 %v60, %v700
    %v725 = vmul.f32 %v59, %v702
    %v726 = vmul.f32 %v60, %v702
    %v727 = vmul.f32 %v59, %v704
    %v728 = vmul.f32 %v60, %v704
    %v729 = vmul.f32 %v59, %v706
    %v730 = vmul.f32 %v60, %v706
    %v731 = vmul.f32 %v59, %v708
    %v732 = vmul.f32 %v60, %v708
    %v733 = vmul.f32 %v59, %v710
    %v734 = vmul.f32 %v60, %v710
    %v735 = vmul.f32 %v59, %v712
    %v736 = vmul.f32 %v60, %v712
    %v738 = vsel %vm72, %v721, 0
    %v741 = vsel %vm72, %v722, 0
    %v744 = vsel %vm72, %v723, 0
    %v747 = vsel %vm72, %v724, 0
    %v750 = vsel %vm72, %v725, 0
    %v753 = vsel %vm72, %v726, 0
    %v756 = vsel %vm72, %v727, 0
    %v759 = vsel %vm72, %v728, 0
    %v762 = vsel %vm72, %v729, 0
    %v765 = vsel %vm72, %v730, 0
    %v768 = vsel %vm72, %v731, 0
    %v771 = vsel %vm72, %v732, 0
    %v774 = vsel %vm72, %v733, 0
    %v777 = vsel %vm72, %v734, 0
    %v780 = vsel %vm72, %v735, 0
    %v783 = vsel %vm72, %v736, 0
    %785 = vmatprep.subr.mxu0 0.0
    %786 = vmatpush1.msra.mxu0 0.0
    %787 = vmatprep.subr.mxu0 0.0
    %788 = vmatpush1.msra.mxu0 0.0
    %789 = vmatprep.subr.mxu0 0.0
    %790 = vmatpush1.msra.mxu0 0.0
    %791 = vmatprep.subr.mxu0 0.0
    %792 = vmatpush1.msra.mxu0 0.0
    %793 = vmatprep.subr.mxu0 0.0
    %794 = vmatpush1.msra.mxu0 0.0
    %795 = vmatprep.subr.mxu0 0.0
    %796 = vmatpush1.msra.mxu0 0.0
    %797 = vmatprep.subr.mxu0 0.0
    %798 = vmatpush1.msra.mxu0 0.0
    %799 = vmatprep.subr.mxu0 0.0
    %800 = vmatpush1.msra.mxu0 0.0
    %801 = vmatprep.subr.mxu0 0.0
    %802 = vmatpush1.msra.mxu0 0.0
    %803 = vmatprep.subr.mxu0 0.0
    %804 = vmatpush1.msra.mxu0 0.0
    %805 = vmatprep.subr.mxu0 0.0
    %806 = vmatpush1.msra.mxu0 0.0
    %807 = vmatprep.subr.mxu0 0.0
    %808 = vmatpush1.msra.mxu0 0.0
    %809 = vmatprep.subr.mxu0 0.0
    %810 = vmatpush1.msra.mxu0 %v58
    %811 = vmatprep.subr.mxu0 0.0
    %812 = vmatpush1.msra.mxu0 %v57
    %813 = vmatprep.subr.mxu0 0.0
    %814 = vmatpush1.msra.mxu0 %v56
    %815 = vmatprep.subr.mxu0 0.0
    %816 = vmatpush1.msra.mxu0 %v55
    %817 = vmatprep.subr.mxu0 0.0
    %818 = vmatpush2.msra.mxu0 0.0
    %819 = vmatprep.subr.mxu0 0.0
    %820 = vmatpush2.msra.mxu0 0.0
    %821 = vmatprep.subr.mxu0 0.0
    %822 = vmatpush2.msra.mxu0 0.0
    %823 = vmatprep.subr.mxu0 0.0
    %824 = vmatpush2.msra.mxu0 0.0
    %825 = vmatprep.subr.mxu0 0.0
    %826 = vmatpush2.msra.mxu0 0.0
    %827 = vmatprep.subr.mxu0 0.0
    %828 = vmatpush2.msra.mxu0 0.0
    %829 = vmatprep.subr.mxu0 0.0
    %830 = vmatpush2.msra.mxu0 0.0
    %831 = vmatprep.subr.mxu0 0.0
    %832 = vmatpush2.msra.mxu0 0.0
    %833 = vmatprep.subr.mxu0 0.0
    %834 = vmatpush2.msra.mxu0 0.0
    %835 = vmatprep.subr.mxu0 0.0
    %836 = vmatpush2.msra.mxu0 0.0
    %837 = vmatprep.subr.mxu0 0.0
    %838 = vmatpush2.msra.mxu0 0.0
    %839 = vmatprep.subr.mxu0 0.0
    %840 = vmatpush2.msra.mxu0 0.0
    %841 = vmatprep.subr.mxu0 0.0
    %842 = vmatpush2.msra.mxu0 0.0
    %843 = vmatprep.subr.mxu0 0.0
    %844 = vmatpush2.msra.mxu0 0.0
    %845 = vmatprep.subr.mxu0 0.0
    %846 = vmatpush2.msra.mxu0 0.0
    %847 = vmatprep.subr.mxu0 0.0
    %848 = vmatpush2.msra.mxu0 0.0
    %849 = vmatprep.mubr.f32.mxu0 0.0
    %850 = vmatmul.mubr.f32.gmra.mxu0 %v738
    %v851 = vpop.f32.mrf.mxu0
    %v852 = vadd.f32 0.0, %v851
    %v853 = vpop.f32.mrf.mxu0
    %854 = vmatprep.mubr.f32.mxu0 0.0
    %855 = vmatmul.mubr.f32.gmra.mxu0 %v741
    %v856 = vpop.f32.mrf.mxu0
    %v857 = vadd.f32 0.0, %v856
    %v858 = vpop.f32.mrf.mxu0
    %859 = vmatprep.mubr.f32.mxu0 0.0
    %860 = vmatmul.mubr.f32.gmra.mxu0 %v744
    %v861 = vpop.f32.mrf.mxu0
    %v862 = vadd.f32 0.0, %v861
    %v863 = vpop.f32.mrf.mxu0
    %864 = vmatprep.mubr.f32.mxu0 0.0
    %865 = vmatmul.mubr.f32.gmra.mxu0 %v747
    %v866 = vpop.f32.mrf.mxu0
    %v867 = vadd.f32 0.0, %v866
    %v868 = vpop.f32.mrf.mxu0
    %869 = vmatprep.mubr.f32.mxu0 0.0
    %870 = vmatmul.mubr.f32.gmra.mxu0 %v750
    %v871 = vpop.f32.mrf.mxu0
    %v872 = vadd.f32 0.0, %v871
    %v873 = vpop.f32.mrf.mxu0
    %874 = vmatprep.mubr.f32.mxu0 0.0
    %875 = vmatmul.mubr.f32.gmra.mxu0 %v753
    %v876 = vpop.f32.mrf.mxu0
    %v877 = vadd.f32 0.0, %v876
    %v878 = vpop.f32.mrf.mxu0
    %879 = vmatprep.mubr.f32.mxu0 0.0
    %880 = vmatmul.mubr.f32.gmra.mxu0 %v756
    %v881 = vpop.f32.mrf.mxu0
    %v882 = vadd.f32 0.0, %v881
    %v883 = vpop.f32.mrf.mxu0
    %884 = vmatprep.mubr.f32.mxu0 0.0
    %885 = vmatmul.mubr.f32.gmra.mxu0 %v759
    %v886 = vpop.f32.mrf.mxu0
    %v887 = vadd.f32 0.0, %v886
    %v888 = vpop.f32.mrf.mxu0
    %889 = vmatprep.mubr.f32.mxu0 0.0
    %890 = vmatmul.mubr.f32.gmra.mxu0 %v762
    %v891 = vpop.f32.mrf.mxu0
    %v892 = vadd.f32 0.0, %v891
    %v893 = vpop.f32.mrf.mxu0
    %894 = vmatprep.mubr.f32.mxu0 0.0
    %895 = vmatmul.mubr.f32.gmra.mxu0 %v765
    %v896 = vpop.f32.mrf.mxu0
    %v897 = vadd.f32 0.0, %v896
    %v898 = vpop.f32.mrf.mxu0
    %899 = vmatprep.mubr.f32.mxu0 0.0
    %900 = vmatmul.mubr.f32.gmra.mxu0 %v768
    %v901 = vpop.f32.mrf.mxu0
    %v902 = vadd.f32 0.0, %v901
    %v903 = vpop.f32.mrf.mxu0
    %904 = vmatprep.mubr.f32.mxu0 0.0
    %905 = vmatmul.mubr.f32.gmra.mxu0 %v771
    %v906 = vpop.f32.mrf.mxu0
    %v907 = vadd.f32 0.0, %v906
    %v908 = vpop.f32.mrf.mxu0
    %909 = vmatprep.mubr.f32.mxu0 0.0
    %910 = vmatmul.mubr.f32.gmra.mxu0 %v774
    %v911 = vpop.f32.mrf.mxu0
    %v912 = vadd.f32 0.0, %v911
    %v913 = vpop.f32.mrf.mxu0
    %914 = vmatprep.mubr.f32.mxu0 0.0
    %915 = vmatmul.mubr.f32.gmra.mxu0 %v777
    %v916 = vpop.f32.mrf.mxu0
    %v917 = vadd.f32 0.0, %v916
    %v918 = vpop.f32.mrf.mxu0
    %919 = vmatprep.mubr.f32.mxu0 0.0
    %920 = vmatmul.mubr.f32.gmra.mxu0 %v780
    %v921 = vpop.f32.mrf.mxu0
    %v922 = vadd.f32 0.0, %v921
    %v923 = vpop.f32.mrf.mxu0
    %924 = vmatprep.mubr.f32.mxu0 0.0
    %925 = vmatmul.mubr.f32.gmra.mxu0 %v783
    %v926 = vpop.f32.mrf.mxu0
    %v927 = vadd.f32 0.0, %v926
    %v928 = vpop.f32.mrf.mxu0
    %929 = vdwg.mxu0
    %v931 = vcombine.high %v604, %v604
    %v933 = vunpack.c.l.s4 1966171168
    %v934 = vunpack.c.0.s8 %v933
    %v935 = vlaneseq
    %v936 = vshrl.u32 %v935, 7
    %v937 = vsub.s32 %v934, %v936
    %v938 = vrot.slane %v604, %v937
    %v940 = vunpack.c.l.s4 1966171168
    %v941 = vunpack.c.0.s8 %v940
    %v942 = vlaneseq
    %v943 = vshrl.u32 %v942, 7
    %v944 = vsub.s32 %v941, %v943
    %v945 = vrot.slane %v931, %v944
    %v946 = vcombine.high %v938, %v938
    %v947 = vcombine.high %v945, %v945
    %v949 = vunpack.c.l.s4 1966171168
    %v950 = vunpack.c.0.s8 %v949
    %v951 = vlaneseq
    %v952 = vshrl.u32 %v951, 7
    %v953 = vsub.s32 %v950, %v952
    %v954 = vrot.slane %v938, %v953
    %v956 = vunpack.c.l.s4 1966171168
    %v957 = vunpack.c.0.s8 %v956
    %v958 = vlaneseq
    %v959 = vshrl.u32 %v958, 7
    %v960 = vsub.s32 %v957, %v959
    %v961 = vrot.slane %v945, %v960
    %v963 = vunpack.c.l.s4 1966171168
    %v964 = vunpack.c.0.s8 %v963
    %v965 = vlaneseq
    %v966 = vshrl.u32 %v965, 7
    %v967 = vsub.s32 %v964, %v966
    %v968 = vrot.slane %v946, %v967
    %v970 = vunpack.c.l.s4 1966171168
    %v971 = vunpack.c.0.s8 %v970
    %v972 = vlaneseq
    %v973 = vshrl.u32 %v972, 7
    %v974 = vsub.s32 %v971, %v973
    %v975 = vrot.slane %v947, %v974
    %v976 = vcombine.high %v954, %v954
    %v977 = vcombine.high %v961, %v961
    %v978 = vcombine.high %v968, %v968
    %v979 = vcombine.high %v975, %v975
    %v980 = vlaneseq
    %v981 = vshrl.u32 %v980, 7
    %v982 = vsub.s32 0, %v981
    %v983 = vrot.slane %v954, %v982
    %v984 = vlaneseq
    %v985 = vshrl.u32 %v984, 7
    %v986 = vsub.s32 0, %v985
    %v987 = vrot.slane %v968, %v986
    %v988 = vlaneseq
    %v989 = vshrl.u32 %v988, 7
    %v990 = vsub.s32 0, %v989
    %v991 = vrot.slane %v976, %v990
    %v992 = vlaneseq
    %v993 = vshrl.u32 %v992, 7
    %v994 = vsub.s32 0, %v993
    %v995 = vrot.slane %v978, %v994
    %v996 = vlaneseq
    %v997 = vshrl.u32 %v996, 7
    %v998 = vsub.s32 0, %v997
    %v999 = vrot.slane %v961, %v998
    %v1000 = vlaneseq
    %v1001 = vshrl.u32 %v1000, 7
    %v1002 = vsub.s32 0, %v1001
    %v1003 = vrot.slane %v975, %v1002
    %v1004 = vlaneseq
    %v1005 = vshrl.u32 %v1004, 7
    %v1006 = vsub.s32 0, %v1005
    %v1007 = vrot.slane %v977, %v1006
    %v1008 = vlaneseq
    %v1009 = vshrl.u32 %v1008, 7
    %v1010 = vsub.s32 0, %v1009
    %v1011 = vrot.slane %v979, %v1010
    %1012 = vrot.lane.b32.xlu0 %v983, 96
    %v1013 = vpop.permute.xlu0 %1012
    %1014 = vrot.lane.b32.xlu0 %v987, 96
    %v1015 = vpop.permute.xlu0 %1014
    %1016 = vrot.lane.b32.xlu0 %v991, 96
    %v1017 = vpop.permute.xlu0 %1016
    %1018 = vrot.lane.b32.xlu0 %v995, 96
    %v1019 = vpop.permute.xlu0 %1018
    %1020 = vrot.lane.b32.xlu0 %v999, 96
    %v1021 = vpop.permute.xlu0 %1020
    %1022 = vrot.lane.b32.xlu0 %v1003, 96
    %v1023 = vpop.permute.xlu0 %1022
    %1024 = vrot.lane.b32.xlu0 %v1007, 96
    %v1025 = vpop.permute.xlu0 %1024
    %1026 = vrot.lane.b32.xlu0 %v1011, 96
    %v1027 = vpop.permute.xlu0 %1026
    %v1036 = vmul.f32 %v852, %v1013
    %v1037 = vmul.f32 %v857, %v1013
    %v1038 = vmul.f32 %v862, %v1015
    %v1039 = vmul.f32 %v867, %v1015
    %v1040 = vmul.f32 %v872, %v1017
    %v1041 = vmul.f32 %v877, %v1017
    %v1042 = vmul.f32 %v882, %v1019
    %v1043 = vmul.f32 %v887, %v1019
    %v1044 = vmul.f32 %v892, %v1021
    %v1045 = vmul.f32 %v897, %v1021
    %v1046 = vmul.f32 %v902, %v1023
    %v1047 = vmul.f32 %v907, %v1023
    %v1048 = vmul.f32 %v912, %v1025
    %v1049 = vmul.f32 %v917, %v1025
    %v1050 = vmul.f32 %v922, %v1027
    %v1051 = vmul.f32 %v927, %v1027
    %v1052 = vld [vmem:[%s4] sm:$0xff]
    %v1053 = vld [vmem:[%s4 + $0x8] sm:$0xff]
    %v1054 = vlaneseq
    %v1055 = vshrl.u32 %v1054, 7
    %v1056 = vsub.s32 0, %v1055
    %v1057 = vrot.slane %v610, %v1056
    %1059 = vrot.lane.b32.xlu0 %v1057, 96
    %v1060 = vpop.permute.xlu0 %1059
    %v1062 = vmul.f32 %v1052, %v1060
    %v1063 = vmul.f32 %v1053, %v1060
    %v1065 = vsel %vm72, %v1062, 0
    %v1068 = vsel %vm72, %v1063, 0
    %1070 = vmatprep.subr.mxu0 0.0
    %1071 = vmatpush1.msra.mxu0 0.0
    %1072 = vmatprep.subr.mxu0 0.0
    %1073 = vmatpush1.msra.mxu0 0.0
    %1074 = vmatprep.subr.mxu0 0.0
    %1075 = vmatpush1.msra.mxu0 0.0
    %1076 = vmatprep.subr.mxu0 0.0
    %1077 = vmatpush1.msra.mxu0 0.0
    %1078 = vmatprep.subr.mxu0 0.0
    %1079 = vmatpush1.msra.mxu0 0.0
    %1080 = vmatprep.subr.mxu0 0.0
    %1081 = vmatpush1.msra.mxu0 0.0
    %1082 = vmatprep.subr.mxu0 0.0
    %1083 = vmatpush1.msra.mxu0 0.0
    %1084 = vmatprep.subr.mxu0 0.0
    %1085 = vmatpush1.msra.mxu0 0.0
    %1086 = vmatprep.subr.mxu0 0.0
    %1087 = vmatpush1.msra.mxu0 0.0
    %1088 = vmatprep.subr.mxu0 0.0
    %1089 = vmatpush1.msra.mxu0 0.0
    %1090 = vmatprep.subr.mxu0 0.0
    %1091 = vmatpush1.msra.mxu0 0.0
    %1092 = vmatprep.subr.mxu0 0.0
    %1093 = vmatpush1.msra.mxu0 0.0
    %1094 = vmatprep.subr.mxu0 0.0
    %1095 = vmatpush1.msra.mxu0 %v58
    %1096 = vmatprep.subr.mxu0 0.0
    %1097 = vmatpush1.msra.mxu0 %v57
    %1098 = vmatprep.subr.mxu0 0.0
    %1099 = vmatpush1.msra.mxu0 %v56
    %1100 = vmatprep.subr.mxu0 0.0
    %1101 = vmatpush1.msra.mxu0 %v55
    %1102 = vmatprep.subr.mxu0 0.0
    %1103 = vmatpush2.msra.mxu0 0.0
    %1104 = vmatprep.subr.mxu0 0.0
    %1105 = vmatpush2.msra.mxu0 0.0
    %1106 = vmatprep.subr.mxu0 0.0
    %1107 = vmatpush2.msra.mxu0 0.0
    %1108 = vmatprep.subr.mxu0 0.0
    %1109 = vmatpush2.msra.mxu0 0.0
    %1110 = vmatprep.subr.mxu0 0.0
    %1111 = vmatpush2.msra.mxu0 0.0
    %1112 = vmatprep.subr.mxu0 0.0
    %1113 = vmatpush2.msra.mxu0 0.0
    %1114 = vmatprep.subr.mxu0 0.0
    %1115 = vmatpush2.msra.mxu0 0.0
    %1116 = vmatprep.subr.mxu0 0.0
    %1117 = vmatpush2.msra.mxu0 0.0
    %1118 = vmatprep.subr.mxu0 0.0
    %1119 = vmatpush2.msra.mxu0 0.0
    %1120 = vmatprep.subr.mxu0 0.0
    %1121 = vmatpush2.msra.mxu0 0.0
    %1122 = vmatprep.subr.mxu0 0.0
    %1123 = vmatpush2.msra.mxu0 0.0
    %1124 = vmatprep.subr.mxu0 0.0
    %1125 = vmatpush2.msra.mxu0 0.0
    %1126 = vmatprep.subr.mxu0 0.0
    %1127 = vmatpush2.msra.mxu0 0.0
    %1128 = vmatprep.subr.mxu0 0.0
    %1129 = vmatpush2.msra.mxu0 0.0
    %1130 = vmatprep.subr.mxu0 0.0
    %1131 = vmatpush2.msra.mxu0 0.0
    %1132 = vmatprep.subr.mxu0 0.0
    %1133 = vmatpush2.msra.mxu0 0.0
    %1134 = vmatprep.mubr.f32.mxu0 0.0
    %1135 = vmatmul.mubr.f32.gmra.mxu0 %v1065
    %v1136 = vpop.f32.mrf.mxu0
    %v1137 = vadd.f32 0.0, %v1136
    %v1138 = vpop.f32.mrf.mxu0
    %1139 = vmatprep.mubr.f32.mxu0 0.0
    %1140 = vmatmul.mubr.f32.gmra.mxu0 %v1068
    %v1141 = vpop.f32.mrf.mxu0
    %v1142 = vadd.f32 0.0, %v1141
    %v1143 = vpop.f32.mrf.mxu0
    %1144 = vdwg.mxu0
    %v1145 = vlaneseq
    %v1146 = vshrl.u32 %v1145, 7
    %v1147 = vsub.s32 0, %v1146
    %v1148 = vrot.slane %v478, %v1147
    %v1149 = vmul.f32 %v1052, %v1148
    %v1150 = vmul.f32 %v1053, %v1148
    %v1151 = vlaneseq
    %v1152 = vshrl.u32 %v1151, 7
    %v1153 = vsub.s32 0, %v1152
    %v1154 = vrot.slane %v615, %v1153
    %1156 = vrot.lane.b32.xlu0 %v1154, 96
    %v1157 = vpop.permute.xlu0 %1156
    %v1159 = vmul.f32 %v1137, %v1157
    %v1160 = vmul.f32 %v1142, %v1157
    %v1161 = vadd.f32 %v1149, %v1159
    %v1162 = vadd.f32 %v1150, %v1160
    %v1163 = vadd.f32 %v1161, %v1036
    %v1164 = vadd.f32 %v1162, %v1037
    %v1165 = vlaneseq
    %v1166 = vshrl.u32 %v1165, 7
    %v1167 = vsub.s32 0, %v1166
    %v1168 = vrot.slane %v316, %v1167
    %v1169 = vmul.f32 %v1163, %v1168
    %v1170 = vmul.f32 %v1164, %v1168
    %v1172 = vsel %vm72, %v1169, 0
    %v1175 = vsel %vm72, %v1170, 0
    %1177 = vmatprep.subr.mxu0 0.0
    %1178 = vmatpush1.msra.mxu0 0.0
    %1179 = vmatprep.subr.mxu0 0.0
    %1180 = vmatpush1.msra.mxu0 0.0
    %1181 = vmatprep.subr.mxu0 0.0
    %1182 = vmatpush1.msra.mxu0 0.0
    %1183 = vmatprep.subr.mxu0 0.0
    %1184 = vmatpush1.msra.mxu0 0.0
    %1185 = vmatprep.subr.mxu0 0.0
    %1186 = vmatpush1.msra.mxu0 0.0
    %1187 = vmatprep.subr.mxu0 0.0
    %1188 = vmatpush1.msra.mxu0 0.0
    %1189 = vmatprep.subr.mxu0 0.0
    %1190 = vmatpush1.msra.mxu0 0.0
    %1191 = vmatprep.subr.mxu0 0.0
    %1192 = vmatpush1.msra.mxu0 0.0
    %1193 = vmatprep.subr.mxu0 0.0
    %1194 = vmatpush1.msra.mxu0 0.0
    %1195 = vmatprep.subr.mxu0 0.0
    %1196 = vmatpush1.msra.mxu0 0.0
    %1197 = vmatprep.subr.mxu0 0.0
    %1198 = vmatpush1.msra.mxu0 0.0
    %1199 = vmatprep.subr.mxu0 0.0
    %1200 = vmatpush1.msra.mxu0 0.0
    %1201 = vmatprep.subr.mxu0 0.0
    %1202 = vmatpush1.msra.mxu0 %v58
    %1203 = vmatprep.subr.mxu0 0.0
    %1204 = vmatpush1.msra.mxu0 %v57
    %1205 = vmatprep.subr.mxu0 0.0
    %1206 = vmatpush1.msra.mxu0 %v56
    %1207 = vmatprep.subr.mxu0 0.0
    %1208 = vmatpush1.msra.mxu0 %v55
    %1209 = vmatprep.subr.mxu0 0.0
    %1210 = vmatpush2.msra.mxu0 0.0
    %1211 = vmatprep.subr.mxu0 0.0
    %1212 = vmatpush2.msra.mxu0 0.0
    %1213 = vmatprep.subr.mxu0 0.0
    %1214 = vmatpush2.msra.mxu0 0.0
    %1215 = vmatprep.subr.mxu0 0.0
    %1216 = vmatpush2.msra.mxu0 0.0
    %1217 = vmatprep.subr.mxu0 0.0
    %1218 = vmatpush2.msra.mxu0 0.0
    %1219 = vmatprep.subr.mxu0 0.0
    %1220 = vmatpush2.msra.mxu0 0.0
    %1221 = vmatprep.subr.mxu0 0.0
    %1222 = vmatpush2.msra.mxu0 0.0
    %1223 = vmatprep.subr.mxu0 0.0
    %1224 = vmatpush2.msra.mxu0 0.0
    %1225 = vmatprep.subr.mxu0 0.0
    %1226 = vmatpush2.msra.mxu0 0.0
    %1227 = vmatprep.subr.mxu0 0.0
    %1228 = vmatpush2.msra.mxu0 0.0
    %1229 = vmatprep.subr.mxu0 0.0
    %1230 = vmatpush2.msra.mxu0 0.0
    %1231 = vmatprep.subr.mxu0 0.0
    %1232 = vmatpush2.msra.mxu0 0.0
    %1233 = vmatprep.subr.mxu0 0.0
    %1234 = vmatpush2.msra.mxu0 0.0
    %1235 = vmatprep.subr.mxu0 0.0
    %1236 = vmatpush2.msra.mxu0 0.0
    %1237 = vmatprep.subr.mxu0 0.0
    %1238 = vmatpush2.msra.mxu0 0.0
    %1239 = vmatprep.subr.mxu0 0.0
    %1240 = vmatpush2.msra.mxu0 0.0
    %1241 = vmatprep.mubr.f32.mxu0 0.0
    %1242 = vmatmul.mubr.f32.gmra.mxu0 %v1172
    %v1243 = vpop.f32.mrf.mxu0
    %v1244 = vadd.f32 0.0, %v1243
    %v1245 = vpop.f32.mrf.mxu0
    %1246 = vmatprep.mubr.f32.mxu0 0.0
    %1247 = vmatmul.mubr.f32.gmra.mxu0 %v1175
    %v1248 = vpop.f32.mrf.mxu0
    %v1249 = vadd.f32 0.0, %v1248
    %v1250 = vpop.f32.mrf.mxu0
    %1251 = vdwg.mxu0
    %v1252 = vlaneseq
    %v1253 = vshrl.u32 %v1252, 7
    %v1254 = vsub.s32 1, %v1253
    %v1255 = vrot.slane %v610, %v1254
    %1257 = vrot.lane.b32.xlu0 %v1255, 96
    %v1258 = vpop.permute.xlu0 %1257
    %v1260 = vmul.f32 %v1163, %v1258
    %v1261 = vmul.f32 %v1164, %v1258
    %v1263 = vsel %vm72, %v1260, 0
    %v1266 = vsel %vm72, %v1261, 0
    %1268 = vmatprep.subr.mxu0 0.0
    %1269 = vmatpush1.msra.mxu0 0.0
    %1270 = vmatprep.subr.mxu0 0.0
    %1271 = vmatpush1.msra.mxu0 0.0
    %1272 = vmatprep.subr.mxu0 0.0
    %1273 = vmatpush1.msra.mxu0 0.0
    %1274 = vmatprep.subr.mxu0 0.0
    %1275 = vmatpush1.msra.mxu0 0.0
    %1276 = vmatprep.subr.mxu0 0.0
    %1277 = vmatpush1.msra.mxu0 0.0
    %1278 = vmatprep.subr.mxu0 0.0
    %1279 = vmatpush1.msra.mxu0 0.0
    %1280 = vmatprep.subr.mxu0 0.0
    %1281 = vmatpush1.msra.mxu0 0.0
    %1282 = vmatprep.subr.mxu0 0.0
    %1283 = vmatpush1.msra.mxu0 0.0
    %1284 = vmatprep.subr.mxu0 0.0
    %1285 = vmatpush1.msra.mxu0 0.0
    %1286 = vmatprep.subr.mxu0 0.0
    %1287 = vmatpush1.msra.mxu0 0.0
    %1288 = vmatprep.subr.mxu0 0.0
    %1289 = vmatpush1.msra.mxu0 0.0
    %1290 = vmatprep.subr.mxu0 0.0
    %1291 = vmatpush1.msra.mxu0 0.0
    %1292 = vmatprep.subr.mxu0 0.0
    %1293 = vmatpush1.msra.mxu0 %v58
    %1294 = vmatprep.subr.mxu0 0.0
    %1295 = vmatpush1.msra.mxu0 %v57
    %1296 = vmatprep.subr.mxu0 0.0
    %1297 = vmatpush1.msra.mxu0 %v56
    %1298 = vmatprep.subr.mxu0 0.0
    %1299 = vmatpush1.msra.mxu0 %v55
    %1300 = vmatprep.subr.mxu0 0.0
    %1301 = vmatpush2.msra.mxu0 0.0
    %1302 = vmatprep.subr.mxu0 0.0
    %1303 = vmatpush2.msra.mxu0 0.0
    %1304 = vmatprep.subr.mxu0 0.0
    %1305 = vmatpush2.msra.mxu0 0.0
    %1306 = vmatprep.subr.mxu0 0.0
    %1307 = vmatpush2.msra.mxu0 0.0
    %1308 = vmatprep.subr.mxu0 0.0
    %1309 = vmatpush2.msra.mxu0 0.0
    %1310 = vmatprep.subr.mxu0 0.0
    %1311 = vmatpush2.msra.mxu0 0.0
    %1312 = vmatprep.subr.mxu0 0.0
    %1313 = vmatpush2.msra.mxu0 0.0
    %1314 = vmatprep.subr.mxu0 0.0
    %1315 = vmatpush2.msra.mxu0 0.0
    %1316 = vmatprep.subr.mxu0 0.0
    %1317 = vmatpush2.msra.mxu0 0.0
    %1318 = vmatprep.subr.mxu0 0.0
    %1319 = vmatpush2.msra.mxu0 0.0
    %1320 = vmatprep.subr.mxu0 0.0
    %1321 = vmatpush2.msra.mxu0 0.0
    %1322 = vmatprep.subr.mxu0 0.0
    %1323 = vmatpush2.msra.mxu0 0.0
    %1324 = vmatprep.subr.mxu0 0.0
    %1325 = vmatpush2.msra.mxu0 0.0
    %1326 = vmatprep.subr.mxu0 0.0
    %1327 = vmatpush2.msra.mxu0 0.0
    %1328 = vmatprep.subr.mxu0 0.0
    %1329 = vmatpush2.msra.mxu0 0.0
    %1330 = vmatprep.subr.mxu0 0.0
    %1331 = vmatpush2.msra.mxu0 0.0
    %1332 = vmatprep.mubr.f32.mxu0 0.0
    %1333 = vmatmul.mubr.f32.gmra.mxu0 %v1263
    %v1334 = vpop.f32.mrf.mxu0
    %v1335 = vadd.f32 0.0, %v1334
    %v1336 = vpop.f32.mrf.mxu0
    %1337 = vmatprep.mubr.f32.mxu0 0.0
    %1338 = vmatmul.mubr.f32.gmra.mxu0 %v1266
    %v1339 = vpop.f32.mrf.mxu0
    %v1340 = vadd.f32 0.0, %v1339
    %v1341 = vpop.f32.mrf.mxu0
    %1342 = vdwg.mxu0
    %v1343 = vlaneseq
    %v1344 = vshrl.u32 %v1343, 7
    %v1345 = vsub.s32 1, %v1344
    %v1346 = vrot.slane %v478, %v1345
    %v1347 = vmul.f32 %v1163, %v1346
    %v1348 = vmul.f32 %v1164, %v1346
    %v1349 = vlaneseq
    %v1350 = vshrl.u32 %v1349, 7
    %v1351 = vsub.s32 1, %v1350
    %v1352 = vrot.slane %v615, %v1351
    %1354 = vrot.lane.b32.xlu0 %v1352, 96
    %v1355 = vpop.permute.xlu0 %1354
    %v1357 = vmul.f32 %v1335, %v1355
    %v1358 = vmul.f32 %v1340, %v1355
    %v1359 = vadd.f32 %v1347, %v1357
    %v1360 = vadd.f32 %v1348, %v1358
    %v1361 = vadd.f32 %v1359, %v1038
    %v1362 = vadd.f32 %v1360, %v1039
    %v1363 = vlaneseq
    %v1364 = vshrl.u32 %v1363, 7
    %v1365 = vsub.s32 1, %v1364
    %v1366 = vrot.slane %v316, %v1365
    %v1367 = vmul.f32 %v1361, %v1366
    %v1368 = vmul.f32 %v1362, %v1366
    %v1370 = vsel %vm72, %v1367, 0
    %v1373 = vsel %vm72, %v1368, 0
    %1375 = vmatprep.subr.mxu0 0.0
    %1376 = vmatpush1.msra.mxu0 0.0
    %1377 = vmatprep.subr.mxu0 0.0
    %1378 = vmatpush1.msra.mxu0 0.0
    %1379 = vmatprep.subr.mxu0 0.0
    %1380 = vmatpush1.msra.mxu0 0.0
    %1381 = vmatprep.subr.mxu0 0.0
    %1382 = vmatpush1.msra.mxu0 0.0
    %1383 = vmatprep.subr.mxu0 0.0
    %1384 = vmatpush1.msra.mxu0 0.0
    %1385 = vmatprep.subr.mxu0 0.0
    %1386 = vmatpush1.msra.mxu0 0.0
    %1387 = vmatprep.subr.mxu0 0.0
    %1388 = vmatpush1.msra.mxu0 0.0
    %1389 = vmatprep.subr.mxu0 0.0
    %1390 = vmatpush1.msra.mxu0 0.0
    %1391 = vmatprep.subr.mxu0 0.0
    %1392 = vmatpush1.msra.mxu0 0.0
    %1393 = vmatprep.subr.mxu0 0.0
    %1394 = vmatpush1.msra.mxu0 0.0
    %1395 = vmatprep.subr.mxu0 0.0
    %1396 = vmatpush1.msra.mxu0 0.0
    %1397 = vmatprep.subr.mxu0 0.0
    %1398 = vmatpush1.msra.mxu0 0.0
    %1399 = vmatprep.subr.mxu0 0.0
    %1400 = vmatpush1.msra.mxu0 %v58
    %1401 = vmatprep.subr.mxu0 0.0
    %1402 = vmatpush1.msra.mxu0 %v57
    %1403 = vmatprep.subr.mxu0 0.0
    %1404 = vmatpush1.msra.mxu0 %v56
    %1405 = vmatprep.subr.mxu0 0.0
    %1406 = vmatpush1.msra.mxu0 %v55
    %1407 = vmatprep.subr.mxu0 0.0
    %1408 = vmatpush2.msra.mxu0 0.0
    %1409 = vmatprep.subr.mxu0 0.0
    %1410 = vmatpush2.msra.mxu0 0.0
    %1411 = vmatprep.subr.mxu0 0.0
    %1412 = vmatpush2.msra.mxu0 0.0
    %1413 = vmatprep.subr.mxu0 0.0
    %1414 = vmatpush2.msra.mxu0 0.0
    %1415 = vmatprep.subr.mxu0 0.0
    %1416 = vmatpush2.msra.mxu0 0.0
    %1417 = vmatprep.subr.mxu0 0.0
    %1418 = vmatpush2.msra.mxu0 0.0
    %1419 = vmatprep.subr.mxu0 0.0
    %1420 = vmatpush2.msra.mxu0 0.0
    %1421 = vmatprep.subr.mxu0 0.0
    %1422 = vmatpush2.msra.mxu0 0.0
    %1423 = vmatprep.subr.mxu0 0.0
    %1424 = vmatpush2.msra.mxu0 0.0
    %1425 = vmatprep.subr.mxu0 0.0
    %1426 = vmatpush2.msra.mxu0 0.0
    %1427 = vmatprep.subr.mxu0 0.0
    %1428 = vmatpush2.msra.mxu0 0.0
    %1429 = vmatprep.subr.mxu0 0.0
    %1430 = vmatpush2.msra.mxu0 0.0
    %1431 = vmatprep.subr.mxu0 0.0
    %1432 = vmatpush2.msra.mxu0 0.0
    %1433 = vmatprep.subr.mxu0 0.0
    %1434 = vmatpush2.msra.mxu0 0.0
    %1435 = vmatprep.subr.mxu0 0.0
    %1436 = vmatpush2.msra.mxu0 0.0
    %1437 = vmatprep.subr.mxu0 0.0
    %1438 = vmatpush2.msra.mxu0 0.0
    %1439 = vmatprep.mubr.f32.mxu0 0.0
    %1440 = vmatmul.mubr.f32.gmra.mxu0 %v1370
    %v1441 = vpop.f32.mrf.mxu0
    %v1442 = vadd.f32 0.0, %v1441
    %v1443 = vpop.f32.mrf.mxu0
    %1444 = vmatprep.mubr.f32.mxu0 0.0
    %1445 = vmatmul.mubr.f32.gmra.mxu0 %v1373
    %v1446 = vpop.f32.mrf.mxu0
    %v1447 = vadd.f32 0.0, %v1446
    %v1448 = vpop.f32.mrf.mxu0
    %1449 = vdwg.mxu0
    %v1450 = vlaneseq
    %v1451 = vshrl.u32 %v1450, 7
    %v1452 = vsub.s32 2, %v1451
    %v1453 = vrot.slane %v610, %v1452
    %1455 = vrot.lane.b32.xlu0 %v1453, 96
    %v1456 = vpop.permute.xlu0 %1455
    %v1458 = vmul.f32 %v1361, %v1456
    %v1459 = vmul.f32 %v1362, %v1456
    %v1461 = vsel %vm72, %v1458, 0
    %v1464 = vsel %vm72, %v1459, 0
    %1466 = vmatprep.subr.mxu0 0.0
    %1467 = vmatpush1.msra.mxu0 0.0
    %1468 = vmatprep.subr.mxu0 0.0
    %1469 = vmatpush1.msra.mxu0 0.0
    %1470 = vmatprep.subr.mxu0 0.0
    %1471 = vmatpush1.msra.mxu0 0.0
    %1472 = vmatprep.subr.mxu0 0.0
    %1473 = vmatpush1.msra.mxu0 0.0
    %1474 = vmatprep.subr.mxu0 0.0
    %1475 = vmatpush1.msra.mxu0 0.0
    %1476 = vmatprep.subr.mxu0 0.0
    %1477 = vmatpush1.msra.mxu0 0.0
    %1478 = vmatprep.subr.mxu0 0.0
    %1479 = vmatpush1.msra.mxu0 0.0
    %1480 = vmatprep.subr.mxu0 0.0
    %1481 = vmatpush1.msra.mxu0 0.0
    %1482 = vmatprep.subr.mxu0 0.0
    %1483 = vmatpush1.msra.mxu0 0.0
    %1484 = vmatprep.subr.mxu0 0.0
    %1485 = vmatpush1.msra.mxu0 0.0
    %1486 = vmatprep.subr.mxu0 0.0
    %1487 = vmatpush1.msra.mxu0 0.0
    %1488 = vmatprep.subr.mxu0 0.0
    %1489 = vmatpush1.msra.mxu0 0.0
    %1490 = vmatprep.subr.mxu0 0.0
    %1491 = vmatpush1.msra.mxu0 %v58
    %1492 = vmatprep.subr.mxu0 0.0
    %1493 = vmatpush1.msra.mxu0 %v57
    %1494 = vmatprep.subr.mxu0 0.0
    %1495 = vmatpush1.msra.mxu0 %v56
    %1496 = vmatprep.subr.mxu0 0.0
    %1497 = vmatpush1.msra.mxu0 %v55
    %1498 = vmatprep.subr.mxu0 0.0
    %1499 = vmatpush2.msra.mxu0 0.0
    %1500 = vmatprep.subr.mxu0 0.0
    %1501 = vmatpush2.msra.mxu0 0.0
    %1502 = vmatprep.subr.mxu0 0.0
    %1503 = vmatpush2.msra.mxu0 0.0
    %1504 = vmatprep.subr.mxu0 0.0
    %1505 = vmatpush2.msra.mxu0 0.0
    %1506 = vmatprep.subr.mxu0 0.0
    %1507 = vmatpush2.msra.mxu0 0.0
    %1508 = vmatprep.subr.mxu0 0.0
    %1509 = vmatpush2.msra.mxu0 0.0
    %1510 = vmatprep.subr.mxu0 0.0
    %1511 = vmatpush2.msra.mxu0 0.0
    %1512 = vmatprep.subr.mxu0 0.0
    %1513 = vmatpush2.msra.mxu0 0.0
    %1514 = vmatprep.subr.mxu0 0.0
    %1515 = vmatpush2.msra.mxu0 0.0
    %1516 = vmatprep.subr.mxu0 0.0
    %1517 = vmatpush2.msra.mxu0 0.0
    %1518 = vmatprep.subr.mxu0 0.0
    %1519 = vmatpush2.msra.mxu0 0.0
    %1520 = vmatprep.subr.mxu0 0.0
    %1521 = vmatpush2.msra.mxu0 0.0
    %1522 = vmatprep.subr.mxu0 0.0
    %1523 = vmatpush2.msra.mxu0 0.0
    %1524 = vmatprep.subr.mxu0 0.0
    %1525 = vmatpush2.msra.mxu0 0.0
    %1526 = vmatprep.subr.mxu0 0.0
    %1527 = vmatpush2.msra.mxu0 0.0
    %1528 = vmatprep.subr.mxu0 0.0
    %1529 = vmatpush2.msra.mxu0 0.0
    %1530 = vmatprep.mubr.f32.mxu0 0.0
    %1531 = vmatmul.mubr.f32.gmra.mxu0 %v1461
    %v1532 = vpop.f32.mrf.mxu0
    %v1533 = vadd.f32 0.0, %v1532
    %v1534 = vpop.f32.mrf.mxu0
    %1535 = vmatprep.mubr.f32.mxu0 0.0
    %1536 = vmatmul.mubr.f32.gmra.mxu0 %v1464
    %v1537 = vpop.f32.mrf.mxu0
    %v1538 = vadd.f32 0.0, %v1537
    %v1539 = vpop.f32.mrf.mxu0
    %1540 = vdwg.mxu0
    %v1541 = vlaneseq
    %v1542 = vshrl.u32 %v1541, 7
    %v1543 = vsub.s32 2, %v1542
    %v1544 = vrot.slane %v478, %v1543
    %v1545 = vmul.f32 %v1361, %v1544
    %v1546 = vmul.f32 %v1362, %v1544
    %v1547 = vlaneseq
    %v1548 = vshrl.u32 %v1547, 7
    %v1549 = vsub.s32 2, %v1548
    %v1550 = vrot.slane %v615, %v1549
    %1552 = vrot.lane.b32.xlu0 %v1550, 96
    %v1553 = vpop.permute.xlu0 %1552
    %v1555 = vmul.f32 %v1533, %v1553
    %v1556 = vmul.f32 %v1538, %v1553
    %v1557 = vadd.f32 %v1545, %v1555
    %v1558 = vadd.f32 %v1546, %v1556
    %v1559 = vadd.f32 %v1557, %v1040
    %v1560 = vadd.f32 %v1558, %v1041
    %v1561 = vlaneseq
    %v1562 = vshrl.u32 %v1561, 7
    %v1563 = vsub.s32 2, %v1562
    %v1564 = vrot.slane %v316, %v1563
    %v1565 = vmul.f32 %v1559, %v1564
    %v1566 = vmul.f32 %v1560, %v1564
    %v1568 = vsel %vm72, %v1565, 0
    %v1571 = vsel %vm72, %v1566, 0
    %1573 = vmatprep.subr.mxu0 0.0
    %1574 = vmatpush1.msra.mxu0 0.0
    %1575 = vmatprep.subr.mxu0 0.0
    %1576 = vmatpush1.msra.mxu0 0.0
    %1577 = vmatprep.subr.mxu0 0.0
    %1578 = vmatpush1.msra.mxu0 0.0
    %1579 = vmatprep.subr.mxu0 0.0
    %1580 = vmatpush1.msra.mxu0 0.0
    %1581 = vmatprep.subr.mxu0 0.0
    %1582 = vmatpush1.msra.mxu0 0.0
    %1583 = vmatprep.subr.mxu0 0.0
    %1584 = vmatpush1.msra.mxu0 0.0
    %1585 = vmatprep.subr.mxu0 0.0
    %1586 = vmatpush1.msra.mxu0 0.0
    %1587 = vmatprep.subr.mxu0 0.0
    %1588 = vmatpush1.msra.mxu0 0.0
    %1589 = vmatprep.subr.mxu0 0.0
    %1590 = vmatpush1.msra.mxu0 0.0
    %1591 = vmatprep.subr.mxu0 0.0
    %1592 = vmatpush1.msra.mxu0 0.0
    %1593 = vmatprep.subr.mxu0 0.0
    %1594 = vmatpush1.msra.mxu0 0.0
    %1595 = vmatprep.subr.mxu0 0.0
    %1596 = vmatpush1.msra.mxu0 0.0
    %1597 = vmatprep.subr.mxu0 0.0
    %1598 = vmatpush1.msra.mxu0 %v58
    %1599 = vmatprep.subr.mxu0 0.0
    %1600 = vmatpush1.msra.mxu0 %v57
    %1601 = vmatprep.subr.mxu0 0.0
    %1602 = vmatpush1.msra.mxu0 %v56
    %1603 = vmatprep.subr.mxu0 0.0
    %1604 = vmatpush1.msra.mxu0 %v55
    %1605 = vmatprep.subr.mxu0 0.0
    %1606 = vmatpush2.msra.mxu0 0.0
    %1607 = vmatprep.subr.mxu0 0.0
    %1608 = vmatpush2.msra.mxu0 0.0
    %1609 = vmatprep.subr.mxu0 0.0
    %1610 = vmatpush2.msra.mxu0 0.0
    %1611 = vmatprep.subr.mxu0 0.0
    %1612 = vmatpush2.msra.mxu0 0.0
    %1613 = vmatprep.subr.mxu0 0.0
    %1614 = vmatpush2.msra.mxu0 0.0
    %1615 = vmatprep.subr.mxu0 0.0
    %1616 = vmatpush2.msra.mxu0 0.0
    %1617 = vmatprep.subr.mxu0 0.0
    %1618 = vmatpush2.msra.mxu0 0.0
    %1619 = vmatprep.subr.mxu0 0.0
    %1620 = vmatpush2.msra.mxu0 0.0
    %1621 = vmatprep.subr.mxu0 0.0
    %1622 = vmatpush2.msra.mxu0 0.0
    %1623 = vmatprep.subr.mxu0 0.0
    %1624 = vmatpush2.msra.mxu0 0.0
    %1625 = vmatprep.subr.mxu0 0.0
    %1626 = vmatpush2.msra.mxu0 0.0
    %1627 = vmatprep.subr.mxu0 0.0
    %1628 = vmatpush2.msra.mxu0 0.0
    %1629 = vmatprep.subr.mxu0 0.0
    %1630 = vmatpush2.msra.mxu0 0.0
    %1631 = vmatprep.subr.mxu0 0.0
    %1632 = vmatpush2.msra.mxu0 0.0
    %1633 = vmatprep.subr.mxu0 0.0
    %1634 = vmatpush2.msra.mxu0 0.0
    %1635 = vmatprep.subr.mxu0 0.0
    %1636 = vmatpush2.msra.mxu0 0.0
    %1637 = vmatprep.mubr.f32.mxu0 0.0
    %1638 = vmatmul.mubr.f32.gmra.mxu0 %v1568
    %v1639 = vpop.f32.mrf.mxu0
    %v1640 = vadd.f32 0.0, %v1639
    %v1641 = vpop.f32.mrf.mxu0
    %1642 = vmatprep.mubr.f32.mxu0 0.0
    %1643 = vmatmul.mubr.f32.gmra.mxu0 %v1571
    %v1644 = vpop.f32.mrf.mxu0
    %v1645 = vadd.f32 0.0, %v1644
    %v1646 = vpop.f32.mrf.mxu0
    %1647 = vdwg.mxu0
    %v1648 = vlaneseq
    %v1649 = vshrl.u32 %v1648, 7
    %v1650 = vsub.s32 3, %v1649
    %v1651 = vrot.slane %v610, %v1650
    %1653 = vrot.lane.b32.xlu0 %v1651, 96
    %v1654 = vpop.permute.xlu0 %1653
    %v1656 = vmul.f32 %v1559, %v1654
    %v1657 = vmul.f32 %v1560, %v1654
    %v1659 = vsel %vm72, %v1656, 0
    %v1662 = vsel %vm72, %v1657, 0
    %1664 = vmatprep.subr.mxu0 0.0
    %1665 = vmatpush1.msra.mxu0 0.0
    %1666 = vmatprep.subr.mxu0 0.0
    %1667 = vmatpush1.msra.mxu0 0.0
    %1668 = vmatprep.subr.mxu0 0.0
    %1669 = vmatpush1.msra.mxu0 0.0
    %1670 = vmatprep.subr.mxu0 0.0
    %1671 = vmatpush1.msra.mxu0 0.0
    %1672 = vmatprep.subr.mxu0 0.0
    %1673 = vmatpush1.msra.mxu0 0.0
    %1674 = vmatprep.subr.mxu0 0.0
    %1675 = vmatpush1.msra.mxu0 0.0
    %1676 = vmatprep.subr.mxu0 0.0
    %1677 = vmatpush1.msra.mxu0 0.0
    %1678 = vmatprep.subr.mxu0 0.0
    %1679 = vmatpush1.msra.mxu0 0.0
    %1680 = vmatprep.subr.mxu0 0.0
    %1681 = vmatpush1.msra.mxu0 0.0
    %1682 = vmatprep.subr.mxu0 0.0
    %1683 = vmatpush1.msra.mxu0 0.0
    %1684 = vmatprep.subr.mxu0 0.0
    %1685 = vmatpush1.msra.mxu0 0.0
    %1686 = vmatprep.subr.mxu0 0.0
    %1687 = vmatpush1.msra.mxu0 0.0
    %1688 = vmatprep.subr.mxu0 0.0
    %1689 = vmatpush1.msra.mxu0 %v58
    %1690 = vmatprep.subr.mxu0 0.0
    %1691 = vmatpush1.msra.mxu0 %v57
    %1692 = vmatprep.subr.mxu0 0.0
    %1693 = vmatpush1.msra.mxu0 %v56
    %1694 = vmatprep.subr.mxu0 0.0
    %1695 = vmatpush1.msra.mxu0 %v55
    %1696 = vmatprep.subr.mxu0 0.0
    %1697 = vmatpush2.msra.mxu0 0.0
    %1698 = vmatprep.subr.mxu0 0.0
    %1699 = vmatpush2.msra.mxu0 0.0
    %1700 = vmatprep.subr.mxu0 0.0
    %1701 = vmatpush2.msra.mxu0 0.0
    %1702 = vmatprep.subr.mxu0 0.0
    %1703 = vmatpush2.msra.mxu0 0.0
    %1704 = vmatprep.subr.mxu0 0.0
    %1705 = vmatpush2.msra.mxu0 0.0
    %1706 = vmatprep.subr.mxu0 0.0
    %1707 = vmatpush2.msra.mxu0 0.0
    %1708 = vmatprep.subr.mxu0 0.0
    %1709 = vmatpush2.msra.mxu0 0.0
    %1710 = vmatprep.subr.mxu0 0.0
    %1711 = vmatpush2.msra.mxu0 0.0
    %1712 = vmatprep.subr.mxu0 0.0
    %1713 = vmatpush2.msra.mxu0 0.0
    %1714 = vmatprep.subr.mxu0 0.0
    %1715 = vmatpush2.msra.mxu0 0.0
    %1716 = vmatprep.subr.mxu0 0.0
    %1717 = vmatpush2.msra.mxu0 0.0
    %1718 = vmatprep.subr.mxu0 0.0
    %1719 = vmatpush2.msra.mxu0 0.0
    %1720 = vmatprep.subr.mxu0 0.0
    %1721 = vmatpush2.msra.mxu0 0.0
    %1722 = vmatprep.subr.mxu0 0.0
    %1723 = vmatpush2.msra.mxu0 0.0
    %1724 = vmatprep.subr.mxu0 0.0
    %1725 = vmatpush2.msra.mxu0 0.0
    %1726 = vmatprep.subr.mxu0 0.0
    %1727 = vmatpush2.msra.mxu0 0.0
    %1728 = vmatprep.mubr.f32.mxu0 0.0
    %1729 = vmatmul.mubr.f32.gmra.mxu0 %v1659
    %v1730 = vpop.f32.mrf.mxu0
    %v1731 = vadd.f32 0.0, %v1730
    %v1732 = vpop.f32.mrf.mxu0
    %1733 = vmatprep.mubr.f32.mxu0 0.0
    %1734 = vmatmul.mubr.f32.gmra.mxu0 %v1662
    %v1735 = vpop.f32.mrf.mxu0
    %v1736 = vadd.f32 0.0, %v1735
    %v1737 = vpop.f32.mrf.mxu0
    %1738 = vdwg.mxu0
    %v1739 = vlaneseq
    %v1740 = vshrl.u32 %v1739, 7
    %v1741 = vsub.s32 3, %v1740
    %v1742 = vrot.slane %v478, %v1741
    %v1743 = vmul.f32 %v1559, %v1742
    %v1744 = vmul.f32 %v1560, %v1742
    %v1745 = vlaneseq
    %v1746 = vshrl.u32 %v1745, 7
    %v1747 = vsub.s32 3, %v1746
    %v1748 = vrot.slane %v615, %v1747
    %1750 = vrot.lane.b32.xlu0 %v1748, 96
    %v1751 = vpop.permute.xlu0 %1750
    %v1753 = vmul.f32 %v1731, %v1751
    %v1754 = vmul.f32 %v1736, %v1751
    %v1755 = vadd.f32 %v1743, %v1753
    %v1756 = vadd.f32 %v1744, %v1754
    %v1757 = vadd.f32 %v1755, %v1042
    %v1758 = vadd.f32 %v1756, %v1043
    %v1759 = vlaneseq
    %v1760 = vshrl.u32 %v1759, 7
    %v1761 = vsub.s32 3, %v1760
    %v1762 = vrot.slane %v316, %v1761
    %v1763 = vmul.f32 %v1757, %v1762
    %v1764 = vmul.f32 %v1758, %v1762
    %v1766 = vsel %vm72, %v1763, 0
    %v1769 = vsel %vm72, %v1764, 0
    %1771 = vmatprep.subr.mxu0 0.0
    %1772 = vmatpush1.msra.mxu0 0.0
    %1773 = vmatprep.subr.mxu0 0.0
    %1774 = vmatpush1.msra.mxu0 0.0
    %1775 = vmatprep.subr.mxu0 0.0
    %1776 = vmatpush1.msra.mxu0 0.0
    %1777 = vmatprep.subr.mxu0 0.0
    %1778 = vmatpush1.msra.mxu0 0.0
    %1779 = vmatprep.subr.mxu0 0.0
    %1780 = vmatpush1.msra.mxu0 0.0
    %1781 = vmatprep.subr.mxu0 0.0
    %1782 = vmatpush1.msra.mxu0 0.0
    %1783 = vmatprep.subr.mxu0 0.0
    %1784 = vmatpush1.msra.mxu0 0.0
    %1785 = vmatprep.subr.mxu0 0.0
    %1786 = vmatpush1.msra.mxu0 0.0
    %1787 = vmatprep.subr.mxu0 0.0
    %1788 = vmatpush1.msra.mxu0 0.0
    %1789 = vmatprep.subr.mxu0 0.0
    %1790 = vmatpush1.msra.mxu0 0.0
    %1791 = vmatprep.subr.mxu0 0.0
    %1792 = vmatpush1.msra.mxu0 0.0
    %1793 = vmatprep.subr.mxu0 0.0
    %1794 = vmatpush1.msra.mxu0 0.0
    %1795 = vmatprep.subr.mxu0 0.0
    %1796 = vmatpush1.msra.mxu0 %v58
    %1797 = vmatprep.subr.mxu0 0.0
    %1798 = vmatpush1.msra.mxu0 %v57
    %1799 = vmatprep.subr.mxu0 0.0
    %1800 = vmatpush1.msra.mxu0 %v56
    %1801 = vmatprep.subr.mxu0 0.0
    %1802 = vmatpush1.msra.mxu0 %v55
    %1803 = vmatprep.subr.mxu0 0.0
    %1804 = vmatpush2.msra.mxu0 0.0
    %1805 = vmatprep.subr.mxu0 0.0
    %1806 = vmatpush2.msra.mxu0 0.0
    %1807 = vmatprep.subr.mxu0 0.0
    %1808 = vmatpush2.msra.mxu0 0.0
    %1809 = vmatprep.subr.mxu0 0.0
    %1810 = vmatpush2.msra.mxu0 0.0
    %1811 = vmatprep.subr.mxu0 0.0
    %1812 = vmatpush2.msra.mxu0 0.0
    %1813 = vmatprep.subr.mxu0 0.0
    %1814 = vmatpush2.msra.mxu0 0.0
    %1815 = vmatprep.subr.mxu0 0.0
    %1816 = vmatpush2.msra.mxu0 0.0
    %1817 = vmatprep.subr.mxu0 0.0
    %1818 = vmatpush2.msra.mxu0 0.0
    %1819 = vmatprep.subr.mxu0 0.0
    %1820 = vmatpush2.msra.mxu0 0.0
    %1821 = vmatprep.subr.mxu0 0.0
    %1822 = vmatpush2.msra.mxu0 0.0
    %1823 = vmatprep.subr.mxu0 0.0
    %1824 = vmatpush2.msra.mxu0 0.0
    %1825 = vmatprep.subr.mxu0 0.0
    %1826 = vmatpush2.msra.mxu0 0.0
    %1827 = vmatprep.subr.mxu0 0.0
    %1828 = vmatpush2.msra.mxu0 0.0
    %1829 = vmatprep.subr.mxu0 0.0
    %1830 = vmatpush2.msra.mxu0 0.0
    %1831 = vmatprep.subr.mxu0 0.0
    %1832 = vmatpush2.msra.mxu0 0.0
    %1833 = vmatprep.subr.mxu0 0.0
    %1834 = vmatpush2.msra.mxu0 0.0
    %1835 = vmatprep.mubr.f32.mxu0 0.0
    %1836 = vmatmul.mubr.f32.gmra.mxu0 %v1766
    %v1837 = vpop.f32.mrf.mxu0
    %v1838 = vadd.f32 0.0, %v1837
    %v1839 = vpop.f32.mrf.mxu0
    %1840 = vmatprep.mubr.f32.mxu0 0.0
    %1841 = vmatmul.mubr.f32.gmra.mxu0 %v1769
    %v1842 = vpop.f32.mrf.mxu0
    %v1843 = vadd.f32 0.0, %v1842
    %v1844 = vpop.f32.mrf.mxu0
    %1845 = vdwg.mxu0
    %v1846 = vlaneseq
    %v1847 = vshrl.u32 %v1846, 7
    %v1848 = vsub.s32 4, %v1847
    %v1849 = vrot.slane %v610, %v1848
    %1851 = vrot.lane.b32.xlu0 %v1849, 96
    %v1852 = vpop.permute.xlu0 %1851
    %v1854 = vmul.f32 %v1757, %v1852
    %v1855 = vmul.f32 %v1758, %v1852
    %v1857 = vsel %vm72, %v1854, 0
    %v1860 = vsel %vm72, %v1855, 0
    %1862 = vmatprep.subr.mxu0 0.0
    %1863 = vmatpush1.msra.mxu0 0.0
    %1864 = vmatprep.subr.mxu0 0.0
    %1865 = vmatpush1.msra.mxu0 0.0
    %1866 = vmatprep.subr.mxu0 0.0
    %1867 = vmatpush1.msra.mxu0 0.0
    %1868 = vmatprep.subr.mxu0 0.0
    %1869 = vmatpush1.msra.mxu0 0.0
    %1870 = vmatprep.subr.mxu0 0.0
    %1871 = vmatpush1.msra.mxu0 0.0
    %1872 = vmatprep.subr.mxu0 0.0
    %1873 = vmatpush1.msra.mxu0 0.0
    %1874 = vmatprep.subr.mxu0 0.0
    %1875 = vmatpush1.msra.mxu0 0.0
    %1876 = vmatprep.subr.mxu0 0.0
    %1877 = vmatpush1.msra.mxu0 0.0
    %1878 = vmatprep.subr.mxu0 0.0
    %1879 = vmatpush1.msra.mxu0 0.0
    %1880 = vmatprep.subr.mxu0 0.0
    %1881 = vmatpush1.msra.mxu0 0.0
    %1882 = vmatprep.subr.mxu0 0.0
    %1883 = vmatpush1.msra.mxu0 0.0
    %1884 = vmatprep.subr.mxu0 0.0
    %1885 = vmatpush1.msra.mxu0 0.0
    %1886 = vmatprep.subr.mxu0 0.0
    %1887 = vmatpush1.msra.mxu0 %v58
    %1888 = vmatprep.subr.mxu0 0.0
    %1889 = vmatpush1.msra.mxu0 %v57
    %1890 = vmatprep.subr.mxu0 0.0
    %1891 = vmatpush1.msra.mxu0 %v56
    %1892 = vmatprep.subr.mxu0 0.0
    %1893 = vmatpush1.msra.mxu0 %v55
    %1894 = vmatprep.subr.mxu0 0.0
    %1895 = vmatpush2.msra.mxu0 0.0
    %1896 = vmatprep.subr.mxu0 0.0
    %1897 = vmatpush2.msra.mxu0 0.0
    %1898 = vmatprep.subr.mxu0 0.0
    %1899 = vmatpush2.msra.mxu0 0.0
    %1900 = vmatprep.subr.mxu0 0.0
    %1901 = vmatpush2.msra.mxu0 0.0
    %1902 = vmatprep.subr.mxu0 0.0
    %1903 = vmatpush2.msra.mxu0 0.0
    %1904 = vmatprep.subr.mxu0 0.0
    %1905 = vmatpush2.msra.mxu0 0.0
    %1906 = vmatprep.subr.mxu0 0.0
    %1907 = vmatpush2.msra.mxu0 0.0
    %1908 = vmatprep.subr.mxu0 0.0
    %1909 = vmatpush2.msra.mxu0 0.0
    %1910 = vmatprep.subr.mxu0 0.0
    %1911 = vmatpush2.msra.mxu0 0.0
    %1912 = vmatprep.subr.mxu0 0.0
    %1913 = vmatpush2.msra.mxu0 0.0
    %1914 = vmatprep.subr.mxu0 0.0
    %1915 = vmatpush2.msra.mxu0 0.0
    %1916 = vmatprep.subr.mxu0 0.0
    %1917 = vmatpush2.msra.mxu0 0.0
    %1918 = vmatprep.subr.mxu0 0.0
    %1919 = vmatpush2.msra.mxu0 0.0
    %1920 = vmatprep.subr.mxu0 0.0
    %1921 = vmatpush2.msra.mxu0 0.0
    %1922 = vmatprep.subr.mxu0 0.0
    %1923 = vmatpush2.msra.mxu0 0.0
    %1924 = vmatprep.subr.mxu0 0.0
    %1925 = vmatpush2.msra.mxu0 0.0
    %1926 = vmatprep.mubr.f32.mxu0 0.0
    %1927 = vmatmul.mubr.f32.gmra.mxu0 %v1857
    %v1928 = vpop.f32.mrf.mxu0
    %v1929 = vadd.f32 0.0, %v1928
    %v1930 = vpop.f32.mrf.mxu0
    %1931 = vmatprep.mubr.f32.mxu0 0.0
    %1932 = vmatmul.mubr.f32.gmra.mxu0 %v1860
    %v1933 = vpop.f32.mrf.mxu0
    %v1934 = vadd.f32 0.0, %v1933
    %v1935 = vpop.f32.mrf.mxu0
    %1936 = vdwg.mxu0
    %v1937 = vlaneseq
    %v1938 = vshrl.u32 %v1937, 7
    %v1939 = vsub.s32 4, %v1938
    %v1940 = vrot.slane %v478, %v1939
    %v1941 = vmul.f32 %v1757, %v1940
    %v1942 = vmul.f32 %v1758, %v1940
    %v1943 = vlaneseq
    %v1944 = vshrl.u32 %v1943, 7
    %v1945 = vsub.s32 4, %v1944
    %v1946 = vrot.slane %v615, %v1945
    %1948 = vrot.lane.b32.xlu0 %v1946, 96
    %v1949 = vpop.permute.xlu0 %1948
    %v1951 = vmul.f32 %v1929, %v1949
    %v1952 = vmul.f32 %v1934, %v1949
    %v1953 = vadd.f32 %v1941, %v1951
    %v1954 = vadd.f32 %v1942, %v1952
    %v1955 = vadd.f32 %v1953, %v1044
    %v1956 = vadd.f32 %v1954, %v1045
    %v1957 = vlaneseq
    %v1958 = vshrl.u32 %v1957, 7
    %v1959 = vsub.s32 4, %v1958
    %v1960 = vrot.slane %v316, %v1959
    %v1961 = vmul.f32 %v1955, %v1960
    %v1962 = vmul.f32 %v1956, %v1960
    %v1964 = vsel %vm72, %v1961, 0
    %v1967 = vsel %vm72, %v1962, 0
    %1969 = vmatprep.subr.mxu0 0.0
    %1970 = vmatpush1.msra.mxu0 0.0
    %1971 = vmatprep.subr.mxu0 0.0
    %1972 = vmatpush1.msra.mxu0 0.0
    %1973 = vmatprep.subr.mxu0 0.0
    %1974 = vmatpush1.msra.mxu0 0.0
    %1975 = vmatprep.subr.mxu0 0.0
    %1976 = vmatpush1.msra.mxu0 0.0
    %1977 = vmatprep.subr.mxu0 0.0
    %1978 = vmatpush1.msra.mxu0 0.0
    %1979 = vmatprep.subr.mxu0 0.0
    %1980 = vmatpush1.msra.mxu0 0.0
    %1981 = vmatprep.subr.mxu0 0.0
    %1982 = vmatpush1.msra.mxu0 0.0
    %1983 = vmatprep.subr.mxu0 0.0
    %1984 = vmatpush1.msra.mxu0 0.0
    %1985 = vmatprep.subr.mxu0 0.0
    %1986 = vmatpush1.msra.mxu0 0.0
    %1987 = vmatprep.subr.mxu0 0.0
    %1988 = vmatpush1.msra.mxu0 0.0
    %1989 = vmatprep.subr.mxu0 0.0
    %1990 = vmatpush1.msra.mxu0 0.0
    %1991 = vmatprep.subr.mxu0 0.0
    %1992 = vmatpush1.msra.mxu0 0.0
    %1993 = vmatprep.subr.mxu0 0.0
    %1994 = vmatpush1.msra.mxu0 %v58
    %1995 = vmatprep.subr.mxu0 0.0
    %1996 = vmatpush1.msra.mxu0 %v57
    %1997 = vmatprep.subr.mxu0 0.0
    %1998 = vmatpush1.msra.mxu0 %v56
    %1999 = vmatprep.subr.mxu0 0.0
    %2000 = vmatpush1.msra.mxu0 %v55
    %2001 = vmatprep.subr.mxu0 0.0
    %2002 = vmatpush2.msra.mxu0 0.0
    %2003 = vmatprep.subr.mxu0 0.0
    %2004 = vmatpush2.msra.mxu0 0.0
    %2005 = vmatprep.subr.mxu0 0.0
    %2006 = vmatpush2.msra.mxu0 0.0
    %2007 = vmatprep.subr.mxu0 0.0
    %2008 = vmatpush2.msra.mxu0 0.0
    %2009 = vmatprep.subr.mxu0 0.0
    %2010 = vmatpush2.msra.mxu0 0.0
    %2011 = vmatprep.subr.mxu0 0.0
    %2012 = vmatpush2.msra.mxu0 0.0
    %2013 = vmatprep.subr.mxu0 0.0
    %2014 = vmatpush2.msra.mxu0 0.0
    %2015 = vmatprep.subr.mxu0 0.0
    %2016 = vmatpush2.msra.mxu0 0.0
    %2017 = vmatprep.subr.mxu0 0.0
    %2018 = vmatpush2.msra.mxu0 0.0
    %2019 = vmatprep.subr.mxu0 0.0
    %2020 = vmatpush2.msra.mxu0 0.0
    %2021 = vmatprep.subr.mxu0 0.0
    %2022 = vmatpush2.msra.mxu0 0.0
    %2023 = vmatprep.subr.mxu0 0.0
    %2024 = vmatpush2.msra.mxu0 0.0
    %2025 = vmatprep.subr.mxu0 0.0
    %2026 = vmatpush2.msra.mxu0 0.0
    %2027 = vmatprep.subr.mxu0 0.0
    %2028 = vmatpush2.msra.mxu0 0.0
    %2029 = vmatprep.subr.mxu0 0.0
    %2030 = vmatpush2.msra.mxu0 0.0
    %2031 = vmatprep.subr.mxu0 0.0
    %2032 = vmatpush2.msra.mxu0 0.0
    %2033 = vmatprep.mubr.f32.mxu0 0.0
    %2034 = vmatmul.mubr.f32.gmra.mxu0 %v1964
    %v2035 = vpop.f32.mrf.mxu0
    %v2036 = vadd.f32 0.0, %v2035
    %v2037 = vpop.f32.mrf.mxu0
    %2038 = vmatprep.mubr.f32.mxu0 0.0
    %2039 = vmatmul.mubr.f32.gmra.mxu0 %v1967
    %v2040 = vpop.f32.mrf.mxu0
    %v2041 = vadd.f32 0.0, %v2040
    %v2042 = vpop.f32.mrf.mxu0
    %2043 = vdwg.mxu0
    %v2044 = vlaneseq
    %v2045 = vshrl.u32 %v2044, 7
    %v2046 = vsub.s32 5, %v2045
    %v2047 = vrot.slane %v610, %v2046
    %2049 = vrot.lane.b32.xlu0 %v2047, 96
    %v2050 = vpop.permute.xlu0 %2049
    %v2052 = vmul.f32 %v1955, %v2050
    %v2053 = vmul.f32 %v1956, %v2050
    %v2055 = vsel %vm72, %v2052, 0
    %v2058 = vsel %vm72, %v2053, 0
    %2060 = vmatprep.subr.mxu0 0.0
    %2061 = vmatpush1.msra.mxu0 0.0
    %2062 = vmatprep.subr.mxu0 0.0
    %2063 = vmatpush1.msra.mxu0 0.0
    %2064 = vmatprep.subr.mxu0 0.0
    %2065 = vmatpush1.msra.mxu0 0.0
    %2066 = vmatprep.subr.mxu0 0.0
    %2067 = vmatpush1.msra.mxu0 0.0
    %2068 = vmatprep.subr.mxu0 0.0
    %2069 = vmatpush1.msra.mxu0 0.0
    %2070 = vmatprep.subr.mxu0 0.0
    %2071 = vmatpush1.msra.mxu0 0.0
    %2072 = vmatprep.subr.mxu0 0.0
    %2073 = vmatpush1.msra.mxu0 0.0
    %2074 = vmatprep.subr.mxu0 0.0
    %2075 = vmatpush1.msra.mxu0 0.0
    %2076 = vmatprep.subr.mxu0 0.0
    %2077 = vmatpush1.msra.mxu0 0.0
    %2078 = vmatprep.subr.mxu0 0.0
    %2079 = vmatpush1.msra.mxu0 0.0
    %2080 = vmatprep.subr.mxu0 0.0
    %2081 = vmatpush1.msra.mxu0 0.0
    %2082 = vmatprep.subr.mxu0 0.0
    %2083 = vmatpush1.msra.mxu0 0.0
    %2084 = vmatprep.subr.mxu0 0.0
    %2085 = vmatpush1.msra.mxu0 %v58
    %2086 = vmatprep.subr.mxu0 0.0
    %2087 = vmatpush1.msra.mxu0 %v57
    %2088 = vmatprep.subr.mxu0 0.0
    %2089 = vmatpush1.msra.mxu0 %v56
    %2090 = vmatprep.subr.mxu0 0.0
    %2091 = vmatpush1.msra.mxu0 %v55
    %2092 = vmatprep.subr.mxu0 0.0
    %2093 = vmatpush2.msra.mxu0 0.0
    %2094 = vmatprep.subr.mxu0 0.0
    %2095 = vmatpush2.msra.mxu0 0.0
    %2096 = vmatprep.subr.mxu0 0.0
    %2097 = vmatpush2.msra.mxu0 0.0
    %2098 = vmatprep.subr.mxu0 0.0
    %2099 = vmatpush2.msra.mxu0 0.0
    %2100 = vmatprep.subr.mxu0 0.0
    %2101 = vmatpush2.msra.mxu0 0.0
    %2102 = vmatprep.subr.mxu0 0.0
    %2103 = vmatpush2.msra.mxu0 0.0
    %2104 = vmatprep.subr.mxu0 0.0
    %2105 = vmatpush2.msra.mxu0 0.0
    %2106 = vmatprep.subr.mxu0 0.0
    %2107 = vmatpush2.msra.mxu0 0.0
    %2108 = vmatprep.subr.mxu0 0.0
    %2109 = vmatpush2.msra.mxu0 0.0
    %2110 = vmatprep.subr.mxu0 0.0
    %2111 = vmatpush2.msra.mxu0 0.0
    %2112 = vmatprep.subr.mxu0 0.0
    %2113 = vmatpush2.msra.mxu0 0.0
    %2114 = vmatprep.subr.mxu0 0.0
    %2115 = vmatpush2.msra.mxu0 0.0
    %2116 = vmatprep.subr.mxu0 0.0
    %2117 = vmatpush2.msra.mxu0 0.0
    %2118 = vmatprep.subr.mxu0 0.0
    %2119 = vmatpush2.msra.mxu0 0.0
    %2120 = vmatprep.subr.mxu0 0.0
    %2121 = vmatpush2.msra.mxu0 0.0
    %2122 = vmatprep.subr.mxu0 0.0
    %2123 = vmatpush2.msra.mxu0 0.0
    %2124 = vmatprep.mubr.f32.mxu0 0.0
    %2125 = vmatmul.mubr.f32.gmra.mxu0 %v2055
    %v2126 = vpop.f32.mrf.mxu0
    %v2127 = vadd.f32 0.0, %v2126
    %v2128 = vpop.f32.mrf.mxu0
    %2129 = vmatprep.mubr.f32.mxu0 0.0
    %2130 = vmatmul.mubr.f32.gmra.mxu0 %v2058
    %v2131 = vpop.f32.mrf.mxu0
    %v2132 = vadd.f32 0.0, %v2131
    %v2133 = vpop.f32.mrf.mxu0
    %2134 = vdwg.mxu0
    %v2135 = vlaneseq
    %v2136 = vshrl.u32 %v2135, 7
    %v2137 = vsub.s32 5, %v2136
    %v2138 = vrot.slane %v478, %v2137
    %v2139 = vmul.f32 %v1955, %v2138
    %v2140 = vmul.f32 %v1956, %v2138
    %v2141 = vlaneseq
    %v2142 = vshrl.u32 %v2141, 7
    %v2143 = vsub.s32 5, %v2142
    %v2144 = vrot.slane %v615, %v2143
    %2146 = vrot.lane.b32.xlu0 %v2144, 96
    %v2147 = vpop.permute.xlu0 %2146
    %v2149 = vmul.f32 %v2127, %v2147
    %v2150 = vmul.f32 %v2132, %v2147
    %v2151 = vadd.f32 %v2139, %v2149
    %v2152 = vadd.f32 %v2140, %v2150
    %v2153 = vadd.f32 %v2151, %v1046
    %v2154 = vadd.f32 %v2152, %v1047
    %v2155 = vlaneseq
    %v2156 = vshrl.u32 %v2155, 7
    %v2157 = vsub.s32 5, %v2156
    %v2158 = vrot.slane %v316, %v2157
    %v2159 = vmul.f32 %v2153, %v2158
    %v2160 = vmul.f32 %v2154, %v2158
    %v2162 = vsel %vm72, %v2159, 0
    %v2165 = vsel %vm72, %v2160, 0
    %2167 = vmatprep.subr.mxu0 0.0
    %2168 = vmatpush1.msra.mxu0 0.0
    %2169 = vmatprep.subr.mxu0 0.0
    %2170 = vmatpush1.msra.mxu0 0.0
    %2171 = vmatprep.subr.mxu0 0.0
    %2172 = vmatpush1.msra.mxu0 0.0
    %2173 = vmatprep.subr.mxu0 0.0
    %2174 = vmatpush1.msra.mxu0 0.0
    %2175 = vmatprep.subr.mxu0 0.0
    %2176 = vmatpush1.msra.mxu0 0.0
    %2177 = vmatprep.subr.mxu0 0.0
    %2178 = vmatpush1.msra.mxu0 0.0
    %2179 = vmatprep.subr.mxu0 0.0
    %2180 = vmatpush1.msra.mxu0 0.0
    %2181 = vmatprep.subr.mxu0 0.0
    %2182 = vmatpush1.msra.mxu0 0.0
    %2183 = vmatprep.subr.mxu0 0.0
    %2184 = vmatpush1.msra.mxu0 0.0
    %2185 = vmatprep.subr.mxu0 0.0
    %2186 = vmatpush1.msra.mxu0 0.0
    %2187 = vmatprep.subr.mxu0 0.0
    %2188 = vmatpush1.msra.mxu0 0.0
    %2189 = vmatprep.subr.mxu0 0.0
    %2190 = vmatpush1.msra.mxu0 0.0
    %2191 = vmatprep.subr.mxu0 0.0
    %2192 = vmatpush1.msra.mxu0 %v58
    %2193 = vmatprep.subr.mxu0 0.0
    %2194 = vmatpush1.msra.mxu0 %v57
    %2195 = vmatprep.subr.mxu0 0.0
    %2196 = vmatpush1.msra.mxu0 %v56
    %2197 = vmatprep.subr.mxu0 0.0
    %2198 = vmatpush1.msra.mxu0 %v55
    %2199 = vmatprep.subr.mxu0 0.0
    %2200 = vmatpush2.msra.mxu0 0.0
    %2201 = vmatprep.subr.mxu0 0.0
    %2202 = vmatpush2.msra.mxu0 0.0
    %2203 = vmatprep.subr.mxu0 0.0
    %2204 = vmatpush2.msra.mxu0 0.0
    %2205 = vmatprep.subr.mxu0 0.0
    %2206 = vmatpush2.msra.mxu0 0.0
    %2207 = vmatprep.subr.mxu0 0.0
    %2208 = vmatpush2.msra.mxu0 0.0
    %2209 = vmatprep.subr.mxu0 0.0
    %2210 = vmatpush2.msra.mxu0 0.0
    %2211 = vmatprep.subr.mxu0 0.0
    %2212 = vmatpush2.msra.mxu0 0.0
    %2213 = vmatprep.subr.mxu0 0.0
    %2214 = vmatpush2.msra.mxu0 0.0
    %2215 = vmatprep.subr.mxu0 0.0
    %2216 = vmatpush2.msra.mxu0 0.0
    %2217 = vmatprep.subr.mxu0 0.0
    %2218 = vmatpush2.msra.mxu0 0.0
    %2219 = vmatprep.subr.mxu0 0.0
    %2220 = vmatpush2.msra.mxu0 0.0
    %2221 = vmatprep.subr.mxu0 0.0
    %2222 = vmatpush2.msra.mxu0 0.0
    %2223 = vmatprep.subr.mxu0 0.0
    %2224 = vmatpush2.msra.mxu0 0.0
    %2225 = vmatprep.subr.mxu0 0.0
    %2226 = vmatpush2.msra.mxu0 0.0
    %2227 = vmatprep.subr.mxu0 0.0
    %2228 = vmatpush2.msra.mxu0 0.0
    %2229 = vmatprep.subr.mxu0 0.0
    %2230 = vmatpush2.msra.mxu0 0.0
    %2231 = vmatprep.mubr.f32.mxu0 0.0
    %2232 = vmatmul.mubr.f32.gmra.mxu0 %v2162
    %v2233 = vpop.f32.mrf.mxu0
    %v2234 = vadd.f32 0.0, %v2233
    %v2235 = vpop.f32.mrf.mxu0
    %2236 = vmatprep.mubr.f32.mxu0 0.0
    %2237 = vmatmul.mubr.f32.gmra.mxu0 %v2165
    %v2238 = vpop.f32.mrf.mxu0
    %v2239 = vadd.f32 0.0, %v2238
    %v2240 = vpop.f32.mrf.mxu0
    %2241 = vdwg.mxu0
    %v2242 = vlaneseq
    %v2243 = vshrl.u32 %v2242, 7
    %v2244 = vsub.s32 6, %v2243
    %v2245 = vrot.slane %v610, %v2244
    %2247 = vrot.lane.b32.xlu0 %v2245, 96
    %v2248 = vpop.permute.xlu0 %2247
    %v2250 = vmul.f32 %v2153, %v2248
    %v2251 = vmul.f32 %v2154, %v2248
    %v2253 = vsel %vm72, %v2250, 0
    %v2256 = vsel %vm72, %v2251, 0
    %2258 = vmatprep.subr.mxu0 0.0
    %2259 = vmatpush1.msra.mxu0 0.0
    %2260 = vmatprep.subr.mxu0 0.0
    %2261 = vmatpush1.msra.mxu0 0.0
    %2262 = vmatprep.subr.mxu0 0.0
    %2263 = vmatpush1.msra.mxu0 0.0
    %2264 = vmatprep.subr.mxu0 0.0
    %2265 = vmatpush1.msra.mxu0 0.0
    %2266 = vmatprep.subr.mxu0 0.0
    %2267 = vmatpush1.msra.mxu0 0.0
    %2268 = vmatprep.subr.mxu0 0.0
    %2269 = vmatpush1.msra.mxu0 0.0
    %2270 = vmatprep.subr.mxu0 0.0
    %2271 = vmatpush1.msra.mxu0 0.0
    %2272 = vmatprep.subr.mxu0 0.0
    %2273 = vmatpush1.msra.mxu0 0.0
    %2274 = vmatprep.subr.mxu0 0.0
    %2275 = vmatpush1.msra.mxu0 0.0
    %2276 = vmatprep.subr.mxu0 0.0
    %2277 = vmatpush1.msra.mxu0 0.0
    %2278 = vmatprep.subr.mxu0 0.0
    %2279 = vmatpush1.msra.mxu0 0.0
    %2280 = vmatprep.subr.mxu0 0.0
    %2281 = vmatpush1.msra.mxu0 0.0
    %2282 = vmatprep.subr.mxu0 0.0
    %2283 = vmatpush1.msra.mxu0 %v58
    %2284 = vmatprep.subr.mxu0 0.0
    %2285 = vmatpush1.msra.mxu0 %v57
    %2286 = vmatprep.subr.mxu0 0.0
    %2287 = vmatpush1.msra.mxu0 %v56
    %2288 = vmatprep.subr.mxu0 0.0
    %2289 = vmatpush1.msra.mxu0 %v55
    %2290 = vmatprep.subr.mxu0 0.0
    %2291 = vmatpush2.msra.mxu0 0.0
    %2292 = vmatprep.subr.mxu0 0.0
    %2293 = vmatpush2.msra.mxu0 0.0
    %2294 = vmatprep.subr.mxu0 0.0
    %2295 = vmatpush2.msra.mxu0 0.0
    %2296 = vmatprep.subr.mxu0 0.0
    %2297 = vmatpush2.msra.mxu0 0.0
    %2298 = vmatprep.subr.mxu0 0.0
    %2299 = vmatpush2.msra.mxu0 0.0
    %2300 = vmatprep.subr.mxu0 0.0
    %2301 = vmatpush2.msra.mxu0 0.0
    %2302 = vmatprep.subr.mxu0 0.0
    %2303 = vmatpush2.msra.mxu0 0.0
    %2304 = vmatprep.subr.mxu0 0.0
    %2305 = vmatpush2.msra.mxu0 0.0
    %2306 = vmatprep.subr.mxu0 0.0
    %2307 = vmatpush2.msra.mxu0 0.0
    %2308 = vmatprep.subr.mxu0 0.0
    %2309 = vmatpush2.msra.mxu0 0.0
    %2310 = vmatprep.subr.mxu0 0.0
    %2311 = vmatpush2.msra.mxu0 0.0
    %2312 = vmatprep.subr.mxu0 0.0
    %2313 = vmatpush2.msra.mxu0 0.0
    %2314 = vmatprep.subr.mxu0 0.0
    %2315 = vmatpush2.msra.mxu0 0.0
    %2316 = vmatprep.subr.mxu0 0.0
    %2317 = vmatpush2.msra.mxu0 0.0
    %2318 = vmatprep.subr.mxu0 0.0
    %2319 = vmatpush2.msra.mxu0 0.0
    %2320 = vmatprep.subr.mxu0 0.0
    %2321 = vmatpush2.msra.mxu0 0.0
    %2322 = vmatprep.mubr.f32.mxu0 0.0
    %2323 = vmatmul.mubr.f32.gmra.mxu0 %v2253
    %v2324 = vpop.f32.mrf.mxu0
    %v2325 = vadd.f32 0.0, %v2324
    %v2326 = vpop.f32.mrf.mxu0
    %2327 = vmatprep.mubr.f32.mxu0 0.0
    %2328 = vmatmul.mubr.f32.gmra.mxu0 %v2256
    %v2329 = vpop.f32.mrf.mxu0
    %v2330 = vadd.f32 0.0, %v2329
    %v2331 = vpop.f32.mrf.mxu0
    %2332 = vdwg.mxu0
    %v2333 = vlaneseq
    %v2334 = vshrl.u32 %v2333, 7
    %v2335 = vsub.s32 6, %v2334
    %v2336 = vrot.slane %v478, %v2335
    %v2337 = vmul.f32 %v2153, %v2336
    %v2338 = vmul.f32 %v2154, %v2336
    %v2339 = vlaneseq
    %v2340 = vshrl.u32 %v2339, 7
    %v2341 = vsub.s32 6, %v2340
    %v2342 = vrot.slane %v615, %v2341
    %2344 = vrot.lane.b32.xlu0 %v2342, 96
    %v2345 = vpop.permute.xlu0 %2344
    %v2347 = vmul.f32 %v2325, %v2345
    %v2348 = vmul.f32 %v2330, %v2345
    %v2349 = vadd.f32 %v2337, %v2347
    %v2350 = vadd.f32 %v2338, %v2348
    %v2351 = vadd.f32 %v2349, %v1048
    %v2352 = vadd.f32 %v2350, %v1049
    %v2353 = vlaneseq
    %v2354 = vshrl.u32 %v2353, 7
    %v2355 = vsub.s32 6, %v2354
    %v2356 = vrot.slane %v316, %v2355
    %v2357 = vmul.f32 %v2351, %v2356
    %v2358 = vmul.f32 %v2352, %v2356
    %v2360 = vsel %vm72, %v2357, 0
    %v2363 = vsel %vm72, %v2358, 0
    %2365 = vmatprep.subr.mxu0 0.0
    %2366 = vmatpush1.msra.mxu0 0.0
    %2367 = vmatprep.subr.mxu0 0.0
    %2368 = vmatpush1.msra.mxu0 0.0
    %2369 = vmatprep.subr.mxu0 0.0
    %2370 = vmatpush1.msra.mxu0 0.0
    %2371 = vmatprep.subr.mxu0 0.0
    %2372 = vmatpush1.msra.mxu0 0.0
    %2373 = vmatprep.subr.mxu0 0.0
    %2374 = vmatpush1.msra.mxu0 0.0
    %2375 = vmatprep.subr.mxu0 0.0
    %2376 = vmatpush1.msra.mxu0 0.0
    %2377 = vmatprep.subr.mxu0 0.0
    %2378 = vmatpush1.msra.mxu0 0.0
    %2379 = vmatprep.subr.mxu0 0.0
    %2380 = vmatpush1.msra.mxu0 0.0
    %2381 = vmatprep.subr.mxu0 0.0
    %2382 = vmatpush1.msra.mxu0 0.0
    %2383 = vmatprep.subr.mxu0 0.0
    %2384 = vmatpush1.msra.mxu0 0.0
    %2385 = vmatprep.subr.mxu0 0.0
    %2386 = vmatpush1.msra.mxu0 0.0
    %2387 = vmatprep.subr.mxu0 0.0
    %2388 = vmatpush1.msra.mxu0 0.0
    %2389 = vmatprep.subr.mxu0 0.0
    %2390 = vmatpush1.msra.mxu0 %v58
    %2391 = vmatprep.subr.mxu0 0.0
    %2392 = vmatpush1.msra.mxu0 %v57
    %2393 = vmatprep.subr.mxu0 0.0
    %2394 = vmatpush1.msra.mxu0 %v56
    %2395 = vmatprep.subr.mxu0 0.0
    %2396 = vmatpush1.msra.mxu0 %v55
    %2397 = vmatprep.subr.mxu0 0.0
    %2398 = vmatpush2.msra.mxu0 0.0
    %2399 = vmatprep.subr.mxu0 0.0
    %2400 = vmatpush2.msra.mxu0 0.0
    %2401 = vmatprep.subr.mxu0 0.0
    %2402 = vmatpush2.msra.mxu0 0.0
    %2403 = vmatprep.subr.mxu0 0.0
    %2404 = vmatpush2.msra.mxu0 0.0
    %2405 = vmatprep.subr.mxu0 0.0
    %2406 = vmatpush2.msra.mxu0 0.0
    %2407 = vmatprep.subr.mxu0 0.0
    %2408 = vmatpush2.msra.mxu0 0.0
    %2409 = vmatprep.subr.mxu0 0.0
    %2410 = vmatpush2.msra.mxu0 0.0
    %2411 = vmatprep.subr.mxu0 0.0
    %2412 = vmatpush2.msra.mxu0 0.0
    %2413 = vmatprep.subr.mxu0 0.0
    %2414 = vmatpush2.msra.mxu0 0.0
    %2415 = vmatprep.subr.mxu0 0.0
    %2416 = vmatpush2.msra.mxu0 0.0
    %2417 = vmatprep.subr.mxu0 0.0
    %2418 = vmatpush2.msra.mxu0 0.0
    %2419 = vmatprep.subr.mxu0 0.0
    %2420 = vmatpush2.msra.mxu0 0.0
    %2421 = vmatprep.subr.mxu0 0.0
    %2422 = vmatpush2.msra.mxu0 0.0
    %2423 = vmatprep.subr.mxu0 0.0
    %2424 = vmatpush2.msra.mxu0 0.0
    %2425 = vmatprep.subr.mxu0 0.0
    %2426 = vmatpush2.msra.mxu0 0.0
    %2427 = vmatprep.subr.mxu0 0.0
    %2428 = vmatpush2.msra.mxu0 0.0
    %2429 = vmatprep.mubr.f32.mxu0 0.0
    %2430 = vmatmul.mubr.f32.gmra.mxu0 %v2360
    %v2431 = vpop.f32.mrf.mxu0
    %v2432 = vadd.f32 0.0, %v2431
    %v2433 = vpop.f32.mrf.mxu0
    %2434 = vmatprep.mubr.f32.mxu0 0.0
    %2435 = vmatmul.mubr.f32.gmra.mxu0 %v2363
    %v2436 = vpop.f32.mrf.mxu0
    %v2437 = vadd.f32 0.0, %v2436
    %v2438 = vpop.f32.mrf.mxu0
    %2439 = vdwg.mxu0
    %v2440 = vlaneseq
    %v2441 = vshrl.u32 %v2440, 7
    %v2442 = vsub.s32 7, %v2441
    %v2443 = vrot.slane %v610, %v2442
    %2445 = vrot.lane.b32.xlu0 %v2443, 96
    %v2446 = vpop.permute.xlu0 %2445
    %v2448 = vmul.f32 %v2351, %v2446
    %v2449 = vmul.f32 %v2352, %v2446
    %v2451 = vsel %vm72, %v2448, 0
    %v2454 = vsel %vm72, %v2449, 0
    %2456 = vmatprep.subr.mxu0 0.0
    %2457 = vmatpush1.msra.mxu0 0.0
    %2458 = vmatprep.subr.mxu0 0.0
    %2459 = vmatpush1.msra.mxu0 0.0
    %2460 = vmatprep.subr.mxu0 0.0
    %2461 = vmatpush1.msra.mxu0 0.0
    %2462 = vmatprep.subr.mxu0 0.0
    %2463 = vmatpush1.msra.mxu0 0.0
    %2464 = vmatprep.subr.mxu0 0.0
    %2465 = vmatpush1.msra.mxu0 0.0
    %2466 = vmatprep.subr.mxu0 0.0
    %2467 = vmatpush1.msra.mxu0 0.0
    %2468 = vmatprep.subr.mxu0 0.0
    %2469 = vmatpush1.msra.mxu0 0.0
    %2470 = vmatprep.subr.mxu0 0.0
    %2471 = vmatpush1.msra.mxu0 0.0
    %2472 = vmatprep.subr.mxu0 0.0
    %2473 = vmatpush1.msra.mxu0 0.0
    %2474 = vmatprep.subr.mxu0 0.0
    %2475 = vmatpush1.msra.mxu0 0.0
    %2476 = vmatprep.subr.mxu0 0.0
    %2477 = vmatpush1.msra.mxu0 0.0
    %2478 = vmatprep.subr.mxu0 0.0
    %2479 = vmatpush1.msra.mxu0 0.0
    %2480 = vmatprep.subr.mxu0 0.0
    %2481 = vmatpush1.msra.mxu0 %v58
    %2482 = vmatprep.subr.mxu0 0.0
    %2483 = vmatpush1.msra.mxu0 %v57
    %2484 = vmatprep.subr.mxu0 0.0
    %2485 = vmatpush1.msra.mxu0 %v56
    %2486 = vmatprep.subr.mxu0 0.0
    %2487 = vmatpush1.msra.mxu0 %v55
    %2488 = vmatprep.subr.mxu0 0.0
    %2489 = vmatpush2.msra.mxu0 0.0
    %2490 = vmatprep.subr.mxu0 0.0
    %2491 = vmatpush2.msra.mxu0 0.0
    %2492 = vmatprep.subr.mxu0 0.0
    %2493 = vmatpush2.msra.mxu0 0.0
    %2494 = vmatprep.subr.mxu0 0.0
    %2495 = vmatpush2.msra.mxu0 0.0
    %2496 = vmatprep.subr.mxu0 0.0
    %2497 = vmatpush2.msra.mxu0 0.0
    %2498 = vmatprep.subr.mxu0 0.0
    %2499 = vmatpush2.msra.mxu0 0.0
    %2500 = vmatprep.subr.mxu0 0.0
    %2501 = vmatpush2.msra.mxu0 0.0
    %2502 = vmatprep.subr.mxu0 0.0
    %2503 = vmatpush2.msra.mxu0 0.0
    %2504 = vmatprep.subr.mxu0 0.0
    %2505 = vmatpush2.msra.mxu0 0.0
    %2506 = vmatprep.subr.mxu0 0.0
    %2507 = vmatpush2.msra.mxu0 0.0
    %2508 = vmatprep.subr.mxu0 0.0
    %2509 = vmatpush2.msra.mxu0 0.0
    %2510 = vmatprep.subr.mxu0 0.0
    %2511 = vmatpush2.msra.mxu0 0.0
    %2512 = vmatprep.subr.mxu0 0.0
    %2513 = vmatpush2.msra.mxu0 0.0
    %2514 = vmatprep.subr.mxu0 0.0
    %2515 = vmatpush2.msra.mxu0 0.0
    %2516 = vmatprep.subr.mxu0 0.0
    %2517 = vmatpush2.msra.mxu0 0.0
    %2518 = vmatprep.subr.mxu0 0.0
    %2519 = vmatpush2.msra.mxu0 0.0
    %2520 = vmatprep.mubr.f32.mxu0 0.0
    %2521 = vmatmul.mubr.f32.gmra.mxu0 %v2451
    %v2522 = vpop.f32.mrf.mxu0
    %v2523 = vadd.f32 0.0, %v2522
    %v2524 = vpop.f32.mrf.mxu0
    %2525 = vmatprep.mubr.f32.mxu0 0.0
    %2526 = vmatmul.mubr.f32.gmra.mxu0 %v2454
    %v2527 = vpop.f32.mrf.mxu0
    %v2528 = vadd.f32 0.0, %v2527
    %v2529 = vpop.f32.mrf.mxu0
    %2530 = vdwg.mxu0
    %v2531 = vlaneseq
    %v2532 = vshrl.u32 %v2531, 7
    %v2533 = vsub.s32 7, %v2532
    %v2534 = vrot.slane %v478, %v2533
    %v2535 = vmul.f32 %v2351, %v2534
    %v2536 = vmul.f32 %v2352, %v2534
    %v2537 = vlaneseq
    %v2538 = vshrl.u32 %v2537, 7
    %v2539 = vsub.s32 7, %v2538
    %v2540 = vrot.slane %v615, %v2539
    %2542 = vrot.lane.b32.xlu0 %v2540, 96
    %v2543 = vpop.permute.xlu0 %2542
    %v2545 = vmul.f32 %v2523, %v2543
    %v2546 = vmul.f32 %v2528, %v2543
    %v2547 = vadd.f32 %v2535, %v2545
    %v2548 = vadd.f32 %v2536, %v2546
    %v2549 = vadd.f32 %v2547, %v1050
    %v2550 = vadd.f32 %v2548, %v1051
    %v2551 = vlaneseq
    %v2552 = vshrl.u32 %v2551, 7
    %v2553 = vsub.s32 7, %v2552
    %v2554 = vrot.slane %v316, %v2553
    %v2555 = vmul.f32 %v2549, %v2554
    %v2556 = vmul.f32 %v2550, %v2554
    %v2558 = vsel %vm72, %v2555, 0
    %v2561 = vsel %vm72, %v2556, 0
    %2563 = vmatprep.subr.mxu0 0.0
    %2564 = vmatpush1.msra.mxu0 0.0
    %2565 = vmatprep.subr.mxu0 0.0
    %2566 = vmatpush1.msra.mxu0 0.0
    %2567 = vmatprep.subr.mxu0 0.0
    %2568 = vmatpush1.msra.mxu0 0.0
    %2569 = vmatprep.subr.mxu0 0.0
    %2570 = vmatpush1.msra.mxu0 0.0
    %2571 = vmatprep.subr.mxu0 0.0
    %2572 = vmatpush1.msra.mxu0 0.0
    %2573 = vmatprep.subr.mxu0 0.0
    %2574 = vmatpush1.msra.mxu0 0.0
    %2575 = vmatprep.subr.mxu0 0.0
    %2576 = vmatpush1.msra.mxu0 0.0
    %2577 = vmatprep.subr.mxu0 0.0
    %2578 = vmatpush1.msra.mxu0 0.0
    %2579 = vmatprep.subr.mxu0 0.0
    %2580 = vmatpush1.msra.mxu0 0.0
    %2581 = vmatprep.subr.mxu0 0.0
    %2582 = vmatpush1.msra.mxu0 0.0
    %2583 = vmatprep.subr.mxu0 0.0
    %2584 = vmatpush1.msra.mxu0 0.0
    %2585 = vmatprep.subr.mxu0 0.0
    %2586 = vmatpush1.msra.mxu0 0.0
    %2587 = vmatprep.subr.mxu0 0.0
    %2588 = vmatpush1.msra.mxu0 %v58
    %2589 = vmatprep.subr.mxu0 0.0
    %2590 = vmatpush1.msra.mxu0 %v57
    %2591 = vmatprep.subr.mxu0 0.0
    %2592 = vmatpush1.msra.mxu0 %v56
    %2593 = vmatprep.subr.mxu0 0.0
    %2594 = vmatpush1.msra.mxu0 %v55
    %2595 = vmatprep.subr.mxu0 0.0
    %2596 = vmatpush2.msra.mxu0 0.0
    %2597 = vmatprep.subr.mxu0 0.0
    %2598 = vmatpush2.msra.mxu0 0.0
    %2599 = vmatprep.subr.mxu0 0.0
    %2600 = vmatpush2.msra.mxu0 0.0
    %2601 = vmatprep.subr.mxu0 0.0
    %2602 = vmatpush2.msra.mxu0 0.0
    %2603 = vmatprep.subr.mxu0 0.0
    %2604 = vmatpush2.msra.mxu0 0.0
    %2605 = vmatprep.subr.mxu0 0.0
    %2606 = vmatpush2.msra.mxu0 0.0
    %2607 = vmatprep.subr.mxu0 0.0
    %2608 = vmatpush2.msra.mxu0 0.0
    %2609 = vmatprep.subr.mxu0 0.0
    %2610 = vmatpush2.msra.mxu0 0.0
    %2611 = vmatprep.subr.mxu0 0.0
    %2612 = vmatpush2.msra.mxu0 0.0
    %2613 = vmatprep.subr.mxu0 0.0
    %2614 = vmatpush2.msra.mxu0 0.0
    %2615 = vmatprep.subr.mxu0 0.0
    %2616 = vmatpush2.msra.mxu0 0.0
    %2617 = vmatprep.subr.mxu0 0.0
    %2618 = vmatpush2.msra.mxu0 0.0
    %2619 = vmatprep.subr.mxu0 0.0
    %2620 = vmatpush2.msra.mxu0 0.0
    %2621 = vmatprep.subr.mxu0 0.0
    %2622 = vmatpush2.msra.mxu0 0.0
    %2623 = vmatprep.subr.mxu0 0.0
    %2624 = vmatpush2.msra.mxu0 0.0
    %2625 = vmatprep.subr.mxu0 0.0
    %2626 = vmatpush2.msra.mxu0 0.0
    %2627 = vmatprep.mubr.f32.mxu0 0.0
    %2628 = vmatmul.mubr.f32.gmra.mxu0 %v2558
    %v2629 = vpop.f32.mrf.mxu0
    %v2630 = vadd.f32 0.0, %v2629
    %v2631 = vpop.f32.mrf.mxu0
    %2632 = vmatprep.mubr.f32.mxu0 0.0
    %2633 = vmatmul.mubr.f32.gmra.mxu0 %v2561
    %v2634 = vpop.f32.mrf.mxu0
    %v2635 = vadd.f32 0.0, %v2634
    %v2636 = vpop.f32.mrf.mxu0
    %2637 = vdwg.mxu0
    %2638 = vst.msk [vmem:[%s17] sm:$0xff] %vm72, %v2549
    %2639 = vst.msk [vmem:[%s17 + $0x8] sm:$0xff] %vm72, %v2550
    %v2640 = vmul.f32 %v59, %v1244
    %v2641 = vmul.f32 %v60, %v1249
    %v2642 = vmul.f32 %v59, %v1442
    %v2643 = vmul.f32 %v60, %v1447
    %v2644 = vmul.f32 %v59, %v1640
    %v2645 = vmul.f32 %v60, %v1645
    %v2646 = vmul.f32 %v59, %v1838
    %v2647 = vmul.f32 %v60, %v1843
    %v2648 = vmul.f32 %v59, %v2036
    %v2649 = vmul.f32 %v60, %v2041
    %v2650 = vmul.f32 %v59, %v2234
    %v2651 = vmul.f32 %v60, %v2239
    %v2652 = vmul.f32 %v59, %v2432
    %v2653 = vmul.f32 %v60, %v2437
    %v2654 = vmul.f32 %v59, %v2630
    %v2655 = vmul.f32 %v60, %v2635
    %v2656 = vsel %vm72, %v2640, 0.0
    %v2657 = vsel %vm72, %v2641, 0.0
    %v2658 = vadd.f32 %v2656, %v2657
    %v2659 = vrot.slane %v2658, 4
    %v2660 = vadd.f32 %v2658, %v2659
    %v2661 = vrot.slane %v2660, 2
    %v2662 = vadd.f32 %v2660, %v2661
    %v2663 = vrot.slane %v2662, 1
    %v2664 = vadd.f32 %v2662, %v2663
    %v2665 = vsel %vm72, %v2642, 0.0
    %v2666 = vsel %vm72, %v2643, 0.0
    %v2667 = vadd.f32 %v2665, %v2666
    %v2668 = vrot.slane %v2667, 4
    %v2669 = vadd.f32 %v2667, %v2668
    %v2670 = vrot.slane %v2669, 2
    %v2671 = vadd.f32 %v2669, %v2670
    %v2672 = vrot.slane %v2671, 1
    %v2673 = vadd.f32 %v2671, %v2672
    %v2674 = vsel %vm72, %v2644, 0.0
    %v2675 = vsel %vm72, %v2645, 0.0
    %v2676 = vadd.f32 %v2674, %v2675
    %v2677 = vrot.slane %v2676, 4
    %v2678 = vadd.f32 %v2676, %v2677
    %v2679 = vrot.slane %v2678, 2
    %v2680 = vadd.f32 %v2678, %v2679
    %v2681 = vrot.slane %v2680, 1
    %v2682 = vadd.f32 %v2680, %v2681
    %v2683 = vsel %vm72, %v2646, 0.0
    %v2684 = vsel %vm72, %v2647, 0.0
    %v2685 = vadd.f32 %v2683, %v2684
    %v2686 = vrot.slane %v2685, 4
    %v2687 = vadd.f32 %v2685, %v2686
    %v2688 = vrot.slane %v2687, 2
    %v2689 = vadd.f32 %v2687, %v2688
    %v2690 = vrot.slane %v2689, 1
    %v2691 = vadd.f32 %v2689, %v2690
    %v2692 = vsel %vm72, %v2648, 0.0
    %v2693 = vsel %vm72, %v2649, 0.0
    %v2694 = vadd.f32 %v2692, %v2693
    %v2695 = vrot.slane %v2694, 4
    %v2696 = vadd.f32 %v2694, %v2695
    %v2697 = vrot.slane %v2696, 2
    %v2698 = vadd.f32 %v2696, %v2697
    %v2699 = vrot.slane %v2698, 1
    %v2700 = vadd.f32 %v2698, %v2699
    %v2701 = vsel %vm72, %v2650, 0.0
    %v2702 = vsel %vm72, %v2651, 0.0
    %v2703 = vadd.f32 %v2701, %v2702
    %v2704 = vrot.slane %v2703, 4
    %v2705 = vadd.f32 %v2703, %v2704
    %v2706 = vrot.slane %v2705, 2
    %v2707 = vadd.f32 %v2705, %v2706
    %v2708 = vrot.slane %v2707, 1
    %v2709 = vadd.f32 %v2707, %v2708
    %v2710 = vsel %vm72, %v2652, 0.0
    %v2711 = vsel %vm72, %v2653, 0.0
    %v2712 = vadd.f32 %v2710, %v2711
    %v2713 = vrot.slane %v2712, 4
    %v2714 = vadd.f32 %v2712, %v2713
    %v2715 = vrot.slane %v2714, 2
    %v2716 = vadd.f32 %v2714, %v2715
    %v2717 = vrot.slane %v2716, 1
    %v2718 = vadd.f32 %v2716, %v2717
    %v2719 = vsel %vm72, %v2654, 0.0
    %v2720 = vsel %vm72, %v2655, 0.0
    %v2721 = vadd.f32 %v2719, %v2720
    %v2722 = vrot.slane %v2721, 4
    %v2723 = vadd.f32 %v2721, %v2722
    %v2724 = vrot.slane %v2723, 2
    %v2725 = vadd.f32 %v2723, %v2724
    %v2726 = vrot.slane %v2725, 1
    %v2727 = vadd.f32 %v2725, %v2726
    %vm2736 = vcmask 1041409
    %v2737 = vsel %vm2736, %v2673, %v2664
    %vm2738 = vcmask 1042434
    %v2739 = vsel %vm2738, %v2682, %v2737
    %vm2740 = vcmask 1043459
    %v2741 = vsel %vm2740, %v2691, %v2739
    %vm2742 = vcmask 1044484
    %v2743 = vsel %vm2742, %v2700, %v2741
    %vm2744 = vcmask 1045509
    %v2745 = vsel %vm2744, %v2709, %v2743
    %vm2746 = vcmask 1046534
    %v2747 = vsel %vm2746, %v2718, %v2745
    %vm2748 = vcmask 1047559
    %v2749 = vsel %vm2748, %v2727, %v2747
    %v2750 = vsel %vm72, %v2749, 0
    %2752 = vmatprep.subr.mxu0 0.0
    %2753 = vmatpush1.msra.mxu0 0.0
    %2754 = vmatprep.subr.mxu0 0.0
    %2755 = vmatpush1.msra.mxu0 0.0
    %2756 = vmatprep.subr.mxu0 0.0
    %2757 = vmatpush1.msra.mxu0 0.0
    %2758 = vmatprep.subr.mxu0 0.0
    %2759 = vmatpush1.msra.mxu0 0.0
    %2760 = vmatprep.subr.mxu0 0.0
    %2761 = vmatpush1.msra.mxu0 0.0
    %2762 = vmatprep.subr.mxu0 0.0
    %2763 = vmatpush1.msra.mxu0 0.0
    %2764 = vmatprep.subr.mxu0 0.0
    %2765 = vmatpush1.msra.mxu0 0.0
    %2766 = vmatprep.subr.mxu0 0.0
    %2767 = vmatpush1.msra.mxu0 0.0
    %2768 = vmatprep.subr.mxu0 0.0
    %2769 = vmatpush1.msra.mxu0 0.0
    %2770 = vmatprep.subr.mxu0 0.0
    %2771 = vmatpush1.msra.mxu0 0.0
    %2772 = vmatprep.subr.mxu0 0.0
    %2773 = vmatpush1.msra.mxu0 0.0
    %2774 = vmatprep.subr.mxu0 0.0
    %2775 = vmatpush1.msra.mxu0 0.0
    %2776 = vmatprep.subr.mxu0 0.0
    %2777 = vmatpush1.msra.mxu0 %v58
    %2778 = vmatprep.subr.mxu0 0.0
    %2779 = vmatpush1.msra.mxu0 %v57
    %2780 = vmatprep.subr.mxu0 0.0
    %2781 = vmatpush1.msra.mxu0 %v56
    %2782 = vmatprep.subr.mxu0 0.0
    %2783 = vmatpush1.msra.mxu0 %v55
    %2784 = vmatprep.subr.mxu0 0.0
    %2785 = vmatpush2.msra.mxu0 0.0
    %2786 = vmatprep.subr.mxu0 0.0
    %2787 = vmatpush2.msra.mxu0 0.0
    %2788 = vmatprep.subr.mxu0 0.0
    %2789 = vmatpush2.msra.mxu0 0.0
    %2790 = vmatprep.subr.mxu0 0.0
    %2791 = vmatpush2.msra.mxu0 0.0
    %2792 = vmatprep.subr.mxu0 0.0
    %2793 = vmatpush2.msra.mxu0 0.0
    %2794 = vmatprep.subr.mxu0 0.0
    %2795 = vmatpush2.msra.mxu0 0.0
    %2796 = vmatprep.subr.mxu0 0.0
    %2797 = vmatpush2.msra.mxu0 0.0
    %2798 = vmatprep.subr.mxu0 0.0
    %2799 = vmatpush2.msra.mxu0 0.0
    %2800 = vmatprep.subr.mxu0 0.0
    %2801 = vmatpush2.msra.mxu0 0.0
    %2802 = vmatprep.subr.mxu0 0.0
    %2803 = vmatpush2.msra.mxu0 0.0
    %2804 = vmatprep.subr.mxu0 0.0
    %2805 = vmatpush2.msra.mxu0 0.0
    %2806 = vmatprep.subr.mxu0 0.0
    %2807 = vmatpush2.msra.mxu0 0.0
    %2808 = vmatprep.subr.mxu0 0.0
    %2809 = vmatpush2.msra.mxu0 0.0
    %2810 = vmatprep.subr.mxu0 0.0
    %2811 = vmatpush2.msra.mxu0 0.0
    %2812 = vmatprep.subr.mxu0 0.0
    %2813 = vmatpush2.msra.mxu0 0.0
    %2814 = vmatprep.subr.mxu0 0.0
    %2815 = vmatpush2.msra.mxu0 0.0
    %2816 = vmatprep.mubr.f32.mxu0 0.0
    %2817 = vmatmul.mubr.f32.gmra.mxu0 %v2750
    %v2818 = vpop.f32.mrf.mxu0
    %v2819 = vadd.f32 0.0, %v2818
    %v2820 = vpop.f32.mrf.mxu0
    %2821 = vdwg.mxu0
    %v2822 = vmul.f32 %v2819, 0.0625
    %v2824 = vrot.slane %v2822, 1
    %v2825 = vrot.slane %v2822, 2
    %v2826 = vrot.slane %v2822, 3
    %v2827 = vrot.slane %v2822, 4
    %v2828 = vrot.slane %v2822, 5
    %v2829 = vrot.slane %v2822, 6
    %v2830 = vrot.slane %v2822, 7
    %v2839 = vsub.f32 %v2664, %v2822
    %v2840 = vsub.f32 %v2673, %v2824
    %v2841 = vsub.f32 %v2682, %v2825
    %v2842 = vsub.f32 %v2691, %v2826
    %v2843 = vsub.f32 %v2700, %v2827
    %v2844 = vsub.f32 %v2709, %v2828
    %v2845 = vsub.f32 %v2718, %v2829
    %v2846 = vsub.f32 %v2727, %v2830
    %v2847 = vmul.f32 %v2839, %v2839
    %v2848 = vmul.f32 %v2840, %v2840
    %v2849 = vmul.f32 %v2841, %v2841
    %v2850 = vmul.f32 %v2842, %v2842
    %v2851 = vmul.f32 %v2843, %v2843
    %v2852 = vmul.f32 %v2844, %v2844
    %v2853 = vmul.f32 %v2845, %v2845
    %v2854 = vmul.f32 %v2846, %v2846
    %v2863 = vrot.slane %v2848, 7
    %v2864 = vsel %vm2736, %v2863, %v2847
    %v2865 = vrot.slane %v2849, 6
    %v2866 = vsel %vm2738, %v2865, %v2864
    %v2867 = vrot.slane %v2850, 5
    %v2868 = vsel %vm2740, %v2867, %v2866
    %v2869 = vrot.slane %v2851, 4
    %v2870 = vsel %vm2742, %v2869, %v2868
    %v2871 = vrot.slane %v2852, 3
    %v2872 = vsel %vm2744, %v2871, %v2870
    %v2873 = vrot.slane %v2853, 2
    %v2874 = vsel %vm2746, %v2873, %v2872
    %v2875 = vrot.slane %v2854, 1
    %v2876 = vsel %vm2748, %v2875, %v2874
    %v2877 = vsel %vm72, %v2876, 0
    %2879 = vmatprep.subr.mxu0 0.0
    %2880 = vmatpush1.msra.mxu0 0.0
    %2881 = vmatprep.subr.mxu0 0.0
    %2882 = vmatpush1.msra.mxu0 0.0
    %2883 = vmatprep.subr.mxu0 0.0
    %2884 = vmatpush1.msra.mxu0 0.0
    %2885 = vmatprep.subr.mxu0 0.0
    %2886 = vmatpush1.msra.mxu0 0.0
    %2887 = vmatprep.subr.mxu0 0.0
    %2888 = vmatpush1.msra.mxu0 0.0
    %2889 = vmatprep.subr.mxu0 0.0
    %2890 = vmatpush1.msra.mxu0 0.0
    %2891 = vmatprep.subr.mxu0 0.0
    %2892 = vmatpush1.msra.mxu0 0.0
    %2893 = vmatprep.subr.mxu0 0.0
    %2894 = vmatpush1.msra.mxu0 0.0
    %2895 = vmatprep.subr.mxu0 0.0
    %2896 = vmatpush1.msra.mxu0 0.0
    %2897 = vmatprep.subr.mxu0 0.0
    %2898 = vmatpush1.msra.mxu0 0.0
    %2899 = vmatprep.subr.mxu0 0.0
    %2900 = vmatpush1.msra.mxu0 0.0
    %2901 = vmatprep.subr.mxu0 0.0
    %2902 = vmatpush1.msra.mxu0 0.0
    %2903 = vmatprep.subr.mxu0 0.0
    %2904 = vmatpush1.msra.mxu0 %v58
    %2905 = vmatprep.subr.mxu0 0.0
    %2906 = vmatpush1.msra.mxu0 %v57
    %2907 = vmatprep.subr.mxu0 0.0
    %2908 = vmatpush1.msra.mxu0 %v56
    %2909 = vmatprep.subr.mxu0 0.0
    %2910 = vmatpush1.msra.mxu0 %v55
    %2911 = vmatprep.subr.mxu0 0.0
    %2912 = vmatpush2.msra.mxu0 0.0
    %2913 = vmatprep.subr.mxu0 0.0
    %2914 = vmatpush2.msra.mxu0 0.0
    %2915 = vmatprep.subr.mxu0 0.0
    %2916 = vmatpush2.msra.mxu0 0.0
    %2917 = vmatprep.subr.mxu0 0.0
    %2918 = vmatpush2.msra.mxu0 0.0
    %2919 = vmatprep.subr.mxu0 0.0
    %2920 = vmatpush2.msra.mxu0 0.0
    %2921 = vmatprep.subr.mxu0 0.0
    %2922 = vmatpush2.msra.mxu0 0.0
    %2923 = vmatprep.subr.mxu0 0.0
    %2924 = vmatpush2.msra.mxu0 0.0
    %2925 = vmatprep.subr.mxu0 0.0
    %2926 = vmatpush2.msra.mxu0 0.0
    %2927 = vmatprep.subr.mxu0 0.0
    %2928 = vmatpush2.msra.mxu0 0.0
    %2929 = vmatprep.subr.mxu0 0.0
    %2930 = vmatpush2.msra.mxu0 0.0
    %2931 = vmatprep.subr.mxu0 0.0
    %2932 = vmatpush2.msra.mxu0 0.0
    %2933 = vmatprep.subr.mxu0 0.0
    %2934 = vmatpush2.msra.mxu0 0.0
    %2935 = vmatprep.subr.mxu0 0.0
    %2936 = vmatpush2.msra.mxu0 0.0
    %2937 = vmatprep.subr.mxu0 0.0
    %2938 = vmatpush2.msra.mxu0 0.0
    %2939 = vmatprep.subr.mxu0 0.0
    %2940 = vmatpush2.msra.mxu0 0.0
    %2941 = vmatprep.subr.mxu0 0.0
    %2942 = vmatpush2.msra.mxu0 0.0
    %2943 = vmatprep.mubr.f32.mxu0 0.0
    %2944 = vmatmul.mubr.f32.gmra.mxu0 %v2877
    %v2945 = vpop.f32.mrf.mxu0
    %v2946 = vadd.f32 0.0, %v2945
    %v2947 = vpop.f32.mrf.mxu0
    %2948 = vdwg.mxu0
    %v2949 = vmul.f32 %v2946, 0.0625
    %v2950 = vadd.f32 %v2949, 0.00064
    %v2951 = vrsqrt.pop %v2950
    %v2952 = vmul.f32 %v2950, %v2951
    %vm2953 = vcmp.eq.f32.partialorder %v2950, inf
    %v2954 = vsel %vm2953, %v2950, %v2952
    %vm2955 = vcmp.eq.f32.partialorder %v2950, 0.0
    %v2956 = vand.u32 %v2950, 2147483648
    %v2957 = vsel %vm2955, %v2956, %v2954
    %v2959 = vrot.slane %v2957, 1
    %v2960 = vrot.slane %v2957, 2
    %v2961 = vrot.slane %v2957, 3
    %v2962 = vrot.slane %v2957, 4
    %v2963 = vrot.slane %v2957, 5
    %v2964 = vrot.slane %v2957, 6
    %v2965 = vrot.slane %v2957, 7
    %v2974 = vrcp.pop %v2957
    %v2975 = vmul.f32 %v2839, %v2974
    %v2976 = vrcp.pop %v2959
    %v2977 = vmul.f32 %v2840, %v2976
    %v2978 = vrcp.pop %v2960
    %v2979 = vmul.f32 %v2841, %v2978
    %v2980 = vrcp.pop %v2961
    %v2981 = vmul.f32 %v2842, %v2980
    %v2982 = vrcp.pop %v2962
    %v2983 = vmul.f32 %v2843, %v2982
    %v2984 = vrcp.pop %v2963
    %v2985 = vmul.f32 %v2844, %v2984
    %v2986 = vrcp.pop %v2964
    %v2987 = vmul.f32 %v2845, %v2986
    %v2988 = vrcp.pop %v2965
    %v2989 = vmul.f32 %v2846, %v2988
    %v2990 = vlaneseq
    %v2991 = vshrl.u32 %v2990, 7
    %v2992 = vsub.s32 2, %v2991
    %v2993 = vrot.slane %v53, %v2992
    %v2994 = vmul.f32 %v2975, %v2993
    %v2995 = vmul.f32 %v2977, %v2993
    %v2996 = vmul.f32 %v2979, %v2993
    %v2997 = vmul.f32 %v2981, %v2993
    %v2998 = vmul.f32 %v2983, %v2993
    %v2999 = vmul.f32 %v2985, %v2993
    %v3000 = vmul.f32 %v2987, %v2993
    %v3001 = vmul.f32 %v2989, %v2993
    %v3002 = vlaneseq
    %v3003 = vshrl.u32 %v3002, 7
    %v3004 = vsub.s32 3, %v3003
    %v3005 = vrot.slane %v53, %v3004
    %v3006 = vadd.f32 %v2994, %v3005
    %v3007 = vadd.f32 %v2995, %v3005
    %v3008 = vadd.f32 %v2996, %v3005
    %v3009 = vadd.f32 %v2997, %v3005
    %v3010 = vadd.f32 %v2998, %v3005
    %v3011 = vadd.f32 %v2999, %v3005
    %v3012 = vadd.f32 %v3000, %v3005
    %v3013 = vadd.f32 %v3001, %v3005
    %3014 = vrot.lane.b32.xlu0 %v604, 96
    %v3015 = vpop.permute.xlu0 %3014
    %v3017 = vmul.f32 %v316, %v3015
    %v3018 = vlaneseq
    %v3019 = vshrl.u32 %v3018, 7
    %v3020 = vsub.s32 1, %v3019
    %v3021 = vrot.slane %v53, %v3020
    %v3022 = vmul.f32 %v3017, %v3021
    %v3024 = vsel %vm72, %v3022, 0
    %3026 = vmatprep.subr.mxu0 0.0
    %3027 = vmatpush1.msra.mxu0 0.0
    %3028 = vmatprep.subr.mxu0 0.0
    %3029 = vmatpush1.msra.mxu0 0.0
    %3030 = vmatprep.subr.mxu0 0.0
    %3031 = vmatpush1.msra.mxu0 0.0
    %3032 = vmatprep.subr.mxu0 0.0
    %3033 = vmatpush1.msra.mxu0 0.0
    %3034 = vmatprep.subr.mxu0 0.0
    %3035 = vmatpush1.msra.mxu0 0.0
    %3036 = vmatprep.subr.mxu0 0.0
    %3037 = vmatpush1.msra.mxu0 0.0
    %3038 = vmatprep.subr.mxu0 0.0
    %3039 = vmatpush1.msra.mxu0 0.0
    %3040 = vmatprep.subr.mxu0 0.0
    %3041 = vmatpush1.msra.mxu0 0.0
    %3042 = vmatprep.subr.mxu0 0.0
    %3043 = vmatpush1.msra.mxu0 0.0
    %3044 = vmatprep.subr.mxu0 0.0
    %3045 = vmatpush1.msra.mxu0 0.0
    %3046 = vmatprep.subr.mxu0 0.0
    %3047 = vmatpush1.msra.mxu0 0.0
    %3048 = vmatprep.subr.mxu0 0.0
    %3049 = vmatpush1.msra.mxu0 0.0
    %3050 = vmatprep.subr.mxu0 0.0
    %3051 = vmatpush1.msra.mxu0 %v58
    %3052 = vmatprep.subr.mxu0 0.0
    %3053 = vmatpush1.msra.mxu0 %v57
    %3054 = vmatprep.subr.mxu0 0.0
    %3055 = vmatpush1.msra.mxu0 %v56
    %3056 = vmatprep.subr.mxu0 0.0
    %3057 = vmatpush1.msra.mxu0 %v55
    %3058 = vmatprep.subr.mxu0 0.0
    %3059 = vmatpush2.msra.mxu0 0.0
    %3060 = vmatprep.subr.mxu0 0.0
    %3061 = vmatpush2.msra.mxu0 0.0
    %3062 = vmatprep.subr.mxu0 0.0
    %3063 = vmatpush2.msra.mxu0 0.0
    %3064 = vmatprep.subr.mxu0 0.0
    %3065 = vmatpush2.msra.mxu0 0.0
    %3066 = vmatprep.subr.mxu0 0.0
    %3067 = vmatpush2.msra.mxu0 0.0
    %3068 = vmatprep.subr.mxu0 0.0
    %3069 = vmatpush2.msra.mxu0 0.0
    %3070 = vmatprep.subr.mxu0 0.0
    %3071 = vmatpush2.msra.mxu0 0.0
    %3072 = vmatprep.subr.mxu0 0.0
    %3073 = vmatpush2.msra.mxu0 0.0
    %3074 = vmatprep.subr.mxu0 0.0
    %3075 = vmatpush2.msra.mxu0 0.0
    %3076 = vmatprep.subr.mxu0 0.0
    %3077 = vmatpush2.msra.mxu0 0.0
    %3078 = vmatprep.subr.mxu0 0.0
    %3079 = vmatpush2.msra.mxu0 0.0
    %3080 = vmatprep.subr.mxu0 0.0
    %3081 = vmatpush2.msra.mxu0 0.0
    %3082 = vmatprep.subr.mxu0 0.0
    %3083 = vmatpush2.msra.mxu0 0.0
    %3084 = vmatprep.subr.mxu0 0.0
    %3085 = vmatpush2.msra.mxu0 0.0
    %3086 = vmatprep.subr.mxu0 0.0
    %3087 = vmatpush2.msra.mxu0 0.0
    %3088 = vmatprep.subr.mxu0 0.0
    %3089 = vmatpush2.msra.mxu0 0.0
    %3090 = vmatprep.mubr.f32.mxu0 0.0
    %3091 = vmatmul.mubr.f32.gmra.mxu0 %v3024
    %v3092 = vpop.f32.mrf.mxu0
    %v3093 = vadd.f32 0.0, %v3092
    %v3094 = vpop.f32.mrf.mxu0
    %3095 = vdwg.mxu0
    %v3096 = vmul.f32 %v3093, %v607
    %v3098 = vrot.slane %v3096, 1
    %v3099 = vrot.slane %v3096, 2
    %v3100 = vrot.slane %v3096, 3
    %v3101 = vrot.slane %v3096, 4
    %v3102 = vrot.slane %v3096, 5
    %v3103 = vrot.slane %v3096, 6
    %v3104 = vrot.slane %v3096, 7
    %v3113 = vadd.f32 %v3006, %v3096
    %v3114 = vadd.f32 %v3007, %v3098
    %v3115 = vadd.f32 %v3008, %v3099
    %v3116 = vadd.f32 %v3009, %v3100
    %v3117 = vadd.f32 %v3010, %v3101
    %v3118 = vadd.f32 %v3011, %v3102
    %v3119 = vadd.f32 %v3012, %v3103
    %v3120 = vadd.f32 %v3013, %v3104
    %v3122 = vrot.slane %v458, 1
    %v3123 = vrot.slane %v458, 2
    %v3124 = vrot.slane %v458, 3
    %v3125 = vrot.slane %v458, 4
    %v3126 = vrot.slane %v458, 5
    %v3127 = vrot.slane %v458, 6
    %v3128 = vrot.slane %v458, 7
    %3129 = vrot.lane.b32.xlu0 %v458, 64
    %v3130 = vpop.permute.xlu0 %3129
    %3131 = vrot.lane.b32.xlu0 %v3122, 64
    %v3132 = vpop.permute.xlu0 %3131
    %3133 = vrot.lane.b32.xlu0 %v3123, 64
    %v3134 = vpop.permute.xlu0 %3133
    %3135 = vrot.lane.b32.xlu0 %v3124, 64
    %v3136 = vpop.permute.xlu0 %3135
    %3137 = vrot.lane.b32.xlu0 %v3125, 64
    %v3138 = vpop.permute.xlu0 %3137
    %3139 = vrot.lane.b32.xlu0 %v3126, 64
    %v3140 = vpop.permute.xlu0 %3139
    %3141 = vrot.lane.b32.xlu0 %v3127, 64
    %v3142 = vpop.permute.xlu0 %3141
    %3143 = vrot.lane.b32.xlu0 %v3128, 64
    %v3144 = vpop.permute.xlu0 %3143
    %v3153 = vmul.f32 %v3113, %v3130
    %v3154 = vmul.f32 %v3114, %v3132
    %v3155 = vmul.f32 %v3115, %v3134
    %v3156 = vmul.f32 %v3116, %v3136
    %v3157 = vmul.f32 %v3117, %v3138
    %v3158 = vmul.f32 %v3118, %v3140
    %v3159 = vmul.f32 %v3119, %v3142
    %v3160 = vmul.f32 %v3120, %v3144
    %v3161 = vld [vmem:[%s8] sm:$0xff]
    %v3162 = vld [vmem:[%s8 + $0x8] sm:$0xff]
    %v3163 = vld [vmem:[%s8 + $0x10] sm:$0xff]
    %v3164 = vld [vmem:[%s8 + $0x18] sm:$0xff]
    %v3173 = vrot.slane %v3154, 7
    %v3174 = vsel %vm2736, %v3173, %v3153
    %v3175 = vrot.slane %v3155, 6
    %v3176 = vsel %vm2738, %v3175, %v3174
    %v3177 = vrot.slane %v3156, 5
    %v3178 = vsel %vm2740, %v3177, %v3176
    %v3179 = vrot.slane %v3157, 4
    %v3180 = vsel %vm2742, %v3179, %v3178
    %v3181 = vrot.slane %v3158, 3
    %v3182 = vsel %vm2744, %v3181, %v3180
    %v3183 = vrot.slane %v3159, 2
    %v3184 = vsel %vm2746, %v3183, %v3182
    %v3185 = vrot.slane %v3160, 1
    %v3186 = vsel %vm2748, %v3185, %v3184
    %v3187 = vsel %vm72, %v3186, 0
    %3189 = vmatprep.subr.mxu0 0.0
    %3190 = vmatpush1.msra.mxu0 0.0
    %3191 = vmatprep.subr.mxu0 0.0
    %3192 = vmatpush1.msra.mxu0 0.0
    %3193 = vmatprep.subr.mxu0 0.0
    %3194 = vmatpush1.msra.mxu0 0.0
    %3195 = vmatprep.subr.mxu0 0.0
    %3196 = vmatpush1.msra.mxu0 0.0
    %3197 = vmatprep.subr.mxu0 0.0
    %3198 = vmatpush1.msra.mxu0 0.0
    %3199 = vmatprep.subr.mxu0 0.0
    %3200 = vmatpush1.msra.mxu0 0.0
    %3201 = vmatprep.subr.mxu0 0.0
    %3202 = vmatpush1.msra.mxu0 0.0
    %3203 = vmatprep.subr.mxu0 0.0
    %3204 = vmatpush1.msra.mxu0 0.0
    %3205 = vmatprep.subr.mxu0 0.0
    %3206 = vmatpush1.msra.mxu0 0.0
    %3207 = vmatprep.subr.mxu0 0.0
    %3208 = vmatpush1.msra.mxu0 0.0
    %3209 = vmatprep.subr.mxu0 0.0
    %3210 = vmatpush1.msra.mxu0 0.0
    %3211 = vmatprep.subr.mxu0 0.0
    %3212 = vmatpush1.msra.mxu0 0.0
    %3213 = vmatprep.subr.mxu0 0.0
    %3214 = vmatpush1.msra.mxu0 %v3164
    %3215 = vmatprep.subr.mxu0 0.0
    %3216 = vmatpush1.msra.mxu0 %v3163
    %3217 = vmatprep.subr.mxu0 0.0
    %3218 = vmatpush1.msra.mxu0 %v3162
    %3219 = vmatprep.subr.mxu0 0.0
    %3220 = vmatpush1.msra.mxu0 %v3161
    %3221 = vmatprep.subr.mxu0 0.0
    %3222 = vmatpush2.msra.mxu0 0.0
    %3223 = vmatprep.subr.mxu0 0.0
    %3224 = vmatpush2.msra.mxu0 0.0
    %3225 = vmatprep.subr.mxu0 0.0
    %3226 = vmatpush2.msra.mxu0 0.0
    %3227 = vmatprep.subr.mxu0 0.0
    %3228 = vmatpush2.msra.mxu0 0.0
    %3229 = vmatprep.subr.mxu0 0.0
    %3230 = vmatpush2.msra.mxu0 0.0
    %3231 = vmatprep.subr.mxu0 0.0
    %3232 = vmatpush2.msra.mxu0 0.0
    %3233 = vmatprep.subr.mxu0 0.0
    %3234 = vmatpush2.msra.mxu0 0.0
    %3235 = vmatprep.subr.mxu0 0.0
    %3236 = vmatpush2.msra.mxu0 0.0
    %3237 = vmatprep.subr.mxu0 0.0
    %3238 = vmatpush2.msra.mxu0 0.0
    %3239 = vmatprep.subr.mxu0 0.0
    %3240 = vmatpush2.msra.mxu0 0.0
    %3241 = vmatprep.subr.mxu0 0.0
    %3242 = vmatpush2.msra.mxu0 0.0
    %3243 = vmatprep.subr.mxu0 0.0
    %3244 = vmatpush2.msra.mxu0 0.0
    %3245 = vmatprep.subr.mxu0 0.0
    %3246 = vmatpush2.msra.mxu0 0.0
    %3247 = vmatprep.subr.mxu0 0.0
    %3248 = vmatpush2.msra.mxu0 0.0
    %3249 = vmatprep.subr.mxu0 0.0
    %3250 = vmatpush2.msra.mxu0 0.0
    %3251 = vmatprep.subr.mxu0 0.0
    %3252 = vmatpush2.msra.mxu0 0.0
    %3253 = vmatprep.mubr.f32.mxu0 0.0
    %3254 = vmatmul.mubr.f32.gmra.mxu0 %v3187
    %v3255 = vpop.f32.mrf.mxu0
    %v3256 = vadd.f32 0.0, %v3255
    %v3257 = vpop.f32.mrf.mxu0
    %3258 = vdwg.mxu0
    %v3259 = vadd.f32 %v51, %v3256
    %v3260 = vsel %vm72, %v3259, 0.0
    %3261 = vadd.xlane.f32.xlu0 %v3260
    %v3262 = vpop.xlane.xlu0 %3261
    %v3263 = vmul.f32 %v3262, %v76
    %v3264 = vsub.f32 %v3259, %v3263
    %v3265 = vmul.f32 %v3264, %v3264
    %v3266 = vsel %vm72, %v3265, 0.0
    %3267 = vadd.xlane.f32.xlu0 %v3266
    %v3268 = vpop.xlane.xlu0 %3267
    %v3269 = vmul.f32 %v3268, %v76
    %v3270 = vadd.f32 %v3269, 1e-05
    %v3271 = vrsqrt.pop %v3270
    %v3272 = vmul.f32 %v3270, %v3271
    %vm3273 = vcmp.eq.f32.partialorder %v3270, inf
    %v3274 = vsel %vm3273, %v3270, %v3272
    %vm3275 = vcmp.eq.f32.partialorder %v3270, 0.0
    %v3276 = vand.u32 %v3270, 2147483648
    %v3277 = vsel %vm3275, %v3276, %v3274
    %v3278 = vrcp.pop %v3277
    %v3279 = vmul.f32 %v3264, %v3278
    %v3280 = vlaneseq
    %v3281 = vshrl.u32 %v3280, 7
    %v3282 = vsub.s32 2, %v3281
    %v3283 = vrot.slane %v52, %v3282
    %v3284 = vmul.f32 %v3279, %v3283
    %v3285 = vlaneseq
    %v3286 = vshrl.u32 %v3285, 7
    %v3287 = vsub.s32 3, %v3286
    %v3288 = vrot.slane %v52, %v3287
    %v3289 = vadd.f32 %v3284, %v3288
    %v3290 = vld [vmem:[%s3] sm:$0x1]
    %v3292 = vlaneseq
    %v3293 = vshrl.u32 %v3292, 7
    %v3294 = vsub.s32 0, %v3293
    %v3295 = vrot.slane %v3290, %v3294
    %v3297 = vmul.f32 %v71, %v3295
    %3298 = vmatprep.subr.mxu0 0.0
    %3299 = vmatpush1.msra.mxu0 0.0
    %3300 = vmatprep.subr.mxu0 0.0
    %3301 = vmatpush1.msra.mxu0 0.0
    %3302 = vmatprep.subr.mxu0 0.0
    %3303 = vmatpush1.msra.mxu0 0.0
    %3304 = vmatprep.subr.mxu0 0.0
    %3305 = vmatpush1.msra.mxu0 0.0
    %3306 = vmatprep.subr.mxu0 0.0
    %3307 = vmatpush1.msra.mxu0 0.0
    %3308 = vmatprep.subr.mxu0 0.0
    %3309 = vmatpush1.msra.mxu0 0.0
    %3310 = vmatprep.subr.mxu0 0.0
    %3311 = vmatpush1.msra.mxu0 0.0
    %3312 = vmatprep.subr.mxu0 0.0
    %3313 = vmatpush1.msra.mxu0 0.0
    %3314 = vmatprep.subr.mxu0 0.0
    %3315 = vmatpush1.msra.mxu0 0.0
    %3316 = vmatprep.subr.mxu0 0.0
    %3317 = vmatpush1.msra.mxu0 0.0
    %3318 = vmatprep.subr.mxu0 0.0
    %3319 = vmatpush1.msra.mxu0 0.0
    %3320 = vmatprep.subr.mxu0 0.0
    %3321 = vmatpush1.msra.mxu0 0.0
    %3322 = vmatprep.subr.mxu0 0.0
    %3323 = vmatpush1.msra.mxu0 0.0
    %3324 = vmatprep.subr.mxu0 0.0
    %3325 = vmatpush1.msra.mxu0 0.0
    %3326 = vmatprep.subr.mxu0 0.0
    %3327 = vmatpush1.msra.mxu0 0.0
    %3328 = vmatprep.subr.mxu0 0.0
    %3329 = vmatpush1.msra.mxu0 %v3289
    %3330 = vmatprep.subr.mxu0 0.0
    %3331 = vmatpush2.msra.mxu0 0.0
    %3332 = vmatprep.subr.mxu0 0.0
    %3333 = vmatpush2.msra.mxu0 0.0
    %3334 = vmatprep.subr.mxu0 0.0
    %3335 = vmatpush2.msra.mxu0 0.0
    %3336 = vmatprep.subr.mxu0 0.0
    %3337 = vmatpush2.msra.mxu0 0.0
    %3338 = vmatprep.subr.mxu0 0.0
    %3339 = vmatpush2.msra.mxu0 0.0
    %3340 = vmatprep.subr.mxu0 0.0
    %3341 = vmatpush2.msra.mxu0 0.0
    %3342 = vmatprep.subr.mxu0 0.0
    %3343 = vmatpush2.msra.mxu0 0.0
    %3344 = vmatprep.subr.mxu0 0.0
    %3345 = vmatpush2.msra.mxu0 0.0
    %3346 = vmatprep.subr.mxu0 0.0
    %3347 = vmatpush2.msra.mxu0 0.0
    %3348 = vmatprep.subr.mxu0 0.0
    %3349 = vmatpush2.msra.mxu0 0.0
    %3350 = vmatprep.subr.mxu0 0.0
    %3351 = vmatpush2.msra.mxu0 0.0
    %3352 = vmatprep.subr.mxu0 0.0
    %3353 = vmatpush2.msra.mxu0 0.0
    %3354 = vmatprep.subr.mxu0 0.0
    %3355 = vmatpush2.msra.mxu0 0.0
    %3356 = vmatprep.subr.mxu0 0.0
    %3357 = vmatpush2.msra.mxu0 0.0
    %3358 = vmatprep.subr.mxu0 0.0
    %3359 = vmatpush2.msra.mxu0 0.0
    %3360 = vmatprep.subr.mxu0 0.0
    %3361 = vmatpush2.msra.mxu0 0.0
    %3362 = vmatprep.mubr.f32.mxu0 0.0
    %3363 = vmatmul.mubr.f32.gmra.mxu0 %v114
    %v3364 = vpop.f32.mrf.mxu0
    %v3365 = vadd.f32 %v3297, %v3364
    %v3366 = vpop.f32.mrf.mxu0
    %3367 = vdwg.mxu0
    %v3368 = vsub.f32 %v3365, %v3289
    %v3369 = vlaneseq
    %v3370 = vshrl.u32 %v3369, 7
    %v3371 = vsub.s32 4, %v3370
    %v3372 = vrot.slane %v53, %v3371
    %v3373 = vmul.f32 %v3368, %v3372
    %v3374 = vadd.f32 %v3289, %v3373
    %v3375 = vld [vmem:[%s9] sm:$0xff]
    %v3376 = vld [vmem:[%s9 + $0x8] sm:$0xff]
    %v3377 = vld [vmem:[%s9 + $0x10] sm:$0xff]
    %v3378 = vld [vmem:[%s9 + $0x18] sm:$0xff]
    %v3380 = vsel %vm72, %v3374, 0
    %3382 = vmatprep.subr.mxu0 0.0
    %3383 = vmatpush1.msra.mxu0 0.0
    %3384 = vmatprep.subr.mxu0 0.0
    %3385 = vmatpush1.msra.mxu0 0.0
    %3386 = vmatprep.subr.mxu0 0.0
    %3387 = vmatpush1.msra.mxu0 0.0
    %3388 = vmatprep.subr.mxu0 0.0
    %3389 = vmatpush1.msra.mxu0 0.0
    %3390 = vmatprep.subr.mxu0 0.0
    %3391 = vmatpush1.msra.mxu0 0.0
    %3392 = vmatprep.subr.mxu0 0.0
    %3393 = vmatpush1.msra.mxu0 0.0
    %3394 = vmatprep.subr.mxu0 0.0
    %3395 = vmatpush1.msra.mxu0 0.0
    %3396 = vmatprep.subr.mxu0 0.0
    %3397 = vmatpush1.msra.mxu0 0.0
    %3398 = vmatprep.subr.mxu0 0.0
    %3399 = vmatpush1.msra.mxu0 0.0
    %3400 = vmatprep.subr.mxu0 0.0
    %3401 = vmatpush1.msra.mxu0 0.0
    %3402 = vmatprep.subr.mxu0 0.0
    %3403 = vmatpush1.msra.mxu0 0.0
    %3404 = vmatprep.subr.mxu0 0.0
    %3405 = vmatpush1.msra.mxu0 0.0
    %3406 = vmatprep.subr.mxu0 0.0
    %3407 = vmatpush1.msra.mxu0 %v3378
    %3408 = vmatprep.subr.mxu0 0.0
    %3409 = vmatpush1.msra.mxu0 %v3377
    %3410 = vmatprep.subr.mxu0 0.0
    %3411 = vmatpush1.msra.mxu0 %v3376
    %3412 = vmatprep.subr.mxu0 0.0
    %3413 = vmatpush1.msra.mxu0 %v3375
    %3414 = vmatprep.subr.mxu0 0.0
    %3415 = vmatpush2.msra.mxu0 0.0
    %3416 = vmatprep.subr.mxu0 0.0
    %3417 = vmatpush2.msra.mxu0 0.0
    %3418 = vmatprep.subr.mxu0 0.0
    %3419 = vmatpush2.msra.mxu0 0.0
    %3420 = vmatprep.subr.mxu0 0.0
    %3421 = vmatpush2.msra.mxu0 0.0
    %3422 = vmatprep.subr.mxu0 0.0
    %3423 = vmatpush2.msra.mxu0 0.0
    %3424 = vmatprep.subr.mxu0 0.0
    %3425 = vmatpush2.msra.mxu0 0.0
    %3426 = vmatprep.subr.mxu0 0.0
    %3427 = vmatpush2.msra.mxu0 0.0
    %3428 = vmatprep.subr.mxu0 0.0
    %3429 = vmatpush2.msra.mxu0 0.0
    %3430 = vmatprep.subr.mxu0 0.0
    %3431 = vmatpush2.msra.mxu0 0.0
    %3432 = vmatprep.subr.mxu0 0.0
    %3433 = vmatpush2.msra.mxu0 0.0
    %3434 = vmatprep.subr.mxu0 0.0
    %3435 = vmatpush2.msra.mxu0 0.0
    %3436 = vmatprep.subr.mxu0 0.0
    %3437 = vmatpush2.msra.mxu0 0.0
    %3438 = vmatprep.subr.mxu0 0.0
    %3439 = vmatpush2.msra.mxu0 0.0
    %3440 = vmatprep.subr.mxu0 0.0
    %3441 = vmatpush2.msra.mxu0 0.0
    %3442 = vmatprep.subr.mxu0 0.0
    %3443 = vmatpush2.msra.mxu0 0.0
    %3444 = vmatprep.subr.mxu0 0.0
    %3445 = vmatpush2.msra.mxu0 0.0
    %3446 = vmatprep.mubr.f32.mxu0 0.0
    %3447 = vmatmul.mubr.f32.gmra.mxu0 %v3380
    %v3448 = vpop.f32.mrf.mxu0
    %v3449 = vadd.f32 0.0, %v3448
    %v3450 = vpop.f32.mrf.mxu0
    %3451 = vdwg.mxu0
    %v3452 = vmax.f32 %v3449, 0.0
    %v3453 = vmul.f32 %v3452, %v3452
    %v3454 = vld [vmem:[%s10] sm:$0xff]
    %v3455 = vld [vmem:[%s10 + $0x8] sm:$0xff]
    %v3456 = vld [vmem:[%s10 + $0x10] sm:$0xff]
    %v3457 = vld [vmem:[%s10 + $0x18] sm:$0xff]
    %v3458 = vld [vmem:[%s10 + $0x20] sm:$0xff]
    %v3459 = vld [vmem:[%s10 + $0x28] sm:$0xff]
    %v3460 = vld [vmem:[%s10 + $0x30] sm:$0xff]
    %v3461 = vld [vmem:[%s10 + $0x38] sm:$0xff]
    %v3462 = vld [vmem:[%s10 + $0x40] sm:$0xff]
    %v3463 = vld [vmem:[%s10 + $0x48] sm:$0xff]
    %v3464 = vld [vmem:[%s10 + $0x50] sm:$0xff]
    %v3465 = vld [vmem:[%s10 + $0x58] sm:$0xff]
    %v3466 = vld [vmem:[%s10 + $0x60] sm:$0xff]
    %v3467 = vld [vmem:[%s10 + $0x68] sm:$0xff]
    %v3468 = vld [vmem:[%s10 + $0x70] sm:$0xff]
    %v3469 = vld [vmem:[%s10 + $0x78] sm:$0xff]
    %3470 = vmatprep.subr.mxu0 0.0
    %3471 = vmatpush1.msra.mxu0 %v3469
    %3472 = vmatprep.subr.mxu0 0.0
    %3473 = vmatpush1.msra.mxu0 %v3468
    %3474 = vmatprep.subr.mxu0 0.0
    %3475 = vmatpush1.msra.mxu0 %v3467
    %3476 = vmatprep.subr.mxu0 0.0
    %3477 = vmatpush1.msra.mxu0 %v3466
    %3478 = vmatprep.subr.mxu0 0.0
    %3479 = vmatpush1.msra.mxu0 %v3465
    %3480 = vmatprep.subr.mxu0 0.0
    %3481 = vmatpush1.msra.mxu0 %v3464
    %3482 = vmatprep.subr.mxu0 0.0
    %3483 = vmatpush1.msra.mxu0 %v3463
    %3484 = vmatprep.subr.mxu0 0.0
    %3485 = vmatpush1.msra.mxu0 %v3462
    %3486 = vmatprep.subr.mxu0 0.0
    %3487 = vmatpush1.msra.mxu0 %v3461
    %3488 = vmatprep.subr.mxu0 0.0
    %3489 = vmatpush1.msra.mxu0 %v3460
    %3490 = vmatprep.subr.mxu0 0.0
    %3491 = vmatpush1.msra.mxu0 %v3459
    %3492 = vmatprep.subr.mxu0 0.0
    %3493 = vmatpush1.msra.mxu0 %v3458
    %3494 = vmatprep.subr.mxu0 0.0
    %3495 = vmatpush1.msra.mxu0 %v3457
    %3496 = vmatprep.subr.mxu0 0.0
    %3497 = vmatpush1.msra.mxu0 %v3456
    %3498 = vmatprep.subr.mxu0 0.0
    %3499 = vmatpush1.msra.mxu0 %v3455
    %3500 = vmatprep.subr.mxu0 0.0
    %3501 = vmatpush1.msra.mxu0 %v3454
    %3502 = vmatprep.subr.mxu0 0.0
    %3503 = vmatpush2.msra.mxu0 0.0
    %3504 = vmatprep.subr.mxu0 0.0
    %3505 = vmatpush2.msra.mxu0 0.0
    %3506 = vmatprep.subr.mxu0 0.0
    %3507 = vmatpush2.msra.mxu0 0.0
    %3508 = vmatprep.subr.mxu0 0.0
    %3509 = vmatpush2.msra.mxu0 0.0
    %3510 = vmatprep.subr.mxu0 0.0
    %3511 = vmatpush2.msra.mxu0 0.0
    %3512 = vmatprep.subr.mxu0 0.0
    %3513 = vmatpush2.msra.mxu0 0.0
    %3514 = vmatprep.subr.mxu0 0.0
    %3515 = vmatpush2.msra.mxu0 0.0
    %3516 = vmatprep.subr.mxu0 0.0
    %3517 = vmatpush2.msra.mxu0 0.0
    %3518 = vmatprep.subr.mxu0 0.0
    %3519 = vmatpush2.msra.mxu0 0.0
    %3520 = vmatprep.subr.mxu0 0.0
    %3521 = vmatpush2.msra.mxu0 0.0
    %3522 = vmatprep.subr.mxu0 0.0
    %3523 = vmatpush2.msra.mxu0 0.0
    %3524 = vmatprep.subr.mxu0 0.0
    %3525 = vmatpush2.msra.mxu0 0.0
    %3526 = vmatprep.subr.mxu0 0.0
    %3527 = vmatpush2.msra.mxu0 0.0
    %3528 = vmatprep.subr.mxu0 0.0
    %3529 = vmatpush2.msra.mxu0 0.0
    %3530 = vmatprep.subr.mxu0 0.0
    %3531 = vmatpush2.msra.mxu0 0.0
    %3532 = vmatprep.subr.mxu0 0.0
    %3533 = vmatpush2.msra.mxu0 0.0
    %3534 = vmatprep.mubr.f32.mxu0 0.0
    %3535 = vmatmul.mubr.f32.gmra.mxu0 %v3453
    %v3536 = vpop.f32.mrf.mxu0
    %v3537 = vadd.f32 0.0, %v3536
    %v3538 = vpop.f32.mrf.mxu0
    %3539 = vdwg.mxu0
    %v3540 = vadd.f32 %v3259, %v3537
    %3541 = vst.msk [vmem:[%s13] sm:$0xff] %vm72, %v3540
    %vm3542 = vcmask 261127
    %3543 = vst.msk [vmem:[#allocation2 - $0x7] sm:$0x80] %vm3542, %v103
    %3544 = vst.msk [vmem:[#allocation4 - $0x7] sm:$0x80] %vm3542, %v3289
    // Predicated region
    $region54: #{forward_seq.3} parent=1 // pred_check
      _
    $region55: #{forward_seq.3} parent=1 // pred_check_branch
      %3546 = sbr.rel (0) target = $region57
    $region56: #{forward_seq.3} parent=1 // pred_region
      _
    $region57: #{forward_seq.3} parent=1 // pred_fallthru
      _
    // Predicated region
    $region58: #{forward_seq.3} parent=1 // pred_check
      _
    $region59: #{forward_seq.3} parent=1 // pred_check_branch
      %3548 = sbr.rel (0) target = $region61
    $region60: #{forward_seq.3} parent=1 // pred_region
      _
    $region61: #{forward_seq.3} parent=1 // pred_fallthru
      _
    // Predicated region
    $region62: #{forward_seq.3} parent=1 // pred_check
      _
    $region63: #{forward_seq.3} parent=1 // pred_check_branch
      %3550 = sbr.rel (0) target = $region65
    $region64: #{forward_seq.3} parent=1 // pred_region
      %s3552 = ssub.s32 16, 16
      %3553 = vsyncadd [#allocation3], %s3552
      %s3555 = sshll.u32 [#allocation2], 4
      %s3556 = int_to_ptr.vmem [resolvable:$true] %s3555
      %3558 = dma.vmem_to_hbm [thread:$0]  %s3556, 16, %s15, [#allocation3]
    $region65: #{forward_seq.3} parent=1 // pred_fallthru
      _
    // Predicated region
    $region66: #{forward_seq.3} parent=1 // pred_check
      _
    $region67: #{forward_seq.3} parent=1 // pred_check_branch
      %3560 = sbr.rel (0) target = $region69
    $region68: #{forward_seq.3} parent=1 // pred_region
      %s3562 = ssub.s32 16, 16
      %3563 = vsyncadd [#allocation5], %s3562
      %s3565 = sshll.u32 [#allocation4], 4
      %s3566 = int_to_ptr.vmem [resolvable:$true] %s3565
      %3568 = dma.vmem_to_hbm [thread:$0]  %s3566, 16, %s16, [#allocation5]
    $region69: #{forward_seq.3} parent=1 // pred_fallthru
      _
    // Predicated region
    $region70: #{forward_seq.3} parent=1 // pred_check
      _
    $region71: #{forward_seq.3} parent=1 // pred_check_branch
      %3570 = sbr.rel (0) target = $region73
    $region72: #{forward_seq.3} parent=1 // pred_region
      _
    $region73: #{forward_seq.3} parent=1 // pred_fallthru
      _
    // Predicated region
    $region74: #{forward_seq.3} parent=1 // pred_check
      _
    $region75: #{forward_seq.3} parent=1 // pred_check_branch
      %3572 = sbr.rel (0) target = $region77
    $region76: #{forward_seq.3} parent=1 // pred_region
      _
    $region77: #{forward_seq.3} parent=1 // pred_fallthru
      _
    // Predicated region
    $region78: #{forward_seq.3} parent=1 // pred_check
      _
    $region79: #{forward_seq.3} parent=1 // pred_check_branch
      %3574 = sbr.rel (0) target = $region81
    $region80: #{forward_seq.3} parent=1 // pred_region
      _
    $region81: #{forward_seq.3} parent=1 // pred_fallthru
      _
    // Predicated region
    $region82: #{forward_seq.3} parent=1 // pred_check
      _
    $region83: #{forward_seq.3} parent=1 // pred_check_branch
      %3576 = sbr.rel (0) target = $region85
    $region84: #{forward_seq.3} parent=1 // pred_region
      %3577 = dma.done [#allocation3], 16
    $region85: #{forward_seq.3} parent=1 // pred_fallthru
      _
    // Predicated region
    $region86: #{forward_seq.3} parent=1 // pred_check
      _
    $region87: #{forward_seq.3} parent=1 // pred_check_branch
      %3579 = sbr.rel (0) target = $region89
    $region88: #{forward_seq.3} parent=1 // pred_region
      %3580 = dma.done [#allocation5], 16
    $region89: #{forward_seq.3} parent=1 // pred_fallthru
      _
    // Predicated region
    $region90: #{forward_seq.3} parent=1 // pred_check
      _
    $region91: #{forward_seq.3} parent=1 // pred_check_branch
      %3582 = sbr.rel (0) target = $region93
    $region92: #{forward_seq.3} parent=1 // pred_region
      _
    $region93: #{forward_seq.3} parent=1 // pred_fallthru
      _
    %3583 = vsyncpa [#allocation3], 1
    %3584 = vsyncpa [#allocation5], 1

// kernel: forward_seq.4
$region0: #{forward_seq.4}
  #allocation0 [shape = 'u32[]', space=smem, size = 0x4, offset = 0x4, fixed_abs, tag = 'smem constant byte address 0x4 - core index']
  #allocation1 [shape = 'u32[144,128]{1,0:T(1,128)}', space=vmem, size = 0x12000, scoped, tag = 'internal scratch']
  %s0 = inlined_call_operand.vmem [shape: f32[8,32], index: 0, kind: input, shape index: {}]
  %s1 = inlined_call_operand.vmem [shape: f32[8,32], index: 1, kind: input, shape index: {}]
  %s2 = inlined_call_operand.vmem [shape: f32[1,32], index: 2, kind: input, shape index: {}]
  %s3 = inlined_call_operand.vmem [shape: f32[1,32], index: 3, kind: input, shape index: {}]
  %s4 = inlined_call_operand.vmem [shape: f32[16,32], index: 4, kind: input, shape index: {}]
  %s5 = inlined_call_operand.vmem [shape: f32[19,32], index: 5, kind: input, shape index: {}]
  %s6 = inlined_call_operand.vmem [shape: f32[32,160], index: 6, kind: input, shape index: {}]
  %s7 = inlined_call_operand.vmem [shape: f32[16,128], index: 7, kind: input, shape index: {}]
  %s8 = inlined_call_operand.vmem [shape: f32[32,32], index: 8, kind: input, shape index: {}]
  %s9 = inlined_call_operand.vmem [shape: f32[32,128], index: 9, kind: input, shape index: {}]
  %s10 = inlined_call_operand.vmem [shape: f32[128,32], index: 10, kind: input, shape index: {}]
  %s11 = inlined_call_operand.vmem [shape: f32[32,32], index: 11, kind: input, shape index: {}]
  %s12 = inlined_call_operand.vmem [shape: f32[16,32], index: 12, kind: input, shape index: {}]
  %s13 = inlined_call_operand.vmem [shape: f32[8,32], index: 13, kind: output, shape index: {0}]
  %s14 = inlined_call_operand.hbm [shape: f32[8,32], index: 14, kind: output, shape index: {1}]
  %s15 = inlined_call_operand.hbm [shape: f32[1,32], index: 15, kind: output, shape index: {2}]
  %s16 = inlined_call_operand.hbm [shape: f32[1,32], index: 16, kind: output, shape index: {3}]
  %s17 = inlined_call_operand.vmem [shape: f32[16,32], index: 17, kind: output, shape index: {4}]
  %18 = xla_tuple %s13, %s14, %s15, %s16, %s17
  %s19 = sld [smem:[#allocation0]]
  $region94: #{forward_seq.4} parent=0
    _
  %s21 = ssub.s32 1, %s19
  %s22 = scalar_select 0, %s21, %s19
  $region1: #{forward_seq.4} parent=0
    #allocation2 [shape = 'u8[4096]{0}', space=vmem, size = 0x1000, scoped, tag = 'output window, operand 1, single buffered']
    #allocation3 [shape = 's32[1]{0}', space=sflag, size = 0x4, scoped, tag = 'scoped memory for forward_seq.4']
    #allocation4 [shape = 'u8[512]{0}', space=vmem, size = 0x400, scoped, tag = 'output window, operand 2, single buffered']
    #allocation5 [shape = 's32[1]{0}', space=sflag, size = 0x4, scoped, tag = 'scoped memory for forward_seq.4']
    #allocation6 [shape = 'u8[512]{0}', space=vmem, size = 0x400, scoped, tag = 'output window, operand 3, single buffered']
    %23 = vsyncpa [#allocation3], 0
    %24 = vsyncpa [#allocation5], 0
    // Predicated region
    $region2: #{forward_seq.4} parent=1 // pred_check
      _
    $region3: #{forward_seq.4} parent=1 // pred_check_branch
      %26 = sbr.rel (0) target = $region5
    $region4: #{forward_seq.4} parent=1 // pred_region
      _
    $region5: #{forward_seq.4} parent=1 // pred_fallthru
      _
    // Predicated region
    $region6: #{forward_seq.4} parent=1 // pred_check
      _
    $region7: #{forward_seq.4} parent=1 // pred_check_branch
      %28 = sbr.rel (0) target = $region9
    $region8: #{forward_seq.4} parent=1 // pred_region
      _
    $region9: #{forward_seq.4} parent=1 // pred_fallthru
      _
    // Predicated region
    $region10: #{forward_seq.4} parent=1 // pred_check
      _
    $region11: #{forward_seq.4} parent=1 // pred_check_branch
      %30 = sbr.rel (0) target = $region13
    $region12: #{forward_seq.4} parent=1 // pred_region
      _
    $region13: #{forward_seq.4} parent=1 // pred_fallthru
      _
    // Predicated region
    $region14: #{forward_seq.4} parent=1 // pred_check
      _
    $region15: #{forward_seq.4} parent=1 // pred_check_branch
      %32 = sbr.rel (0) target = $region17
    $region16: #{forward_seq.4} parent=1 // pred_region
      _
    $region17: #{forward_seq.4} parent=1 // pred_fallthru
      _
    // Predicated region
    $region18: #{forward_seq.4} parent=1 // pred_check
      _
    $region19: #{forward_seq.4} parent=1 // pred_check_branch
      %34 = sbr.rel (0) target = $region21
    $region20: #{forward_seq.4} parent=1 // pred_region
      _
    $region21: #{forward_seq.4} parent=1 // pred_fallthru
      _
    // Predicated region
    $region22: #{forward_seq.4} parent=1 // pred_check
      _
    $region23: #{forward_seq.4} parent=1 // pred_check_branch
      %36 = sbr.rel (0) target = $region25
    $region24: #{forward_seq.4} parent=1 // pred_region
      _
    $region25: #{forward_seq.4} parent=1 // pred_fallthru
      _
    // Predicated region
    $region26: #{forward_seq.4} parent=1 // pred_check
      _
    $region27: #{forward_seq.4} parent=1 // pred_check_branch
      %38 = sbr.rel (0) target = $region29
    $region28: #{forward_seq.4} parent=1 // pred_region
      _
    $region29: #{forward_seq.4} parent=1 // pred_fallthru
      _
    // Predicated region
    $region30: #{forward_seq.4} parent=1 // pred_check
      _
    $region31: #{forward_seq.4} parent=1 // pred_check_branch
      %40 = sbr.rel (0) target = $region33
    $region32: #{forward_seq.4} parent=1 // pred_region
      _
    $region33: #{forward_seq.4} parent=1 // pred_fallthru
      _
    // Predicated region
    $region34: #{forward_seq.4} parent=1 // pred_check
      _
    $region35: #{forward_seq.4} parent=1 // pred_check_branch
      %42 = sbr.rel (0) target = $region37
    $region36: #{forward_seq.4} parent=1 // pred_region
      _
    $region37: #{forward_seq.4} parent=1 // pred_fallthru
      _
    // Predicated region
    $region38: #{forward_seq.4} parent=1 // pred_check
      _
    $region39: #{forward_seq.4} parent=1 // pred_check_branch
      %44 = sbr.rel (0) target = $region41
    $region40: #{forward_seq.4} parent=1 // pred_region
      _
    $region41: #{forward_seq.4} parent=1 // pred_fallthru
      _
    // Predicated region
    $region42: #{forward_seq.4} parent=1 // pred_check
      _
    $region43: #{forward_seq.4} parent=1 // pred_check_branch
      %46 = sbr.rel (0) target = $region45
    $region44: #{forward_seq.4} parent=1 // pred_region
      _
    $region45: #{forward_seq.4} parent=1 // pred_fallthru
      _
    // Predicated region
    $region46: #{forward_seq.4} parent=1 // pred_check
      _
    $region47: #{forward_seq.4} parent=1 // pred_check_branch
      %48 = sbr.rel (0) target = $region49
    $region48: #{forward_seq.4} parent=1 // pred_region
      _
    $region49: #{forward_seq.4} parent=1 // pred_fallthru
      _
    // Predicated region
    $region50: #{forward_seq.4} parent=1 // pred_check
      _
    $region51: #{forward_seq.4} parent=1 // pred_check_branch
      %50 = sbr.rel (0) target = $region53
    $region52: #{forward_seq.4} parent=1 // pred_region
      _
    $region53: #{forward_seq.4} parent=1 // pred_fallthru
      _
    %v51 = vld [vmem:[%s0] sm:$0xff]
    %v52 = vld [vmem:[%s5] sm:$0xff]
    %v53 = vld [vmem:[%s5 + $0x8] sm:$0xff]
    %v54 = vld [vmem:[%s5 + $0x10] sm:$0x7]
    %v55 = vld [vmem:[%s11] sm:$0xff]
    %v56 = vld [vmem:[%s11 + $0x8] sm:$0xff]
    %v57 = vld [vmem:[%s11 + $0x10] sm:$0xff]
    %v58 = vld [vmem:[%s11 + $0x18] sm:$0xff]
    %v59 = vld [vmem:[%s12] sm:$0xff]
    %v60 = vld [vmem:[%s12 + $0x8] sm:$0xff]
    %v61 = vlaneseq
    %v62 = vshrl.u32 %v61, 7
    %v63 = vlaneseq
    %v64 = vand.u32 %v63, 127
    %v65 = vadd.s32 %v64, 1
    %vm66 = vcmp.eq.s32.totalorder %v62, %v65
    %v67 = vsel %vm66, 1, 0
    %v68 = vcvt.s32.f32 %v67
    %vm69 = vcmp.eq.s32.totalorder %v62, 0
    %v70 = vsel %vm69, 1, 0
    %v71 = vcvt.s32.f32 %v70
    %vm72 = vcmask 261120
    %v73 = vsel %vm72, %v51, 0.0
    %74 = vadd.xlane.f32.xlu0 %v73
    %v75 = vpop.xlane.xlu0 %74
    %v76 = vrcp.pop 32.0
    %v77 = vmul.f32 %v75, %v76
    %v78 = vsub.f32 %v51, %v77
    %v79 = vmul.f32 %v78, %v78
    %v80 = vsel %vm72, %v79, 0.0
    %81 = vadd.xlane.f32.xlu0 %v80
    %v82 = vpop.xlane.xlu0 %81
    %v83 = vmul.f32 %v82, %v76
    %v84 = vadd.f32 %v83, 1e-05
    %v85 = vrsqrt.pop %v84
    %v86 = vmul.f32 %v84, %v85
    %vm87 = vcmp.eq.f32.partialorder %v84, inf
    %v88 = vsel %vm87, %v84, %v86
    %vm89 = vcmp.eq.f32.partialorder %v84, 0.0
    %v90 = vand.u32 %v84, 2147483648
    %v91 = vsel %vm89, %v90, %v88
    %v92 = vrcp.pop %v91
    %v93 = vmul.f32 %v78, %v92
    %v94 = vlaneseq
    %v95 = vshrl.u32 %v94, 7
    %v96 = vsub.s32 0, %v95
    %v97 = vrot.slane %v52, %v96
    %v98 = vmul.f32 %v93, %v97
    %v99 = vlaneseq
    %v100 = vshrl.u32 %v99, 7
    %v101 = vsub.s32 1, %v100
    %v102 = vrot.slane %v52, %v101
    %v103 = vadd.f32 %v98, %v102
    %v104 = vld [vmem:[%s2] sm:$0x1]
    %v106 = vlaneseq
    %v107 = vshrl.u32 %v106, 7
    %v108 = vsub.s32 0, %v107
    %v109 = vrot.slane %v104, %v108
    %v111 = vmul.f32 %v71, %v109
    %vm112 = vcmask 64512
    %v114 = vsel %vm112, %v68, 0
    %116 = vmatprep.subr.mxu0 0.0
    %117 = vmatpush1.msra.mxu0 0.0
    %118 = vmatprep.subr.mxu0 0.0
    %119 = vmatpush1.msra.mxu0 0.0
    %120 = vmatprep.subr.mxu0 0.0
    %121 = vmatpush1.msra.mxu0 0.0
    %122 = vmatprep.subr.mxu0 0.0
    %123 = vmatpush1.msra.mxu0 0.0
    %124 = vmatprep.subr.mxu0 0.0
    %125 = vmatpush1.msra.mxu0 0.0
    %126 = vmatprep.subr.mxu0 0.0
    %127 = vmatpush1.msra.mxu0 0.0
    %128 = vmatprep.subr.mxu0 0.0
    %129 = vmatpush1.msra.mxu0 0.0
    %130 = vmatprep.subr.mxu0 0.0
    %131 = vmatpush1.msra.mxu0 0.0
    %132 = vmatprep.subr.mxu0 0.0
    %133 = vmatpush1.msra.mxu0 0.0
    %134 = vmatprep.subr.mxu0 0.0
    %135 = vmatpush1.msra.mxu0 0.0
    %136 = vmatprep.subr.mxu0 0.0
    %137 = vmatpush1.msra.mxu0 0.0
    %138 = vmatprep.subr.mxu0 0.0
    %139 = vmatpush1.msra.mxu0 0.0
    %140 = vmatprep.subr.mxu0 0.0
    %141 = vmatpush1.msra.mxu0 0.0
    %142 = vmatprep.subr.mxu0 0.0
    %143 = vmatpush1.msra.mxu0 0.0
    %144 = vmatprep.subr.mxu0 0.0
    %145 = vmatpush1.msra.mxu0 0.0
    %146 = vmatprep.subr.mxu0 0.0
    %147 = vmatpush1.msra.mxu0 %v103
    %148 = vmatprep.subr.mxu0 0.0
    %149 = vmatpush2.msra.mxu0 0.0
    %150 = vmatprep.subr.mxu0 0.0
    %151 = vmatpush2.msra.mxu0 0.0
    %152 = vmatprep.subr.mxu0 0.0
    %153 = vmatpush2.msra.mxu0 0.0
    %154 = vmatprep.subr.mxu0 0.0
    %155 = vmatpush2.msra.mxu0 0.0
    %156 = vmatprep.subr.mxu0 0.0
    %157 = vmatpush2.msra.mxu0 0.0
    %158 = vmatprep.subr.mxu0 0.0
    %159 = vmatpush2.msra.mxu0 0.0
    %160 = vmatprep.subr.mxu0 0.0
    %161 = vmatpush2.msra.mxu0 0.0
    %162 = vmatprep.subr.mxu0 0.0
    %163 = vmatpush2.msra.mxu0 0.0
    %164 = vmatprep.subr.mxu0 0.0
    %165 = vmatpush2.msra.mxu0 0.0
    %166 = vmatprep.subr.mxu0 0.0
    %167 = vmatpush2.msra.mxu0 0.0
    %168 = vmatprep.subr.mxu0 0.0
    %169 = vmatpush2.msra.mxu0 0.0
    %170 = vmatprep.subr.mxu0 0.0
    %171 = vmatpush2.msra.mxu0 0.0
    %172 = vmatprep.subr.mxu0 0.0
    %173 = vmatpush2.msra.mxu0 0.0
    %174 = vmatprep.subr.mxu0 0.0
    %175 = vmatpush2.msra.mxu0 0.0
    %176 = vmatprep.subr.mxu0 0.0
    %177 = vmatpush2.msra.mxu0 0.0
    %178 = vmatprep.subr.mxu0 0.0
    %179 = vmatpush2.msra.mxu0 0.0
    %180 = vmatprep.mubr.f32.mxu0 0.0
    %181 = vmatmul.mubr.f32.gmra.mxu0 %v114
    %v182 = vpop.f32.mrf.mxu0
    %v183 = vadd.f32 %v111, %v182
    %v184 = vpop.f32.mrf.mxu0
    %185 = vdwg.mxu0
    %v186 = vsub.f32 %v183, %v103
    %v187 = vlaneseq
    %v188 = vshrl.u32 %v187, 7
    %v189 = vsub.s32 5, %v188
    %v190 = vrot.slane %v53, %v189
    %v191 = vmul.f32 %v186, %v190
    %v192 = vadd.f32 %v103, %v191
    %v193 = vlaneseq
    %v194 = vshrl.u32 %v193, 7
    %v195 = vsub.s32 6, %v194
    %v196 = vrot.slane %v53, %v195
    %v197 = vmul.f32 %v186, %v196
    %v198 = vadd.f32 %v103, %v197
    %v199 = vlaneseq
    %v200 = vshrl.u32 %v199, 7
    %v201 = vsub.s32 7, %v200
    %v202 = vrot.slane %v53, %v201
    %v203 = vmul.f32 %v186, %v202
    %v204 = vadd.f32 %v103, %v203
    %v205 = vlaneseq
    %v206 = vshrl.u32 %v205, 7
    %v207 = vsub.s32 0, %v206
    %v208 = vrot.slane %v54, %v207
    %v209 = vmul.f32 %v186, %v208
    %v210 = vadd.f32 %v103, %v209
    %v211 = vlaneseq
    %v212 = vshrl.u32 %v211, 7
    %v213 = vsub.s32 1, %v212
    %v214 = vrot.slane %v54, %v213
    %v215 = vmul.f32 %v186, %v214
    %v216 = vadd.f32 %v103, %v215
    %v217 = vlaneseq
    %v218 = vshrl.u32 %v217, 7
    %v219 = vsub.s32 2, %v218
    %v220 = vrot.slane %v54, %v219
    %v221 = vmul.f32 %v186, %v220
    %v222 = vadd.f32 %v103, %v221
    %v223 = vld [vmem:[%s6] sm:$0xff]
    %v224 = vld [vmem:[%s6 + $0x8] sm:$0xff]
    %v225 = vld [vmem:[%s6 + $0x10] sm:$0xff]
    %v226 = vld [vmem:[%s6 + $0x18] sm:$0xff]
    %v227 = vld [vmem:[%s6 + $0x20] sm:$0xff]
    %v228 = vld [vmem:[%s6 + $0x28] sm:$0xff]
    %v229 = vld [vmem:[%s6 + $0x30] sm:$0xff]
    %v230 = vld [vmem:[%s6 + $0x38] sm:$0xff]
    %v232 = vsel %vm72, %v192, 0
    %v235 = vsel %vm72, %v198, 0
    %v238 = vsel %vm72, %v204, 0
    %v241 = vsel %vm72, %v210, 0
    %v244 = vsel %vm72, %v216, 0
    %v247 = vsel %vm72, %v222, 0
    %249 = vmatprep.subr.mxu0 0.0
    %250 = vmatpush1.msra.mxu0 0.0
    %251 = vmatprep.subr.mxu0 0.0
    %252 = vmatpush1.msra.mxu0 0.0
    %253 = vmatprep.subr.mxu0 0.0
    %254 = vmatpush1.msra.mxu0 0.0
    %255 = vmatprep.subr.mxu0 0.0
    %256 = vmatpush1.msra.mxu0 0.0
    %257 = vmatprep.subr.mxu0 0.0
    %258 = vmatpush1.msra.mxu0 0.0
    %259 = vmatprep.subr.mxu0 0.0
    %260 = vmatpush1.msra.mxu0 0.0
    %261 = vmatprep.subr.mxu0 0.0
    %262 = vmatpush1.msra.mxu0 0.0
    %263 = vmatprep.subr.mxu0 0.0
    %264 = vmatpush1.msra.mxu0 0.0
    %265 = vmatprep.subr.mxu0 0.0
    %266 = vmatpush1.msra.mxu0 0.0
    %267 = vmatprep.subr.mxu0 0.0
    %268 = vmatpush1.msra.mxu0 0.0
    %269 = vmatprep.subr.mxu0 0.0
    %270 = vmatpush1.msra.mxu0 0.0
    %271 = vmatprep.subr.mxu0 0.0
    %272 = vmatpush1.msra.mxu0 0.0
    %273 = vmatprep.subr.mxu0 %v230
    %274 = vmatpush1.msra.mxu0 %v229
    %275 = vmatprep.subr.mxu0 %v228
    %276 = vmatpush1.msra.mxu0 %v227
    %277 = vmatprep.subr.mxu0 %v226
    %278 = vmatpush1.msra.mxu0 %v225
    %279 = vmatprep.subr.mxu0 %v224
    %280 = vmatpush1.msra.mxu0 %v223
    %281 = vmatprep.subr.mxu0 0.0
    %282 = vmatpush2.msra.mxu0 0.0
    %283 = vmatprep.subr.mxu0 0.0
    %284 = vmatpush2.msra.mxu0 0.0
    %285 = vmatprep.subr.mxu0 0.0
    %286 = vmatpush2.msra.mxu0 0.0
    %287 = vmatprep.subr.mxu0 0.0
    %288 = vmatpush2.msra.mxu0 0.0
    %289 = vmatprep.subr.mxu0 0.0
    %290 = vmatpush2.msra.mxu0 0.0
    %291 = vmatprep.subr.mxu0 0.0
    %292 = vmatpush2.msra.mxu0 0.0
    %293 = vmatprep.subr.mxu0 0.0
    %294 = vmatpush2.msra.mxu0 0.0
    %295 = vmatprep.subr.mxu0 0.0
    %296 = vmatpush2.msra.mxu0 0.0
    %297 = vmatprep.subr.mxu0 0.0
    %298 = vmatpush2.msra.mxu0 0.0
    %299 = vmatprep.subr.mxu0 0.0
    %300 = vmatpush2.msra.mxu0 0.0
    %301 = vmatprep.subr.mxu0 0.0
    %302 = vmatpush2.msra.mxu0 0.0
    %303 = vmatprep.subr.mxu0 0.0
    %304 = vmatpush2.msra.mxu0 0.0
    %305 = vmatprep.subr.mxu0 0.0
    %306 = vmatpush2.msra.mxu0 0.0
    %307 = vmatprep.subr.mxu0 0.0
    %308 = vmatpush2.msra.mxu0 0.0
    %309 = vmatprep.subr.mxu0 0.0
    %310 = vmatpush2.msra.mxu0 0.0
    %311 = vmatprep.subr.mxu0 0.0
    %312 = vmatpush2.msra.mxu0 0.0
    %313 = vmatprep.mubr.f32.mxu0 0.0
    %314 = vmatmul.mubr.f32.gmra.mxu0 %v232
    %v315 = vpop.f32.mrf.mxu0
    %v316 = vadd.f32 0.0, %v315
    %v317 = vpop.f32.mrf.mxu0
    %318 = vmatprep.mubr.f32.mxu0 0.0
    %319 = vmatmul.mubr.f32.gmra.mxu0 %v235
    %v320 = vpop.f32.mrf.mxu0
    %v321 = vadd.f32 0.0, %v320
    %v322 = vpop.f32.mrf.mxu0
    %323 = vmatprep.mubr.f32.mxu0 0.0
    %324 = vmatmul.mubr.f32.gmra.mxu0 %v238
    %v325 = vpop.f32.mrf.mxu0
    %v326 = vadd.f32 0.0, %v325
    %v327 = vpop.f32.mrf.mxu0
    %328 = vmatprep.mubr.f32.mxu0 0.0
    %329 = vmatmul.mubr.f32.gmra.mxu0 %v241
    %v330 = vpop.f32.mrf.mxu0
    %v331 = vadd.f32 0.0, %v330
    %v332 = vpop.f32.mrf.mxu0
    %v333 = vadd.f32 0.0, %v332
    %334 = vmatprep.mubr.f32.mxu0 0.0
    %335 = vmatmul.mubr.f32.gmra.mxu0 %v244
    %v336 = vpop.f32.mrf.mxu0
    %v337 = vadd.f32 0.0, %v336
    %v338 = vpop.f32.mrf.mxu0
    %339 = vmatprep.mubr.f32.mxu0 0.0
    %340 = vmatmul.mubr.f32.gmra.mxu0 %v247
    %v341 = vpop.f32.mrf.mxu0
    %v342 = vpop.f32.mrf.mxu0
    %v343 = vadd.f32 0.0, %v342
    %344 = vdwg.mxu0
    %v345 = vtanh.pop %v321
    %v346 = vxor.u32 %v343, 2147483648
    %v347 = vmul.f32 %v346, 1.442695
    %v348 = vpow.pop %v347
    %v349 = vadd.f32 %v348, 1.0
    %v350 = vrcp.pop %v349
    %v351 = vmul.f32 1.0, %v350
    %353 = vrot.lane.b32.xlu0 %v337, 112
    %v354 = vpop.permute.xlu0 %353
    %356 = vrot.lane.b32.xlu0 %v351, 96
    %v357 = vpop.permute.xlu0 %356
    %359 = vrot.lane.b32.xlu0 %v333, 80
    %v360 = vpop.permute.xlu0 %359
    %v361 = vld [vmem:[%s7] sm:$0xff]
    %v362 = vld [vmem:[%s7 + $0x8] sm:$0xff]
    %364 = vrot.lane.b32.xlu0 %v345, 32
    %v365 = vpop.permute.xlu0 %364
    %366 = vrot.lane.b32.xlu0 %v354, 32
    %v367 = vpop.permute.xlu0 %366
    %368 = vrot.lane.b32.xlu0 %v357, 32
    %v369 = vpop.permute.xlu0 %368
    %370 = vrot.lane.b32.xlu0 %v360, 32
    %v371 = vpop.permute.xlu0 %370
    %vm372 = vcmask 130048
    %v373 = vsel %vm372, %v365, 0
    %v375 = vsel %vm372, %v367, 0
    %v377 = vsel %vm372, %v369, 0
    %v379 = vsel %vm372, %v371, 0
    %381 = vmatprep.subr.mxu0 0.0
    %382 = vmatpush1.msra.mxu0 0.0
    %383 = vmatprep.subr.mxu0 0.0
    %384 = vmatpush1.msra.mxu0 0.0
    %385 = vmatprep.subr.mxu0 0.0
    %386 = vmatpush1.msra.mxu0 0.0
    %387 = vmatprep.subr.mxu0 0.0
    %388 = vmatpush1.msra.mxu0 0.0
    %389 = vmatprep.subr.mxu0 0.0
    %390 = vmatpush1.msra.mxu0 0.0
    %391 = vmatprep.subr.mxu0 0.0
    %392 = vmatpush1.msra.mxu0 0.0
    %393 = vmatprep.subr.mxu0 0.0
    %394 = vmatpush1.msra.mxu0 0.0
    %395 = vmatprep.subr.mxu0 0.0
    %396 = vmatpush1.msra.mxu0 0.0
    %397 = vmatprep.subr.mxu0 0.0
    %398 = vmatpush1.msra.mxu0 0.0
    %399 = vmatprep.subr.mxu0 0.0
    %400 = vmatpush1.msra.mxu0 0.0
    %401 = vmatprep.subr.mxu0 0.0
    %402 = vmatpush1.msra.mxu0 0.0
    %403 = vmatprep.subr.mxu0 0.0
    %404 = vmatpush1.msra.mxu0 0.0
    %405 = vmatprep.subr.mxu0 0.0
    %406 = vmatpush1.msra.mxu0 0.0
    %407 = vmatprep.subr.mxu0 0.0
    %408 = vmatpush1.msra.mxu0 0.0
    %409 = vmatprep.subr.mxu0 0.0
    %410 = vmatpush1.msra.mxu0 %v362
    %411 = vmatprep.subr.mxu0 0.0
    %412 = vmatpush1.msra.mxu0 %v361
    %413 = vmatprep.subr.mxu0 0.0
    %414 = vmatpush2.msra.mxu0 0.0
    %415 = vmatprep.subr.mxu0 0.0
    %416 = vmatpush2.msra.mxu0 0.0
    %417 = vmatprep.subr.mxu0 0.0
    %418 = vmatpush2.msra.mxu0 0.0
    %419 = vmatprep.subr.mxu0 0.0
    %420 = vmatpush2.msra.mxu0 0.0
    %421 = vmatprep.subr.mxu0 0.0
    %422 = vmatpush2.msra.mxu0 0.0
    %423 = vmatprep.subr.mxu0 0.0
    %424 = vmatpush2.msra.mxu0 0.0
    %425 = vmatprep.subr.mxu0 0.0
    %426 = vmatpush2.msra.mxu0 0.0
    %427 = vmatprep.subr.mxu0 0.0
    %428 = vmatpush2.msra.mxu0 0.0
    %429 = vmatprep.subr.mxu0 0.0
    %430 = vmatpush2.msra.mxu0 0.0
    %431 = vmatprep.subr.mxu0 0.0
    %432 = vmatpush2.msra.mxu0 0.0
    %433 = vmatprep.subr.mxu0 0.0
    %434 = vmatpush2.msra.mxu0 0.0
    %435 = vmatprep.subr.mxu0 0.0
    %436 = vmatpush2.msra.mxu0 0.0
    %437 = vmatprep.subr.mxu0 0.0
    %438 = vmatpush2.msra.mxu0 0.0
    %439 = vmatprep.subr.mxu0 0.0
    %440 = vmatpush2.msra.mxu0 0.0
    %441 = vmatprep.subr.mxu0 0.0
    %442 = vmatpush2.msra.mxu0 0.0
    %443 = vmatprep.subr.mxu0 0.0
    %444 = vmatpush2.msra.mxu0 0.0
    %445 = vmatprep.mubr.f32.mxu0 0.0
    %446 = vmatmul.mubr.f32.gmra.mxu0 %v373
    %v447 = vpop.f32.mrf.mxu0
    %v448 = vadd.f32 0.0, %v447
    %v449 = vpop.f32.mrf.mxu0
    %450 = vmatprep.mubr.f32.mxu0 0.0
    %451 = vmatmul.mubr.f32.gmra.mxu0 %v375
    %v452 = vpop.f32.mrf.mxu0
    %v453 = vadd.f32 0.0, %v452
    %v454 = vpop.f32.mrf.mxu0
    %455 = vmatprep.mubr.f32.mxu0 0.0
    %456 = vmatmul.mubr.f32.gmra.mxu0 %v377
    %v457 = vpop.f32.mrf.mxu0
    %v458 = vadd.f32 0.0, %v457
    %v459 = vpop.f32.mrf.mxu0
    %460 = vmatprep.mubr.f32.mxu0 0.0
    %461 = vmatmul.mubr.f32.gmra.mxu0 %v379
    %v462 = vpop.f32.mrf.mxu0
    %v463 = vadd.f32 0.0, %v462
    %v464 = vpop.f32.mrf.mxu0
    %465 = vdwg.mxu0
    %v466 = vlaneseq
    %v467 = vshrl.u32 %v466, 7
    %v468 = vsub.s32 4, %v467
    %v469 = vrot.slane %v52, %v468
    %v470 = vadd.f32 %v469, %v448
    %v471 = vxor.u32 %v470, 2147483648
    %v472 = vmul.f32 %v471, 1.442695
    %v473 = vpow.pop %v472
    %v474 = vadd.f32 %v473, 1.0
    %v475 = vrcp.pop %v474
    %v476 = vmul.f32 1.0, %v475
    %v477 = vmul.f32 %v476, -0.606531
    %v478 = vmul.f32 %v477, 1.442695
    %v479 = vpow.pop %v478
    %v480 = vlaneseq
    %v481 = vshrl.u32 %v480, 7
    %v482 = vsub.s32 5, %v481
    %v483 = vrot.slane %v52, %v482
    %485 = vrot.lane.b32.xlu0 %v453, 96
    %v486 = vpop.permute.xlu0 %485
    %v488 = vadd.f32 %v483, %v486
    %v489 = vxor.u32 %v488, 2147483648
    %v490 = vmul.f32 %v489, 1.442695
    %v491 = vpow.pop %v490
    %v492 = vadd.f32 %v491, 1.0
    %v493 = vrcp.pop %v492
    %v494 = vmul.f32 1.0, %v493
    %v495 = vlaneseq
    %v496 = vshrl.u32 %v495, 7
    %v497 = vsub.s32 7, %v496
    %v498 = vrot.slane %v52, %v497
    %500 = vrot.lane.b32.xlu0 %v498, 32
    %v501 = vpop.permute.xlu0 %500
    %v503 = vmul.f32 %v326, %v501
    %v504 = vmul.f32 %v503, %v503
    %506 = vrot.lane.b32.xlu0 %v504, 96
    %v507 = vpop.permute.xlu0 %506
    %v508 = vsel %vm72, %v507, 0
    %510 = vmatprep.subr.mxu0 0.0
    %511 = vmatpush1.msra.mxu0 0.0
    %512 = vmatprep.subr.mxu0 0.0
    %513 = vmatpush1.msra.mxu0 0.0
    %514 = vmatprep.subr.mxu0 0.0
    %515 = vmatpush1.msra.mxu0 0.0
    %516 = vmatprep.subr.mxu0 0.0
    %517 = vmatpush1.msra.mxu0 0.0
    %518 = vmatprep.subr.mxu0 0.0
    %519 = vmatpush1.msra.mxu0 0.0
    %520 = vmatprep.subr.mxu0 0.0
    %521 = vmatpush1.msra.mxu0 0.0
    %522 = vmatprep.subr.mxu0 0.0
    %523 = vmatpush1.msra.mxu0 0.0
    %524 = vmatprep.subr.mxu0 0.0
    %525 = vmatpush1.msra.mxu0 0.0
    %526 = vmatprep.subr.mxu0 0.0
    %527 = vmatpush1.msra.mxu0 0.0
    %528 = vmatprep.subr.mxu0 0.0
    %529 = vmatpush1.msra.mxu0 0.0
    %530 = vmatprep.subr.mxu0 0.0
    %531 = vmatpush1.msra.mxu0 0.0
    %532 = vmatprep.subr.mxu0 0.0
    %533 = vmatpush1.msra.mxu0 0.0
    %534 = vmatprep.subr.mxu0 0.0
    %535 = vmatpush1.msra.mxu0 %v58
    %536 = vmatprep.subr.mxu0 0.0
    %537 = vmatpush1.msra.mxu0 %v57
    %538 = vmatprep.subr.mxu0 0.0
    %539 = vmatpush1.msra.mxu0 %v56
    %540 = vmatprep.subr.mxu0 0.0
    %541 = vmatpush1.msra.mxu0 %v55
    %542 = vmatprep.subr.mxu0 0.0
    %543 = vmatpush2.msra.mxu0 0.0
    %544 = vmatprep.subr.mxu0 0.0
    %545 = vmatpush2.msra.mxu0 0.0
    %546 = vmatprep.subr.mxu0 0.0
    %547 = vmatpush2.msra.mxu0 0.0
    %548 = vmatprep.subr.mxu0 0.0
    %549 = vmatpush2.msra.mxu0 0.0
    %550 = vmatprep.subr.mxu0 0.0
    %551 = vmatpush2.msra.mxu0 0.0
    %552 = vmatprep.subr.mxu0 0.0
    %553 = vmatpush2.msra.mxu0 0.0
    %554 = vmatprep.subr.mxu0 0.0
    %555 = vmatpush2.msra.mxu0 0.0
    %556 = vmatprep.subr.mxu0 0.0
    %557 = vmatpush2.msra.mxu0 0.0
    %558 = vmatprep.subr.mxu0 0.0
    %559 = vmatpush2.msra.mxu0 0.0
    %560 = vmatprep.subr.mxu0 0.0
    %561 = vmatpush2.msra.mxu0 0.0
    %562 = vmatprep.subr.mxu0 0.0
    %563 = vmatpush2.msra.mxu0 0.0
    %564 = vmatprep.subr.mxu0 0.0
    %565 = vmatpush2.msra.mxu0 0.0
    %566 = vmatprep.subr.mxu0 0.0
    %567 = vmatpush2.msra.mxu0 0.0
    %568 = vmatprep.subr.mxu0 0.0
    %569 = vmatpush2.msra.mxu0 0.0
    %570 = vmatprep.subr.mxu0 0.0
    %571 = vmatpush2.msra.mxu0 0.0
    %572 = vmatprep.subr.mxu0 0.0
    %573 = vmatpush2.msra.mxu0 0.0
    %574 = vmatprep.mubr.f32.mxu0 0.0
    %575 = vmatmul.mubr.f32.gmra.mxu0 %v508
    %v576 = vpop.f32.mrf.mxu0
    %v577 = vadd.f32 0.0, %v576
    %v578 = vpop.f32.mrf.mxu0
    %579 = vdwg.mxu0
    %v580 = vrsqrt.pop %v577
    %v581 = vmul.f32 %v577, %v580
    %vm582 = vcmp.eq.f32.partialorder %v577, inf
    %v583 = vsel %vm582, %v577, %v581
    %vm584 = vcmp.eq.f32.partialorder %v577, 0.0
    %v585 = vand.u32 %v577, 2147483648
    %v586 = vsel %vm584, %v585, %v583
    %v587 = vmax.f32 %v586, 1e-12
    %589 = vrot.lane.b32.xlu0 %v587, 32
    %v590 = vpop.permute.xlu0 %589
    %v592 = vrcp.pop %v590
    %v593 = vmul.f32 %v503, %v592
    %v594 = vsub.f32 %v494, 1.0
    %v595 = vlaneseq
    %v596 = vshrl.u32 %v595, 7
    %v597 = vsub.s32 0, %v596
    %v598 = vrot.slane %v53, %v597
    %v599 = vmul.f32 %v594, %v598
    %v600 = vadd.f32 %v599, 1.0
    %602 = vrot.lane.b32.xlu0 %v600, 32
    %v603 = vpop.permute.xlu0 %602
    %v605 = vmul.f32 %v326, %v603
    %v606 = vld [vmem:[%s1] sm:$0xff]
    %608 = vrot.lane.b32.xlu0 %v331, 64
    %v609 = vpop.permute.xlu0 %608
    %v611 = vsub.f32 %v606, %v609
    %v612 = vlaneseq
    %v613 = vshrl.u32 %v612, 7
    %v614 = vsub.s32 6, %v613
    %v615 = vrot.slane %v52, %v614
    %617 = vrot.lane.b32.xlu0 %v463, 32
    %v618 = vpop.permute.xlu0 %617
    %v620 = vadd.f32 %v615, %v618
    %v621 = vxor.u32 %v620, 2147483648
    %v622 = vmul.f32 %v621, 1.442695
    %v623 = vpow.pop %v622
    %v624 = vadd.f32 %v623, 1.0
    %v625 = vrcp.pop %v624
    %v626 = vmul.f32 1.0, %v625
    %v627 = vmul.f32 %v611, %v626
    %629 = vrot.lane.b32.xlu0 %v627, 64
    %v630 = vpop.permute.xlu0 %629
    %v632 = vadd.f32 %v331, %v630
    %633 = vst.msk [vmem:[#allocation2] sm:$0xff] %vm72, %v606
    %v634 = vsub.f32 0.0, %v593
    %636 = vrot.lane.b32.xlu0 %v494, 32
    %v637 = vpop.permute.xlu0 %636
    %v639 = vmul.f32 %v593, %v637
    %v641 = vcombine.high %v632, %v632
    %v643 = vunpack.c.l.s4 1966171168
    %v644 = vunpack.c.0.s8 %v643
    %v645 = vlaneseq
    %v646 = vshrl.u32 %v645, 7
    %v647 = vsub.s32 %v644, %v646
    %v648 = vrot.slane %v632, %v647
    %v650 = vunpack.c.l.s4 1966171168
    %v651 = vunpack.c.0.s8 %v650
    %v652 = vlaneseq
    %v653 = vshrl.u32 %v652, 7
    %v654 = vsub.s32 %v651, %v653
    %v655 = vrot.slane %v641, %v654
    %v656 = vcombine.high %v648, %v648
    %v657 = vcombine.high %v655, %v655
    %v659 = vunpack.c.l.s4 1966171168
    %v660 = vunpack.c.0.s8 %v659
    %v661 = vlaneseq
    %v662 = vshrl.u32 %v661, 7
    %v663 = vsub.s32 %v660, %v662
    %v664 = vrot.slane %v648, %v663
    %v666 = vunpack.c.l.s4 1966171168
    %v667 = vunpack.c.0.s8 %v666
    %v668 = vlaneseq
    %v669 = vshrl.u32 %v668, 7
    %v670 = vsub.s32 %v667, %v669
    %v671 = vrot.slane %v655, %v670
    %v673 = vunpack.c.l.s4 1966171168
    %v674 = vunpack.c.0.s8 %v673
    %v675 = vlaneseq
    %v676 = vshrl.u32 %v675, 7
    %v677 = vsub.s32 %v674, %v676
    %v678 = vrot.slane %v656, %v677
    %v680 = vunpack.c.l.s4 1966171168
    %v681 = vunpack.c.0.s8 %v680
    %v682 = vlaneseq
    %v683 = vshrl.u32 %v682, 7
    %v684 = vsub.s32 %v681, %v683
    %v685 = vrot.slane %v657, %v684
    %v686 = vcombine.high %v664, %v664
    %v687 = vcombine.high %v671, %v671
    %v688 = vcombine.high %v678, %v678
    %v689 = vcombine.high %v685, %v685
    %v690 = vlaneseq
    %v691 = vshrl.u32 %v690, 7
    %v692 = vsub.s32 0, %v691
    %v693 = vrot.slane %v664, %v692
    %v694 = vlaneseq
    %v695 = vshrl.u32 %v694, 7
    %v696 = vsub.s32 0, %v695
    %v697 = vrot.slane %v678, %v696
    %v698 = vlaneseq
    %v699 = vshrl.u32 %v698, 7
    %v700 = vsub.s32 0, %v699
    %v701 = vrot.slane %v686, %v700
    %v702 = vlaneseq
    %v703 = vshrl.u32 %v702, 7
    %v704 = vsub.s32 0, %v703
    %v705 = vrot.slane %v688, %v704
    %v706 = vlaneseq
    %v707 = vshrl.u32 %v706, 7
    %v708 = vsub.s32 0, %v707
    %v709 = vrot.slane %v671, %v708
    %v710 = vlaneseq
    %v711 = vshrl.u32 %v710, 7
    %v712 = vsub.s32 0, %v711
    %v713 = vrot.slane %v685, %v712
    %v714 = vlaneseq
    %v715 = vshrl.u32 %v714, 7
    %v716 = vsub.s32 0, %v715
    %v717 = vrot.slane %v687, %v716
    %v718 = vlaneseq
    %v719 = vshrl.u32 %v718, 7
    %v720 = vsub.s32 0, %v719
    %v721 = vrot.slane %v689, %v720
    %722 = vrot.lane.b32.xlu0 %v693, 64
    %v723 = vpop.permute.xlu0 %722
    %724 = vrot.lane.b32.xlu0 %v697, 64
    %v725 = vpop.permute.xlu0 %724
    %726 = vrot.lane.b32.xlu0 %v701, 64
    %v727 = vpop.permute.xlu0 %726
    %728 = vrot.lane.b32.xlu0 %v705, 64
    %v729 = vpop.permute.xlu0 %728
    %730 = vrot.lane.b32.xlu0 %v709, 64
    %v731 = vpop.permute.xlu0 %730
    %732 = vrot.lane.b32.xlu0 %v713, 64
    %v733 = vpop.permute.xlu0 %732
    %734 = vrot.lane.b32.xlu0 %v717, 64
    %v735 = vpop.permute.xlu0 %734
    %736 = vrot.lane.b32.xlu0 %v721, 64
    %v737 = vpop.permute.xlu0 %736
    %v746 = vmul.f32 %v59, %v723
    %v747 = vmul.f32 %v60, %v723
    %v748 = vmul.f32 %v59, %v725
    %v749 = vmul.f32 %v60, %v725
    %v750 = vmul.f32 %v59, %v727
    %v751 = vmul.f32 %v60, %v727
    %v752 = vmul.f32 %v59, %v729
    %v753 = vmul.f32 %v60, %v729
    %v754 = vmul.f32 %v59, %v731
    %v755 = vmul.f32 %v60, %v731
    %v756 = vmul.f32 %v59, %v733
    %v757 = vmul.f32 %v60, %v733
    %v758 = vmul.f32 %v59, %v735
    %v759 = vmul.f32 %v60, %v735
    %v760 = vmul.f32 %v59, %v737
    %v761 = vmul.f32 %v60, %v737
    %v763 = vsel %vm72, %v746, 0
    %v766 = vsel %vm72, %v747, 0
    %v769 = vsel %vm72, %v748, 0
    %v772 = vsel %vm72, %v749, 0
    %v775 = vsel %vm72, %v750, 0
    %v778 = vsel %vm72, %v751, 0
    %v781 = vsel %vm72, %v752, 0
    %v784 = vsel %vm72, %v753, 0
    %v787 = vsel %vm72, %v754, 0
    %v790 = vsel %vm72, %v755, 0
    %v793 = vsel %vm72, %v756, 0
    %v796 = vsel %vm72, %v757, 0
    %v799 = vsel %vm72, %v758, 0
    %v802 = vsel %vm72, %v759, 0
    %v805 = vsel %vm72, %v760, 0
    %v808 = vsel %vm72, %v761, 0
    %810 = vmatprep.subr.mxu0 0.0
    %811 = vmatpush1.msra.mxu0 0.0
    %812 = vmatprep.subr.mxu0 0.0
    %813 = vmatpush1.msra.mxu0 0.0
    %814 = vmatprep.subr.mxu0 0.0
    %815 = vmatpush1.msra.mxu0 0.0
    %816 = vmatprep.subr.mxu0 0.0
    %817 = vmatpush1.msra.mxu0 0.0
    %818 = vmatprep.subr.mxu0 0.0
    %819 = vmatpush1.msra.mxu0 0.0
    %820 = vmatprep.subr.mxu0 0.0
    %821 = vmatpush1.msra.mxu0 0.0
    %822 = vmatprep.subr.mxu0 0.0
    %823 = vmatpush1.msra.mxu0 0.0
    %824 = vmatprep.subr.mxu0 0.0
    %825 = vmatpush1.msra.mxu0 0.0
    %826 = vmatprep.subr.mxu0 0.0
    %827 = vmatpush1.msra.mxu0 0.0
    %828 = vmatprep.subr.mxu0 0.0
    %829 = vmatpush1.msra.mxu0 0.0
    %830 = vmatprep.subr.mxu0 0.0
    %831 = vmatpush1.msra.mxu0 0.0
    %832 = vmatprep.subr.mxu0 0.0
    %833 = vmatpush1.msra.mxu0 0.0
    %834 = vmatprep.subr.mxu0 0.0
    %835 = vmatpush1.msra.mxu0 %v58
    %836 = vmatprep.subr.mxu0 0.0
    %837 = vmatpush1.msra.mxu0 %v57
    %838 = vmatprep.subr.mxu0 0.0
    %839 = vmatpush1.msra.mxu0 %v56
    %840 = vmatprep.subr.mxu0 0.0
    %841 = vmatpush1.msra.mxu0 %v55
    %842 = vmatprep.subr.mxu0 0.0
    %843 = vmatpush2.msra.mxu0 0.0
    %844 = vmatprep.subr.mxu0 0.0
    %845 = vmatpush2.msra.mxu0 0.0
    %846 = vmatprep.subr.mxu0 0.0
    %847 = vmatpush2.msra.mxu0 0.0
    %848 = vmatprep.subr.mxu0 0.0
    %849 = vmatpush2.msra.mxu0 0.0
    %850 = vmatprep.subr.mxu0 0.0
    %851 = vmatpush2.msra.mxu0 0.0
    %852 = vmatprep.subr.mxu0 0.0
    %853 = vmatpush2.msra.mxu0 0.0
    %854 = vmatprep.subr.mxu0 0.0
    %855 = vmatpush2.msra.mxu0 0.0
    %856 = vmatprep.subr.mxu0 0.0
    %857 = vmatpush2.msra.mxu0 0.0
    %858 = vmatprep.subr.mxu0 0.0
    %859 = vmatpush2.msra.mxu0 0.0
    %860 = vmatprep.subr.mxu0 0.0
    %861 = vmatpush2.msra.mxu0 0.0
    %862 = vmatprep.subr.mxu0 0.0
    %863 = vmatpush2.msra.mxu0 0.0
    %864 = vmatprep.subr.mxu0 0.0
    %865 = vmatpush2.msra.mxu0 0.0
    %866 = vmatprep.subr.mxu0 0.0
    %867 = vmatpush2.msra.mxu0 0.0
    %868 = vmatprep.subr.mxu0 0.0
    %869 = vmatpush2.msra.mxu0 0.0
    %870 = vmatprep.subr.mxu0 0.0
    %871 = vmatpush2.msra.mxu0 0.0
    %872 = vmatprep.subr.mxu0 0.0
    %873 = vmatpush2.msra.mxu0 0.0
    %874 = vmatprep.mubr.f32.mxu0 0.0
    %875 = vmatmul.mubr.f32.gmra.mxu0 %v763
    %v876 = vpop.f32.mrf.mxu0
    %v877 = vadd.f32 0.0, %v876
    %v878 = vpop.f32.mrf.mxu0
    %879 = vmatprep.mubr.f32.mxu0 0.0
    %880 = vmatmul.mubr.f32.gmra.mxu0 %v766
    %v881 = vpop.f32.mrf.mxu0
    %v882 = vadd.f32 0.0, %v881
    %v883 = vpop.f32.mrf.mxu0
    %884 = vmatprep.mubr.f32.mxu0 0.0
    %885 = vmatmul.mubr.f32.gmra.mxu0 %v769
    %v886 = vpop.f32.mrf.mxu0
    %v887 = vadd.f32 0.0, %v886
    %v888 = vpop.f32.mrf.mxu0
    %889 = vmatprep.mubr.f32.mxu0 0.0
    %890 = vmatmul.mubr.f32.gmra.mxu0 %v772
    %v891 = vpop.f32.mrf.mxu0
    %v892 = vadd.f32 0.0, %v891
    %v893 = vpop.f32.mrf.mxu0
    %894 = vmatprep.mubr.f32.mxu0 0.0
    %895 = vmatmul.mubr.f32.gmra.mxu0 %v775
    %v896 = vpop.f32.mrf.mxu0
    %v897 = vadd.f32 0.0, %v896
    %v898 = vpop.f32.mrf.mxu0
    %899 = vmatprep.mubr.f32.mxu0 0.0
    %900 = vmatmul.mubr.f32.gmra.mxu0 %v778
    %v901 = vpop.f32.mrf.mxu0
    %v902 = vadd.f32 0.0, %v901
    %v903 = vpop.f32.mrf.mxu0
    %904 = vmatprep.mubr.f32.mxu0 0.0
    %905 = vmatmul.mubr.f32.gmra.mxu0 %v781
    %v906 = vpop.f32.mrf.mxu0
    %v907 = vadd.f32 0.0, %v906
    %v908 = vpop.f32.mrf.mxu0
    %909 = vmatprep.mubr.f32.mxu0 0.0
    %910 = vmatmul.mubr.f32.gmra.mxu0 %v784
    %v911 = vpop.f32.mrf.mxu0
    %v912 = vadd.f32 0.0, %v911
    %v913 = vpop.f32.mrf.mxu0
    %914 = vmatprep.mubr.f32.mxu0 0.0
    %915 = vmatmul.mubr.f32.gmra.mxu0 %v787
    %v916 = vpop.f32.mrf.mxu0
    %v917 = vadd.f32 0.0, %v916
    %v918 = vpop.f32.mrf.mxu0
    %919 = vmatprep.mubr.f32.mxu0 0.0
    %920 = vmatmul.mubr.f32.gmra.mxu0 %v790
    %v921 = vpop.f32.mrf.mxu0
    %v922 = vadd.f32 0.0, %v921
    %v923 = vpop.f32.mrf.mxu0
    %924 = vmatprep.mubr.f32.mxu0 0.0
    %925 = vmatmul.mubr.f32.gmra.mxu0 %v793
    %v926 = vpop.f32.mrf.mxu0
    %v927 = vadd.f32 0.0, %v926
    %v928 = vpop.f32.mrf.mxu0
    %929 = vmatprep.mubr.f32.mxu0 0.0
    %930 = vmatmul.mubr.f32.gmra.mxu0 %v796
    %v931 = vpop.f32.mrf.mxu0
    %v932 = vadd.f32 0.0, %v931
    %v933 = vpop.f32.mrf.mxu0
    %934 = vmatprep.mubr.f32.mxu0 0.0
    %935 = vmatmul.mubr.f32.gmra.mxu0 %v799
    %v936 = vpop.f32.mrf.mxu0
    %v937 = vadd.f32 0.0, %v936
    %v938 = vpop.f32.mrf.mxu0
    %939 = vmatprep.mubr.f32.mxu0 0.0
    %940 = vmatmul.mubr.f32.gmra.mxu0 %v802
    %v941 = vpop.f32.mrf.mxu0
    %v942 = vadd.f32 0.0, %v941
    %v943 = vpop.f32.mrf.mxu0
    %944 = vmatprep.mubr.f32.mxu0 0.0
    %945 = vmatmul.mubr.f32.gmra.mxu0 %v805
    %v946 = vpop.f32.mrf.mxu0
    %v947 = vadd.f32 0.0, %v946
    %v948 = vpop.f32.mrf.mxu0
    %949 = vmatprep.mubr.f32.mxu0 0.0
    %950 = vmatmul.mubr.f32.gmra.mxu0 %v808
    %v951 = vpop.f32.mrf.mxu0
    %v952 = vadd.f32 0.0, %v951
    %v953 = vpop.f32.mrf.mxu0
    %954 = vdwg.mxu0
    %v956 = vcombine.high %v605, %v605
    %v958 = vunpack.c.l.s4 1966171168
    %v959 = vunpack.c.0.s8 %v958
    %v960 = vlaneseq
    %v961 = vshrl.u32 %v960, 7
    %v962 = vsub.s32 %v959, %v961
    %v963 = vrot.slane %v605, %v962
    %v965 = vunpack.c.l.s4 1966171168
    %v966 = vunpack.c.0.s8 %v965
    %v967 = vlaneseq
    %v968 = vshrl.u32 %v967, 7
    %v969 = vsub.s32 %v966, %v968
    %v970 = vrot.slane %v956, %v969
    %v971 = vcombine.high %v963, %v963
    %v972 = vcombine.high %v970, %v970
    %v974 = vunpack.c.l.s4 1966171168
    %v975 = vunpack.c.0.s8 %v974
    %v976 = vlaneseq
    %v977 = vshrl.u32 %v976, 7
    %v978 = vsub.s32 %v975, %v977
    %v979 = vrot.slane %v963, %v978
    %v981 = vunpack.c.l.s4 1966171168
    %v982 = vunpack.c.0.s8 %v981
    %v983 = vlaneseq
    %v984 = vshrl.u32 %v983, 7
    %v985 = vsub.s32 %v982, %v984
    %v986 = vrot.slane %v970, %v985
    %v988 = vunpack.c.l.s4 1966171168
    %v989 = vunpack.c.0.s8 %v988
    %v990 = vlaneseq
    %v991 = vshrl.u32 %v990, 7
    %v992 = vsub.s32 %v989, %v991
    %v993 = vrot.slane %v971, %v992
    %v995 = vunpack.c.l.s4 1966171168
    %v996 = vunpack.c.0.s8 %v995
    %v997 = vlaneseq
    %v998 = vshrl.u32 %v997, 7
    %v999 = vsub.s32 %v996, %v998
    %v1000 = vrot.slane %v972, %v999
    %v1001 = vcombine.high %v979, %v979
    %v1002 = vcombine.high %v986, %v986
    %v1003 = vcombine.high %v993, %v993
    %v1004 = vcombine.high %v1000, %v1000
    %v1005 = vlaneseq
    %v1006 = vshrl.u32 %v1005, 7
    %v1007 = vsub.s32 0, %v1006
    %v1008 = vrot.slane %v979, %v1007
    %v1009 = vlaneseq
    %v1010 = vshrl.u32 %v1009, 7
    %v1011 = vsub.s32 0, %v1010
    %v1012 = vrot.slane %v993, %v1011
    %v1013 = vlaneseq
    %v1014 = vshrl.u32 %v1013, 7
    %v1015 = vsub.s32 0, %v1014
    %v1016 = vrot.slane %v1001, %v1015
    %v1017 = vlaneseq
    %v1018 = vshrl.u32 %v1017, 7
    %v1019 = vsub.s32 0, %v1018
    %v1020 = vrot.slane %v1003, %v1019
    %v1021 = vlaneseq
    %v1022 = vshrl.u32 %v1021, 7
    %v1023 = vsub.s32 0, %v1022
    %v1024 = vrot.slane %v986, %v1023
    %v1025 = vlaneseq
    %v1026 = vshrl.u32 %v1025, 7
    %v1027 = vsub.s32 0, %v1026
    %v1028 = vrot.slane %v1000, %v1027
    %v1029 = vlaneseq
    %v1030 = vshrl.u32 %v1029, 7
    %v1031 = vsub.s32 0, %v1030
    %v1032 = vrot.slane %v1002, %v1031
    %v1033 = vlaneseq
    %v1034 = vshrl.u32 %v1033, 7
    %v1035 = vsub.s32 0, %v1034
    %v1036 = vrot.slane %v1004, %v1035
    %1037 = vrot.lane.b32.xlu0 %v1008, 96
    %v1038 = vpop.permute.xlu0 %1037
    %1039 = vrot.lane.b32.xlu0 %v1012, 96
    %v1040 = vpop.permute.xlu0 %1039
    %1041 = vrot.lane.b32.xlu0 %v1016, 96
    %v1042 = vpop.permute.xlu0 %1041
    %1043 = vrot.lane.b32.xlu0 %v1020, 96
    %v1044 = vpop.permute.xlu0 %1043
    %1045 = vrot.lane.b32.xlu0 %v1024, 96
    %v1046 = vpop.permute.xlu0 %1045
    %1047 = vrot.lane.b32.xlu0 %v1028, 96
    %v1048 = vpop.permute.xlu0 %1047
    %1049 = vrot.lane.b32.xlu0 %v1032, 96
    %v1050 = vpop.permute.xlu0 %1049
    %1051 = vrot.lane.b32.xlu0 %v1036, 96
    %v1052 = vpop.permute.xlu0 %1051
    %v1061 = vmul.f32 %v877, %v1038
    %v1062 = vmul.f32 %v882, %v1038
    %v1063 = vmul.f32 %v887, %v1040
    %v1064 = vmul.f32 %v892, %v1040
    %v1065 = vmul.f32 %v897, %v1042
    %v1066 = vmul.f32 %v902, %v1042
    %v1067 = vmul.f32 %v907, %v1044
    %v1068 = vmul.f32 %v912, %v1044
    %v1069 = vmul.f32 %v917, %v1046
    %v1070 = vmul.f32 %v922, %v1046
    %v1071 = vmul.f32 %v927, %v1048
    %v1072 = vmul.f32 %v932, %v1048
    %v1073 = vmul.f32 %v937, %v1050
    %v1074 = vmul.f32 %v942, %v1050
    %v1075 = vmul.f32 %v947, %v1052
    %v1076 = vmul.f32 %v952, %v1052
    %v1077 = vld [vmem:[%s4] sm:$0xff]
    %v1078 = vld [vmem:[%s4 + $0x8] sm:$0xff]
    %v1079 = vlaneseq
    %v1080 = vshrl.u32 %v1079, 7
    %v1081 = vsub.s32 0, %v1080
    %v1082 = vrot.slane %v634, %v1081
    %1084 = vrot.lane.b32.xlu0 %v1082, 96
    %v1085 = vpop.permute.xlu0 %1084
    %v1087 = vmul.f32 %v1077, %v1085
    %v1088 = vmul.f32 %v1078, %v1085
    %v1090 = vsel %vm72, %v1087, 0
    %v1093 = vsel %vm72, %v1088, 0
    %1095 = vmatprep.subr.mxu0 0.0
    %1096 = vmatpush1.msra.mxu0 0.0
    %1097 = vmatprep.subr.mxu0 0.0
    %1098 = vmatpush1.msra.mxu0 0.0
    %1099 = vmatprep.subr.mxu0 0.0
    %1100 = vmatpush1.msra.mxu0 0.0
    %1101 = vmatprep.subr.mxu0 0.0
    %1102 = vmatpush1.msra.mxu0 0.0
    %1103 = vmatprep.subr.mxu0 0.0
    %1104 = vmatpush1.msra.mxu0 0.0
    %1105 = vmatprep.subr.mxu0 0.0
    %1106 = vmatpush1.msra.mxu0 0.0
    %1107 = vmatprep.subr.mxu0 0.0
    %1108 = vmatpush1.msra.mxu0 0.0
    %1109 = vmatprep.subr.mxu0 0.0
    %1110 = vmatpush1.msra.mxu0 0.0
    %1111 = vmatprep.subr.mxu0 0.0
    %1112 = vmatpush1.msra.mxu0 0.0
    %1113 = vmatprep.subr.mxu0 0.0
    %1114 = vmatpush1.msra.mxu0 0.0
    %1115 = vmatprep.subr.mxu0 0.0
    %1116 = vmatpush1.msra.mxu0 0.0
    %1117 = vmatprep.subr.mxu0 0.0
    %1118 = vmatpush1.msra.mxu0 0.0
    %1119 = vmatprep.subr.mxu0 0.0
    %1120 = vmatpush1.msra.mxu0 %v58
    %1121 = vmatprep.subr.mxu0 0.0
    %1122 = vmatpush1.msra.mxu0 %v57
    %1123 = vmatprep.subr.mxu0 0.0
    %1124 = vmatpush1.msra.mxu0 %v56
    %1125 = vmatprep.subr.mxu0 0.0
    %1126 = vmatpush1.msra.mxu0 %v55
    %1127 = vmatprep.subr.mxu0 0.0
    %1128 = vmatpush2.msra.mxu0 0.0
    %1129 = vmatprep.subr.mxu0 0.0
    %1130 = vmatpush2.msra.mxu0 0.0
    %1131 = vmatprep.subr.mxu0 0.0
    %1132 = vmatpush2.msra.mxu0 0.0
    %1133 = vmatprep.subr.mxu0 0.0
    %1134 = vmatpush2.msra.mxu0 0.0
    %1135 = vmatprep.subr.mxu0 0.0
    %1136 = vmatpush2.msra.mxu0 0.0
    %1137 = vmatprep.subr.mxu0 0.0
    %1138 = vmatpush2.msra.mxu0 0.0
    %1139 = vmatprep.subr.mxu0 0.0
    %1140 = vmatpush2.msra.mxu0 0.0
    %1141 = vmatprep.subr.mxu0 0.0
    %1142 = vmatpush2.msra.mxu0 0.0
    %1143 = vmatprep.subr.mxu0 0.0
    %1144 = vmatpush2.msra.mxu0 0.0
    %1145 = vmatprep.subr.mxu0 0.0
    %1146 = vmatpush2.msra.mxu0 0.0
    %1147 = vmatprep.subr.mxu0 0.0
    %1148 = vmatpush2.msra.mxu0 0.0
    %1149 = vmatprep.subr.mxu0 0.0
    %1150 = vmatpush2.msra.mxu0 0.0
    %1151 = vmatprep.subr.mxu0 0.0
    %1152 = vmatpush2.msra.mxu0 0.0
    %1153 = vmatprep.subr.mxu0 0.0
    %1154 = vmatpush2.msra.mxu0 0.0
    %1155 = vmatprep.subr.mxu0 0.0
    %1156 = vmatpush2.msra.mxu0 0.0
    %1157 = vmatprep.subr.mxu0 0.0
    %1158 = vmatpush2.msra.mxu0 0.0
    %1159 = vmatprep.mubr.f32.mxu0 0.0
    %1160 = vmatmul.mubr.f32.gmra.mxu0 %v1090
    %v1161 = vpop.f32.mrf.mxu0
    %v1162 = vadd.f32 0.0, %v1161
    %v1163 = vpop.f32.mrf.mxu0
    %1164 = vmatprep.mubr.f32.mxu0 0.0
    %1165 = vmatmul.mubr.f32.gmra.mxu0 %v1093
    %v1166 = vpop.f32.mrf.mxu0
    %v1167 = vadd.f32 0.0, %v1166
    %v1168 = vpop.f32.mrf.mxu0
    %1169 = vdwg.mxu0
    %v1170 = vlaneseq
    %v1171 = vshrl.u32 %v1170, 7
    %v1172 = vsub.s32 0, %v1171
    %v1173 = vrot.slane %v479, %v1172
    %v1174 = vmul.f32 %v1077, %v1173
    %v1175 = vmul.f32 %v1078, %v1173
    %v1176 = vlaneseq
    %v1177 = vshrl.u32 %v1176, 7
    %v1178 = vsub.s32 0, %v1177
    %v1179 = vrot.slane %v639, %v1178
    %1181 = vrot.lane.b32.xlu0 %v1179, 96
    %v1182 = vpop.permute.xlu0 %1181
    %v1184 = vmul.f32 %v1162, %v1182
    %v1185 = vmul.f32 %v1167, %v1182
    %v1186 = vadd.f32 %v1174, %v1184
    %v1187 = vadd.f32 %v1175, %v1185
    %v1188 = vadd.f32 %v1186, %v1061
    %v1189 = vadd.f32 %v1187, %v1062
    %v1190 = vlaneseq
    %v1191 = vshrl.u32 %v1190, 7
    %v1192 = vsub.s32 0, %v1191
    %v1193 = vrot.slane %v316, %v1192
    %v1194 = vmul.f32 %v1188, %v1193
    %v1195 = vmul.f32 %v1189, %v1193
    %v1197 = vsel %vm72, %v1194, 0
    %v1200 = vsel %vm72, %v1195, 0
    %1202 = vmatprep.subr.mxu0 0.0
    %1203 = vmatpush1.msra.mxu0 0.0
    %1204 = vmatprep.subr.mxu0 0.0
    %1205 = vmatpush1.msra.mxu0 0.0
    %1206 = vmatprep.subr.mxu0 0.0
    %1207 = vmatpush1.msra.mxu0 0.0
    %1208 = vmatprep.subr.mxu0 0.0
    %1209 = vmatpush1.msra.mxu0 0.0
    %1210 = vmatprep.subr.mxu0 0.0
    %1211 = vmatpush1.msra.mxu0 0.0
    %1212 = vmatprep.subr.mxu0 0.0
    %1213 = vmatpush1.msra.mxu0 0.0
    %1214 = vmatprep.subr.mxu0 0.0
    %1215 = vmatpush1.msra.mxu0 0.0
    %1216 = vmatprep.subr.mxu0 0.0
    %1217 = vmatpush1.msra.mxu0 0.0
    %1218 = vmatprep.subr.mxu0 0.0
    %1219 = vmatpush1.msra.mxu0 0.0
    %1220 = vmatprep.subr.mxu0 0.0
    %1221 = vmatpush1.msra.mxu0 0.0
    %1222 = vmatprep.subr.mxu0 0.0
    %1223 = vmatpush1.msra.mxu0 0.0
    %1224 = vmatprep.subr.mxu0 0.0
    %1225 = vmatpush1.msra.mxu0 0.0
    %1226 = vmatprep.subr.mxu0 0.0
    %1227 = vmatpush1.msra.mxu0 %v58
    %1228 = vmatprep.subr.mxu0 0.0
    %1229 = vmatpush1.msra.mxu0 %v57
    %1230 = vmatprep.subr.mxu0 0.0
    %1231 = vmatpush1.msra.mxu0 %v56
    %1232 = vmatprep.subr.mxu0 0.0
    %1233 = vmatpush1.msra.mxu0 %v55
    %1234 = vmatprep.subr.mxu0 0.0
    %1235 = vmatpush2.msra.mxu0 0.0
    %1236 = vmatprep.subr.mxu0 0.0
    %1237 = vmatpush2.msra.mxu0 0.0
    %1238 = vmatprep.subr.mxu0 0.0
    %1239 = vmatpush2.msra.mxu0 0.0
    %1240 = vmatprep.subr.mxu0 0.0
    %1241 = vmatpush2.msra.mxu0 0.0
    %1242 = vmatprep.subr.mxu0 0.0
    %1243 = vmatpush2.msra.mxu0 0.0
    %1244 = vmatprep.subr.mxu0 0.0
    %1245 = vmatpush2.msra.mxu0 0.0
    %1246 = vmatprep.subr.mxu0 0.0
    %1247 = vmatpush2.msra.mxu0 0.0
    %1248 = vmatprep.subr.mxu0 0.0
    %1249 = vmatpush2.msra.mxu0 0.0
    %1250 = vmatprep.subr.mxu0 0.0
    %1251 = vmatpush2.msra.mxu0 0.0
    %1252 = vmatprep.subr.mxu0 0.0
    %1253 = vmatpush2.msra.mxu0 0.0
    %1254 = vmatprep.subr.mxu0 0.0
    %1255 = vmatpush2.msra.mxu0 0.0
    %1256 = vmatprep.subr.mxu0 0.0
    %1257 = vmatpush2.msra.mxu0 0.0
    %1258 = vmatprep.subr.mxu0 0.0
    %1259 = vmatpush2.msra.mxu0 0.0
    %1260 = vmatprep.subr.mxu0 0.0
    %1261 = vmatpush2.msra.mxu0 0.0
    %1262 = vmatprep.subr.mxu0 0.0
    %1263 = vmatpush2.msra.mxu0 0.0
    %1264 = vmatprep.subr.mxu0 0.0
    %1265 = vmatpush2.msra.mxu0 0.0
    %1266 = vmatprep.mubr.f32.mxu0 0.0
    %1267 = vmatmul.mubr.f32.gmra.mxu0 %v1197
    %v1268 = vpop.f32.mrf.mxu0
    %v1269 = vadd.f32 0.0, %v1268
    %v1270 = vpop.f32.mrf.mxu0
    %1271 = vmatprep.mubr.f32.mxu0 0.0
    %1272 = vmatmul.mubr.f32.gmra.mxu0 %v1200
    %v1273 = vpop.f32.mrf.mxu0
    %v1274 = vadd.f32 0.0, %v1273
    %v1275 = vpop.f32.mrf.mxu0
    %1276 = vdwg.mxu0
    %v1277 = vlaneseq
    %v1278 = vshrl.u32 %v1277, 7
    %v1279 = vsub.s32 1, %v1278
    %v1280 = vrot.slane %v634, %v1279
    %1282 = vrot.lane.b32.xlu0 %v1280, 96
    %v1283 = vpop.permute.xlu0 %1282
    %v1285 = vmul.f32 %v1188, %v1283
    %v1286 = vmul.f32 %v1189, %v1283
    %v1288 = vsel %vm72, %v1285, 0
    %v1291 = vsel %vm72, %v1286, 0
    %1293 = vmatprep.subr.mxu0 0.0
    %1294 = vmatpush1.msra.mxu0 0.0
    %1295 = vmatprep.subr.mxu0 0.0
    %1296 = vmatpush1.msra.mxu0 0.0
    %1297 = vmatprep.subr.mxu0 0.0
    %1298 = vmatpush1.msra.mxu0 0.0
    %1299 = vmatprep.subr.mxu0 0.0
    %1300 = vmatpush1.msra.mxu0 0.0
    %1301 = vmatprep.subr.mxu0 0.0
    %1302 = vmatpush1.msra.mxu0 0.0
    %1303 = vmatprep.subr.mxu0 0.0
    %1304 = vmatpush1.msra.mxu0 0.0
    %1305 = vmatprep.subr.mxu0 0.0
    %1306 = vmatpush1.msra.mxu0 0.0
    %1307 = vmatprep.subr.mxu0 0.0
    %1308 = vmatpush1.msra.mxu0 0.0
    %1309 = vmatprep.subr.mxu0 0.0
    %1310 = vmatpush1.msra.mxu0 0.0
    %1311 = vmatprep.subr.mxu0 0.0
    %1312 = vmatpush1.msra.mxu0 0.0
    %1313 = vmatprep.subr.mxu0 0.0
    %1314 = vmatpush1.msra.mxu0 0.0
    %1315 = vmatprep.subr.mxu0 0.0
    %1316 = vmatpush1.msra.mxu0 0.0
    %1317 = vmatprep.subr.mxu0 0.0
    %1318 = vmatpush1.msra.mxu0 %v58
    %1319 = vmatprep.subr.mxu0 0.0
    %1320 = vmatpush1.msra.mxu0 %v57
    %1321 = vmatprep.subr.mxu0 0.0
    %1322 = vmatpush1.msra.mxu0 %v56
    %1323 = vmatprep.subr.mxu0 0.0
    %1324 = vmatpush1.msra.mxu0 %v55
    %1325 = vmatprep.subr.mxu0 0.0
    %1326 = vmatpush2.msra.mxu0 0.0
    %1327 = vmatprep.subr.mxu0 0.0
    %1328 = vmatpush2.msra.mxu0 0.0
    %1329 = vmatprep.subr.mxu0 0.0
    %1330 = vmatpush2.msra.mxu0 0.0
    %1331 = vmatprep.subr.mxu0 0.0
    %1332 = vmatpush2.msra.mxu0 0.0
    %1333 = vmatprep.subr.mxu0 0.0
    %1334 = vmatpush2.msra.mxu0 0.0
    %1335 = vmatprep.subr.mxu0 0.0
    %1336 = vmatpush2.msra.mxu0 0.0
    %1337 = vmatprep.subr.mxu0 0.0
    %1338 = vmatpush2.msra.mxu0 0.0
    %1339 = vmatprep.subr.mxu0 0.0
    %1340 = vmatpush2.msra.mxu0 0.0
    %1341 = vmatprep.subr.mxu0 0.0
    %1342 = vmatpush2.msra.mxu0 0.0
    %1343 = vmatprep.subr.mxu0 0.0
    %1344 = vmatpush2.msra.mxu0 0.0
    %1345 = vmatprep.subr.mxu0 0.0
    %1346 = vmatpush2.msra.mxu0 0.0
    %1347 = vmatprep.subr.mxu0 0.0
    %1348 = vmatpush2.msra.mxu0 0.0
    %1349 = vmatprep.subr.mxu0 0.0
    %1350 = vmatpush2.msra.mxu0 0.0
    %1351 = vmatprep.subr.mxu0 0.0
    %1352 = vmatpush2.msra.mxu0 0.0
    %1353 = vmatprep.subr.mxu0 0.0
    %1354 = vmatpush2.msra.mxu0 0.0
    %1355 = vmatprep.subr.mxu0 0.0
    %1356 = vmatpush2.msra.mxu0 0.0
    %1357 = vmatprep.mubr.f32.mxu0 0.0
    %1358 = vmatmul.mubr.f32.gmra.mxu0 %v1288
    %v1359 = vpop.f32.mrf.mxu0
    %v1360 = vadd.f32 0.0, %v1359
    %v1361 = vpop.f32.mrf.mxu0
    %1362 = vmatprep.mubr.f32.mxu0 0.0
    %1363 = vmatmul.mubr.f32.gmra.mxu0 %v1291
    %v1364 = vpop.f32.mrf.mxu0
    %v1365 = vadd.f32 0.0, %v1364
    %v1366 = vpop.f32.mrf.mxu0
    %1367 = vdwg.mxu0
    %v1368 = vlaneseq
    %v1369 = vshrl.u32 %v1368, 7
    %v1370 = vsub.s32 1, %v1369
    %v1371 = vrot.slane %v479, %v1370
    %v1372 = vmul.f32 %v1188, %v1371
    %v1373 = vmul.f32 %v1189, %v1371
    %v1374 = vlaneseq
    %v1375 = vshrl.u32 %v1374, 7
    %v1376 = vsub.s32 1, %v1375
    %v1377 = vrot.slane %v639, %v1376
    %1379 = vrot.lane.b32.xlu0 %v1377, 96
    %v1380 = vpop.permute.xlu0 %1379
    %v1382 = vmul.f32 %v1360, %v1380
    %v1383 = vmul.f32 %v1365, %v1380
    %v1384 = vadd.f32 %v1372, %v1382
    %v1385 = vadd.f32 %v1373, %v1383
    %v1386 = vadd.f32 %v1384, %v1063
    %v1387 = vadd.f32 %v1385, %v1064
    %v1388 = vlaneseq
    %v1389 = vshrl.u32 %v1388, 7
    %v1390 = vsub.s32 1, %v1389
    %v1391 = vrot.slane %v316, %v1390
    %v1392 = vmul.f32 %v1386, %v1391
    %v1393 = vmul.f32 %v1387, %v1391
    %v1395 = vsel %vm72, %v1392, 0
    %v1398 = vsel %vm72, %v1393, 0
    %1400 = vmatprep.subr.mxu0 0.0
    %1401 = vmatpush1.msra.mxu0 0.0
    %1402 = vmatprep.subr.mxu0 0.0
    %1403 = vmatpush1.msra.mxu0 0.0
    %1404 = vmatprep.subr.mxu0 0.0
    %1405 = vmatpush1.msra.mxu0 0.0
    %1406 = vmatprep.subr.mxu0 0.0
    %1407 = vmatpush1.msra.mxu0 0.0
    %1408 = vmatprep.subr.mxu0 0.0
    %1409 = vmatpush1.msra.mxu0 0.0
    %1410 = vmatprep.subr.mxu0 0.0
    %1411 = vmatpush1.msra.mxu0 0.0
    %1412 = vmatprep.subr.mxu0 0.0
    %1413 = vmatpush1.msra.mxu0 0.0
    %1414 = vmatprep.subr.mxu0 0.0
    %1415 = vmatpush1.msra.mxu0 0.0
    %1416 = vmatprep.subr.mxu0 0.0
    %1417 = vmatpush1.msra.mxu0 0.0
    %1418 = vmatprep.subr.mxu0 0.0
    %1419 = vmatpush1.msra.mxu0 0.0
    %1420 = vmatprep.subr.mxu0 0.0
    %1421 = vmatpush1.msra.mxu0 0.0
    %1422 = vmatprep.subr.mxu0 0.0
    %1423 = vmatpush1.msra.mxu0 0.0
    %1424 = vmatprep.subr.mxu0 0.0
    %1425 = vmatpush1.msra.mxu0 %v58
    %1426 = vmatprep.subr.mxu0 0.0
    %1427 = vmatpush1.msra.mxu0 %v57
    %1428 = vmatprep.subr.mxu0 0.0
    %1429 = vmatpush1.msra.mxu0 %v56
    %1430 = vmatprep.subr.mxu0 0.0
    %1431 = vmatpush1.msra.mxu0 %v55
    %1432 = vmatprep.subr.mxu0 0.0
    %1433 = vmatpush2.msra.mxu0 0.0
    %1434 = vmatprep.subr.mxu0 0.0
    %1435 = vmatpush2.msra.mxu0 0.0
    %1436 = vmatprep.subr.mxu0 0.0
    %1437 = vmatpush2.msra.mxu0 0.0
    %1438 = vmatprep.subr.mxu0 0.0
    %1439 = vmatpush2.msra.mxu0 0.0
    %1440 = vmatprep.subr.mxu0 0.0
    %1441 = vmatpush2.msra.mxu0 0.0
    %1442 = vmatprep.subr.mxu0 0.0
    %1443 = vmatpush2.msra.mxu0 0.0
    %1444 = vmatprep.subr.mxu0 0.0
    %1445 = vmatpush2.msra.mxu0 0.0
    %1446 = vmatprep.subr.mxu0 0.0
    %1447 = vmatpush2.msra.mxu0 0.0
    %1448 = vmatprep.subr.mxu0 0.0
    %1449 = vmatpush2.msra.mxu0 0.0
    %1450 = vmatprep.subr.mxu0 0.0
    %1451 = vmatpush2.msra.mxu0 0.0
    %1452 = vmatprep.subr.mxu0 0.0
    %1453 = vmatpush2.msra.mxu0 0.0
    %1454 = vmatprep.subr.mxu0 0.0
    %1455 = vmatpush2.msra.mxu0 0.0
    %1456 = vmatprep.subr.mxu0 0.0
    %1457 = vmatpush2.msra.mxu0 0.0
    %1458 = vmatprep.subr.mxu0 0.0
    %1459 = vmatpush2.msra.mxu0 0.0
    %1460 = vmatprep.subr.mxu0 0.0
    %1461 = vmatpush2.msra.mxu0 0.0
    %1462 = vmatprep.subr.mxu0 0.0
    %1463 = vmatpush2.msra.mxu0 0.0
    %1464 = vmatprep.mubr.f32.mxu0 0.0
    %1465 = vmatmul.mubr.f32.gmra.mxu0 %v1395
    %v1466 = vpop.f32.mrf.mxu0
    %v1467 = vadd.f32 0.0, %v1466
    %v1468 = vpop.f32.mrf.mxu0
    %1469 = vmatprep.mubr.f32.mxu0 0.0
    %1470 = vmatmul.mubr.f32.gmra.mxu0 %v1398
    %v1471 = vpop.f32.mrf.mxu0
    %v1472 = vadd.f32 0.0, %v1471
    %v1473 = vpop.f32.mrf.mxu0
    %1474 = vdwg.mxu0
    %v1475 = vlaneseq
    %v1476 = vshrl.u32 %v1475, 7
    %v1477 = vsub.s32 2, %v1476
    %v1478 = vrot.slane %v634, %v1477
    %1480 = vrot.lane.b32.xlu0 %v1478, 96
    %v1481 = vpop.permute.xlu0 %1480
    %v1483 = vmul.f32 %v1386, %v1481
    %v1484 = vmul.f32 %v1387, %v1481
    %v1486 = vsel %vm72, %v1483, 0
    %v1489 = vsel %vm72, %v1484, 0
    %1491 = vmatprep.subr.mxu0 0.0
    %1492 = vmatpush1.msra.mxu0 0.0
    %1493 = vmatprep.subr.mxu0 0.0
    %1494 = vmatpush1.msra.mxu0 0.0
    %1495 = vmatprep.subr.mxu0 0.0
    %1496 = vmatpush1.msra.mxu0 0.0
    %1497 = vmatprep.subr.mxu0 0.0
    %1498 = vmatpush1.msra.mxu0 0.0
    %1499 = vmatprep.subr.mxu0 0.0
    %1500 = vmatpush1.msra.mxu0 0.0
    %1501 = vmatprep.subr.mxu0 0.0
    %1502 = vmatpush1.msra.mxu0 0.0
    %1503 = vmatprep.subr.mxu0 0.0
    %1504 = vmatpush1.msra.mxu0 0.0
    %1505 = vmatprep.subr.mxu0 0.0
    %1506 = vmatpush1.msra.mxu0 0.0
    %1507 = vmatprep.subr.mxu0 0.0
    %1508 = vmatpush1.msra.mxu0 0.0
    %1509 = vmatprep.subr.mxu0 0.0
    %1510 = vmatpush1.msra.mxu0 0.0
    %1511 = vmatprep.subr.mxu0 0.0
    %1512 = vmatpush1.msra.mxu0 0.0
    %1513 = vmatprep.subr.mxu0 0.0
    %1514 = vmatpush1.msra.mxu0 0.0
    %1515 = vmatprep.subr.mxu0 0.0
    %1516 = vmatpush1.msra.mxu0 %v58
    %1517 = vmatprep.subr.mxu0 0.0
    %1518 = vmatpush1.msra.mxu0 %v57
    %1519 = vmatprep.subr.mxu0 0.0
    %1520 = vmatpush1.msra.mxu0 %v56
    %1521 = vmatprep.subr.mxu0 0.0
    %1522 = vmatpush1.msra.mxu0 %v55
    %1523 = vmatprep.subr.mxu0 0.0
    %1524 = vmatpush2.msra.mxu0 0.0
    %1525 = vmatprep.subr.mxu0 0.0
    %1526 = vmatpush2.msra.mxu0 0.0
    %1527 = vmatprep.subr.mxu0 0.0
    %1528 = vmatpush2.msra.mxu0 0.0
    %1529 = vmatprep.subr.mxu0 0.0
    %1530 = vmatpush2.msra.mxu0 0.0
    %1531 = vmatprep.subr.mxu0 0.0
    %1532 = vmatpush2.msra.mxu0 0.0
    %1533 = vmatprep.subr.mxu0 0.0
    %1534 = vmatpush2.msra.mxu0 0.0
    %1535 = vmatprep.subr.mxu0 0.0
    %1536 = vmatpush2.msra.mxu0 0.0
    %1537 = vmatprep.subr.mxu0 0.0
    %1538 = vmatpush2.msra.mxu0 0.0
    %1539 = vmatprep.subr.mxu0 0.0
    %1540 = vmatpush2.msra.mxu0 0.0
    %1541 = vmatprep.subr.mxu0 0.0
    %1542 = vmatpush2.msra.mxu0 0.0
    %1543 = vmatprep.subr.mxu0 0.0
    %1544 = vmatpush2.msra.mxu0 0.0
    %1545 = vmatprep.subr.mxu0 0.0
    %1546 = vmatpush2.msra.mxu0 0.0
    %1547 = vmatprep.subr.mxu0 0.0
    %1548 = vmatpush2.msra.mxu0 0.0
    %1549 = vmatprep.subr.mxu0 0.0
    %1550 = vmatpush2.msra.mxu0 0.0
    %1551 = vmatprep.subr.mxu0 0.0
    %1552 = vmatpush2.msra.mxu0 0.0
    %1553 = vmatprep.subr.mxu0 0.0
    %1554 = vmatpush2.msra.mxu0 0.0
    %1555 = vmatprep.mubr.f32.mxu0 0.0
    %1556 = vmatmul.mubr.f32.gmra.mxu0 %v1486
    %v1557 = vpop.f32.mrf.mxu0
    %v1558 = vadd.f32 0.0, %v1557
    %v1559 = vpop.f32.mrf.mxu0
    %1560 = vmatprep.mubr.f32.mxu0 0.0
    %1561 = vmatmul.mubr.f32.gmra.mxu0 %v1489
    %v1562 = vpop.f32.mrf.mxu0
    %v1563 = vadd.f32 0.0, %v1562
    %v1564 = vpop.f32.mrf.mxu0
    %1565 = vdwg.mxu0
    %v1566 = vlaneseq
    %v1567 = vshrl.u32 %v1566, 7
    %v1568 = vsub.s32 2, %v1567
    %v1569 = vrot.slane %v479, %v1568
    %v1570 = vmul.f32 %v1386, %v1569
    %v1571 = vmul.f32 %v1387, %v1569
    %v1572 = vlaneseq
    %v1573 = vshrl.u32 %v1572, 7
    %v1574 = vsub.s32 2, %v1573
    %v1575 = vrot.slane %v639, %v1574
    %1577 = vrot.lane.b32.xlu0 %v1575, 96
    %v1578 = vpop.permute.xlu0 %1577
    %v1580 = vmul.f32 %v1558, %v1578
    %v1581 = vmul.f32 %v1563, %v1578
    %v1582 = vadd.f32 %v1570, %v1580
    %v1583 = vadd.f32 %v1571, %v1581
    %v1584 = vadd.f32 %v1582, %v1065
    %v1585 = vadd.f32 %v1583, %v1066
    %v1586 = vlaneseq
    %v1587 = vshrl.u32 %v1586, 7
    %v1588 = vsub.s32 2, %v1587
    %v1589 = vrot.slane %v316, %v1588
    %v1590 = vmul.f32 %v1584, %v1589
    %v1591 = vmul.f32 %v1585, %v1589
    %v1593 = vsel %vm72, %v1590, 0
    %v1596 = vsel %vm72, %v1591, 0
    %1598 = vmatprep.subr.mxu0 0.0
    %1599 = vmatpush1.msra.mxu0 0.0
    %1600 = vmatprep.subr.mxu0 0.0
    %1601 = vmatpush1.msra.mxu0 0.0
    %1602 = vmatprep.subr.mxu0 0.0
    %1603 = vmatpush1.msra.mxu0 0.0
    %1604 = vmatprep.subr.mxu0 0.0
    %1605 = vmatpush1.msra.mxu0 0.0
    %1606 = vmatprep.subr.mxu0 0.0
    %1607 = vmatpush1.msra.mxu0 0.0
    %1608 = vmatprep.subr.mxu0 0.0
    %1609 = vmatpush1.msra.mxu0 0.0
    %1610 = vmatprep.subr.mxu0 0.0
    %1611 = vmatpush1.msra.mxu0 0.0
    %1612 = vmatprep.subr.mxu0 0.0
    %1613 = vmatpush1.msra.mxu0 0.0
    %1614 = vmatprep.subr.mxu0 0.0
    %1615 = vmatpush1.msra.mxu0 0.0
    %1616 = vmatprep.subr.mxu0 0.0
    %1617 = vmatpush1.msra.mxu0 0.0
    %1618 = vmatprep.subr.mxu0 0.0
    %1619 = vmatpush1.msra.mxu0 0.0
    %1620 = vmatprep.subr.mxu0 0.0
    %1621 = vmatpush1.msra.mxu0 0.0
    %1622 = vmatprep.subr.mxu0 0.0
    %1623 = vmatpush1.msra.mxu0 %v58
    %1624 = vmatprep.subr.mxu0 0.0
    %1625 = vmatpush1.msra.mxu0 %v57
    %1626 = vmatprep.subr.mxu0 0.0
    %1627 = vmatpush1.msra.mxu0 %v56
    %1628 = vmatprep.subr.mxu0 0.0
    %1629 = vmatpush1.msra.mxu0 %v55
    %1630 = vmatprep.subr.mxu0 0.0
    %1631 = vmatpush2.msra.mxu0 0.0
    %1632 = vmatprep.subr.mxu0 0.0
    %1633 = vmatpush2.msra.mxu0 0.0
    %1634 = vmatprep.subr.mxu0 0.0
    %1635 = vmatpush2.msra.mxu0 0.0
    %1636 = vmatprep.subr.mxu0 0.0
    %1637 = vmatpush2.msra.mxu0 0.0
    %1638 = vmatprep.subr.mxu0 0.0
    %1639 = vmatpush2.msra.mxu0 0.0
    %1640 = vmatprep.subr.mxu0 0.0
    %1641 = vmatpush2.msra.mxu0 0.0
    %1642 = vmatprep.subr.mxu0 0.0
    %1643 = vmatpush2.msra.mxu0 0.0
    %1644 = vmatprep.subr.mxu0 0.0
    %1645 = vmatpush2.msra.mxu0 0.0
    %1646 = vmatprep.subr.mxu0 0.0
    %1647 = vmatpush2.msra.mxu0 0.0
    %1648 = vmatprep.subr.mxu0 0.0
    %1649 = vmatpush2.msra.mxu0 0.0
    %1650 = vmatprep.subr.mxu0 0.0
    %1651 = vmatpush2.msra.mxu0 0.0
    %1652 = vmatprep.subr.mxu0 0.0
    %1653 = vmatpush2.msra.mxu0 0.0
    %1654 = vmatprep.subr.mxu0 0.0
    %1655 = vmatpush2.msra.mxu0 0.0
    %1656 = vmatprep.subr.mxu0 0.0
    %1657 = vmatpush2.msra.mxu0 0.0
    %1658 = vmatprep.subr.mxu0 0.0
    %1659 = vmatpush2.msra.mxu0 0.0
    %1660 = vmatprep.subr.mxu0 0.0
    %1661 = vmatpush2.msra.mxu0 0.0
    %1662 = vmatprep.mubr.f32.mxu0 0.0
    %1663 = vmatmul.mubr.f32.gmra.mxu0 %v1593
    %v1664 = vpop.f32.mrf.mxu0
    %v1665 = vadd.f32 0.0, %v1664
    %v1666 = vpop.f32.mrf.mxu0
    %1667 = vmatprep.mubr.f32.mxu0 0.0
    %1668 = vmatmul.mubr.f32.gmra.mxu0 %v1596
    %v1669 = vpop.f32.mrf.mxu0
    %v1670 = vadd.f32 0.0, %v1669
    %v1671 = vpop.f32.mrf.mxu0
    %1672 = vdwg.mxu0
    %v1673 = vlaneseq
    %v1674 = vshrl.u32 %v1673, 7
    %v1675 = vsub.s32 3, %v1674
    %v1676 = vrot.slane %v634, %v1675
    %1678 = vrot.lane.b32.xlu0 %v1676, 96
    %v1679 = vpop.permute.xlu0 %1678
    %v1681 = vmul.f32 %v1584, %v1679
    %v1682 = vmul.f32 %v1585, %v1679
    %v1684 = vsel %vm72, %v1681, 0
    %v1687 = vsel %vm72, %v1682, 0
    %1689 = vmatprep.subr.mxu0 0.0
    %1690 = vmatpush1.msra.mxu0 0.0
    %1691 = vmatprep.subr.mxu0 0.0
    %1692 = vmatpush1.msra.mxu0 0.0
    %1693 = vmatprep.subr.mxu0 0.0
    %1694 = vmatpush1.msra.mxu0 0.0
    %1695 = vmatprep.subr.mxu0 0.0
    %1696 = vmatpush1.msra.mxu0 0.0
    %1697 = vmatprep.subr.mxu0 0.0
    %1698 = vmatpush1.msra.mxu0 0.0
    %1699 = vmatprep.subr.mxu0 0.0
    %1700 = vmatpush1.msra.mxu0 0.0
    %1701 = vmatprep.subr.mxu0 0.0
    %1702 = vmatpush1.msra.mxu0 0.0
    %1703 = vmatprep.subr.mxu0 0.0
    %1704 = vmatpush1.msra.mxu0 0.0
    %1705 = vmatprep.subr.mxu0 0.0
    %1706 = vmatpush1.msra.mxu0 0.0
    %1707 = vmatprep.subr.mxu0 0.0
    %1708 = vmatpush1.msra.mxu0 0.0
    %1709 = vmatprep.subr.mxu0 0.0
    %1710 = vmatpush1.msra.mxu0 0.0
    %1711 = vmatprep.subr.mxu0 0.0
    %1712 = vmatpush1.msra.mxu0 0.0
    %1713 = vmatprep.subr.mxu0 0.0
    %1714 = vmatpush1.msra.mxu0 %v58
    %1715 = vmatprep.subr.mxu0 0.0
    %1716 = vmatpush1.msra.mxu0 %v57
    %1717 = vmatprep.subr.mxu0 0.0
    %1718 = vmatpush1.msra.mxu0 %v56
    %1719 = vmatprep.subr.mxu0 0.0
    %1720 = vmatpush1.msra.mxu0 %v55
    %1721 = vmatprep.subr.mxu0 0.0
    %1722 = vmatpush2.msra.mxu0 0.0
    %1723 = vmatprep.subr.mxu0 0.0
    %1724 = vmatpush2.msra.mxu0 0.0
    %1725 = vmatprep.subr.mxu0 0.0
    %1726 = vmatpush2.msra.mxu0 0.0
    %1727 = vmatprep.subr.mxu0 0.0
    %1728 = vmatpush2.msra.mxu0 0.0
    %1729 = vmatprep.subr.mxu0 0.0
    %1730 = vmatpush2.msra.mxu0 0.0
    %1731 = vmatprep.subr.mxu0 0.0
    %1732 = vmatpush2.msra.mxu0 0.0
    %1733 = vmatprep.subr.mxu0 0.0
    %1734 = vmatpush2.msra.mxu0 0.0
    %1735 = vmatprep.subr.mxu0 0.0
    %1736 = vmatpush2.msra.mxu0 0.0
    %1737 = vmatprep.subr.mxu0 0.0
    %1738 = vmatpush2.msra.mxu0 0.0
    %1739 = vmatprep.subr.mxu0 0.0
    %1740 = vmatpush2.msra.mxu0 0.0
    %1741 = vmatprep.subr.mxu0 0.0
    %1742 = vmatpush2.msra.mxu0 0.0
    %1743 = vmatprep.subr.mxu0 0.0
    %1744 = vmatpush2.msra.mxu0 0.0
    %1745 = vmatprep.subr.mxu0 0.0
    %1746 = vmatpush2.msra.mxu0 0.0
    %1747 = vmatprep.subr.mxu0 0.0
    %1748 = vmatpush2.msra.mxu0 0.0
    %1749 = vmatprep.subr.mxu0 0.0
    %1750 = vmatpush2.msra.mxu0 0.0
    %1751 = vmatprep.subr.mxu0 0.0
    %1752 = vmatpush2.msra.mxu0 0.0
    %1753 = vmatprep.mubr.f32.mxu0 0.0
    %1754 = vmatmul.mubr.f32.gmra.mxu0 %v1684
    %v1755 = vpop.f32.mrf.mxu0
    %v1756 = vadd.f32 0.0, %v1755
    %v1757 = vpop.f32.mrf.mxu0
    %1758 = vmatprep.mubr.f32.mxu0 0.0
    %1759 = vmatmul.mubr.f32.gmra.mxu0 %v1687
    %v1760 = vpop.f32.mrf.mxu0
    %v1761 = vadd.f32 0.0, %v1760
    %v1762 = vpop.f32.mrf.mxu0
    %1763 = vdwg.mxu0
    %v1764 = vlaneseq
    %v1765 = vshrl.u32 %v1764, 7
    %v1766 = vsub.s32 3, %v1765
    %v1767 = vrot.slane %v479, %v1766
    %v1768 = vmul.f32 %v1584, %v1767
    %v1769 = vmul.f32 %v1585, %v1767
    %v1770 = vlaneseq
    %v1771 = vshrl.u32 %v1770, 7
    %v1772 = vsub.s32 3, %v1771
    %v1773 = vrot.slane %v639, %v1772
    %1775 = vrot.lane.b32.xlu0 %v1773, 96
    %v1776 = vpop.permute.xlu0 %1775
    %v1778 = vmul.f32 %v1756, %v1776
    %v1779 = vmul.f32 %v1761, %v1776
    %v1780 = vadd.f32 %v1768, %v1778
    %v1781 = vadd.f32 %v1769, %v1779
    %v1782 = vadd.f32 %v1780, %v1067
    %v1783 = vadd.f32 %v1781, %v1068
    %v1784 = vlaneseq
    %v1785 = vshrl.u32 %v1784, 7
    %v1786 = vsub.s32 3, %v1785
    %v1787 = vrot.slane %v316, %v1786
    %v1788 = vmul.f32 %v1782, %v1787
    %v1789 = vmul.f32 %v1783, %v1787
    %v1791 = vsel %vm72, %v1788, 0
    %v1794 = vsel %vm72, %v1789, 0
    %1796 = vmatprep.subr.mxu0 0.0
    %1797 = vmatpush1.msra.mxu0 0.0
    %1798 = vmatprep.subr.mxu0 0.0
    %1799 = vmatpush1.msra.mxu0 0.0
    %1800 = vmatprep.subr.mxu0 0.0
    %1801 = vmatpush1.msra.mxu0 0.0
    %1802 = vmatprep.subr.mxu0 0.0
    %1803 = vmatpush1.msra.mxu0 0.0
    %1804 = vmatprep.subr.mxu0 0.0
    %1805 = vmatpush1.msra.mxu0 0.0
    %1806 = vmatprep.subr.mxu0 0.0
    %1807 = vmatpush1.msra.mxu0 0.0
    %1808 = vmatprep.subr.mxu0 0.0
    %1809 = vmatpush1.msra.mxu0 0.0
    %1810 = vmatprep.subr.mxu0 0.0
    %1811 = vmatpush1.msra.mxu0 0.0
    %1812 = vmatprep.subr.mxu0 0.0
    %1813 = vmatpush1.msra.mxu0 0.0
    %1814 = vmatprep.subr.mxu0 0.0
    %1815 = vmatpush1.msra.mxu0 0.0
    %1816 = vmatprep.subr.mxu0 0.0
    %1817 = vmatpush1.msra.mxu0 0.0
    %1818 = vmatprep.subr.mxu0 0.0
    %1819 = vmatpush1.msra.mxu0 0.0
    %1820 = vmatprep.subr.mxu0 0.0
    %1821 = vmatpush1.msra.mxu0 %v58
    %1822 = vmatprep.subr.mxu0 0.0
    %1823 = vmatpush1.msra.mxu0 %v57
    %1824 = vmatprep.subr.mxu0 0.0
    %1825 = vmatpush1.msra.mxu0 %v56
    %1826 = vmatprep.subr.mxu0 0.0
    %1827 = vmatpush1.msra.mxu0 %v55
    %1828 = vmatprep.subr.mxu0 0.0
    %1829 = vmatpush2.msra.mxu0 0.0
    %1830 = vmatprep.subr.mxu0 0.0
    %1831 = vmatpush2.msra.mxu0 0.0
    %1832 = vmatprep.subr.mxu0 0.0
    %1833 = vmatpush2.msra.mxu0 0.0
    %1834 = vmatprep.subr.mxu0 0.0
    %1835 = vmatpush2.msra.mxu0 0.0
    %1836 = vmatprep.subr.mxu0 0.0
    %1837 = vmatpush2.msra.mxu0 0.0
    %1838 = vmatprep.subr.mxu0 0.0
    %1839 = vmatpush2.msra.mxu0 0.0
    %1840 = vmatprep.subr.mxu0 0.0
    %1841 = vmatpush2.msra.mxu0 0.0
    %1842 = vmatprep.subr.mxu0 0.0
    %1843 = vmatpush2.msra.mxu0 0.0
    %1844 = vmatprep.subr.mxu0 0.0
    %1845 = vmatpush2.msra.mxu0 0.0
    %1846 = vmatprep.subr.mxu0 0.0
    %1847 = vmatpush2.msra.mxu0 0.0
    %1848 = vmatprep.subr.mxu0 0.0
    %1849 = vmatpush2.msra.mxu0 0.0
    %1850 = vmatprep.subr.mxu0 0.0
    %1851 = vmatpush2.msra.mxu0 0.0
    %1852 = vmatprep.subr.mxu0 0.0
    %1853 = vmatpush2.msra.mxu0 0.0
    %1854 = vmatprep.subr.mxu0 0.0
    %1855 = vmatpush2.msra.mxu0 0.0
    %1856 = vmatprep.subr.mxu0 0.0
    %1857 = vmatpush2.msra.mxu0 0.0
    %1858 = vmatprep.subr.mxu0 0.0
    %1859 = vmatpush2.msra.mxu0 0.0
    %1860 = vmatprep.mubr.f32.mxu0 0.0
    %1861 = vmatmul.mubr.f32.gmra.mxu0 %v1791
    %v1862 = vpop.f32.mrf.mxu0
    %v1863 = vadd.f32 0.0, %v1862
    %v1864 = vpop.f32.mrf.mxu0
    %1865 = vmatprep.mubr.f32.mxu0 0.0
    %1866 = vmatmul.mubr.f32.gmra.mxu0 %v1794
    %v1867 = vpop.f32.mrf.mxu0
    %v1868 = vadd.f32 0.0, %v1867
    %v1869 = vpop.f32.mrf.mxu0
    %1870 = vdwg.mxu0
    %v1871 = vlaneseq
    %v1872 = vshrl.u32 %v1871, 7
    %v1873 = vsub.s32 4, %v1872
    %v1874 = vrot.slane %v634, %v1873
    %1876 = vrot.lane.b32.xlu0 %v1874, 96
    %v1877 = vpop.permute.xlu0 %1876
    %v1879 = vmul.f32 %v1782, %v1877
    %v1880 = vmul.f32 %v1783, %v1877
    %v1882 = vsel %vm72, %v1879, 0
    %v1885 = vsel %vm72, %v1880, 0
    %1887 = vmatprep.subr.mxu0 0.0
    %1888 = vmatpush1.msra.mxu0 0.0
    %1889 = vmatprep.subr.mxu0 0.0
    %1890 = vmatpush1.msra.mxu0 0.0
    %1891 = vmatprep.subr.mxu0 0.0
    %1892 = vmatpush1.msra.mxu0 0.0
    %1893 = vmatprep.subr.mxu0 0.0
    %1894 = vmatpush1.msra.mxu0 0.0
    %1895 = vmatprep.subr.mxu0 0.0
    %1896 = vmatpush1.msra.mxu0 0.0
    %1897 = vmatprep.subr.mxu0 0.0
    %1898 = vmatpush1.msra.mxu0 0.0
    %1899 = vmatprep.subr.mxu0 0.0
    %1900 = vmatpush1.msra.mxu0 0.0
    %1901 = vmatprep.subr.mxu0 0.0
    %1902 = vmatpush1.msra.mxu0 0.0
    %1903 = vmatprep.subr.mxu0 0.0
    %1904 = vmatpush1.msra.mxu0 0.0
    %1905 = vmatprep.subr.mxu0 0.0
    %1906 = vmatpush1.msra.mxu0 0.0
    %1907 = vmatprep.subr.mxu0 0.0
    %1908 = vmatpush1.msra.mxu0 0.0
    %1909 = vmatprep.subr.mxu0 0.0
    %1910 = vmatpush1.msra.mxu0 0.0
    %1911 = vmatprep.subr.mxu0 0.0
    %1912 = vmatpush1.msra.mxu0 %v58
    %1913 = vmatprep.subr.mxu0 0.0
    %1914 = vmatpush1.msra.mxu0 %v57
    %1915 = vmatprep.subr.mxu0 0.0
    %1916 = vmatpush1.msra.mxu0 %v56
    %1917 = vmatprep.subr.mxu0 0.0
    %1918 = vmatpush1.msra.mxu0 %v55
    %1919 = vmatprep.subr.mxu0 0.0
    %1920 = vmatpush2.msra.mxu0 0.0
    %1921 = vmatprep.subr.mxu0 0.0
    %1922 = vmatpush2.msra.mxu0 0.0
    %1923 = vmatprep.subr.mxu0 0.0
    %1924 = vmatpush2.msra.mxu0 0.0
    %1925 = vmatprep.subr.mxu0 0.0
    %1926 = vmatpush2.msra.mxu0 0.0
    %1927 = vmatprep.subr.mxu0 0.0
    %1928 = vmatpush2.msra.mxu0 0.0
    %1929 = vmatprep.subr.mxu0 0.0
    %1930 = vmatpush2.msra.mxu0 0.0
    %1931 = vmatprep.subr.mxu0 0.0
    %1932 = vmatpush2.msra.mxu0 0.0
    %1933 = vmatprep.subr.mxu0 0.0
    %1934 = vmatpush2.msra.mxu0 0.0
    %1935 = vmatprep.subr.mxu0 0.0
    %1936 = vmatpush2.msra.mxu0 0.0
    %1937 = vmatprep.subr.mxu0 0.0
    %1938 = vmatpush2.msra.mxu0 0.0
    %1939 = vmatprep.subr.mxu0 0.0
    %1940 = vmatpush2.msra.mxu0 0.0
    %1941 = vmatprep.subr.mxu0 0.0
    %1942 = vmatpush2.msra.mxu0 0.0
    %1943 = vmatprep.subr.mxu0 0.0
    %1944 = vmatpush2.msra.mxu0 0.0
    %1945 = vmatprep.subr.mxu0 0.0
    %1946 = vmatpush2.msra.mxu0 0.0
    %1947 = vmatprep.subr.mxu0 0.0
    %1948 = vmatpush2.msra.mxu0 0.0
    %1949 = vmatprep.subr.mxu0 0.0
    %1950 = vmatpush2.msra.mxu0 0.0
    %1951 = vmatprep.mubr.f32.mxu0 0.0
    %1952 = vmatmul.mubr.f32.gmra.mxu0 %v1882
    %v1953 = vpop.f32.mrf.mxu0
    %v1954 = vadd.f32 0.0, %v1953
    %v1955 = vpop.f32.mrf.mxu0
    %1956 = vmatprep.mubr.f32.mxu0 0.0
    %1957 = vmatmul.mubr.f32.gmra.mxu0 %v1885
    %v1958 = vpop.f32.mrf.mxu0
    %v1959 = vadd.f32 0.0, %v1958
    %v1960 = vpop.f32.mrf.mxu0
    %1961 = vdwg.mxu0
    %v1962 = vlaneseq
    %v1963 = vshrl.u32 %v1962, 7
    %v1964 = vsub.s32 4, %v1963
    %v1965 = vrot.slane %v479, %v1964
    %v1966 = vmul.f32 %v1782, %v1965
    %v1967 = vmul.f32 %v1783, %v1965
    %v1968 = vlaneseq
    %v1969 = vshrl.u32 %v1968, 7
    %v1970 = vsub.s32 4, %v1969
    %v1971 = vrot.slane %v639, %v1970
    %1973 = vrot.lane.b32.xlu0 %v1971, 96
    %v1974 = vpop.permute.xlu0 %1973
    %v1976 = vmul.f32 %v1954, %v1974
    %v1977 = vmul.f32 %v1959, %v1974
    %v1978 = vadd.f32 %v1966, %v1976
    %v1979 = vadd.f32 %v1967, %v1977
    %v1980 = vadd.f32 %v1978, %v1069
    %v1981 = vadd.f32 %v1979, %v1070
    %v1982 = vlaneseq
    %v1983 = vshrl.u32 %v1982, 7
    %v1984 = vsub.s32 4, %v1983
    %v1985 = vrot.slane %v316, %v1984
    %v1986 = vmul.f32 %v1980, %v1985
    %v1987 = vmul.f32 %v1981, %v1985
    %v1989 = vsel %vm72, %v1986, 0
    %v1992 = vsel %vm72, %v1987, 0
    %1994 = vmatprep.subr.mxu0 0.0
    %1995 = vmatpush1.msra.mxu0 0.0
    %1996 = vmatprep.subr.mxu0 0.0
    %1997 = vmatpush1.msra.mxu0 0.0
    %1998 = vmatprep.subr.mxu0 0.0
    %1999 = vmatpush1.msra.mxu0 0.0
    %2000 = vmatprep.subr.mxu0 0.0
    %2001 = vmatpush1.msra.mxu0 0.0
    %2002 = vmatprep.subr.mxu0 0.0
    %2003 = vmatpush1.msra.mxu0 0.0
    %2004 = vmatprep.subr.mxu0 0.0
    %2005 = vmatpush1.msra.mxu0 0.0
    %2006 = vmatprep.subr.mxu0 0.0
    %2007 = vmatpush1.msra.mxu0 0.0
    %2008 = vmatprep.subr.mxu0 0.0
    %2009 = vmatpush1.msra.mxu0 0.0
    %2010 = vmatprep.subr.mxu0 0.0
    %2011 = vmatpush1.msra.mxu0 0.0
    %2012 = vmatprep.subr.mxu0 0.0
    %2013 = vmatpush1.msra.mxu0 0.0
    %2014 = vmatprep.subr.mxu0 0.0
    %2015 = vmatpush1.msra.mxu0 0.0
    %2016 = vmatprep.subr.mxu0 0.0
    %2017 = vmatpush1.msra.mxu0 0.0
    %2018 = vmatprep.subr.mxu0 0.0
    %2019 = vmatpush1.msra.mxu0 %v58
    %2020 = vmatprep.subr.mxu0 0.0
    %2021 = vmatpush1.msra.mxu0 %v57
    %2022 = vmatprep.subr.mxu0 0.0
    %2023 = vmatpush1.msra.mxu0 %v56
    %2024 = vmatprep.subr.mxu0 0.0
    %2025 = vmatpush1.msra.mxu0 %v55
    %2026 = vmatprep.subr.mxu0 0.0
    %2027 = vmatpush2.msra.mxu0 0.0
    %2028 = vmatprep.subr.mxu0 0.0
    %2029 = vmatpush2.msra.mxu0 0.0
    %2030 = vmatprep.subr.mxu0 0.0
    %2031 = vmatpush2.msra.mxu0 0.0
    %2032 = vmatprep.subr.mxu0 0.0
    %2033 = vmatpush2.msra.mxu0 0.0
    %2034 = vmatprep.subr.mxu0 0.0
    %2035 = vmatpush2.msra.mxu0 0.0
    %2036 = vmatprep.subr.mxu0 0.0
    %2037 = vmatpush2.msra.mxu0 0.0
    %2038 = vmatprep.subr.mxu0 0.0
    %2039 = vmatpush2.msra.mxu0 0.0
    %2040 = vmatprep.subr.mxu0 0.0
    %2041 = vmatpush2.msra.mxu0 0.0
    %2042 = vmatprep.subr.mxu0 0.0
    %2043 = vmatpush2.msra.mxu0 0.0
    %2044 = vmatprep.subr.mxu0 0.0
    %2045 = vmatpush2.msra.mxu0 0.0
    %2046 = vmatprep.subr.mxu0 0.0
    %2047 = vmatpush2.msra.mxu0 0.0
    %2048 = vmatprep.subr.mxu0 0.0
    %2049 = vmatpush2.msra.mxu0 0.0
    %2050 = vmatprep.subr.mxu0 0.0
    %2051 = vmatpush2.msra.mxu0 0.0
    %2052 = vmatprep.subr.mxu0 0.0
    %2053 = vmatpush2.msra.mxu0 0.0
    %2054 = vmatprep.subr.mxu0 0.0
    %2055 = vmatpush2.msra.mxu0 0.0
    %2056 = vmatprep.subr.mxu0 0.0
    %2057 = vmatpush2.msra.mxu0 0.0
    %2058 = vmatprep.mubr.f32.mxu0 0.0
    %2059 = vmatmul.mubr.f32.gmra.mxu0 %v1989
    %v2060 = vpop.f32.mrf.mxu0
    %v2061 = vadd.f32 0.0, %v2060
    %v2062 = vpop.f32.mrf.mxu0
    %2063 = vmatprep.mubr.f32.mxu0 0.0
    %2064 = vmatmul.mubr.f32.gmra.mxu0 %v1992
    %v2065 = vpop.f32.mrf.mxu0
    %v2066 = vadd.f32 0.0, %v2065
    %v2067 = vpop.f32.mrf.mxu0
    %2068 = vdwg.mxu0
    %v2069 = vlaneseq
    %v2070 = vshrl.u32 %v2069, 7
    %v2071 = vsub.s32 5, %v2070
    %v2072 = vrot.slane %v634, %v2071
    %2074 = vrot.lane.b32.xlu0 %v2072, 96
    %v2075 = vpop.permute.xlu0 %2074
    %v2077 = vmul.f32 %v1980, %v2075
    %v2078 = vmul.f32 %v1981, %v2075
    %v2080 = vsel %vm72, %v2077, 0
    %v2083 = vsel %vm72, %v2078, 0
    %2085 = vmatprep.subr.mxu0 0.0
    %2086 = vmatpush1.msra.mxu0 0.0
    %2087 = vmatprep.subr.mxu0 0.0
    %2088 = vmatpush1.msra.mxu0 0.0
    %2089 = vmatprep.subr.mxu0 0.0
    %2090 = vmatpush1.msra.mxu0 0.0
    %2091 = vmatprep.subr.mxu0 0.0
    %2092 = vmatpush1.msra.mxu0 0.0
    %2093 = vmatprep.subr.mxu0 0.0
    %2094 = vmatpush1.msra.mxu0 0.0
    %2095 = vmatprep.subr.mxu0 0.0
    %2096 = vmatpush1.msra.mxu0 0.0
    %2097 = vmatprep.subr.mxu0 0.0
    %2098 = vmatpush1.msra.mxu0 0.0
    %2099 = vmatprep.subr.mxu0 0.0
    %2100 = vmatpush1.msra.mxu0 0.0
    %2101 = vmatprep.subr.mxu0 0.0
    %2102 = vmatpush1.msra.mxu0 0.0
    %2103 = vmatprep.subr.mxu0 0.0
    %2104 = vmatpush1.msra.mxu0 0.0
    %2105 = vmatprep.subr.mxu0 0.0
    %2106 = vmatpush1.msra.mxu0 0.0
    %2107 = vmatprep.subr.mxu0 0.0
    %2108 = vmatpush1.msra.mxu0 0.0
    %2109 = vmatprep.subr.mxu0 0.0
    %2110 = vmatpush1.msra.mxu0 %v58
    %2111 = vmatprep.subr.mxu0 0.0
    %2112 = vmatpush1.msra.mxu0 %v57
    %2113 = vmatprep.subr.mxu0 0.0
    %2114 = vmatpush1.msra.mxu0 %v56
    %2115 = vmatprep.subr.mxu0 0.0
    %2116 = vmatpush1.msra.mxu0 %v55
    %2117 = vmatprep.subr.mxu0 0.0
    %2118 = vmatpush2.msra.mxu0 0.0
    %2119 = vmatprep.subr.mxu0 0.0
    %2120 = vmatpush2.msra.mxu0 0.0
    %2121 = vmatprep.subr.mxu0 0.0
    %2122 = vmatpush2.msra.mxu0 0.0
    %2123 = vmatprep.subr.mxu0 0.0
    %2124 = vmatpush2.msra.mxu0 0.0
    %2125 = vmatprep.subr.mxu0 0.0
    %2126 = vmatpush2.msra.mxu0 0.0
    %2127 = vmatprep.subr.mxu0 0.0
    %2128 = vmatpush2.msra.mxu0 0.0
    %2129 = vmatprep.subr.mxu0 0.0
    %2130 = vmatpush2.msra.mxu0 0.0
    %2131 = vmatprep.subr.mxu0 0.0
    %2132 = vmatpush2.msra.mxu0 0.0
    %2133 = vmatprep.subr.mxu0 0.0
    %2134 = vmatpush2.msra.mxu0 0.0
    %2135 = vmatprep.subr.mxu0 0.0
    %2136 = vmatpush2.msra.mxu0 0.0
    %2137 = vmatprep.subr.mxu0 0.0
    %2138 = vmatpush2.msra.mxu0 0.0
    %2139 = vmatprep.subr.mxu0 0.0
    %2140 = vmatpush2.msra.mxu0 0.0
    %2141 = vmatprep.subr.mxu0 0.0
    %2142 = vmatpush2.msra.mxu0 0.0
    %2143 = vmatprep.subr.mxu0 0.0
    %2144 = vmatpush2.msra.mxu0 0.0
    %2145 = vmatprep.subr.mxu0 0.0
    %2146 = vmatpush2.msra.mxu0 0.0
    %2147 = vmatprep.subr.mxu0 0.0
    %2148 = vmatpush2.msra.mxu0 0.0
    %2149 = vmatprep.mubr.f32.mxu0 0.0
    %2150 = vmatmul.mubr.f32.gmra.mxu0 %v2080
    %v2151 = vpop.f32.mrf.mxu0
    %v2152 = vadd.f32 0.0, %v2151
    %v2153 = vpop.f32.mrf.mxu0
    %2154 = vmatprep.mubr.f32.mxu0 0.0
    %2155 = vmatmul.mubr.f32.gmra.mxu0 %v2083
    %v2156 = vpop.f32.mrf.mxu0
    %v2157 = vadd.f32 0.0, %v2156
    %v2158 = vpop.f32.mrf.mxu0
    %2159 = vdwg.mxu0
    %v2160 = vlaneseq
    %v2161 = vshrl.u32 %v2160, 7
    %v2162 = vsub.s32 5, %v2161
    %v2163 = vrot.slane %v479, %v2162
    %v2164 = vmul.f32 %v1980, %v2163
    %v2165 = vmul.f32 %v1981, %v2163
    %v2166 = vlaneseq
    %v2167 = vshrl.u32 %v2166, 7
    %v2168 = vsub.s32 5, %v2167
    %v2169 = vrot.slane %v639, %v2168
    %2171 = vrot.lane.b32.xlu0 %v2169, 96
    %v2172 = vpop.permute.xlu0 %2171
    %v2174 = vmul.f32 %v2152, %v2172
    %v2175 = vmul.f32 %v2157, %v2172
    %v2176 = vadd.f32 %v2164, %v2174
    %v2177 = vadd.f32 %v2165, %v2175
    %v2178 = vadd.f32 %v2176, %v1071
    %v2179 = vadd.f32 %v2177, %v1072
    %v2180 = vlaneseq
    %v2181 = vshrl.u32 %v2180, 7
    %v2182 = vsub.s32 5, %v2181
    %v2183 = vrot.slane %v316, %v2182
    %v2184 = vmul.f32 %v2178, %v2183
    %v2185 = vmul.f32 %v2179, %v2183
    %v2187 = vsel %vm72, %v2184, 0
    %v2190 = vsel %vm72, %v2185, 0
    %2192 = vmatprep.subr.mxu0 0.0
    %2193 = vmatpush1.msra.mxu0 0.0
    %2194 = vmatprep.subr.mxu0 0.0
    %2195 = vmatpush1.msra.mxu0 0.0
    %2196 = vmatprep.subr.mxu0 0.0
    %2197 = vmatpush1.msra.mxu0 0.0
    %2198 = vmatprep.subr.mxu0 0.0
    %2199 = vmatpush1.msra.mxu0 0.0
    %2200 = vmatprep.subr.mxu0 0.0
    %2201 = vmatpush1.msra.mxu0 0.0
    %2202 = vmatprep.subr.mxu0 0.0
    %2203 = vmatpush1.msra.mxu0 0.0
    %2204 = vmatprep.subr.mxu0 0.0
    %2205 = vmatpush1.msra.mxu0 0.0
    %2206 = vmatprep.subr.mxu0 0.0
    %2207 = vmatpush1.msra.mxu0 0.0
    %2208 = vmatprep.subr.mxu0 0.0
    %2209 = vmatpush1.msra.mxu0 0.0
    %2210 = vmatprep.subr.mxu0 0.0
    %2211 = vmatpush1.msra.mxu0 0.0
    %2212 = vmatprep.subr.mxu0 0.0
    %2213 = vmatpush1.msra.mxu0 0.0
    %2214 = vmatprep.subr.mxu0 0.0
    %2215 = vmatpush1.msra.mxu0 0.0
    %2216 = vmatprep.subr.mxu0 0.0
    %2217 = vmatpush1.msra.mxu0 %v58
    %2218 = vmatprep.subr.mxu0 0.0
    %2219 = vmatpush1.msra.mxu0 %v57
    %2220 = vmatprep.subr.mxu0 0.0
    %2221 = vmatpush1.msra.mxu0 %v56
    %2222 = vmatprep.subr.mxu0 0.0
    %2223 = vmatpush1.msra.mxu0 %v55
    %2224 = vmatprep.subr.mxu0 0.0
    %2225 = vmatpush2.msra.mxu0 0.0
    %2226 = vmatprep.subr.mxu0 0.0
    %2227 = vmatpush2.msra.mxu0 0.0
    %2228 = vmatprep.subr.mxu0 0.0
    %2229 = vmatpush2.msra.mxu0 0.0
    %2230 = vmatprep.subr.mxu0 0.0
    %2231 = vmatpush2.msra.mxu0 0.0
    %2232 = vmatprep.subr.mxu0 0.0
    %2233 = vmatpush2.msra.mxu0 0.0
    %2234 = vmatprep.subr.mxu0 0.0
    %2235 = vmatpush2.msra.mxu0 0.0
    %2236 = vmatprep.subr.mxu0 0.0
    %2237 = vmatpush2.msra.mxu0 0.0
    %2238 = vmatprep.subr.mxu0 0.0
    %2239 = vmatpush2.msra.mxu0 0.0
    %2240 = vmatprep.subr.mxu0 0.0
    %2241 = vmatpush2.msra.mxu0 0.0
    %2242 = vmatprep.subr.mxu0 0.0
    %2243 = vmatpush2.msra.mxu0 0.0
    %2244 = vmatprep.subr.mxu0 0.0
    %2245 = vmatpush2.msra.mxu0 0.0
    %2246 = vmatprep.subr.mxu0 0.0
    %2247 = vmatpush2.msra.mxu0 0.0
    %2248 = vmatprep.subr.mxu0 0.0
    %2249 = vmatpush2.msra.mxu0 0.0
    %2250 = vmatprep.subr.mxu0 0.0
    %2251 = vmatpush2.msra.mxu0 0.0
    %2252 = vmatprep.subr.mxu0 0.0
    %2253 = vmatpush2.msra.mxu0 0.0
    %2254 = vmatprep.subr.mxu0 0.0
    %2255 = vmatpush2.msra.mxu0 0.0
    %2256 = vmatprep.mubr.f32.mxu0 0.0
    %2257 = vmatmul.mubr.f32.gmra.mxu0 %v2187
    %v2258 = vpop.f32.mrf.mxu0
    %v2259 = vadd.f32 0.0, %v2258
    %v2260 = vpop.f32.mrf.mxu0
    %2261 = vmatprep.mubr.f32.mxu0 0.0
    %2262 = vmatmul.mubr.f32.gmra.mxu0 %v2190
    %v2263 = vpop.f32.mrf.mxu0
    %v2264 = vadd.f32 0.0, %v2263
    %v2265 = vpop.f32.mrf.mxu0
    %2266 = vdwg.mxu0
    %v2267 = vlaneseq
    %v2268 = vshrl.u32 %v2267, 7
    %v2269 = vsub.s32 6, %v2268
    %v2270 = vrot.slane %v634, %v2269
    %2272 = vrot.lane.b32.xlu0 %v2270, 96
    %v2273 = vpop.permute.xlu0 %2272
    %v2275 = vmul.f32 %v2178, %v2273
    %v2276 = vmul.f32 %v2179, %v2273
    %v2278 = vsel %vm72, %v2275, 0
    %v2281 = vsel %vm72, %v2276, 0
    %2283 = vmatprep.subr.mxu0 0.0
    %2284 = vmatpush1.msra.mxu0 0.0
    %2285 = vmatprep.subr.mxu0 0.0
    %2286 = vmatpush1.msra.mxu0 0.0
    %2287 = vmatprep.subr.mxu0 0.0
    %2288 = vmatpush1.msra.mxu0 0.0
    %2289 = vmatprep.subr.mxu0 0.0
    %2290 = vmatpush1.msra.mxu0 0.0
    %2291 = vmatprep.subr.mxu0 0.0
    %2292 = vmatpush1.msra.mxu0 0.0
    %2293 = vmatprep.subr.mxu0 0.0
    %2294 = vmatpush1.msra.mxu0 0.0
    %2295 = vmatprep.subr.mxu0 0.0
    %2296 = vmatpush1.msra.mxu0 0.0
    %2297 = vmatprep.subr.mxu0 0.0
    %2298 = vmatpush1.msra.mxu0 0.0
    %2299 = vmatprep.subr.mxu0 0.0
    %2300 = vmatpush1.msra.mxu0 0.0
    %2301 = vmatprep.subr.mxu0 0.0
    %2302 = vmatpush1.msra.mxu0 0.0
    %2303 = vmatprep.subr.mxu0 0.0
    %2304 = vmatpush1.msra.mxu0 0.0
    %2305 = vmatprep.subr.mxu0 0.0
    %2306 = vmatpush1.msra.mxu0 0.0
    %2307 = vmatprep.subr.mxu0 0.0
    %2308 = vmatpush1.msra.mxu0 %v58
    %2309 = vmatprep.subr.mxu0 0.0
    %2310 = vmatpush1.msra.mxu0 %v57
    %2311 = vmatprep.subr.mxu0 0.0
    %2312 = vmatpush1.msra.mxu0 %v56
    %2313 = vmatprep.subr.mxu0 0.0
    %2314 = vmatpush1.msra.mxu0 %v55
    %2315 = vmatprep.subr.mxu0 0.0
    %2316 = vmatpush2.msra.mxu0 0.0
    %2317 = vmatprep.subr.mxu0 0.0
    %2318 = vmatpush2.msra.mxu0 0.0
    %2319 = vmatprep.subr.mxu0 0.0
    %2320 = vmatpush2.msra.mxu0 0.0
    %2321 = vmatprep.subr.mxu0 0.0
    %2322 = vmatpush2.msra.mxu0 0.0
    %2323 = vmatprep.subr.mxu0 0.0
    %2324 = vmatpush2.msra.mxu0 0.0
    %2325 = vmatprep.subr.mxu0 0.0
    %2326 = vmatpush2.msra.mxu0 0.0
    %2327 = vmatprep.subr.mxu0 0.0
    %2328 = vmatpush2.msra.mxu0 0.0
    %2329 = vmatprep.subr.mxu0 0.0
    %2330 = vmatpush2.msra.mxu0 0.0
    %2331 = vmatprep.subr.mxu0 0.0
    %2332 = vmatpush2.msra.mxu0 0.0
    %2333 = vmatprep.subr.mxu0 0.0
    %2334 = vmatpush2.msra.mxu0 0.0
    %2335 = vmatprep.subr.mxu0 0.0
    %2336 = vmatpush2.msra.mxu0 0.0
    %2337 = vmatprep.subr.mxu0 0.0
    %2338 = vmatpush2.msra.mxu0 0.0
    %2339 = vmatprep.subr.mxu0 0.0
    %2340 = vmatpush2.msra.mxu0 0.0
    %2341 = vmatprep.subr.mxu0 0.0
    %2342 = vmatpush2.msra.mxu0 0.0
    %2343 = vmatprep.subr.mxu0 0.0
    %2344 = vmatpush2.msra.mxu0 0.0
    %2345 = vmatprep.subr.mxu0 0.0
    %2346 = vmatpush2.msra.mxu0 0.0
    %2347 = vmatprep.mubr.f32.mxu0 0.0
    %2348 = vmatmul.mubr.f32.gmra.mxu0 %v2278
    %v2349 = vpop.f32.mrf.mxu0
    %v2350 = vadd.f32 0.0, %v2349
    %v2351 = vpop.f32.mrf.mxu0
    %2352 = vmatprep.mubr.f32.mxu0 0.0
    %2353 = vmatmul.mubr.f32.gmra.mxu0 %v2281
    %v2354 = vpop.f32.mrf.mxu0
    %v2355 = vadd.f32 0.0, %v2354
    %v2356 = vpop.f32.mrf.mxu0
    %2357 = vdwg.mxu0
    %v2358 = vlaneseq
    %v2359 = vshrl.u32 %v2358, 7
    %v2360 = vsub.s32 6, %v2359
    %v2361 = vrot.slane %v479, %v2360
    %v2362 = vmul.f32 %v2178, %v2361
    %v2363 = vmul.f32 %v2179, %v2361
    %v2364 = vlaneseq
    %v2365 = vshrl.u32 %v2364, 7
    %v2366 = vsub.s32 6, %v2365
    %v2367 = vrot.slane %v639, %v2366
    %2369 = vrot.lane.b32.xlu0 %v2367, 96
    %v2370 = vpop.permute.xlu0 %2369
    %v2372 = vmul.f32 %v2350, %v2370
    %v2373 = vmul.f32 %v2355, %v2370
    %v2374 = vadd.f32 %v2362, %v2372
    %v2375 = vadd.f32 %v2363, %v2373
    %v2376 = vadd.f32 %v2374, %v1073
    %v2377 = vadd.f32 %v2375, %v1074
    %v2378 = vlaneseq
    %v2379 = vshrl.u32 %v2378, 7
    %v2380 = vsub.s32 6, %v2379
    %v2381 = vrot.slane %v316, %v2380
    %v2382 = vmul.f32 %v2376, %v2381
    %v2383 = vmul.f32 %v2377, %v2381
    %v2385 = vsel %vm72, %v2382, 0
    %v2388 = vsel %vm72, %v2383, 0
    %2390 = vmatprep.subr.mxu0 0.0
    %2391 = vmatpush1.msra.mxu0 0.0
    %2392 = vmatprep.subr.mxu0 0.0
    %2393 = vmatpush1.msra.mxu0 0.0
    %2394 = vmatprep.subr.mxu0 0.0
    %2395 = vmatpush1.msra.mxu0 0.0
    %2396 = vmatprep.subr.mxu0 0.0
    %2397 = vmatpush1.msra.mxu0 0.0
    %2398 = vmatprep.subr.mxu0 0.0
    %2399 = vmatpush1.msra.mxu0 0.0
    %2400 = vmatprep.subr.mxu0 0.0
    %2401 = vmatpush1.msra.mxu0 0.0
    %2402 = vmatprep.subr.mxu0 0.0
    %2403 = vmatpush1.msra.mxu0 0.0
    %2404 = vmatprep.subr.mxu0 0.0
    %2405 = vmatpush1.msra.mxu0 0.0
    %2406 = vmatprep.subr.mxu0 0.0
    %2407 = vmatpush1.msra.mxu0 0.0
    %2408 = vmatprep.subr.mxu0 0.0
    %2409 = vmatpush1.msra.mxu0 0.0
    %2410 = vmatprep.subr.mxu0 0.0
    %2411 = vmatpush1.msra.mxu0 0.0
    %2412 = vmatprep.subr.mxu0 0.0
    %2413 = vmatpush1.msra.mxu0 0.0
    %2414 = vmatprep.subr.mxu0 0.0
    %2415 = vmatpush1.msra.mxu0 %v58
    %2416 = vmatprep.subr.mxu0 0.0
    %2417 = vmatpush1.msra.mxu0 %v57
    %2418 = vmatprep.subr.mxu0 0.0
    %2419 = vmatpush1.msra.mxu0 %v56
    %2420 = vmatprep.subr.mxu0 0.0
    %2421 = vmatpush1.msra.mxu0 %v55
    %2422 = vmatprep.subr.mxu0 0.0
    %2423 = vmatpush2.msra.mxu0 0.0
    %2424 = vmatprep.subr.mxu0 0.0
    %2425 = vmatpush2.msra.mxu0 0.0
    %2426 = vmatprep.subr.mxu0 0.0
    %2427 = vmatpush2.msra.mxu0 0.0
    %2428 = vmatprep.subr.mxu0 0.0
    %2429 = vmatpush2.msra.mxu0 0.0
    %2430 = vmatprep.subr.mxu0 0.0
    %2431 = vmatpush2.msra.mxu0 0.0
    %2432 = vmatprep.subr.mxu0 0.0
    %2433 = vmatpush2.msra.mxu0 0.0
    %2434 = vmatprep.subr.mxu0 0.0
    %2435 = vmatpush2.msra.mxu0 0.0
    %2436 = vmatprep.subr.mxu0 0.0
    %2437 = vmatpush2.msra.mxu0 0.0
    %2438 = vmatprep.subr.mxu0 0.0
    %2439 = vmatpush2.msra.mxu0 0.0
    %2440 = vmatprep.subr.mxu0 0.0
    %2441 = vmatpush2.msra.mxu0 0.0
    %2442 = vmatprep.subr.mxu0 0.0
    %2443 = vmatpush2.msra.mxu0 0.0
    %2444 = vmatprep.subr.mxu0 0.0
    %2445 = vmatpush2.msra.mxu0 0.0
    %2446 = vmatprep.subr.mxu0 0.0
    %2447 = vmatpush2.msra.mxu0 0.0
    %2448 = vmatprep.subr.mxu0 0.0
    %2449 = vmatpush2.msra.mxu0 0.0
    %2450 = vmatprep.subr.mxu0 0.0
    %2451 = vmatpush2.msra.mxu0 0.0
    %2452 = vmatprep.subr.mxu0 0.0
    %2453 = vmatpush2.msra.mxu0 0.0
    %2454 = vmatprep.mubr.f32.mxu0 0.0
    %2455 = vmatmul.mubr.f32.gmra.mxu0 %v2385
    %v2456 = vpop.f32.mrf.mxu0
    %v2457 = vadd.f32 0.0, %v2456
    %v2458 = vpop.f32.mrf.mxu0
    %2459 = vmatprep.mubr.f32.mxu0 0.0
    %2460 = vmatmul.mubr.f32.gmra.mxu0 %v2388
    %v2461 = vpop.f32.mrf.mxu0
    %v2462 = vadd.f32 0.0, %v2461
    %v2463 = vpop.f32.mrf.mxu0
    %2464 = vdwg.mxu0
    %v2465 = vlaneseq
    %v2466 = vshrl.u32 %v2465, 7
    %v2467 = vsub.s32 7, %v2466
    %v2468 = vrot.slane %v634, %v2467
    %2470 = vrot.lane.b32.xlu0 %v2468, 96
    %v2471 = vpop.permute.xlu0 %2470
    %v2473 = vmul.f32 %v2376, %v2471
    %v2474 = vmul.f32 %v2377, %v2471
    %v2476 = vsel %vm72, %v2473, 0
    %v2479 = vsel %vm72, %v2474, 0
    %2481 = vmatprep.subr.mxu0 0.0
    %2482 = vmatpush1.msra.mxu0 0.0
    %2483 = vmatprep.subr.mxu0 0.0
    %2484 = vmatpush1.msra.mxu0 0.0
    %2485 = vmatprep.subr.mxu0 0.0
    %2486 = vmatpush1.msra.mxu0 0.0
    %2487 = vmatprep.subr.mxu0 0.0
    %2488 = vmatpush1.msra.mxu0 0.0
    %2489 = vmatprep.subr.mxu0 0.0
    %2490 = vmatpush1.msra.mxu0 0.0
    %2491 = vmatprep.subr.mxu0 0.0
    %2492 = vmatpush1.msra.mxu0 0.0
    %2493 = vmatprep.subr.mxu0 0.0
    %2494 = vmatpush1.msra.mxu0 0.0
    %2495 = vmatprep.subr.mxu0 0.0
    %2496 = vmatpush1.msra.mxu0 0.0
    %2497 = vmatprep.subr.mxu0 0.0
    %2498 = vmatpush1.msra.mxu0 0.0
    %2499 = vmatprep.subr.mxu0 0.0
    %2500 = vmatpush1.msra.mxu0 0.0
    %2501 = vmatprep.subr.mxu0 0.0
    %2502 = vmatpush1.msra.mxu0 0.0
    %2503 = vmatprep.subr.mxu0 0.0
    %2504 = vmatpush1.msra.mxu0 0.0
    %2505 = vmatprep.subr.mxu0 0.0
    %2506 = vmatpush1.msra.mxu0 %v58
    %2507 = vmatprep.subr.mxu0 0.0
    %2508 = vmatpush1.msra.mxu0 %v57
    %2509 = vmatprep.subr.mxu0 0.0
    %2510 = vmatpush1.msra.mxu0 %v56
    %2511 = vmatprep.subr.mxu0 0.0
    %2512 = vmatpush1.msra.mxu0 %v55
    %2513 = vmatprep.subr.mxu0 0.0
    %2514 = vmatpush2.msra.mxu0 0.0
    %2515 = vmatprep.subr.mxu0 0.0
    %2516 = vmatpush2.msra.mxu0 0.0
    %2517 = vmatprep.subr.mxu0 0.0
    %2518 = vmatpush2.msra.mxu0 0.0
    %2519 = vmatprep.subr.mxu0 0.0
    %2520 = vmatpush2.msra.mxu0 0.0
    %2521 = vmatprep.subr.mxu0 0.0
    %2522 = vmatpush2.msra.mxu0 0.0
    %2523 = vmatprep.subr.mxu0 0.0
    %2524 = vmatpush2.msra.mxu0 0.0
    %2525 = vmatprep.subr.mxu0 0.0
    %2526 = vmatpush2.msra.mxu0 0.0
    %2527 = vmatprep.subr.mxu0 0.0
    %2528 = vmatpush2.msra.mxu0 0.0
    %2529 = vmatprep.subr.mxu0 0.0
    %2530 = vmatpush2.msra.mxu0 0.0
    %2531 = vmatprep.subr.mxu0 0.0
    %2532 = vmatpush2.msra.mxu0 0.0
    %2533 = vmatprep.subr.mxu0 0.0
    %2534 = vmatpush2.msra.mxu0 0.0
    %2535 = vmatprep.subr.mxu0 0.0
    %2536 = vmatpush2.msra.mxu0 0.0
    %2537 = vmatprep.subr.mxu0 0.0
    %2538 = vmatpush2.msra.mxu0 0.0
    %2539 = vmatprep.subr.mxu0 0.0
    %2540 = vmatpush2.msra.mxu0 0.0
    %2541 = vmatprep.subr.mxu0 0.0
    %2542 = vmatpush2.msra.mxu0 0.0
    %2543 = vmatprep.subr.mxu0 0.0
    %2544 = vmatpush2.msra.mxu0 0.0
    %2545 = vmatprep.mubr.f32.mxu0 0.0
    %2546 = vmatmul.mubr.f32.gmra.mxu0 %v2476
    %v2547 = vpop.f32.mrf.mxu0
    %v2548 = vadd.f32 0.0, %v2547
    %v2549 = vpop.f32.mrf.mxu0
    %2550 = vmatprep.mubr.f32.mxu0 0.0
    %2551 = vmatmul.mubr.f32.gmra.mxu0 %v2479
    %v2552 = vpop.f32.mrf.mxu0
    %v2553 = vadd.f32 0.0, %v2552
    %v2554 = vpop.f32.mrf.mxu0
    %2555 = vdwg.mxu0
    %v2556 = vlaneseq
    %v2557 = vshrl.u32 %v2556, 7
    %v2558 = vsub.s32 7, %v2557
    %v2559 = vrot.slane %v479, %v2558
    %v2560 = vmul.f32 %v2376, %v2559
    %v2561 = vmul.f32 %v2377, %v2559
    %v2562 = vlaneseq
    %v2563 = vshrl.u32 %v2562, 7
    %v2564 = vsub.s32 7, %v2563
    %v2565 = vrot.slane %v639, %v2564
    %2567 = vrot.lane.b32.xlu0 %v2565, 96
    %v2568 = vpop.permute.xlu0 %2567
    %v2570 = vmul.f32 %v2548, %v2568
    %v2571 = vmul.f32 %v2553, %v2568
    %v2572 = vadd.f32 %v2560, %v2570
    %v2573 = vadd.f32 %v2561, %v2571
    %v2574 = vadd.f32 %v2572, %v1075
    %v2575 = vadd.f32 %v2573, %v1076
    %v2576 = vlaneseq
    %v2577 = vshrl.u32 %v2576, 7
    %v2578 = vsub.s32 7, %v2577
    %v2579 = vrot.slane %v316, %v2578
    %v2580 = vmul.f32 %v2574, %v2579
    %v2581 = vmul.f32 %v2575, %v2579
    %v2583 = vsel %vm72, %v2580, 0
    %v2586 = vsel %vm72, %v2581, 0
    %2588 = vmatprep.subr.mxu0 0.0
    %2589 = vmatpush1.msra.mxu0 0.0
    %2590 = vmatprep.subr.mxu0 0.0
    %2591 = vmatpush1.msra.mxu0 0.0
    %2592 = vmatprep.subr.mxu0 0.0
    %2593 = vmatpush1.msra.mxu0 0.0
    %2594 = vmatprep.subr.mxu0 0.0
    %2595 = vmatpush1.msra.mxu0 0.0
    %2596 = vmatprep.subr.mxu0 0.0
    %2597 = vmatpush1.msra.mxu0 0.0
    %2598 = vmatprep.subr.mxu0 0.0
    %2599 = vmatpush1.msra.mxu0 0.0
    %2600 = vmatprep.subr.mxu0 0.0
    %2601 = vmatpush1.msra.mxu0 0.0
    %2602 = vmatprep.subr.mxu0 0.0
    %2603 = vmatpush1.msra.mxu0 0.0
    %2604 = vmatprep.subr.mxu0 0.0
    %2605 = vmatpush1.msra.mxu0 0.0
    %2606 = vmatprep.subr.mxu0 0.0
    %2607 = vmatpush1.msra.mxu0 0.0
    %2608 = vmatprep.subr.mxu0 0.0
    %2609 = vmatpush1.msra.mxu0 0.0
    %2610 = vmatprep.subr.mxu0 0.0
    %2611 = vmatpush1.msra.mxu0 0.0
    %2612 = vmatprep.subr.mxu0 0.0
    %2613 = vmatpush1.msra.mxu0 %v58
    %2614 = vmatprep.subr.mxu0 0.0
    %2615 = vmatpush1.msra.mxu0 %v57
    %2616 = vmatprep.subr.mxu0 0.0
    %2617 = vmatpush1.msra.mxu0 %v56
    %2618 = vmatprep.subr.mxu0 0.0
    %2619 = vmatpush1.msra.mxu0 %v55
    %2620 = vmatprep.subr.mxu0 0.0
    %2621 = vmatpush2.msra.mxu0 0.0
    %2622 = vmatprep.subr.mxu0 0.0
    %2623 = vmatpush2.msra.mxu0 0.0
    %2624 = vmatprep.subr.mxu0 0.0
    %2625 = vmatpush2.msra.mxu0 0.0
    %2626 = vmatprep.subr.mxu0 0.0
    %2627 = vmatpush2.msra.mxu0 0.0
    %2628 = vmatprep.subr.mxu0 0.0
    %2629 = vmatpush2.msra.mxu0 0.0
    %2630 = vmatprep.subr.mxu0 0.0
    %2631 = vmatpush2.msra.mxu0 0.0
    %2632 = vmatprep.subr.mxu0 0.0
    %2633 = vmatpush2.msra.mxu0 0.0
    %2634 = vmatprep.subr.mxu0 0.0
    %2635 = vmatpush2.msra.mxu0 0.0
    %2636 = vmatprep.subr.mxu0 0.0
    %2637 = vmatpush2.msra.mxu0 0.0
    %2638 = vmatprep.subr.mxu0 0.0
    %2639 = vmatpush2.msra.mxu0 0.0
    %2640 = vmatprep.subr.mxu0 0.0
    %2641 = vmatpush2.msra.mxu0 0.0
    %2642 = vmatprep.subr.mxu0 0.0
    %2643 = vmatpush2.msra.mxu0 0.0
    %2644 = vmatprep.subr.mxu0 0.0
    %2645 = vmatpush2.msra.mxu0 0.0
    %2646 = vmatprep.subr.mxu0 0.0
    %2647 = vmatpush2.msra.mxu0 0.0
    %2648 = vmatprep.subr.mxu0 0.0
    %2649 = vmatpush2.msra.mxu0 0.0
    %2650 = vmatprep.subr.mxu0 0.0
    %2651 = vmatpush2.msra.mxu0 0.0
    %2652 = vmatprep.mubr.f32.mxu0 0.0
    %2653 = vmatmul.mubr.f32.gmra.mxu0 %v2583
    %v2654 = vpop.f32.mrf.mxu0
    %v2655 = vadd.f32 0.0, %v2654
    %v2656 = vpop.f32.mrf.mxu0
    %2657 = vmatprep.mubr.f32.mxu0 0.0
    %2658 = vmatmul.mubr.f32.gmra.mxu0 %v2586
    %v2659 = vpop.f32.mrf.mxu0
    %v2660 = vadd.f32 0.0, %v2659
    %v2661 = vpop.f32.mrf.mxu0
    %2662 = vdwg.mxu0
    %2663 = vst.msk [vmem:[%s17] sm:$0xff] %vm72, %v2574
    %2664 = vst.msk [vmem:[%s17 + $0x8] sm:$0xff] %vm72, %v2575
    %v2665 = vmul.f32 %v59, %v1269
    %v2666 = vmul.f32 %v60, %v1274
    %v2667 = vmul.f32 %v59, %v1467
    %v2668 = vmul.f32 %v60, %v1472
    %v2669 = vmul.f32 %v59, %v1665
    %v2670 = vmul.f32 %v60, %v1670
    %v2671 = vmul.f32 %v59, %v1863
    %v2672 = vmul.f32 %v60, %v1868
    %v2673 = vmul.f32 %v59, %v2061
    %v2674 = vmul.f32 %v60, %v2066
    %v2675 = vmul.f32 %v59, %v2259
    %v2676 = vmul.f32 %v60, %v2264
    %v2677 = vmul.f32 %v59, %v2457
    %v2678 = vmul.f32 %v60, %v2462
    %v2679 = vmul.f32 %v59, %v2655
    %v2680 = vmul.f32 %v60, %v2660
    %v2681 = vsel %vm72, %v2665, 0.0
    %v2682 = vsel %vm72, %v2666, 0.0
    %v2683 = vadd.f32 %v2681, %v2682
    %v2684 = vrot.slane %v2683, 4
    %v2685 = vadd.f32 %v2683, %v2684
    %v2686 = vrot.slane %v2685, 2
    %v2687 = vadd.f32 %v2685, %v2686
    %v2688 = vrot.slane %v2687, 1
    %v2689 = vadd.f32 %v2687, %v2688
    %v2690 = vsel %vm72, %v2667, 0.0
    %v2691 = vsel %vm72, %v2668, 0.0
    %v2692 = vadd.f32 %v2690, %v2691
    %v2693 = vrot.slane %v2692, 4
    %v2694 = vadd.f32 %v2692, %v2693
    %v2695 = vrot.slane %v2694, 2
    %v2696 = vadd.f32 %v2694, %v2695
    %v2697 = vrot.slane %v2696, 1
    %v2698 = vadd.f32 %v2696, %v2697
    %v2699 = vsel %vm72, %v2669, 0.0
    %v2700 = vsel %vm72, %v2670, 0.0
    %v2701 = vadd.f32 %v2699, %v2700
    %v2702 = vrot.slane %v2701, 4
    %v2703 = vadd.f32 %v2701, %v2702
    %v2704 = vrot.slane %v2703, 2
    %v2705 = vadd.f32 %v2703, %v2704
    %v2706 = vrot.slane %v2705, 1
    %v2707 = vadd.f32 %v2705, %v2706
    %v2708 = vsel %vm72, %v2671, 0.0
    %v2709 = vsel %vm72, %v2672, 0.0
    %v2710 = vadd.f32 %v2708, %v2709
    %v2711 = vrot.slane %v2710, 4
    %v2712 = vadd.f32 %v2710, %v2711
    %v2713 = vrot.slane %v2712, 2
    %v2714 = vadd.f32 %v2712, %v2713
    %v2715 = vrot.slane %v2714, 1
    %v2716 = vadd.f32 %v2714, %v2715
    %v2717 = vsel %vm72, %v2673, 0.0
    %v2718 = vsel %vm72, %v2674, 0.0
    %v2719 = vadd.f32 %v2717, %v2718
    %v2720 = vrot.slane %v2719, 4
    %v2721 = vadd.f32 %v2719, %v2720
    %v2722 = vrot.slane %v2721, 2
    %v2723 = vadd.f32 %v2721, %v2722
    %v2724 = vrot.slane %v2723, 1
    %v2725 = vadd.f32 %v2723, %v2724
    %v2726 = vsel %vm72, %v2675, 0.0
    %v2727 = vsel %vm72, %v2676, 0.0
    %v2728 = vadd.f32 %v2726, %v2727
    %v2729 = vrot.slane %v2728, 4
    %v2730 = vadd.f32 %v2728, %v2729
    %v2731 = vrot.slane %v2730, 2
    %v2732 = vadd.f32 %v2730, %v2731
    %v2733 = vrot.slane %v2732, 1
    %v2734 = vadd.f32 %v2732, %v2733
    %v2735 = vsel %vm72, %v2677, 0.0
    %v2736 = vsel %vm72, %v2678, 0.0
    %v2737 = vadd.f32 %v2735, %v2736
    %v2738 = vrot.slane %v2737, 4
    %v2739 = vadd.f32 %v2737, %v2738
    %v2740 = vrot.slane %v2739, 2
    %v2741 = vadd.f32 %v2739, %v2740
    %v2742 = vrot.slane %v2741, 1
    %v2743 = vadd.f32 %v2741, %v2742
    %v2744 = vsel %vm72, %v2679, 0.0
    %v2745 = vsel %vm72, %v2680, 0.0
    %v2746 = vadd.f32 %v2744, %v2745
    %v2747 = vrot.slane %v2746, 4
    %v2748 = vadd.f32 %v2746, %v2747
    %v2749 = vrot.slane %v2748, 2
    %v2750 = vadd.f32 %v2748, %v2749
    %v2751 = vrot.slane %v2750, 1
    %v2752 = vadd.f32 %v2750, %v2751
    %vm2761 = vcmask 1041409
    %v2762 = vsel %vm2761, %v2698, %v2689
    %vm2763 = vcmask 1042434
    %v2764 = vsel %vm2763, %v2707, %v2762
    %vm2765 = vcmask 1043459
    %v2766 = vsel %vm2765, %v2716, %v2764
    %vm2767 = vcmask 1044484
    %v2768 = vsel %vm2767, %v2725, %v2766
    %vm2769 = vcmask 1045509
    %v2770 = vsel %vm2769, %v2734, %v2768
    %vm2771 = vcmask 1046534
    %v2772 = vsel %vm2771, %v2743, %v2770
    %vm2773 = vcmask 1047559
    %v2774 = vsel %vm2773, %v2752, %v2772
    %v2775 = vsel %vm72, %v2774, 0
    %2777 = vmatprep.subr.mxu0 0.0
    %2778 = vmatpush1.msra.mxu0 0.0
    %2779 = vmatprep.subr.mxu0 0.0
    %2780 = vmatpush1.msra.mxu0 0.0
    %2781 = vmatprep.subr.mxu0 0.0
    %2782 = vmatpush1.msra.mxu0 0.0
    %2783 = vmatprep.subr.mxu0 0.0
    %2784 = vmatpush1.msra.mxu0 0.0
    %2785 = vmatprep.subr.mxu0 0.0
    %2786 = vmatpush1.msra.mxu0 0.0
    %2787 = vmatprep.subr.mxu0 0.0
    %2788 = vmatpush1.msra.mxu0 0.0
    %2789 = vmatprep.subr.mxu0 0.0
    %2790 = vmatpush1.msra.mxu0 0.0
    %2791 = vmatprep.subr.mxu0 0.0
    %2792 = vmatpush1.msra.mxu0 0.0
    %2793 = vmatprep.subr.mxu0 0.0
    %2794 = vmatpush1.msra.mxu0 0.0
    %2795 = vmatprep.subr.mxu0 0.0
    %2796 = vmatpush1.msra.mxu0 0.0
    %2797 = vmatprep.subr.mxu0 0.0
    %2798 = vmatpush1.msra.mxu0 0.0
    %2799 = vmatprep.subr.mxu0 0.0
    %2800 = vmatpush1.msra.mxu0 0.0
    %2801 = vmatprep.subr.mxu0 0.0
    %2802 = vmatpush1.msra.mxu0 %v58
    %2803 = vmatprep.subr.mxu0 0.0
    %2804 = vmatpush1.msra.mxu0 %v57
    %2805 = vmatprep.subr.mxu0 0.0
    %2806 = vmatpush1.msra.mxu0 %v56
    %2807 = vmatprep.subr.mxu0 0.0
    %2808 = vmatpush1.msra.mxu0 %v55
    %2809 = vmatprep.subr.mxu0 0.0
    %2810 = vmatpush2.msra.mxu0 0.0
    %2811 = vmatprep.subr.mxu0 0.0
    %2812 = vmatpush2.msra.mxu0 0.0
    %2813 = vmatprep.subr.mxu0 0.0
    %2814 = vmatpush2.msra.mxu0 0.0
    %2815 = vmatprep.subr.mxu0 0.0
    %2816 = vmatpush2.msra.mxu0 0.0
    %2817 = vmatprep.subr.mxu0 0.0
    %2818 = vmatpush2.msra.mxu0 0.0
    %2819 = vmatprep.subr.mxu0 0.0
    %2820 = vmatpush2.msra.mxu0 0.0
    %2821 = vmatprep.subr.mxu0 0.0
    %2822 = vmatpush2.msra.mxu0 0.0
    %2823 = vmatprep.subr.mxu0 0.0
    %2824 = vmatpush2.msra.mxu0 0.0
    %2825 = vmatprep.subr.mxu0 0.0
    %2826 = vmatpush2.msra.mxu0 0.0
    %2827 = vmatprep.subr.mxu0 0.0
    %2828 = vmatpush2.msra.mxu0 0.0
    %2829 = vmatprep.subr.mxu0 0.0
    %2830 = vmatpush2.msra.mxu0 0.0
    %2831 = vmatprep.subr.mxu0 0.0
    %2832 = vmatpush2.msra.mxu0 0.0
    %2833 = vmatprep.subr.mxu0 0.0
    %2834 = vmatpush2.msra.mxu0 0.0
    %2835 = vmatprep.subr.mxu0 0.0
    %2836 = vmatpush2.msra.mxu0 0.0
    %2837 = vmatprep.subr.mxu0 0.0
    %2838 = vmatpush2.msra.mxu0 0.0
    %2839 = vmatprep.subr.mxu0 0.0
    %2840 = vmatpush2.msra.mxu0 0.0
    %2841 = vmatprep.mubr.f32.mxu0 0.0
    %2842 = vmatmul.mubr.f32.gmra.mxu0 %v2775
    %v2843 = vpop.f32.mrf.mxu0
    %v2844 = vadd.f32 0.0, %v2843
    %v2845 = vpop.f32.mrf.mxu0
    %2846 = vdwg.mxu0
    %v2847 = vmul.f32 %v2844, 0.0625
    %v2849 = vrot.slane %v2847, 1
    %v2850 = vrot.slane %v2847, 2
    %v2851 = vrot.slane %v2847, 3
    %v2852 = vrot.slane %v2847, 4
    %v2853 = vrot.slane %v2847, 5
    %v2854 = vrot.slane %v2847, 6
    %v2855 = vrot.slane %v2847, 7
    %v2864 = vsub.f32 %v2689, %v2847
    %v2865 = vsub.f32 %v2698, %v2849
    %v2866 = vsub.f32 %v2707, %v2850
    %v2867 = vsub.f32 %v2716, %v2851
    %v2868 = vsub.f32 %v2725, %v2852
    %v2869 = vsub.f32 %v2734, %v2853
    %v2870 = vsub.f32 %v2743, %v2854
    %v2871 = vsub.f32 %v2752, %v2855
    %v2872 = vmul.f32 %v2864, %v2864
    %v2873 = vmul.f32 %v2865, %v2865
    %v2874 = vmul.f32 %v2866, %v2866
    %v2875 = vmul.f32 %v2867, %v2867
    %v2876 = vmul.f32 %v2868, %v2868
    %v2877 = vmul.f32 %v2869, %v2869
    %v2878 = vmul.f32 %v2870, %v2870
    %v2879 = vmul.f32 %v2871, %v2871
    %v2888 = vrot.slane %v2873, 7
    %v2889 = vsel %vm2761, %v2888, %v2872
    %v2890 = vrot.slane %v2874, 6
    %v2891 = vsel %vm2763, %v2890, %v2889
    %v2892 = vrot.slane %v2875, 5
    %v2893 = vsel %vm2765, %v2892, %v2891
    %v2894 = vrot.slane %v2876, 4
    %v2895 = vsel %vm2767, %v2894, %v2893
    %v2896 = vrot.slane %v2877, 3
    %v2897 = vsel %vm2769, %v2896, %v2895
    %v2898 = vrot.slane %v2878, 2
    %v2899 = vsel %vm2771, %v2898, %v2897
    %v2900 = vrot.slane %v2879, 1
    %v2901 = vsel %vm2773, %v2900, %v2899
    %v2902 = vsel %vm72, %v2901, 0
    %2904 = vmatprep.subr.mxu0 0.0
    %2905 = vmatpush1.msra.mxu0 0.0
    %2906 = vmatprep.subr.mxu0 0.0
    %2907 = vmatpush1.msra.mxu0 0.0
    %2908 = vmatprep.subr.mxu0 0.0
    %2909 = vmatpush1.msra.mxu0 0.0
    %2910 = vmatprep.subr.mxu0 0.0
    %2911 = vmatpush1.msra.mxu0 0.0
    %2912 = vmatprep.subr.mxu0 0.0
    %2913 = vmatpush1.msra.mxu0 0.0
    %2914 = vmatprep.subr.mxu0 0.0
    %2915 = vmatpush1.msra.mxu0 0.0
    %2916 = vmatprep.subr.mxu0 0.0
    %2917 = vmatpush1.msra.mxu0 0.0
    %2918 = vmatprep.subr.mxu0 0.0
    %2919 = vmatpush1.msra.mxu0 0.0
    %2920 = vmatprep.subr.mxu0 0.0
    %2921 = vmatpush1.msra.mxu0 0.0
    %2922 = vmatprep.subr.mxu0 0.0
    %2923 = vmatpush1.msra.mxu0 0.0
    %2924 = vmatprep.subr.mxu0 0.0
    %2925 = vmatpush1.msra.mxu0 0.0
    %2926 = vmatprep.subr.mxu0 0.0
    %2927 = vmatpush1.msra.mxu0 0.0
    %2928 = vmatprep.subr.mxu0 0.0
    %2929 = vmatpush1.msra.mxu0 %v58
    %2930 = vmatprep.subr.mxu0 0.0
    %2931 = vmatpush1.msra.mxu0 %v57
    %2932 = vmatprep.subr.mxu0 0.0
    %2933 = vmatpush1.msra.mxu0 %v56
    %2934 = vmatprep.subr.mxu0 0.0
    %2935 = vmatpush1.msra.mxu0 %v55
    %2936 = vmatprep.subr.mxu0 0.0
    %2937 = vmatpush2.msra.mxu0 0.0
    %2938 = vmatprep.subr.mxu0 0.0
    %2939 = vmatpush2.msra.mxu0 0.0
    %2940 = vmatprep.subr.mxu0 0.0
    %2941 = vmatpush2.msra.mxu0 0.0
    %2942 = vmatprep.subr.mxu0 0.0
    %2943 = vmatpush2.msra.mxu0 0.0
    %2944 = vmatprep.subr.mxu0 0.0
    %2945 = vmatpush2.msra.mxu0 0.0
    %2946 = vmatprep.subr.mxu0 0.0
    %2947 = vmatpush2.msra.mxu0 0.0
    %2948 = vmatprep.subr.mxu0 0.0
    %2949 = vmatpush2.msra.mxu0 0.0
    %2950 = vmatprep.subr.mxu0 0.0
    %2951 = vmatpush2.msra.mxu0 0.0
    %2952 = vmatprep.subr.mxu0 0.0
    %2953 = vmatpush2.msra.mxu0 0.0
    %2954 = vmatprep.subr.mxu0 0.0
    %2955 = vmatpush2.msra.mxu0 0.0
    %2956 = vmatprep.subr.mxu0 0.0
    %2957 = vmatpush2.msra.mxu0 0.0
    %2958 = vmatprep.subr.mxu0 0.0
    %2959 = vmatpush2.msra.mxu0 0.0
    %2960 = vmatprep.subr.mxu0 0.0
    %2961 = vmatpush2.msra.mxu0 0.0
    %2962 = vmatprep.subr.mxu0 0.0
    %2963 = vmatpush2.msra.mxu0 0.0
    %2964 = vmatprep.subr.mxu0 0.0
    %2965 = vmatpush2.msra.mxu0 0.0
    %2966 = vmatprep.subr.mxu0 0.0
    %2967 = vmatpush2.msra.mxu0 0.0
    %2968 = vmatprep.mubr.f32.mxu0 0.0
    %2969 = vmatmul.mubr.f32.gmra.mxu0 %v2902
    %v2970 = vpop.f32.mrf.mxu0
    %v2971 = vadd.f32 0.0, %v2970
    %v2972 = vpop.f32.mrf.mxu0
    %2973 = vdwg.mxu0
    %v2974 = vmul.f32 %v2971, 0.0625
    %v2975 = vadd.f32 %v2974, 0.00064
    %v2976 = vrsqrt.pop %v2975
    %v2977 = vmul.f32 %v2975, %v2976
    %vm2978 = vcmp.eq.f32.partialorder %v2975, inf
    %v2979 = vsel %vm2978, %v2975, %v2977
    %vm2980 = vcmp.eq.f32.partialorder %v2975, 0.0
    %v2981 = vand.u32 %v2975, 2147483648
    %v2982 = vsel %vm2980, %v2981, %v2979
    %v2984 = vrot.slane %v2982, 1
    %v2985 = vrot.slane %v2982, 2
    %v2986 = vrot.slane %v2982, 3
    %v2987 = vrot.slane %v2982, 4
    %v2988 = vrot.slane %v2982, 5
    %v2989 = vrot.slane %v2982, 6
    %v2990 = vrot.slane %v2982, 7
    %v2999 = vrcp.pop %v2982
    %v3000 = vmul.f32 %v2864, %v2999
    %v3001 = vrcp.pop %v2984
    %v3002 = vmul.f32 %v2865, %v3001
    %v3003 = vrcp.pop %v2985
    %v3004 = vmul.f32 %v2866, %v3003
    %v3005 = vrcp.pop %v2986
    %v3006 = vmul.f32 %v2867, %v3005
    %v3007 = vrcp.pop %v2987
    %v3008 = vmul.f32 %v2868, %v3007
    %v3009 = vrcp.pop %v2988
    %v3010 = vmul.f32 %v2869, %v3009
    %v3011 = vrcp.pop %v2989
    %v3012 = vmul.f32 %v2870, %v3011
    %v3013 = vrcp.pop %v2990
    %v3014 = vmul.f32 %v2871, %v3013
    %v3015 = vlaneseq
    %v3016 = vshrl.u32 %v3015, 7
    %v3017 = vsub.s32 2, %v3016
    %v3018 = vrot.slane %v53, %v3017
    %v3019 = vmul.f32 %v3000, %v3018
    %v3020 = vmul.f32 %v3002, %v3018
    %v3021 = vmul.f32 %v3004, %v3018
    %v3022 = vmul.f32 %v3006, %v3018
    %v3023 = vmul.f32 %v3008, %v3018
    %v3024 = vmul.f32 %v3010, %v3018
    %v3025 = vmul.f32 %v3012, %v3018
    %v3026 = vmul.f32 %v3014, %v3018
    %v3027 = vlaneseq
    %v3028 = vshrl.u32 %v3027, 7
    %v3029 = vsub.s32 3, %v3028
    %v3030 = vrot.slane %v53, %v3029
    %v3031 = vadd.f32 %v3019, %v3030
    %v3032 = vadd.f32 %v3020, %v3030
    %v3033 = vadd.f32 %v3021, %v3030
    %v3034 = vadd.f32 %v3022, %v3030
    %v3035 = vadd.f32 %v3023, %v3030
    %v3036 = vadd.f32 %v3024, %v3030
    %v3037 = vadd.f32 %v3025, %v3030
    %v3038 = vadd.f32 %v3026, %v3030
    %3039 = vrot.lane.b32.xlu0 %v605, 96
    %v3040 = vpop.permute.xlu0 %3039
    %v3042 = vmul.f32 %v316, %v3040
    %v3043 = vlaneseq
    %v3044 = vshrl.u32 %v3043, 7
    %v3045 = vsub.s32 1, %v3044
    %v3046 = vrot.slane %v53, %v3045
    %v3047 = vmul.f32 %v3042, %v3046
    %v3049 = vsel %vm72, %v3047, 0
    %3051 = vmatprep.subr.mxu0 0.0
    %3052 = vmatpush1.msra.mxu0 0.0
    %3053 = vmatprep.subr.mxu0 0.0
    %3054 = vmatpush1.msra.mxu0 0.0
    %3055 = vmatprep.subr.mxu0 0.0
    %3056 = vmatpush1.msra.mxu0 0.0
    %3057 = vmatprep.subr.mxu0 0.0
    %3058 = vmatpush1.msra.mxu0 0.0
    %3059 = vmatprep.subr.mxu0 0.0
    %3060 = vmatpush1.msra.mxu0 0.0
    %3061 = vmatprep.subr.mxu0 0.0
    %3062 = vmatpush1.msra.mxu0 0.0
    %3063 = vmatprep.subr.mxu0 0.0
    %3064 = vmatpush1.msra.mxu0 0.0
    %3065 = vmatprep.subr.mxu0 0.0
    %3066 = vmatpush1.msra.mxu0 0.0
    %3067 = vmatprep.subr.mxu0 0.0
    %3068 = vmatpush1.msra.mxu0 0.0
    %3069 = vmatprep.subr.mxu0 0.0
    %3070 = vmatpush1.msra.mxu0 0.0
    %3071 = vmatprep.subr.mxu0 0.0
    %3072 = vmatpush1.msra.mxu0 0.0
    %3073 = vmatprep.subr.mxu0 0.0
    %3074 = vmatpush1.msra.mxu0 0.0
    %3075 = vmatprep.subr.mxu0 0.0
    %3076 = vmatpush1.msra.mxu0 %v58
    %3077 = vmatprep.subr.mxu0 0.0
    %3078 = vmatpush1.msra.mxu0 %v57
    %3079 = vmatprep.subr.mxu0 0.0
    %3080 = vmatpush1.msra.mxu0 %v56
    %3081 = vmatprep.subr.mxu0 0.0
    %3082 = vmatpush1.msra.mxu0 %v55
    %3083 = vmatprep.subr.mxu0 0.0
    %3084 = vmatpush2.msra.mxu0 0.0
    %3085 = vmatprep.subr.mxu0 0.0
    %3086 = vmatpush2.msra.mxu0 0.0
    %3087 = vmatprep.subr.mxu0 0.0
    %3088 = vmatpush2.msra.mxu0 0.0
    %3089 = vmatprep.subr.mxu0 0.0
    %3090 = vmatpush2.msra.mxu0 0.0
    %3091 = vmatprep.subr.mxu0 0.0
    %3092 = vmatpush2.msra.mxu0 0.0
    %3093 = vmatprep.subr.mxu0 0.0
    %3094 = vmatpush2.msra.mxu0 0.0
    %3095 = vmatprep.subr.mxu0 0.0
    %3096 = vmatpush2.msra.mxu0 0.0
    %3097 = vmatprep.subr.mxu0 0.0
    %3098 = vmatpush2.msra.mxu0 0.0
    %3099 = vmatprep.subr.mxu0 0.0
    %3100 = vmatpush2.msra.mxu0 0.0
    %3101 = vmatprep.subr.mxu0 0.0
    %3102 = vmatpush2.msra.mxu0 0.0
    %3103 = vmatprep.subr.mxu0 0.0
    %3104 = vmatpush2.msra.mxu0 0.0
    %3105 = vmatprep.subr.mxu0 0.0
    %3106 = vmatpush2.msra.mxu0 0.0
    %3107 = vmatprep.subr.mxu0 0.0
    %3108 = vmatpush2.msra.mxu0 0.0
    %3109 = vmatprep.subr.mxu0 0.0
    %3110 = vmatpush2.msra.mxu0 0.0
    %3111 = vmatprep.subr.mxu0 0.0
    %3112 = vmatpush2.msra.mxu0 0.0
    %3113 = vmatprep.subr.mxu0 0.0
    %3114 = vmatpush2.msra.mxu0 0.0
    %3115 = vmatprep.mubr.f32.mxu0 0.0
    %3116 = vmatmul.mubr.f32.gmra.mxu0 %v3049
    %v3117 = vpop.f32.mrf.mxu0
    %v3118 = vadd.f32 0.0, %v3117
    %v3119 = vpop.f32.mrf.mxu0
    %3120 = vdwg.mxu0
    %3121 = vrot.lane.b32.xlu0 %v632, 64
    %v3122 = vpop.permute.xlu0 %3121
    %v3124 = vmul.f32 %v3118, %v3122
    %v3126 = vrot.slane %v3124, 1
    %v3127 = vrot.slane %v3124, 2
    %v3128 = vrot.slane %v3124, 3
    %v3129 = vrot.slane %v3124, 4
    %v3130 = vrot.slane %v3124, 5
    %v3131 = vrot.slane %v3124, 6
    %v3132 = vrot.slane %v3124, 7
    %v3141 = vadd.f32 %v3031, %v3124
    %v3142 = vadd.f32 %v3032, %v3126
    %v3143 = vadd.f32 %v3033, %v3127
    %v3144 = vadd.f32 %v3034, %v3128
    %v3145 = vadd.f32 %v3035, %v3129
    %v3146 = vadd.f32 %v3036, %v3130
    %v3147 = vadd.f32 %v3037, %v3131
    %v3148 = vadd.f32 %v3038, %v3132
    %v3150 = vrot.slane %v458, 1
    %v3151 = vrot.slane %v458, 2
    %v3152 = vrot.slane %v458, 3
    %v3153 = vrot.slane %v458, 4
    %v3154 = vrot.slane %v458, 5
    %v3155 = vrot.slane %v458, 6
    %v3156 = vrot.slane %v458, 7
    %3157 = vrot.lane.b32.xlu0 %v458, 64
    %v3158 = vpop.permute.xlu0 %3157
    %3159 = vrot.lane.b32.xlu0 %v3150, 64
    %v3160 = vpop.permute.xlu0 %3159
    %3161 = vrot.lane.b32.xlu0 %v3151, 64
    %v3162 = vpop.permute.xlu0 %3161
    %3163 = vrot.lane.b32.xlu0 %v3152, 64
    %v3164 = vpop.permute.xlu0 %3163
    %3165 = vrot.lane.b32.xlu0 %v3153, 64
    %v3166 = vpop.permute.xlu0 %3165
    %3167 = vrot.lane.b32.xlu0 %v3154, 64
    %v3168 = vpop.permute.xlu0 %3167
    %3169 = vrot.lane.b32.xlu0 %v3155, 64
    %v3170 = vpop.permute.xlu0 %3169
    %3171 = vrot.lane.b32.xlu0 %v3156, 64
    %v3172 = vpop.permute.xlu0 %3171
    %v3181 = vmul.f32 %v3141, %v3158
    %v3182 = vmul.f32 %v3142, %v3160
    %v3183 = vmul.f32 %v3143, %v3162
    %v3184 = vmul.f32 %v3144, %v3164
    %v3185 = vmul.f32 %v3145, %v3166
    %v3186 = vmul.f32 %v3146, %v3168
    %v3187 = vmul.f32 %v3147, %v3170
    %v3188 = vmul.f32 %v3148, %v3172
    %v3189 = vld [vmem:[%s8] sm:$0xff]
    %v3190 = vld [vmem:[%s8 + $0x8] sm:$0xff]
    %v3191 = vld [vmem:[%s8 + $0x10] sm:$0xff]
    %v3192 = vld [vmem:[%s8 + $0x18] sm:$0xff]
    %v3201 = vrot.slane %v3182, 7
    %v3202 = vsel %vm2761, %v3201, %v3181
    %v3203 = vrot.slane %v3183, 6
    %v3204 = vsel %vm2763, %v3203, %v3202
    %v3205 = vrot.slane %v3184, 5
    %v3206 = vsel %vm2765, %v3205, %v3204
    %v3207 = vrot.slane %v3185, 4
    %v3208 = vsel %vm2767, %v3207, %v3206
    %v3209 = vrot.slane %v3186, 3
    %v3210 = vsel %vm2769, %v3209, %v3208
    %v3211 = vrot.slane %v3187, 2
    %v3212 = vsel %vm2771, %v3211, %v3210
    %v3213 = vrot.slane %v3188, 1
    %v3214 = vsel %vm2773, %v3213, %v3212
    %v3215 = vsel %vm72, %v3214, 0
    %3217 = vmatprep.subr.mxu0 0.0
    %3218 = vmatpush1.msra.mxu0 0.0
    %3219 = vmatprep.subr.mxu0 0.0
    %3220 = vmatpush1.msra.mxu0 0.0
    %3221 = vmatprep.subr.mxu0 0.0
    %3222 = vmatpush1.msra.mxu0 0.0
    %3223 = vmatprep.subr.mxu0 0.0
    %3224 = vmatpush1.msra.mxu0 0.0
    %3225 = vmatprep.subr.mxu0 0.0
    %3226 = vmatpush1.msra.mxu0 0.0
    %3227 = vmatprep.subr.mxu0 0.0
    %3228 = vmatpush1.msra.mxu0 0.0
    %3229 = vmatprep.subr.mxu0 0.0
    %3230 = vmatpush1.msra.mxu0 0.0
    %3231 = vmatprep.subr.mxu0 0.0
    %3232 = vmatpush1.msra.mxu0 0.0
    %3233 = vmatprep.subr.mxu0 0.0
    %3234 = vmatpush1.msra.mxu0 0.0
    %3235 = vmatprep.subr.mxu0 0.0
    %3236 = vmatpush1.msra.mxu0 0.0
    %3237 = vmatprep.subr.mxu0 0.0
    %3238 = vmatpush1.msra.mxu0 0.0
    %3239 = vmatprep.subr.mxu0 0.0
    %3240 = vmatpush1.msra.mxu0 0.0
    %3241 = vmatprep.subr.mxu0 0.0
    %3242 = vmatpush1.msra.mxu0 %v3192
    %3243 = vmatprep.subr.mxu0 0.0
    %3244 = vmatpush1.msra.mxu0 %v3191
    %3245 = vmatprep.subr.mxu0 0.0
    %3246 = vmatpush1.msra.mxu0 %v3190
    %3247 = vmatprep.subr.mxu0 0.0
    %3248 = vmatpush1.msra.mxu0 %v3189
    %3249 = vmatprep.subr.mxu0 0.0
    %3250 = vmatpush2.msra.mxu0 0.0
    %3251 = vmatprep.subr.mxu0 0.0
    %3252 = vmatpush2.msra.mxu0 0.0
    %3253 = vmatprep.subr.mxu0 0.0
    %3254 = vmatpush2.msra.mxu0 0.0
    %3255 = vmatprep.subr.mxu0 0.0
    %3256 = vmatpush2.msra.mxu0 0.0
    %3257 = vmatprep.subr.mxu0 0.0
    %3258 = vmatpush2.msra.mxu0 0.0
    %3259 = vmatprep.subr.mxu0 0.0
    %3260 = vmatpush2.msra.mxu0 0.0
    %3261 = vmatprep.subr.mxu0 0.0
    %3262 = vmatpush2.msra.mxu0 0.0
    %3263 = vmatprep.subr.mxu0 0.0
    %3264 = vmatpush2.msra.mxu0 0.0
    %3265 = vmatprep.subr.mxu0 0.0
    %3266 = vmatpush2.msra.mxu0 0.0
    %3267 = vmatprep.subr.mxu0 0.0
    %3268 = vmatpush2.msra.mxu0 0.0
    %3269 = vmatprep.subr.mxu0 0.0
    %3270 = vmatpush2.msra.mxu0 0.0
    %3271 = vmatprep.subr.mxu0 0.0
    %3272 = vmatpush2.msra.mxu0 0.0
    %3273 = vmatprep.subr.mxu0 0.0
    %3274 = vmatpush2.msra.mxu0 0.0
    %3275 = vmatprep.subr.mxu0 0.0
    %3276 = vmatpush2.msra.mxu0 0.0
    %3277 = vmatprep.subr.mxu0 0.0
    %3278 = vmatpush2.msra.mxu0 0.0
    %3279 = vmatprep.subr.mxu0 0.0
    %3280 = vmatpush2.msra.mxu0 0.0
    %3281 = vmatprep.mubr.f32.mxu0 0.0
    %3282 = vmatmul.mubr.f32.gmra.mxu0 %v3215
    %v3283 = vpop.f32.mrf.mxu0
    %v3284 = vadd.f32 0.0, %v3283
    %v3285 = vpop.f32.mrf.mxu0
    %3286 = vdwg.mxu0
    %v3287 = vadd.f32 %v51, %v3284
    %v3288 = vsel %vm72, %v3287, 0.0
    %3289 = vadd.xlane.f32.xlu0 %v3288
    %v3290 = vpop.xlane.xlu0 %3289
    %v3291 = vmul.f32 %v3290, %v76
    %v3292 = vsub.f32 %v3287, %v3291
    %v3293 = vmul.f32 %v3292, %v3292
    %v3294 = vsel %vm72, %v3293, 0.0
    %3295 = vadd.xlane.f32.xlu0 %v3294
    %v3296 = vpop.xlane.xlu0 %3295
    %v3297 = vmul.f32 %v3296, %v76
    %v3298 = vadd.f32 %v3297, 1e-05
    %v3299 = vrsqrt.pop %v3298
    %v3300 = vmul.f32 %v3298, %v3299
    %vm3301 = vcmp.eq.f32.partialorder %v3298, inf
    %v3302 = vsel %vm3301, %v3298, %v3300
    %vm3303 = vcmp.eq.f32.partialorder %v3298, 0.0
    %v3304 = vand.u32 %v3298, 2147483648
    %v3305 = vsel %vm3303, %v3304, %v3302
    %v3306 = vrcp.pop %v3305
    %v3307 = vmul.f32 %v3292, %v3306
    %v3308 = vlaneseq
    %v3309 = vshrl.u32 %v3308, 7
    %v3310 = vsub.s32 2, %v3309
    %v3311 = vrot.slane %v52, %v3310
    %v3312 = vmul.f32 %v3307, %v3311
    %v3313 = vlaneseq
    %v3314 = vshrl.u32 %v3313, 7
    %v3315 = vsub.s32 3, %v3314
    %v3316 = vrot.slane %v52, %v3315
    %v3317 = vadd.f32 %v3312, %v3316
    %v3318 = vld [vmem:[%s3] sm:$0x1]
    %v3320 = vlaneseq
    %v3321 = vshrl.u32 %v3320, 7
    %v3322 = vsub.s32 0, %v3321
    %v3323 = vrot.slane %v3318, %v3322
    %v3325 = vmul.f32 %v71, %v3323
    %3326 = vmatprep.subr.mxu0 0.0
    %3327 = vmatpush1.msra.mxu0 0.0
    %3328 = vmatprep.subr.mxu0 0.0
    %3329 = vmatpush1.msra.mxu0 0.0
    %3330 = vmatprep.subr.mxu0 0.0
    %3331 = vmatpush1.msra.mxu0 0.0
    %3332 = vmatprep.subr.mxu0 0.0
    %3333 = vmatpush1.msra.mxu0 0.0
    %3334 = vmatprep.subr.mxu0 0.0
    %3335 = vmatpush1.msra.mxu0 0.0
    %3336 = vmatprep.subr.mxu0 0.0
    %3337 = vmatpush1.msra.mxu0 0.0
    %3338 = vmatprep.subr.mxu0 0.0
    %3339 = vmatpush1.msra.mxu0 0.0
    %3340 = vmatprep.subr.mxu0 0.0
    %3341 = vmatpush1.msra.mxu0 0.0
    %3342 = vmatprep.subr.mxu0 0.0
    %3343 = vmatpush1.msra.mxu0 0.0
    %3344 = vmatprep.subr.mxu0 0.0
    %3345 = vmatpush1.msra.mxu0 0.0
    %3346 = vmatprep.subr.mxu0 0.0
    %3347 = vmatpush1.msra.mxu0 0.0
    %3348 = vmatprep.subr.mxu0 0.0
    %3349 = vmatpush1.msra.mxu0 0.0
    %3350 = vmatprep.subr.mxu0 0.0
    %3351 = vmatpush1.msra.mxu0 0.0
    %3352 = vmatprep.subr.mxu0 0.0
    %3353 = vmatpush1.msra.mxu0 0.0
    %3354 = vmatprep.subr.mxu0 0.0
    %3355 = vmatpush1.msra.mxu0 0.0
    %3356 = vmatprep.subr.mxu0 0.0
    %3357 = vmatpush1.msra.mxu0 %v3317
    %3358 = vmatprep.subr.mxu0 0.0
    %3359 = vmatpush2.msra.mxu0 0.0
    %3360 = vmatprep.subr.mxu0 0.0
    %3361 = vmatpush2.msra.mxu0 0.0
    %3362 = vmatprep.subr.mxu0 0.0
    %3363 = vmatpush2.msra.mxu0 0.0
    %3364 = vmatprep.subr.mxu0 0.0
    %3365 = vmatpush2.msra.mxu0 0.0
    %3366 = vmatprep.subr.mxu0 0.0
    %3367 = vmatpush2.msra.mxu0 0.0
    %3368 = vmatprep.subr.mxu0 0.0
    %3369 = vmatpush2.msra.mxu0 0.0
    %3370 = vmatprep.subr.mxu0 0.0
    %3371 = vmatpush2.msra.mxu0 0.0
    %3372 = vmatprep.subr.mxu0 0.0
    %3373 = vmatpush2.msra.mxu0 0.0
    %3374 = vmatprep.subr.mxu0 0.0
    %3375 = vmatpush2.msra.mxu0 0.0
    %3376 = vmatprep.subr.mxu0 0.0
    %3377 = vmatpush2.msra.mxu0 0.0
    %3378 = vmatprep.subr.mxu0 0.0
    %3379 = vmatpush2.msra.mxu0 0.0
    %3380 = vmatprep.subr.mxu0 0.0
    %3381 = vmatpush2.msra.mxu0 0.0
    %3382 = vmatprep.subr.mxu0 0.0
    %3383 = vmatpush2.msra.mxu0 0.0
    %3384 = vmatprep.subr.mxu0 0.0
    %3385 = vmatpush2.msra.mxu0 0.0
    %3386 = vmatprep.subr.mxu0 0.0
    %3387 = vmatpush2.msra.mxu0 0.0
    %3388 = vmatprep.subr.mxu0 0.0
    %3389 = vmatpush2.msra.mxu0 0.0
    %3390 = vmatprep.mubr.f32.mxu0 0.0
    %3391 = vmatmul.mubr.f32.gmra.mxu0 %v114
    %v3392 = vpop.f32.mrf.mxu0
    %v3393 = vadd.f32 %v3325, %v3392
    %v3394 = vpop.f32.mrf.mxu0
    %3395 = vdwg.mxu0
    %v3396 = vsub.f32 %v3393, %v3317
    %v3397 = vlaneseq
    %v3398 = vshrl.u32 %v3397, 7
    %v3399 = vsub.s32 4, %v3398
    %v3400 = vrot.slane %v53, %v3399
    %v3401 = vmul.f32 %v3396, %v3400
    %v3402 = vadd.f32 %v3317, %v3401
    %v3403 = vld [vmem:[%s9] sm:$0xff]
    %v3404 = vld [vmem:[%s9 + $0x8] sm:$0xff]
    %v3405 = vld [vmem:[%s9 + $0x10] sm:$0xff]
    %v3406 = vld [vmem:[%s9 + $0x18] sm:$0xff]
    %v3408 = vsel %vm72, %v3402, 0
    %3410 = vmatprep.subr.mxu0 0.0
    %3411 = vmatpush1.msra.mxu0 0.0
    %3412 = vmatprep.subr.mxu0 0.0
    %3413 = vmatpush1.msra.mxu0 0.0
    %3414 = vmatprep.subr.mxu0 0.0
    %3415 = vmatpush1.msra.mxu0 0.0
    %3416 = vmatprep.subr.mxu0 0.0
    %3417 = vmatpush1.msra.mxu0 0.0
    %3418 = vmatprep.subr.mxu0 0.0
    %3419 = vmatpush1.msra.mxu0 0.0
    %3420 = vmatprep.subr.mxu0 0.0
    %3421 = vmatpush1.msra.mxu0 0.0
    %3422 = vmatprep.subr.mxu0 0.0
    %3423 = vmatpush1.msra.mxu0 0.0
    %3424 = vmatprep.subr.mxu0 0.0
    %3425 = vmatpush1.msra.mxu0 0.0
    %3426 = vmatprep.subr.mxu0 0.0
    %3427 = vmatpush1.msra.mxu0 0.0
    %3428 = vmatprep.subr.mxu0 0.0
    %3429 = vmatpush1.msra.mxu0 0.0
    %3430 = vmatprep.subr.mxu0 0.0
    %3431 = vmatpush1.msra.mxu0 0.0
    %3432 = vmatprep.subr.mxu0 0.0
    %3433 = vmatpush1.msra.mxu0 0.0
    %3434 = vmatprep.subr.mxu0 0.0
    %3435 = vmatpush1.msra.mxu0 %v3406
    %3436 = vmatprep.subr.mxu0 0.0
    %3437 = vmatpush1.msra.mxu0 %v3405
    %3438 = vmatprep.subr.mxu0 0.0
    %3439 = vmatpush1.msra.mxu0 %v3404
    %3440 = vmatprep.subr.mxu0 0.0
    %3441 = vmatpush1.msra.mxu0 %v3403
    %3442 = vmatprep.subr.mxu0 0.0
    %3443 = vmatpush2.msra.mxu0 0.0
    %3444 = vmatprep.subr.mxu0 0.0
    %3445 = vmatpush2.msra.mxu0 0.0
    %3446 = vmatprep.subr.mxu0 0.0
    %3447 = vmatpush2.msra.mxu0 0.0
    %3448 = vmatprep.subr.mxu0 0.0
    %3449 = vmatpush2.msra.mxu0 0.0
    %3450 = vmatprep.subr.mxu0 0.0
    %3451 = vmatpush2.msra.mxu0 0.0
    %3452 = vmatprep.subr.mxu0 0.0
    %3453 = vmatpush2.msra.mxu0 0.0
    %3454 = vmatprep.subr.mxu0 0.0
    %3455 = vmatpush2.msra.mxu0 0.0
    %3456 = vmatprep.subr.mxu0 0.0
    %3457 = vmatpush2.msra.mxu0 0.0
    %3458 = vmatprep.subr.mxu0 0.0
    %3459 = vmatpush2.msra.mxu0 0.0
    %3460 = vmatprep.subr.mxu0 0.0
    %3461 = vmatpush2.msra.mxu0 0.0
    %3462 = vmatprep.subr.mxu0 0.0
    %3463 = vmatpush2.msra.mxu0 0.0
    %3464 = vmatprep.subr.mxu0 0.0
    %3465 = vmatpush2.msra.mxu0 0.0
    %3466 = vmatprep.subr.mxu0 0.0
    %3467 = vmatpush2.msra.mxu0 0.0
    %3468 = vmatprep.subr.mxu0 0.0
    %3469 = vmatpush2.msra.mxu0 0.0
    %3470 = vmatprep.subr.mxu0 0.0
    %3471 = vmatpush2.msra.mxu0 0.0
    %3472 = vmatprep.subr.mxu0 0.0
    %3473 = vmatpush2.msra.mxu0 0.0
    %3474 = vmatprep.mubr.f32.mxu0 0.0
    %3475 = vmatmul.mubr.f32.gmra.mxu0 %v3408
    %v3476 = vpop.f32.mrf.mxu0
    %v3477 = vadd.f32 0.0, %v3476
    %v3478 = vpop.f32.mrf.mxu0
    %3479 = vdwg.mxu0
    %v3480 = vmax.f32 %v3477, 0.0
    %v3481 = vmul.f32 %v3480, %v3480
    %v3482 = vld [vmem:[%s10] sm:$0xff]
    %v3483 = vld [vmem:[%s10 + $0x8] sm:$0xff]
    %v3484 = vld [vmem:[%s10 + $0x10] sm:$0xff]
    %v3485 = vld [vmem:[%s10 + $0x18] sm:$0xff]
    %v3486 = vld [vmem:[%s10 + $0x20] sm:$0xff]
    %v3487 = vld [vmem:[%s10 + $0x28] sm:$0xff]
    %v3488 = vld [vmem:[%s10 + $0x30] sm:$0xff]
    %v3489 = vld [vmem:[%s10 + $0x38] sm:$0xff]
    %v3490 = vld [vmem:[%s10 + $0x40] sm:$0xff]
    %v3491 = vld [vmem:[%s10 + $0x48] sm:$0xff]
    %v3492 = vld [vmem:[%s10 + $0x50] sm:$0xff]
    %v3493 = vld [vmem:[%s10 + $0x58] sm:$0xff]
    %v3494 = vld [vmem:[%s10 + $0x60] sm:$0xff]
    %v3495 = vld [vmem:[%s10 + $0x68] sm:$0xff]
    %v3496 = vld [vmem:[%s10 + $0x70] sm:$0xff]
    %v3497 = vld [vmem:[%s10 + $0x78] sm:$0xff]
    %3498 = vmatprep.subr.mxu0 0.0
    %3499 = vmatpush1.msra.mxu0 %v3497
    %3500 = vmatprep.subr.mxu0 0.0
    %3501 = vmatpush1.msra.mxu0 %v3496
    %3502 = vmatprep.subr.mxu0 0.0
    %3503 = vmatpush1.msra.mxu0 %v3495
    %3504 = vmatprep.subr.mxu0 0.0
    %3505 = vmatpush1.msra.mxu0 %v3494
    %3506 = vmatprep.subr.mxu0 0.0
    %3507 = vmatpush1.msra.mxu0 %v3493
    %3508 = vmatprep.subr.mxu0 0.0
    %3509 = vmatpush1.msra.mxu0 %v3492
    %3510 = vmatprep.subr.mxu0 0.0
    %3511 = vmatpush1.msra.mxu0 %v3491
    %3512 = vmatprep.subr.mxu0 0.0
    %3513 = vmatpush1.msra.mxu0 %v3490
    %3514 = vmatprep.subr.mxu0 0.0
    %3515 = vmatpush1.msra.mxu0 %v3489
    %3516 = vmatprep.subr.mxu0 0.0
    %3517 = vmatpush1.msra.mxu0 %v3488
    %3518 = vmatprep.subr.mxu0 0.0
    %3519 = vmatpush1.msra.mxu0 %v3487
    %3520 = vmatprep.subr.mxu0 0.0
    %3521 = vmatpush1.msra.mxu0 %v3486
    %3522 = vmatprep.subr.mxu0 0.0
    %3523 = vmatpush1.msra.mxu0 %v3485
    %3524 = vmatprep.subr.mxu0 0.0
    %3525 = vmatpush1.msra.mxu0 %v3484
    %3526 = vmatprep.subr.mxu0 0.0
    %3527 = vmatpush1.msra.mxu0 %v3483
    %3528 = vmatprep.subr.mxu0 0.0
    %3529 = vmatpush1.msra.mxu0 %v3482
    %3530 = vmatprep.subr.mxu0 0.0
    %3531 = vmatpush2.msra.mxu0 0.0
    %3532 = vmatprep.subr.mxu0 0.0
    %3533 = vmatpush2.msra.mxu0 0.0
    %3534 = vmatprep.subr.mxu0 0.0
    %3535 = vmatpush2.msra.mxu0 0.0
    %3536 = vmatprep.subr.mxu0 0.0
    %3537 = vmatpush2.msra.mxu0 0.0
    %3538 = vmatprep.subr.mxu0 0.0
    %3539 = vmatpush2.msra.mxu0 0.0
    %3540 = vmatprep.subr.mxu0 0.0
    %3541 = vmatpush2.msra.mxu0 0.0
    %3542 = vmatprep.subr.mxu0 0.0
    %3543 = vmatpush2.msra.mxu0 0.0
    %3544 = vmatprep.subr.mxu0 0.0
    %3545 = vmatpush2.msra.mxu0 0.0
    %3546 = vmatprep.subr.mxu0 0.0
    %3547 = vmatpush2.msra.mxu0 0.0
    %3548 = vmatprep.subr.mxu0 0.0
    %3549 = vmatpush2.msra.mxu0 0.0
    %3550 = vmatprep.subr.mxu0 0.0
    %3551 = vmatpush2.msra.mxu0 0.0
    %3552 = vmatprep.subr.mxu0 0.0
    %3553 = vmatpush2.msra.mxu0 0.0
    %3554 = vmatprep.subr.mxu0 0.0
    %3555 = vmatpush2.msra.mxu0 0.0
    %3556 = vmatprep.subr.mxu0 0.0
    %3557 = vmatpush2.msra.mxu0 0.0
    %3558 = vmatprep.subr.mxu0 0.0
    %3559 = vmatpush2.msra.mxu0 0.0
    %3560 = vmatprep.subr.mxu0 0.0
    %3561 = vmatpush2.msra.mxu0 0.0
    %3562 = vmatprep.mubr.f32.mxu0 0.0
    %3563 = vmatmul.mubr.f32.gmra.mxu0 %v3481
    %v3564 = vpop.f32.mrf.mxu0
    %v3565 = vadd.f32 0.0, %v3564
    %v3566 = vpop.f32.mrf.mxu0
    %3567 = vdwg.mxu0
    %v3568 = vadd.f32 %v3287, %v3565
    %3569 = vst.msk [vmem:[%s13] sm:$0xff] %vm72, %v3568
    %vm3570 = vcmask 261127
    %3571 = vst.msk [vmem:[#allocation4 - $0x7] sm:$0x80] %vm3570, %v103
    %3572 = vst.msk [vmem:[#allocation6 - $0x7] sm:$0x80] %vm3570, %v3317
    // Predicated region
    $region54: #{forward_seq.4} parent=1 // pred_check
      _
    $region55: #{forward_seq.4} parent=1 // pred_check_branch
      %3574 = sbr.rel (0) target = $region57
    $region56: #{forward_seq.4} parent=1 // pred_region
      _
    $region57: #{forward_seq.4} parent=1 // pred_fallthru
      _
    // Predicated region
    $region58: #{forward_seq.4} parent=1 // pred_check
      _
    $region59: #{forward_seq.4} parent=1 // pred_check_branch
      %3576 = sbr.rel (0) target = $region61
    $region60: #{forward_seq.4} parent=1 // pred_region
      %s3578 = ssub.s32 128, 128
      %3579 = vsyncadd [#allocation3], %s3578
      %s3581 = sshll.u32 [#allocation2], 4
      %s3582 = int_to_ptr.vmem [resolvable:$true] %s3581
      %3584 = dma.vmem_to_hbm [thread:$0]  %s3582, 128, %s14, [#allocation3]
    $region61: #{forward_seq.4} parent=1 // pred_fallthru
      _
    // Predicated region
    $region62: #{forward_seq.4} parent=1 // pred_check
      _
    $region63: #{forward_seq.4} parent=1 // pred_check_branch
      %3586 = sbr.rel (0) target = $region65
    $region64: #{forward_seq.4} parent=1 // pred_region
      %s3588 = ssub.s32 16, 16
      %3589 = vsyncadd [#allocation5], %s3588
      %s3591 = sshll.u32 [#allocation4], 4
      %s3592 = int_to_ptr.vmem [resolvable:$true] %s3591
      %3594 = dma.vmem_to_hbm [thread:$0]  %s3592, 16, %s15, [#allocation5]
    $region65: #{forward_seq.4} parent=1 // pred_fallthru
      _
    // Predicated region
    $region66: #{forward_seq.4} parent=1 // pred_check
      _
    $region67: #{forward_seq.4} parent=1 // pred_check_branch
      %3596 = sbr.rel (0) target = $region69
    $region68: #{forward_seq.4} parent=1 // pred_region
      %s3598 = ssub.s32 16, 16
      %3599 = vsyncadd [#allocation5], %s3598
      %s3601 = sshll.u32 [#allocation6], 4
      %s3602 = int_to_ptr.vmem [resolvable:$true] %s3601
      %3604 = dma.vmem_to_hbm [thread:$0]  %s3602, 16, %s16, [#allocation5]
    $region69: #{forward_seq.4} parent=1 // pred_fallthru
      _
    // Predicated region
    $region70: #{forward_seq.4} parent=1 // pred_check
      _
    $region71: #{forward_seq.4} parent=1 // pred_check_branch
      %3606 = sbr.rel (0) target = $region73
    $region72: #{forward_seq.4} parent=1 // pred_region
      _
    $region73: #{forward_seq.4} parent=1 // pred_fallthru
      _
    // Predicated region
    $region74: #{forward_seq.4} parent=1 // pred_check
      _
    $region75: #{forward_seq.4} parent=1 // pred_check_branch
      %3608 = sbr.rel (0) target = $region77
    $region76: #{forward_seq.4} parent=1 // pred_region
      _
    $region77: #{forward_seq.4} parent=1 // pred_fallthru
      _
    // Predicated region
    $region78: #{forward_seq.4} parent=1 // pred_check
      _
    $region79: #{forward_seq.4} parent=1 // pred_check_branch
      %3610 = sbr.rel (0) target = $region81
    $region80: #{forward_seq.4} parent=1 // pred_region
      %3611 = dma.done [#allocation3], 128
    $region81: #{forward_seq.4} parent=1 // pred_fallthru
      _
    // Predicated region
    $region82: #{forward_seq.4} parent=1 // pred_check
      _
    $region83: #{forward_seq.4} parent=1 // pred_check_branch
      %3613 = sbr.rel (0) target = $region85
    $region84: #{forward_seq.4} parent=1 // pred_region
      %3614 = dma.done [#allocation5], 16
    $region85: #{forward_seq.4} parent=1 // pred_fallthru
      _
    // Predicated region
    $region86: #{forward_seq.4} parent=1 // pred_check
      _
    $region87: #{forward_seq.4} parent=1 // pred_check_branch
      %3616 = sbr.rel (0) target = $region89
    $region88: #{forward_seq.4} parent=1 // pred_region
      %3617 = dma.done [#allocation5], 16
    $region89: #{forward_seq.4} parent=1 // pred_fallthru
      _
    // Predicated region
    $region90: #{forward_seq.4} parent=1 // pred_check
      _
    $region91: #{forward_seq.4} parent=1 // pred_check_branch
      %3619 = sbr.rel (0) target = $region93
    $region92: #{forward_seq.4} parent=1 // pred_region
      _
    $region93: #{forward_seq.4} parent=1 // pred_fallthru
      _
    %3620 = vsyncpa [#allocation3], 1
    %3621 = vsyncpa [#allocation5], 1

</llo_original>
